<compile_context>
chip_gen: v7x
topology: tpu7x:2x2x1
jax: 0.10.0
libtpu: 0.0.40
codegen_flags: <defaults>
</compile_context>

<pallas_src>
import numpy as np
import jax
import jax.numpy as jnp
from jax.experimental import pallas as pl
from jax.experimental.pallas import tpu as pltpu

KLD_ANNEALING = 0.1
EPOCHS = 175

WIN_SIZE = 7
WIN_SIGMA = 1.5
LEVELS = 4
DATA_RANGE = 1.0
_MS_SSIM_WEIGHTS = [0.0448, 0.2856, 0.3001, 0.2363, 0.1333]
_C1 = (0.01 * DATA_RANGE) ** 2
_C2 = (0.03 * DATA_RANGE) ** 2
_EPS = 1e-30


# --------------------- host-side constant matrices (numpy) -------------------

def _gaussian_1d(win, sigma):
    coords = np.arange(win, dtype=np.float64) - (win - 1) / 2.0
    g = np.exp(-(coords ** 2) / (2.0 * sigma ** 2))
    return (g / g.sum()).astype(np.float32)


def _band_filter_matrix(n, win, g):
    """(n, n-win+1) band matrix of the 1-D window (right-multiply form)."""
    nout = n - win + 1
    f = np.zeros((n, nout), dtype=np.float32)
    for j in range(nout):
        f[j:j + win, j] = g
    return f


def _pool_matrix(n):
    """(n//2, n) matrix averaging adjacent pairs (left-multiply form)."""
    p = np.zeros((n // 2, n), dtype=np.float32)
    for i in range(n // 2):
        p[i, 2 * i] = 0.5
        p[i, 2 * i + 1] = 0.5
    return p


def _block_diag(block, count):
    return np.kron(np.eye(count), block).astype(np.float32)


# ------------------------------- fused kernel --------------------------------

def _make_fused_kernel(bc, dims, weights, kld_weight, c1, c2):
    """dims: per-level (H, Hout, Hout_padded, W, Wout).  All sizes are static."""
    n_levels = len(dims)

    def kernel(*refs):
        x1_ref, x2_ref, mu_ref, lv_ref = refs[:4]
        pos = 4
        lvl_refs = []
        for _ in range(n_levels):
            lvl_refs.append(refs[pos:pos + 3])   # (fht_bd, fw_bd, sb)
            pos += 3
        pool_refs = []
        for _ in range(n_levels - 1):
            pool_refs.append(refs[pos:pos + 2])  # (ph, pw_bd)
            pos += 2
        out_ref = refs[pos]

        x1 = x1_ref[...]                         # (H, BC*W) f32, H-major layout
        x2 = x2_ref[...]

        # ---- MSE (reduction='sum') ----
        d = x1 - x2
        sse = jnp.sum(d * d)

        # ---- KLD ----
        mu = mu_ref[...]
        lv = lv_ref[...]
        kld = -0.5 * jnp.sum(1.0 + lv - mu * mu - jnp.exp(lv))

        # ---- MS-SSIM (all levels, in-kernel 2x2 pooling between levels) ----
        acc = jnp.ones((1, bc), jnp.float32)     # per-(b,c) product over levels
        for lvl in range(n_levels):
            h, hout, hop, w, wout = dims[lvl]
            fht_bd_ref, fw_bd_ref, sb_ref = lvl_refs[lvl]

            # stack the 5 maps along sublanes -> one matmul pair filters all of them
            m5 = jnp.concatenate([x1, x2, x1 * x1, x2 * x2, x1 * x2], axis=0)  # (5H, BC*W)
            t = jnp.dot(fht_bd_ref[...], m5,
                        preferred_element_type=jnp.float32)                   # (5*hop, BC*W)
            f = jnp.dot(t, fw_bd_ref[...],
                        preferred_element_type=jnp.float32)                   # (5*hop, BC*Wout)

            mu1 = f[0 * hop:0 * hop + hout, :]
            mu2 = f[1 * hop:1 * hop + hout, :]
            e11 = f[2 * hop:2 * hop + hout, :]
            e22 = f[3 * hop:3 * hop + hout, :]
            e12 = f[4 * hop:4 * hop + hout, :]

            mu1mu2 = mu1 * mu2
            s1 = e11 - mu1 * mu1
            s2 = e22 - mu2 * mu2
            s12 = e12 - mu1mu2

            cs_map = (2.0 * s12 + c2) / (s1 + s2 + c2)
            if lvl == n_levels - 1:
                val_map = ((2.0 * mu1mu2 + c1) / (mu1 * mu1 + mu2 * mu2 + c1)) * cs_map
            else:
                val_map = cs_map

            # per-(b,c) spatial mean via block-sum matmul, then relu + weighted power
            per_bc = jnp.sum(
                jnp.dot(val_map, sb_ref[...], preferred_element_type=jnp.float32),
                axis=0, keepdims=True)                                         # (1, BC)
            r = jnp.maximum(per_bc, 0.0)
            p = jnp.exp(weights[lvl] * jnp.log(jnp.maximum(r, _EPS)))
            acc = acc * jnp.where(r > 0.0, p, 0.0)

            if lvl < n_levels - 1:
                ph = pool_refs[lvl][0][...]
                pw_bd = pool_refs[lvl][1][...]
                x1 = jnp.dot(jnp.dot(ph, x1, preferred_element_type=jnp.float32),
                             pw_bd, preferred_element_type=jnp.float32)
                x2 = jnp.dot(jnp.dot(ph, x2, preferred_element_type=jnp.float32),
                             pw_bd, preferred_element_type=jnp.float32)

        ms_ssim = jnp.sum(acc) / bc
        out_ref[0] = sse + kld_weight * kld + 0.5 * ms_ssim

    return kernel


# --------------------------------- wrapper -----------------------------------

def custom_loss(x_recon, x, mu, logvar, epoch):
    B, C, H, W = x.shape
    BC = B * C

    # static per-level dims
    dims = []
    lh, lw = H, W
    for lvl in range(LEVELS):
        assert min(lh, lw) >= WIN_SIZE, "image too small for chosen MS-SSIM levels"
        hout, wout = lh - WIN_SIZE + 1, lw - WIN_SIZE + 1
        hop = -(-hout // 8) * 8          # pad filtered rows to a sublane multiple
        dims.append((lh, hout, hop, lw, wout))
        if lvl < LEVELS - 1:
            assert lh % 2 == 0 and lw % 2 == 0, "even spatial dims expected for downsampling"
            lh, lw = lh // 2, lw // 2

    # precomputed filter / pooling / reduction matrices
    g = _gaussian_1d(WIN_SIZE, WIN_SIGMA)
    consts = []
    for (lh, hout, hop, lw, wout) in dims:
        fht = _band_filter_matrix(lh, WIN_SIZE, g).T          # (hout, lh)
        fht_pad = np.zeros((hop, lh), np.float32)
        fht_pad[:hout] = fht
        fht_bd = _block_diag(fht_pad, 5)                      # (5*hop, 5*lh)
        fw_bd = _block_diag(_band_filter_matrix(lw, WIN_SIZE, g), BC)  # (BC*lw, BC*wout)
        sb = np.zeros((BC * wout, BC), np.float32)            # block mean matrix
        for b in range(BC):
            sb[b * wout:(b + 1) * wout, b] = 1.0 / (hout * wout)
        consts += [fht_bd, fw_bd, sb]
    for lvl in range(LEVELS - 1):
        lh, _, _, lw, _ = dims[lvl]
        ph = _pool_matrix(lh)                                 # (lh/2, lh)
        pw_bd = _block_diag(_pool_matrix(lw).T, BC)           # (BC*lw, BC*lw/2)
        consts += [ph, pw_bd]
    consts = [jnp.asarray(c) for c in consts]

    # H-major, lane-dense layout: (H, BC*W)
    def to_hmajor(img):
        return jnp.transpose(img.reshape(BC, H, W).astype(jnp.float32),
                             (1, 0, 2)).reshape(H, BC * W)

    x1h = to_hmajor(x_recon)
    x2h = to_hmajor(x)

    # matches: min(1.0, float(round(epochs / 2 + 0.75)) * KLD_annealing) (epoch arg unused)
    kld_weight = min(1.0, float(round(EPOCHS / 2 + 0.75)) * KLD_ANNEALING)
    weights = [float(v) for v in _MS_SSIM_WEIGHTS[:LEVELS]]

    kernel = _make_fused_kernel(BC, dims, weights, kld_weight, _C1, _C2)
    out = pl.pallas_call(
        kernel,
        out_shape=jax.ShapeDtypeStruct((1,), jnp.float32),
        out_specs=pl.BlockSpec(memory_space=pltpu.SMEM),
    )(x1h, x2h, mu.astype(jnp.float32), logvar.astype(jnp.float32), *consts)
    return out[0]


# --------------------------- pure-JAX reference -------------------------------

def _avg_pool2(x):
    B, C, H, W = x.shape
    return x.reshape(B, C, H // 2, 2, W // 2, 2).mean(axis=(3, 5))


def _ms_ssim_ref(img1, img2):
    g = _gaussian_1d(WIN_SIZE, WIN_SIGMA)
    weights = jnp.asarray(_MS_SSIM_WEIGHTS[:LEVELS], jnp.float32)
    x1 = img1.astype(jnp.float32)
    x2 = img2.astype(jnp.float32)
    mcs = []
    for lvl in range(LEVELS):
        H, W = x1.shape[2], x1.shape[3]
        fh = jnp.asarray(_band_filter_matrix(H, WIN_SIZE, g))
        fw = jnp.asarray(_band_filter_matrix(W, WIN_SIZE, g))

        def filt(z):
            return jnp.einsum('hi,bchw,wj->bcij', fh, z, fw)

        mu1, mu2 = filt(x1), filt(x2)
        s1 = filt(x1 * x1) - mu1 * mu1
        s2 = filt(x2 * x2) - mu2 * mu2
        s12 = filt(x1 * x2) - mu1 * mu2
        cs_map = (2.0 * s12 + _C2) / (s1 + s2 + _C2)
        ssim_map = ((2.0 * mu1 * mu2 + _C1) / (mu1 * mu1 + mu2 * mu2 + _C1)) * cs_map
        cs = jnp.mean(cs_map, axis=(-2, -1)).reshape(-1)
        ssim = jnp.mean(ssim_map, axis=(-2, -1)).reshape(-1)
        if lvl < LEVELS - 1:
            mcs.append(jax.nn.relu(cs))
            x1 = _avg_pool2(x1)
            x2 = _avg_pool2(x2)
        else:
            mcs.append(jax.nn.relu(ssim))
    stack = jnp.stack(mcs)
    return jnp.mean(jnp.prod(stack ** weights[:, None], axis=0))


def custom_loss_ref(x_recon, x, mu, logvar, epoch):
    kld_weight = min(1.0, float(round(EPOCHS / 2 + 0.75)) * KLD_ANNEALING)
    loss_mse = jnp.sum((x_recon - x) ** 2)
    loss_kld = -0.5 * jnp.sum(1.0 + logvar - mu * mu - jnp.exp(logvar))
    return loss_mse + kld_weight * loss_kld + 0.5 * _ms_ssim_ref(x_recon, x)


# ---------------------------------- main --------------------------------------

if __name__ == "__main__":
    key = jax.random.PRNGKey(0)
    k1, k2, k3, k4 = jax.random.split(key, 4)

    B, C, H, W, Z = 2, 3, 64, 64, 32
    x = jax.random.uniform(k1, (B, C, H, W), dtype=jnp.float32)
    x_recon = jnp.clip(x + 0.05 * jax.random.normal(k2, (B, C, H, W), dtype=jnp.float32), 0.0, 1.0)
    mu = 0.1 * jax.random.normal(k3, (B, Z), dtype=jnp.float32)
    logvar = 0.1 * jax.random.normal(k4, (B, Z), dtype=jnp.float32)
    epoch = 5

    loss = jax.block_until_ready(custom_loss(x_recon, x, mu, logvar, epoch))
    loss_ref = jax.block_until_ready(custom_loss_ref(x_recon, x, mu, logvar, epoch))
    np.testing.assert_allclose(np.asarray(loss), np.asarray(loss_ref), rtol=2e-3, atol=1e-2)

    print("KERNEL_OK")
</pallas_src>

<mosaic_0001>
module attributes {stable_mosaic.version = 11 : i64} {
  func.func @kernel(%arg0: memref<64x384xf32, #tpu.memory_space<vmem>>, %arg1: memref<64x384xf32, #tpu.memory_space<vmem>>, %arg2: memref<2x32xf32, #tpu.memory_space<vmem>>, %arg3: memref<2x32xf32, #tpu.memory_space<vmem>>, %arg4: memref<320x320xf32, #tpu.memory_space<vmem>>, %arg5: memref<384x348xf32, #tpu.memory_space<vmem>>, %arg6: memref<348x6xf32, #tpu.memory_space<vmem>>, %arg7: memref<160x160xf32, #tpu.memory_space<vmem>>, %arg8: memref<192x156xf32, #tpu.memory_space<vmem>>, %arg9: memref<156x6xf32, #tpu.memory_space<vmem>>, %arg10: memref<80x80xf32, #tpu.memory_space<vmem>>, %arg11: memref<96x60xf32, #tpu.memory_space<vmem>>, %arg12: memref<60x6xf32, #tpu.memory_space<vmem>>, %arg13: memref<40x40xf32, #tpu.memory_space<vmem>>, %arg14: memref<48x12xf32, #tpu.memory_space<vmem>>, %arg15: memref<12x6xf32, #tpu.memory_space<vmem>>, %arg16: memref<32x64xf32, #tpu.memory_space<vmem>>, %arg17: memref<384x192xf32, #tpu.memory_space<vmem>>, %arg18: memref<16x32xf32, #tpu.memory_space<vmem>>, %arg19: memref<192x96xf32, #tpu.memory_space<vmem>>, %arg20: memref<8x16xf32, #tpu.memory_space<vmem>>, %arg21: memref<96x48xf32, #tpu.memory_space<vmem>>, %arg22: memref<1xf32, #tpu.memory_space<smem>>) attributes {dimension_semantics = [], scalar_prefetch = 0 : i64, scratch_operands = 0 : i64, tpu.core_type = #tpu.core_type<tc>} {
    %c0 = arith.constant 0 : index
    %c0_0 = arith.constant 0 : index
    %0 = vector.load %arg0[%c0, %c0_0] : memref<64x384xf32, #tpu.memory_space<vmem>>, vector<64x384xf32>
    %c0_1 = arith.constant 0 : index
    %c0_2 = arith.constant 0 : index
    %1 = vector.load %arg1[%c0_1, %c0_2] : memref<64x384xf32, #tpu.memory_space<vmem>>, vector<64x384xf32>
    %2 = arith.subf %0, %1 : vector<64x384xf32>
    %3 = arith.mulf %2, %2 : vector<64x384xf32>
    %4 = vector.shape_cast %3 : vector<64x384xf32> to vector<1x64x384xf32>
    %cst = arith.constant dense<0.000000e+00> : vector<1xf32>
    %5 = vector.multi_reduction <add>, %4, %cst [1, 2] : vector<1x64x384xf32> to vector<1xf32>
    %6 = vector.shape_cast %5 : vector<1xf32> to vector<1x1x1xf32>
    %7 = vector.extract %6[0, 0, 0] : f32 from vector<1x1x1xf32>
    %c0_3 = arith.constant 0 : index
    %c0_4 = arith.constant 0 : index
    %8 = vector.load %arg2[%c0_3, %c0_4] : memref<2x32xf32, #tpu.memory_space<vmem>>, vector<2x32xf32>
    %c0_5 = arith.constant 0 : index
    %c0_6 = arith.constant 0 : index
    %9 = vector.load %arg3[%c0_5, %c0_6] : memref<2x32xf32, #tpu.memory_space<vmem>>, vector<2x32xf32>
    %cst_7 = arith.constant 1.000000e+00 : f32
    %10 = vector.broadcast %cst_7 : f32 to vector<2x32xf32>
    %11 = arith.addf %10, %9 : vector<2x32xf32>
    %12 = arith.mulf %8, %8 : vector<2x32xf32>
    %13 = arith.subf %11, %12 : vector<2x32xf32>
    %14 = math.exp %9 : vector<2x32xf32>
    %15 = arith.subf %13, %14 : vector<2x32xf32>
    %16 = vector.shape_cast %15 : vector<2x32xf32> to vector<1x2x32xf32>
    %cst_8 = arith.constant dense<0.000000e+00> : vector<1xf32>
    %17 = vector.multi_reduction <add>, %16, %cst_8 [1, 2] : vector<1x2x32xf32> to vector<1xf32>
    %18 = vector.shape_cast %17 : vector<1xf32> to vector<1x1x1xf32>
    %19 = vector.extract %18[0, 0, 0] : f32 from vector<1x1x1xf32>
    %cst_9 = arith.constant -5.000000e-01 : f32
    %20 = arith.mulf %cst_9, %19 : f32
    %cst_10 = arith.constant 1.000000e+00 : f32
    %21 = vector.broadcast %cst_10 : f32 to vector<1x6xf32>
    %22 = arith.mulf %0, %0 : vector<64x384xf32>
    %23 = arith.mulf %1, %1 : vector<64x384xf32>
    %24 = arith.mulf %0, %1 : vector<64x384xf32>
    %25 = tpu.concatenate %0, %1, %22, %23, %24 in 0 : vector<64x384xf32>, vector<64x384xf32>, vector<64x384xf32>, vector<64x384xf32>, vector<64x384xf32> -> vector<320x384xf32>
    %c0_11 = arith.constant 0 : index
    %c0_12 = arith.constant 0 : index
    %26 = vector.load %arg4[%c0_11, %c0_12] : memref<320x320xf32, #tpu.memory_space<vmem>>, vector<320x320xf32>
    %cst_13 = arith.constant dense<0.000000e+00> : vector<320x384xf32>
    %27 = tpu.matmul %26, %25, %cst_13 {dimension_numbers = #tpu.dot_dimension_numbers<[1], [0], [0], [1], [0, 0, 1, 1], [], []>} : vector<320x320xf32>, vector<320x384xf32>, vector<320x384xf32> -> vector<320x384xf32>
    %c0_14 = arith.constant 0 : index
    %c0_15 = arith.constant 0 : index
    %28 = vector.load %arg5[%c0_14, %c0_15] : memref<384x348xf32, #tpu.memory_space<vmem>>, vector<384x348xf32>
    %cst_16 = arith.constant dense<0.000000e+00> : vector<320x348xf32>
    %29 = tpu.matmul %27, %28, %cst_16 {dimension_numbers = #tpu.dot_dimension_numbers<[1], [0], [0], [1], [0, 0, 1, 1], [], []>} : vector<320x384xf32>, vector<384x348xf32>, vector<320x348xf32> -> vector<320x348xf32>
    %30 = vector.extract_strided_slice %29 {offsets = [0, 0], sizes = [58, 348], strides = [1, 1]} : vector<320x348xf32> to vector<58x348xf32>
    %31 = vector.extract_strided_slice %29 {offsets = [64, 0], sizes = [58, 348], strides = [1, 1]} : vector<320x348xf32> to vector<58x348xf32>
    %32 = vector.extract_strided_slice %29 {offsets = [128, 0], sizes = [58, 348], strides = [1, 1]} : vector<320x348xf32> to vector<58x348xf32>
    %33 = vector.extract_strided_slice %29 {offsets = [192, 0], sizes = [58, 348], strides = [1, 1]} : vector<320x348xf32> to vector<58x348xf32>
    %34 = vector.extract_strided_slice %29 {offsets = [256, 0], sizes = [58, 348], strides = [1, 1]} : vector<320x348xf32> to vector<58x348xf32>
    %35 = arith.mulf %30, %31 : vector<58x348xf32>
    %36 = arith.mulf %30, %30 : vector<58x348xf32>
    %37 = arith.subf %32, %36 : vector<58x348xf32>
    %38 = arith.mulf %31, %31 : vector<58x348xf32>
    %39 = arith.subf %33, %38 : vector<58x348xf32>
    %40 = arith.subf %34, %35 : vector<58x348xf32>
    %cst_17 = arith.constant 2.000000e+00 : f32
    %41 = vector.broadcast %cst_17 : f32 to vector<58x348xf32>
    %42 = arith.mulf %41, %40 : vector<58x348xf32>
    %cst_18 = arith.constant 8.99999984E-4 : f32
    %43 = vector.broadcast %cst_18 : f32 to vector<58x348xf32>
    %44 = arith.addf %42, %43 : vector<58x348xf32>
    %45 = arith.addf %37, %39 : vector<58x348xf32>
    %cst_19 = arith.constant 8.99999984E-4 : f32
    %46 = vector.broadcast %cst_19 : f32 to vector<58x348xf32>
    %47 = arith.addf %45, %46 : vector<58x348xf32>
    %48 = arith.divf %44, %47 : vector<58x348xf32>
    %c0_20 = arith.constant 0 : index
    %c0_21 = arith.constant 0 : index
    %49 = vector.load %arg6[%c0_20, %c0_21] : memref<348x6xf32, #tpu.memory_space<vmem>>, vector<348x6xf32>
    %cst_22 = arith.constant dense<0.000000e+00> : vector<58x6xf32>
    %50 = tpu.matmul %48, %49, %cst_22 {dimension_numbers = #tpu.dot_dimension_numbers<[1], [0], [0], [1], [0, 0, 1, 1], [], []>} : vector<58x348xf32>, vector<348x6xf32>, vector<58x6xf32> -> vector<58x6xf32>
    %cst_23 = arith.constant dense<0.000000e+00> : vector<6xf32>
    %51 = vector.multi_reduction <add>, %50, %cst_23 [0] : vector<58x6xf32> to vector<6xf32>
    %52 = vector.shape_cast %51 : vector<6xf32> to vector<1x6xf32>
    %cst_24 = arith.constant 0.000000e+00 : f32
    %53 = vector.broadcast %cst_24 : f32 to vector<1x6xf32>
    %54 = arith.maximumf %52, %53 : vector<1x6xf32>
    %cst_25 = arith.constant 1.000000e-30 : f32
    %55 = vector.broadcast %cst_25 : f32 to vector<1x6xf32>
    %56 = arith.maximumf %54, %55 : vector<1x6xf32>
    %57 = math.log %56 : vector<1x6xf32>
    %cst_26 = arith.constant 4.480000e-02 : f32
    %58 = vector.broadcast %cst_26 : f32 to vector<1x6xf32>
    %59 = arith.mulf %58, %57 : vector<1x6xf32>
    %60 = math.exp %59 : vector<1x6xf32>
    %cst_27 = arith.constant 0.000000e+00 : f32
    %61 = vector.broadcast %cst_27 : f32 to vector<1x6xf32>
    %62 = arith.cmpf ogt, %54, %61 : vector<1x6xf32>
    %cst_28 = arith.constant 0.000000e+00 : f32
    %63 = vector.broadcast %cst_28 : f32 to vector<1x6xf32>
    %64 = arith.select %62, %60, %63 : vector<1x6xi1>, vector<1x6xf32>
    %65 = arith.mulf %21, %64 : vector<1x6xf32>
    %c0_29 = arith.constant 0 : index
    %c0_30 = arith.constant 0 : index
    %66 = vector.load %arg16[%c0_29, %c0_30] : memref<32x64xf32, #tpu.memory_space<vmem>>, vector<32x64xf32>
    %c0_31 = arith.constant 0 : index
    %c0_32 = arith.constant 0 : index
    %67 = vector.load %arg17[%c0_31, %c0_32] : memref<384x192xf32, #tpu.memory_space<vmem>>, vector<384x192xf32>
    %cst_33 = arith.constant dense<0.000000e+00> : vector<32x384xf32>
    %68 = tpu.matmul %66, %0, %cst_33 {dimension_numbers = #tpu.dot_dimension_numbers<[1], [0], [0], [1], [0, 0, 1, 1], [], []>} : vector<32x64xf32>, vector<64x384xf32>, vector<32x384xf32> -> vector<32x384xf32>
    %cst_34 = arith.constant dense<0.000000e+00> : vector<32x192xf32>
    %69 = tpu.matmul %68, %67, %cst_34 {dimension_numbers = #tpu.dot_dimension_numbers<[1], [0], [0], [1], [0, 0, 1, 1], [], []>} : vector<32x384xf32>, vector<384x192xf32>, vector<32x192xf32> -> vector<32x192xf32>
    %cst_35 = arith.constant dense<0.000000e+00> : vector<32x384xf32>
    %70 = tpu.matmul %66, %1, %cst_35 {dimension_numbers = #tpu.dot_dimension_numbers<[1], [0], [0], [1], [0, 0, 1, 1], [], []>} : vector<32x64xf32>, vector<64x384xf32>, vector<32x384xf32> -> vector<32x384xf32>
    %cst_36 = arith.constant dense<0.000000e+00> : vector<32x192xf32>
    %71 = tpu.matmul %70, %67, %cst_36 {dimension_numbers = #tpu.dot_dimension_numbers<[1], [0], [0], [1], [0, 0, 1, 1], [], []>} : vector<32x384xf32>, vector<384x192xf32>, vector<32x192xf32> -> vector<32x192xf32>
    %72 = arith.mulf %69, %69 : vector<32x192xf32>
    %73 = arith.mulf %71, %71 : vector<32x192xf32>
    %74 = arith.mulf %69, %71 : vector<32x192xf32>
    %75 = tpu.concatenate %69, %71, %72, %73, %74 in 0 : vector<32x192xf32>, vector<32x192xf32>, vector<32x192xf32>, vector<32x192xf32>, vector<32x192xf32> -> vector<160x192xf32>
    %c0_37 = arith.constant 0 : index
    %c0_38 = arith.constant 0 : index
    %76 = vector.load %arg7[%c0_37, %c0_38] : memref<160x160xf32, #tpu.memory_space<vmem>>, vector<160x160xf32>
    %cst_39 = arith.constant dense<0.000000e+00> : vector<160x192xf32>
    %77 = tpu.matmul %76, %75, %cst_39 {dimension_numbers = #tpu.dot_dimension_numbers<[1], [0], [0], [1], [0, 0, 1, 1], [], []>} : vector<160x160xf32>, vector<160x192xf32>, vector<160x192xf32> -> vector<160x192xf32>
    %c0_40 = arith.constant 0 : index
    %c0_41 = arith.constant 0 : index
    %78 = vector.load %arg8[%c0_40, %c0_41] : memref<192x156xf32, #tpu.memory_space<vmem>>, vector<192x156xf32>
    %cst_42 = arith.constant dense<0.000000e+00> : vector<160x156xf32>
    %79 = tpu.matmul %77, %78, %cst_42 {dimension_numbers = #tpu.dot_dimension_numbers<[1], [0], [0], [1], [0, 0, 1, 1], [], []>} : vector<160x192xf32>, vector<192x156xf32>, vector<160x156xf32> -> vector<160x156xf32>
    %80 = vector.extract_strided_slice %79 {offsets = [0, 0], sizes = [26, 156], strides = [1, 1]} : vector<160x156xf32> to vector<26x156xf32>
    %81 = vector.extract_strided_slice %79 {offsets = [32, 0], sizes = [26, 156], strides = [1, 1]} : vector<160x156xf32> to vector<26x156xf32>
    %82 = vector.extract_strided_slice %79 {offsets = [64, 0], sizes = [26, 156], strides = [1, 1]} : vector<160x156xf32> to vector<26x156xf32>
    %83 = vector.extract_strided_slice %79 {offsets = [96, 0], sizes = [26, 156], strides = [1, 1]} : vector<160x156xf32> to vector<26x156xf32>
    %84 = vector.extract_strided_slice %79 {offsets = [128, 0], sizes = [26, 156], strides = [1, 1]} : vector<160x156xf32> to vector<26x156xf32>
    %85 = arith.mulf %80, %81 : vector<26x156xf32>
    %86 = arith.mulf %80, %80 : vector<26x156xf32>
    %87 = arith.subf %82, %86 : vector<26x156xf32>
    %88 = arith.mulf %81, %81 : vector<26x156xf32>
    %89 = arith.subf %83, %88 : vector<26x156xf32>
    %90 = arith.subf %84, %85 : vector<26x156xf32>
    %cst_43 = arith.constant 2.000000e+00 : f32
    %91 = vector.broadcast %cst_43 : f32 to vector<26x156xf32>
    %92 = arith.mulf %91, %90 : vector<26x156xf32>
    %cst_44 = arith.constant 8.99999984E-4 : f32
    %93 = vector.broadcast %cst_44 : f32 to vector<26x156xf32>
    %94 = arith.addf %92, %93 : vector<26x156xf32>
    %95 = arith.addf %87, %89 : vector<26x156xf32>
    %cst_45 = arith.constant 8.99999984E-4 : f32
    %96 = vector.broadcast %cst_45 : f32 to vector<26x156xf32>
    %97 = arith.addf %95, %96 : vector<26x156xf32>
    %98 = arith.divf %94, %97 : vector<26x156xf32>
    %c0_46 = arith.constant 0 : index
    %c0_47 = arith.constant 0 : index
    %99 = vector.load %arg9[%c0_46, %c0_47] : memref<156x6xf32, #tpu.memory_space<vmem>>, vector<156x6xf32>
    %cst_48 = arith.constant dense<0.000000e+00> : vector<26x6xf32>
    %100 = tpu.matmul %98, %99, %cst_48 {dimension_numbers = #tpu.dot_dimension_numbers<[1], [0], [0], [1], [0, 0, 1, 1], [], []>} : vector<26x156xf32>, vector<156x6xf32>, vector<26x6xf32> -> vector<26x6xf32>
    %cst_49 = arith.constant dense<0.000000e+00> : vector<6xf32>
    %101 = vector.multi_reduction <add>, %100, %cst_49 [0] : vector<26x6xf32> to vector<6xf32>
    %102 = vector.shape_cast %101 : vector<6xf32> to vector<1x6xf32>
    %cst_50 = arith.constant 0.000000e+00 : f32
    %103 = vector.broadcast %cst_50 : f32 to vector<1x6xf32>
    %104 = arith.maximumf %102, %103 : vector<1x6xf32>
    %cst_51 = arith.constant 1.000000e-30 : f32
    %105 = vector.broadcast %cst_51 : f32 to vector<1x6xf32>
    %106 = arith.maximumf %104, %105 : vector<1x6xf32>
    %107 = math.log %106 : vector<1x6xf32>
    %cst_52 = arith.constant 2.856000e-01 : f32
    %108 = vector.broadcast %cst_52 : f32 to vector<1x6xf32>
    %109 = arith.mulf %108, %107 : vector<1x6xf32>
    %110 = math.exp %109 : vector<1x6xf32>
    %cst_53 = arith.constant 0.000000e+00 : f32
    %111 = vector.broadcast %cst_53 : f32 to vector<1x6xf32>
    %112 = arith.cmpf ogt, %104, %111 : vector<1x6xf32>
    %cst_54 = arith.constant 0.000000e+00 : f32
    %113 = vector.broadcast %cst_54 : f32 to vector<1x6xf32>
    %114 = arith.select %112, %110, %113 : vector<1x6xi1>, vector<1x6xf32>
    %115 = arith.mulf %65, %114 : vector<1x6xf32>
    %c0_55 = arith.constant 0 : index
    %c0_56 = arith.constant 0 : index
    %116 = vector.load %arg18[%c0_55, %c0_56] : memref<16x32xf32, #tpu.memory_space<vmem>>, vector<16x32xf32>
    %c0_57 = arith.constant 0 : index
    %c0_58 = arith.constant 0 : index
    %117 = vector.load %arg19[%c0_57, %c0_58] : memref<192x96xf32, #tpu.memory_space<vmem>>, vector<192x96xf32>
    %cst_59 = arith.constant dense<0.000000e+00> : vector<16x192xf32>
    %118 = tpu.matmul %116, %69, %cst_59 {dimension_numbers = #tpu.dot_dimension_numbers<[1], [0], [0], [1], [0, 0, 1, 1], [], []>} : vector<16x32xf32>, vector<32x192xf32>, vector<16x192xf32> -> vector<16x192xf32>
    %cst_60 = arith.constant dense<0.000000e+00> : vector<16x96xf32>
    %119 = tpu.matmul %118, %117, %cst_60 {dimension_numbers = #tpu.dot_dimension_numbers<[1], [0], [0], [1], [0, 0, 1, 1], [], []>} : vector<16x192xf32>, vector<192x96xf32>, vector<16x96xf32> -> vector<16x96xf32>
    %cst_61 = arith.constant dense<0.000000e+00> : vector<16x192xf32>
    %120 = tpu.matmul %116, %71, %cst_61 {dimension_numbers = #tpu.dot_dimension_numbers<[1], [0], [0], [1], [0, 0, 1, 1], [], []>} : vector<16x32xf32>, vector<32x192xf32>, vector<16x192xf32> -> vector<16x192xf32>
    %cst_62 = arith.constant dense<0.000000e+00> : vector<16x96xf32>
    %121 = tpu.matmul %120, %117, %cst_62 {dimension_numbers = #tpu.dot_dimension_numbers<[1], [0], [0], [1], [0, 0, 1, 1], [], []>} : vector<16x192xf32>, vector<192x96xf32>, vector<16x96xf32> -> vector<16x96xf32>
    %122 = arith.mulf %119, %119 : vector<16x96xf32>
    %123 = arith.mulf %121, %121 : vector<16x96xf32>
    %124 = arith.mulf %119, %121 : vector<16x96xf32>
    %125 = tpu.concatenate %119, %121, %122, %123, %124 in 0 : vector<16x96xf32>, vector<16x96xf32>, vector<16x96xf32>, vector<16x96xf32>, vector<16x96xf32> -> vector<80x96xf32>
    %c0_63 = arith.constant 0 : index
    %c0_64 = arith.constant 0 : index
    %126 = vector.load %arg10[%c0_63, %c0_64] : memref<80x80xf32, #tpu.memory_space<vmem>>, vector<80x80xf32>
    %cst_65 = arith.constant dense<0.000000e+00> : vector<80x96xf32>
    %127 = tpu.matmul %126, %125, %cst_65 {dimension_numbers = #tpu.dot_dimension_numbers<[1], [0], [0], [1], [0, 0, 1, 1], [], []>} : vector<80x80xf32>, vector<80x96xf32>, vector<80x96xf32> -> vector<80x96xf32>
    %c0_66 = arith.constant 0 : index
    %c0_67 = arith.constant 0 : index
    %128 = vector.load %arg11[%c0_66, %c0_67] : memref<96x60xf32, #tpu.memory_space<vmem>>, vector<96x60xf32>
    %cst_68 = arith.constant dense<0.000000e+00> : vector<80x60xf32>
    %129 = tpu.matmul %127, %128, %cst_68 {dimension_numbers = #tpu.dot_dimension_numbers<[1], [0], [0], [1], [0, 0, 1, 1], [], []>} : vector<80x96xf32>, vector<96x60xf32>, vector<80x60xf32> -> vector<80x60xf32>
    %130 = vector.extract_strided_slice %129 {offsets = [0, 0], sizes = [10, 60], strides = [1, 1]} : vector<80x60xf32> to vector<10x60xf32>
    %131 = vector.extract_strided_slice %129 {offsets = [16, 0], sizes = [10, 60], strides = [1, 1]} : vector<80x60xf32> to vector<10x60xf32>
    %132 = vector.extract_strided_slice %129 {offsets = [32, 0], sizes = [10, 60], strides = [1, 1]} : vector<80x60xf32> to vector<10x60xf32>
    %133 = vector.extract_strided_slice %129 {offsets = [48, 0], sizes = [10, 60], strides = [1, 1]} : vector<80x60xf32> to vector<10x60xf32>
    %134 = vector.extract_strided_slice %129 {offsets = [64, 0], sizes = [10, 60], strides = [1, 1]} : vector<80x60xf32> to vector<10x60xf32>
    %135 = arith.mulf %130, %131 : vector<10x60xf32>
    %136 = arith.mulf %130, %130 : vector<10x60xf32>
    %137 = arith.subf %132, %136 : vector<10x60xf32>
    %138 = arith.mulf %131, %131 : vector<10x60xf32>
    %139 = arith.subf %133, %138 : vector<10x60xf32>
    %140 = arith.subf %134, %135 : vector<10x60xf32>
    %cst_69 = arith.constant 2.000000e+00 : f32
    %141 = vector.broadcast %cst_69 : f32 to vector<10x60xf32>
    %142 = arith.mulf %141, %140 : vector<10x60xf32>
    %cst_70 = arith.constant 8.99999984E-4 : f32
    %143 = vector.broadcast %cst_70 : f32 to vector<10x60xf32>
    %144 = arith.addf %142, %143 : vector<10x60xf32>
    %145 = arith.addf %137, %139 : vector<10x60xf32>
    %cst_71 = arith.constant 8.99999984E-4 : f32
    %146 = vector.broadcast %cst_71 : f32 to vector<10x60xf32>
    %147 = arith.addf %145, %146 : vector<10x60xf32>
    %148 = arith.divf %144, %147 : vector<10x60xf32>
    %c0_72 = arith.constant 0 : index
    %c0_73 = arith.constant 0 : index
    %149 = vector.load %arg12[%c0_72, %c0_73] : memref<60x6xf32, #tpu.memory_space<vmem>>, vector<60x6xf32>
    %cst_74 = arith.constant dense<0.000000e+00> : vector<10x6xf32>
    %150 = tpu.matmul %148, %149, %cst_74 {dimension_numbers = #tpu.dot_dimension_numbers<[1], [0], [0], [1], [0, 0, 1, 1], [], []>} : vector<10x60xf32>, vector<60x6xf32>, vector<10x6xf32> -> vector<10x6xf32>
    %cst_75 = arith.constant dense<0.000000e+00> : vector<6xf32>
    %151 = vector.multi_reduction <add>, %150, %cst_75 [0] : vector<10x6xf32> to vector<6xf32>
    %152 = vector.shape_cast %151 : vector<6xf32> to vector<1x6xf32>
    %cst_76 = arith.constant 0.000000e+00 : f32
    %153 = vector.broadcast %cst_76 : f32 to vector<1x6xf32>
    %154 = arith.maximumf %152, %153 : vector<1x6xf32>
    %cst_77 = arith.constant 1.000000e-30 : f32
    %155 = vector.broadcast %cst_77 : f32 to vector<1x6xf32>
    %156 = arith.maximumf %154, %155 : vector<1x6xf32>
    %157 = math.log %156 : vector<1x6xf32>
    %cst_78 = arith.constant 3.001000e-01 : f32
    %158 = vector.broadcast %cst_78 : f32 to vector<1x6xf32>
    %159 = arith.mulf %158, %157 : vector<1x6xf32>
    %160 = math.exp %159 : vector<1x6xf32>
    %cst_79 = arith.constant 0.000000e+00 : f32
    %161 = vector.broadcast %cst_79 : f32 to vector<1x6xf32>
    %162 = arith.cmpf ogt, %154, %161 : vector<1x6xf32>
    %cst_80 = arith.constant 0.000000e+00 : f32
    %163 = vector.broadcast %cst_80 : f32 to vector<1x6xf32>
    %164 = arith.select %162, %160, %163 : vector<1x6xi1>, vector<1x6xf32>
    %165 = arith.mulf %115, %164 : vector<1x6xf32>
    %c0_81 = arith.constant 0 : index
    %c0_82 = arith.constant 0 : index
    %166 = vector.load %arg20[%c0_81, %c0_82] : memref<8x16xf32, #tpu.memory_space<vmem>>, vector<8x16xf32>
    %c0_83 = arith.constant 0 : index
    %c0_84 = arith.constant 0 : index
    %167 = vector.load %arg21[%c0_83, %c0_84] : memref<96x48xf32, #tpu.memory_space<vmem>>, vector<96x48xf32>
    %cst_85 = arith.constant dense<0.000000e+00> : vector<8x96xf32>
    %168 = tpu.matmul %166, %119, %cst_85 {dimension_numbers = #tpu.dot_dimension_numbers<[1], [0], [0], [1], [0, 0, 1, 1], [], []>} : vector<8x16xf32>, vector<16x96xf32>, vector<8x96xf32> -> vector<8x96xf32>
    %cst_86 = arith.constant dense<0.000000e+00> : vector<8x48xf32>
    %169 = tpu.matmul %168, %167, %cst_86 {dimension_numbers = #tpu.dot_dimension_numbers<[1], [0], [0], [1], [0, 0, 1, 1], [], []>} : vector<8x96xf32>, vector<96x48xf32>, vector<8x48xf32> -> vector<8x48xf32>
    %cst_87 = arith.constant dense<0.000000e+00> : vector<8x96xf32>
    %170 = tpu.matmul %166, %121, %cst_87 {dimension_numbers = #tpu.dot_dimension_numbers<[1], [0], [0], [1], [0, 0, 1, 1], [], []>} : vector<8x16xf32>, vector<16x96xf32>, vector<8x96xf32> -> vector<8x96xf32>
    %cst_88 = arith.constant dense<0.000000e+00> : vector<8x48xf32>
    %171 = tpu.matmul %170, %167, %cst_88 {dimension_numbers = #tpu.dot_dimension_numbers<[1], [0], [0], [1], [0, 0, 1, 1], [], []>} : vector<8x96xf32>, vector<96x48xf32>, vector<8x48xf32> -> vector<8x48xf32>
    %172 = arith.mulf %169, %169 : vector<8x48xf32>
    %173 = arith.mulf %171, %171 : vector<8x48xf32>
    %174 = arith.mulf %169, %171 : vector<8x48xf32>
    %175 = tpu.concatenate %169, %171, %172, %173, %174 in 0 : vector<8x48xf32>, vector<8x48xf32>, vector<8x48xf32>, vector<8x48xf32>, vector<8x48xf32> -> vector<40x48xf32>
    %c0_89 = arith.constant 0 : index
    %c0_90 = arith.constant 0 : index
    %176 = vector.load %arg13[%c0_89, %c0_90] : memref<40x40xf32, #tpu.memory_space<vmem>>, vector<40x40xf32>
    %cst_91 = arith.constant dense<0.000000e+00> : vector<40x48xf32>
    %177 = tpu.matmul %176, %175, %cst_91 {dimension_numbers = #tpu.dot_dimension_numbers<[1], [0], [0], [1], [0, 0, 1, 1], [], []>} : vector<40x40xf32>, vector<40x48xf32>, vector<40x48xf32> -> vector<40x48xf32>
    %c0_92 = arith.constant 0 : index
    %c0_93 = arith.constant 0 : index
    %178 = vector.load %arg14[%c0_92, %c0_93] : memref<48x12xf32, #tpu.memory_space<vmem>>, vector<48x12xf32>
    %cst_94 = arith.constant dense<0.000000e+00> : vector<40x12xf32>
    %179 = tpu.matmul %177, %178, %cst_94 {dimension_numbers = #tpu.dot_dimension_numbers<[1], [0], [0], [1], [0, 0, 1, 1], [], []>} : vector<40x48xf32>, vector<48x12xf32>, vector<40x12xf32> -> vector<40x12xf32>
    %180 = vector.extract_strided_slice %179 {offsets = [0, 0], sizes = [2, 12], strides = [1, 1]} : vector<40x12xf32> to vector<2x12xf32>
    %181 = vector.extract_strided_slice %179 {offsets = [8, 0], sizes = [2, 12], strides = [1, 1]} : vector<40x12xf32> to vector<2x12xf32>
    %182 = vector.extract_strided_slice %179 {offsets = [16, 0], sizes = [2, 12], strides = [1, 1]} : vector<40x12xf32> to vector<2x12xf32>
    %183 = vector.extract_strided_slice %179 {offsets = [24, 0], sizes = [2, 12], strides = [1, 1]} : vector<40x12xf32> to vector<2x12xf32>
    %184 = vector.extract_strided_slice %179 {offsets = [32, 0], sizes = [2, 12], strides = [1, 1]} : vector<40x12xf32> to vector<2x12xf32>
    %185 = arith.mulf %180, %181 : vector<2x12xf32>
    %186 = arith.mulf %180, %180 : vector<2x12xf32>
    %187 = arith.subf %182, %186 : vector<2x12xf32>
    %188 = arith.mulf %181, %181 : vector<2x12xf32>
    %189 = arith.subf %183, %188 : vector<2x12xf32>
    %190 = arith.subf %184, %185 : vector<2x12xf32>
    %cst_95 = arith.constant 2.000000e+00 : f32
    %191 = vector.broadcast %cst_95 : f32 to vector<2x12xf32>
    %192 = arith.mulf %191, %190 : vector<2x12xf32>
    %cst_96 = arith.constant 8.99999984E-4 : f32
    %193 = vector.broadcast %cst_96 : f32 to vector<2x12xf32>
    %194 = arith.addf %192, %193 : vector<2x12xf32>
    %195 = arith.addf %187, %189 : vector<2x12xf32>
    %cst_97 = arith.constant 8.99999984E-4 : f32
    %196 = vector.broadcast %cst_97 : f32 to vector<2x12xf32>
    %197 = arith.addf %195, %196 : vector<2x12xf32>
    %198 = arith.divf %194, %197 : vector<2x12xf32>
    %cst_98 = arith.constant 2.000000e+00 : f32
    %199 = vector.broadcast %cst_98 : f32 to vector<2x12xf32>
    %200 = arith.mulf %199, %185 : vector<2x12xf32>
    %cst_99 = arith.constant 9.99999974E-5 : f32
    %201 = vector.broadcast %cst_99 : f32 to vector<2x12xf32>
    %202 = arith.addf %200, %201 : vector<2x12xf32>
    %203 = arith.mulf %180, %180 : vector<2x12xf32>
    %204 = arith.mulf %181, %181 : vector<2x12xf32>
    %205 = arith.addf %203, %204 : vector<2x12xf32>
    %cst_100 = arith.constant 9.99999974E-5 : f32
    %206 = vector.broadcast %cst_100 : f32 to vector<2x12xf32>
    %207 = arith.addf %205, %206 : vector<2x12xf32>
    %208 = arith.divf %202, %207 : vector<2x12xf32>
    %209 = arith.mulf %208, %198 : vector<2x12xf32>
    %c0_101 = arith.constant 0 : index
    %c0_102 = arith.constant 0 : index
    %210 = vector.load %arg15[%c0_101, %c0_102] : memref<12x6xf32, #tpu.memory_space<vmem>>, vector<12x6xf32>
    %cst_103 = arith.constant dense<0.000000e+00> : vector<2x6xf32>
    %211 = tpu.matmul %209, %210, %cst_103 {dimension_numbers = #tpu.dot_dimension_numbers<[1], [0], [0], [1], [0, 0, 1, 1], [], []>} : vector<2x12xf32>, vector<12x6xf32>, vector<2x6xf32> -> vector<2x6xf32>
    %cst_104 = arith.constant dense<0.000000e+00> : vector<6xf32>
    %212 = vector.multi_reduction <add>, %211, %cst_104 [0] : vector<2x6xf32> to vector<6xf32>
    %213 = vector.shape_cast %212 : vector<6xf32> to vector<1x6xf32>
    %cst_105 = arith.constant 0.000000e+00 : f32
    %214 = vector.broadcast %cst_105 : f32 to vector<1x6xf32>
    %215 = arith.maximumf %213, %214 : vector<1x6xf32>
    %cst_106 = arith.constant 1.000000e-30 : f32
    %216 = vector.broadcast %cst_106 : f32 to vector<1x6xf32>
    %217 = arith.maximumf %215, %216 : vector<1x6xf32>
    %218 = math.log %217 : vector<1x6xf32>
    %cst_107 = arith.constant 2.363000e-01 : f32
    %219 = vector.broadcast %cst_107 : f32 to vector<1x6xf32>
    %220 = arith.mulf %219, %218 : vector<1x6xf32>
    %221 = math.exp %220 : vector<1x6xf32>
    %cst_108 = arith.constant 0.000000e+00 : f32
    %222 = vector.broadcast %cst_108 : f32 to vector<1x6xf32>
    %223 = arith.cmpf ogt, %215, %222 : vector<1x6xf32>
    %cst_109 = arith.constant 0.000000e+00 : f32
    %224 = vector.broadcast %cst_109 : f32 to vector<1x6xf32>
    %225 = arith.select %223, %221, %224 : vector<1x6xi1>, vector<1x6xf32>
    %226 = arith.mulf %165, %225 : vector<1x6xf32>
    %227 = vector.shape_cast %226 : vector<1x6xf32> to vector<1x1x6xf32>
    %cst_110 = arith.constant dense<0.000000e+00> : vector<1xf32>
    %228 = vector.multi_reduction <add>, %227, %cst_110 [1, 2] : vector<1x1x6xf32> to vector<1xf32>
    %229 = vector.shape_cast %228 : vector<1xf32> to vector<1x1x1xf32>
    %230 = vector.extract %229[0, 0, 0] : f32 from vector<1x1x1xf32>
    %cst_111 = arith.constant 6.000000e+00 : f32
    %231 = arith.divf %230, %cst_111 : f32
    %cst_112 = arith.constant 1.000000e+00 : f32
    %232 = arith.mulf %cst_112, %20 : f32
    %233 = arith.addf %7, %232 : f32
    %cst_113 = arith.constant 5.000000e-01 : f32
    %234 = arith.mulf %cst_113, %231 : f32
    %235 = arith.addf %233, %234 : f32
    %c0_114 = arith.constant 0 : index
    %236 = memref.load %arg22[%c0_114] : memref<1xf32, #tpu.memory_space<smem>>
    memref.store %235, %arg22[%c0_114] : memref<1xf32, #tpu.memory_space<smem>>
    return
  }
}

</mosaic_0001>

<llo_original>
// kernel: tpu_custom_call.1
$region0: #{tpu_custom_call.1}
  #allocation0 [shape = 'u32[]', space=smem, size = 0x4, offset = 0x4, fixed_abs, tag = 'smem constant byte address 0x4 - core index']
  #allocation1 [shape = 'u32[144,128]{1,0:T(1,128)}', space=vmem, size = 0x12000, scoped, tag = 'internal scratch']
  %s0 = inlined_call_operand.vmem [shape: f32[64,384], index: 0, kind: input, shape index: {}]
  %s1 = inlined_call_operand.vmem [shape: f32[64,384], index: 1, kind: input, shape index: {}]
  %s2 = inlined_call_operand.vmem [shape: f32[2,32], index: 2, kind: input, shape index: {}]
  %s3 = inlined_call_operand.vmem [shape: f32[2,32], index: 3, kind: input, shape index: {}]
  %s4 = inlined_call_operand.vmem [shape: f32[320,320], index: 4, kind: input, shape index: {}]
  %s5 = inlined_call_operand.vmem [shape: f32[384,348], index: 5, kind: input, shape index: {}]
  %s6 = inlined_call_operand.vmem [shape: f32[348,6], index: 6, kind: input, shape index: {}]
  %s7 = inlined_call_operand.vmem [shape: f32[160,160], index: 7, kind: input, shape index: {}]
  %s8 = inlined_call_operand.vmem [shape: f32[192,156], index: 8, kind: input, shape index: {}]
  %s9 = inlined_call_operand.vmem [shape: f32[156,6], index: 9, kind: input, shape index: {}]
  %s10 = inlined_call_operand.vmem [shape: f32[80,80], index: 10, kind: input, shape index: {}]
  %s11 = inlined_call_operand.vmem [shape: f32[96,60], index: 11, kind: input, shape index: {}]
  %s12 = inlined_call_operand.vmem [shape: f32[60,6], index: 12, kind: input, shape index: {}]
  %s13 = inlined_call_operand.vmem [shape: f32[40,40], index: 13, kind: input, shape index: {}]
  %s14 = inlined_call_operand.vmem [shape: f32[48,12], index: 14, kind: input, shape index: {}]
  %s15 = inlined_call_operand.vmem [shape: f32[12,6], index: 15, kind: input, shape index: {}]
  %s16 = inlined_call_operand.vmem [shape: f32[32,64], index: 16, kind: input, shape index: {}]
  %s17 = inlined_call_operand.vmem [shape: f32[384,192], index: 17, kind: input, shape index: {}]
  %s18 = inlined_call_operand.vmem [shape: f32[16,32], index: 18, kind: input, shape index: {}]
  %s19 = inlined_call_operand.vmem [shape: f32[192,96], index: 19, kind: input, shape index: {}]
  %s20 = inlined_call_operand.vmem [shape: f32[8,16], index: 20, kind: input, shape index: {}]
  %s21 = inlined_call_operand.vmem [shape: f32[96,48], index: 21, kind: input, shape index: {}]
  %s22 = inlined_call_operand.hbm [shape: f32[1], index: 22, kind: output, shape index: {}]
  %s23 = sld [smem:[#allocation0]]
  $region98: #{tpu_custom_call.1} parent=0
    _
  %s25 = ssub.s32 1, %s23
  %s26 = scalar_select 0, %s25, %s23
  $region1: #{tpu_custom_call.1} parent=0
    #allocation2 [shape = 'u8[512]{0}', space=smem, size = 0x200, scoped, tag = 'output window, operand 0, single buffered']
    #allocation3 [shape = 's32[1]{0}', space=sflag, size = 0x4, scoped, tag = 'scoped memory for tpu_custom_call.1']
    %27 = vsyncpa [#allocation3], 0
    // Predicated region
    $region2: #{tpu_custom_call.1} parent=1 // pred_check
      _
    $region3: #{tpu_custom_call.1} parent=1 // pred_check_branch
      %29 = sbr.rel (0) target = $region5
    $region4: #{tpu_custom_call.1} parent=1 // pred_region
      _
    $region5: #{tpu_custom_call.1} parent=1 // pred_fallthru
      _
    // Predicated region
    $region6: #{tpu_custom_call.1} parent=1 // pred_check
      _
    $region7: #{tpu_custom_call.1} parent=1 // pred_check_branch
      %31 = sbr.rel (0) target = $region9
    $region8: #{tpu_custom_call.1} parent=1 // pred_region
      _
    $region9: #{tpu_custom_call.1} parent=1 // pred_fallthru
      _
    // Predicated region
    $region10: #{tpu_custom_call.1} parent=1 // pred_check
      _
    $region11: #{tpu_custom_call.1} parent=1 // pred_check_branch
      %33 = sbr.rel (0) target = $region13
    $region12: #{tpu_custom_call.1} parent=1 // pred_region
      _
    $region13: #{tpu_custom_call.1} parent=1 // pred_fallthru
      _
    // Predicated region
    $region14: #{tpu_custom_call.1} parent=1 // pred_check
      _
    $region15: #{tpu_custom_call.1} parent=1 // pred_check_branch
      %35 = sbr.rel (0) target = $region17
    $region16: #{tpu_custom_call.1} parent=1 // pred_region
      _
    $region17: #{tpu_custom_call.1} parent=1 // pred_fallthru
      _
    // Predicated region
    $region18: #{tpu_custom_call.1} parent=1 // pred_check
      _
    $region19: #{tpu_custom_call.1} parent=1 // pred_check_branch
      %37 = sbr.rel (0) target = $region21
    $region20: #{tpu_custom_call.1} parent=1 // pred_region
      _
    $region21: #{tpu_custom_call.1} parent=1 // pred_fallthru
      _
    // Predicated region
    $region22: #{tpu_custom_call.1} parent=1 // pred_check
      _
    $region23: #{tpu_custom_call.1} parent=1 // pred_check_branch
      %39 = sbr.rel (0) target = $region25
    $region24: #{tpu_custom_call.1} parent=1 // pred_region
      _
    $region25: #{tpu_custom_call.1} parent=1 // pred_fallthru
      _
    // Predicated region
    $region26: #{tpu_custom_call.1} parent=1 // pred_check
      _
    $region27: #{tpu_custom_call.1} parent=1 // pred_check_branch
      %41 = sbr.rel (0) target = $region29
    $region28: #{tpu_custom_call.1} parent=1 // pred_region
      _
    $region29: #{tpu_custom_call.1} parent=1 // pred_fallthru
      _
    // Predicated region
    $region30: #{tpu_custom_call.1} parent=1 // pred_check
      _
    $region31: #{tpu_custom_call.1} parent=1 // pred_check_branch
      %43 = sbr.rel (0) target = $region33
    $region32: #{tpu_custom_call.1} parent=1 // pred_region
      _
    $region33: #{tpu_custom_call.1} parent=1 // pred_fallthru
      _
    // Predicated region
    $region34: #{tpu_custom_call.1} parent=1 // pred_check
      _
    $region35: #{tpu_custom_call.1} parent=1 // pred_check_branch
      %45 = sbr.rel (0) target = $region37
    $region36: #{tpu_custom_call.1} parent=1 // pred_region
      _
    $region37: #{tpu_custom_call.1} parent=1 // pred_fallthru
      _
    // Predicated region
    $region38: #{tpu_custom_call.1} parent=1 // pred_check
      _
    $region39: #{tpu_custom_call.1} parent=1 // pred_check_branch
      %47 = sbr.rel (0) target = $region41
    $region40: #{tpu_custom_call.1} parent=1 // pred_region
      _
    $region41: #{tpu_custom_call.1} parent=1 // pred_fallthru
      _
    // Predicated region
    $region42: #{tpu_custom_call.1} parent=1 // pred_check
      _
    $region43: #{tpu_custom_call.1} parent=1 // pred_check_branch
      %49 = sbr.rel (0) target = $region45
    $region44: #{tpu_custom_call.1} parent=1 // pred_region
      _
    $region45: #{tpu_custom_call.1} parent=1 // pred_fallthru
      _
    // Predicated region
    $region46: #{tpu_custom_call.1} parent=1 // pred_check
      _
    $region47: #{tpu_custom_call.1} parent=1 // pred_check_branch
      %51 = sbr.rel (0) target = $region49
    $region48: #{tpu_custom_call.1} parent=1 // pred_region
      _
    $region49: #{tpu_custom_call.1} parent=1 // pred_fallthru
      _
    // Predicated region
    $region50: #{tpu_custom_call.1} parent=1 // pred_check
      _
    $region51: #{tpu_custom_call.1} parent=1 // pred_check_branch
      %53 = sbr.rel (0) target = $region53
    $region52: #{tpu_custom_call.1} parent=1 // pred_region
      _
    $region53: #{tpu_custom_call.1} parent=1 // pred_fallthru
      _
    // Predicated region
    $region54: #{tpu_custom_call.1} parent=1 // pred_check
      _
    $region55: #{tpu_custom_call.1} parent=1 // pred_check_branch
      %55 = sbr.rel (0) target = $region57
    $region56: #{tpu_custom_call.1} parent=1 // pred_region
      _
    $region57: #{tpu_custom_call.1} parent=1 // pred_fallthru
      _
    // Predicated region
    $region58: #{tpu_custom_call.1} parent=1 // pred_check
      _
    $region59: #{tpu_custom_call.1} parent=1 // pred_check_branch
      %57 = sbr.rel (0) target = $region61
    $region60: #{tpu_custom_call.1} parent=1 // pred_region
      _
    $region61: #{tpu_custom_call.1} parent=1 // pred_fallthru
      _
    // Predicated region
    $region62: #{tpu_custom_call.1} parent=1 // pred_check
      _
    $region63: #{tpu_custom_call.1} parent=1 // pred_check_branch
      %59 = sbr.rel (0) target = $region65
    $region64: #{tpu_custom_call.1} parent=1 // pred_region
      _
    $region65: #{tpu_custom_call.1} parent=1 // pred_fallthru
      _
    // Predicated region
    $region66: #{tpu_custom_call.1} parent=1 // pred_check
      _
    $region67: #{tpu_custom_call.1} parent=1 // pred_check_branch
      %61 = sbr.rel (0) target = $region69
    $region68: #{tpu_custom_call.1} parent=1 // pred_region
      _
    $region69: #{tpu_custom_call.1} parent=1 // pred_fallthru
      _
    // Predicated region
    $region70: #{tpu_custom_call.1} parent=1 // pred_check
      _
    $region71: #{tpu_custom_call.1} parent=1 // pred_check_branch
      %63 = sbr.rel (0) target = $region73
    $region72: #{tpu_custom_call.1} parent=1 // pred_region
      _
    $region73: #{tpu_custom_call.1} parent=1 // pred_fallthru
      _
    // Predicated region
    $region74: #{tpu_custom_call.1} parent=1 // pred_check
      _
    $region75: #{tpu_custom_call.1} parent=1 // pred_check_branch
      %65 = sbr.rel (0) target = $region77
    $region76: #{tpu_custom_call.1} parent=1 // pred_region
      _
    $region77: #{tpu_custom_call.1} parent=1 // pred_fallthru
      _
    // Predicated region
    $region78: #{tpu_custom_call.1} parent=1 // pred_check
      _
    $region79: #{tpu_custom_call.1} parent=1 // pred_check_branch
      %67 = sbr.rel (0) target = $region81
    $region80: #{tpu_custom_call.1} parent=1 // pred_region
      _
    $region81: #{tpu_custom_call.1} parent=1 // pred_fallthru
      _
    // Predicated region
    $region82: #{tpu_custom_call.1} parent=1 // pred_check
      _
    $region83: #{tpu_custom_call.1} parent=1 // pred_check_branch
      %69 = sbr.rel (0) target = $region85
    $region84: #{tpu_custom_call.1} parent=1 // pred_region
      _
    $region85: #{tpu_custom_call.1} parent=1 // pred_fallthru
      _
    // Predicated region
    $region86: #{tpu_custom_call.1} parent=1 // pred_check
      _
    $region87: #{tpu_custom_call.1} parent=1 // pred_check_branch
      %71 = sbr.rel (0) target = $region89
    $region88: #{tpu_custom_call.1} parent=1 // pred_region
      _
    $region89: #{tpu_custom_call.1} parent=1 // pred_fallthru
      _
    %v72 = vld [vmem:[%s0] sm:$0xff]
    %v73 = vld [vmem:[%s0 + $0x8] sm:$0xff]
    %v74 = vld [vmem:[%s0 + $0x10] sm:$0xff]
    %v75 = vld [vmem:[%s0 + $0x18] sm:$0xff]
    %v76 = vld [vmem:[%s0 + $0x20] sm:$0xff]
    %v77 = vld [vmem:[%s0 + $0x28] sm:$0xff]
    %v78 = vld [vmem:[%s0 + $0x30] sm:$0xff]
    %v79 = vld [vmem:[%s0 + $0x38] sm:$0xff]
    %v80 = vld [vmem:[%s0 + $0x40] sm:$0xff]
    %v81 = vld [vmem:[%s0 + $0x48] sm:$0xff]
    %v82 = vld [vmem:[%s0 + $0x50] sm:$0xff]
    %v83 = vld [vmem:[%s0 + $0x58] sm:$0xff]
    %v84 = vld [vmem:[%s0 + $0x60] sm:$0xff]
    %v85 = vld [vmem:[%s0 + $0x68] sm:$0xff]
    %v86 = vld [vmem:[%s0 + $0x70] sm:$0xff]
    %v87 = vld [vmem:[%s0 + $0x78] sm:$0xff]
    %v88 = vld [vmem:[%s0 + $0x80] sm:$0xff]
    %v89 = vld [vmem:[%s0 + $0x88] sm:$0xff]
    %v90 = vld [vmem:[%s0 + $0x90] sm:$0xff]
    %v91 = vld [vmem:[%s0 + $0x98] sm:$0xff]
    %v92 = vld [vmem:[%s0 + $0xa0] sm:$0xff]
    %v93 = vld [vmem:[%s0 + $0xa8] sm:$0xff]
    %v94 = vld [vmem:[%s0 + $0xb0] sm:$0xff]
    %v95 = vld [vmem:[%s0 + $0xb8] sm:$0xff]
    %v96 = vld [vmem:[%s1] sm:$0xff]
    %v97 = vld [vmem:[%s1 + $0x8] sm:$0xff]
    %v98 = vld [vmem:[%s1 + $0x10] sm:$0xff]
    %v99 = vld [vmem:[%s1 + $0x18] sm:$0xff]
    %v100 = vld [vmem:[%s1 + $0x20] sm:$0xff]
    %v101 = vld [vmem:[%s1 + $0x28] sm:$0xff]
    %v102 = vld [vmem:[%s1 + $0x30] sm:$0xff]
    %v103 = vld [vmem:[%s1 + $0x38] sm:$0xff]
    %v104 = vld [vmem:[%s1 + $0x40] sm:$0xff]
    %v105 = vld [vmem:[%s1 + $0x48] sm:$0xff]
    %v106 = vld [vmem:[%s1 + $0x50] sm:$0xff]
    %v107 = vld [vmem:[%s1 + $0x58] sm:$0xff]
    %v108 = vld [vmem:[%s1 + $0x60] sm:$0xff]
    %v109 = vld [vmem:[%s1 + $0x68] sm:$0xff]
    %v110 = vld [vmem:[%s1 + $0x70] sm:$0xff]
    %v111 = vld [vmem:[%s1 + $0x78] sm:$0xff]
    %v112 = vld [vmem:[%s1 + $0x80] sm:$0xff]
    %v113 = vld [vmem:[%s1 + $0x88] sm:$0xff]
    %v114 = vld [vmem:[%s1 + $0x90] sm:$0xff]
    %v115 = vld [vmem:[%s1 + $0x98] sm:$0xff]
    %v116 = vld [vmem:[%s1 + $0xa0] sm:$0xff]
    %v117 = vld [vmem:[%s1 + $0xa8] sm:$0xff]
    %v118 = vld [vmem:[%s1 + $0xb0] sm:$0xff]
    %v119 = vld [vmem:[%s1 + $0xb8] sm:$0xff]
    %v120 = vsub.f32 %v72, %v96
    %v121 = vsub.f32 %v73, %v97
    %v122 = vsub.f32 %v74, %v98
    %v123 = vsub.f32 %v75, %v99
    %v124 = vsub.f32 %v76, %v100
    %v125 = vsub.f32 %v77, %v101
    %v126 = vsub.f32 %v78, %v102
    %v127 = vsub.f32 %v79, %v103
    %v128 = vsub.f32 %v80, %v104
    %v129 = vsub.f32 %v81, %v105
    %v130 = vsub.f32 %v82, %v106
    %v131 = vsub.f32 %v83, %v107
    %v132 = vsub.f32 %v84, %v108
    %v133 = vsub.f32 %v85, %v109
    %v134 = vsub.f32 %v86, %v110
    %v135 = vsub.f32 %v87, %v111
    %v136 = vsub.f32 %v88, %v112
    %v137 = vsub.f32 %v89, %v113
    %v138 = vsub.f32 %v90, %v114
    %v139 = vsub.f32 %v91, %v115
    %v140 = vsub.f32 %v92, %v116
    %v141 = vsub.f32 %v93, %v117
    %v142 = vsub.f32 %v94, %v118
    %v143 = vsub.f32 %v95, %v119
    %v144 = vmul.f32 %v120, %v120
    %v145 = vmul.f32 %v121, %v121
    %v146 = vmul.f32 %v122, %v122
    %v147 = vmul.f32 %v123, %v123
    %v148 = vmul.f32 %v124, %v124
    %v149 = vmul.f32 %v125, %v125
    %v150 = vmul.f32 %v126, %v126
    %v151 = vmul.f32 %v127, %v127
    %v152 = vmul.f32 %v128, %v128
    %v153 = vmul.f32 %v129, %v129
    %v154 = vmul.f32 %v130, %v130
    %v155 = vmul.f32 %v131, %v131
    %v156 = vmul.f32 %v132, %v132
    %v157 = vmul.f32 %v133, %v133
    %v158 = vmul.f32 %v134, %v134
    %v159 = vmul.f32 %v135, %v135
    %v160 = vmul.f32 %v136, %v136
    %v161 = vmul.f32 %v137, %v137
    %v162 = vmul.f32 %v138, %v138
    %v163 = vmul.f32 %v139, %v139
    %v164 = vmul.f32 %v140, %v140
    %v165 = vmul.f32 %v141, %v141
    %v166 = vmul.f32 %v142, %v142
    %v167 = vmul.f32 %v143, %v143
    %v168 = vadd.f32 %v144, %v145
    %v169 = vadd.f32 %v168, %v146
    %v170 = vadd.f32 %v169, %v147
    %v171 = vadd.f32 %v170, %v148
    %v172 = vadd.f32 %v171, %v149
    %v173 = vadd.f32 %v172, %v150
    %v174 = vadd.f32 %v173, %v151
    %v175 = vadd.f32 %v174, %v152
    %v176 = vadd.f32 %v175, %v153
    %v177 = vadd.f32 %v176, %v154
    %v178 = vadd.f32 %v177, %v155
    %v179 = vadd.f32 %v178, %v156
    %v180 = vadd.f32 %v179, %v157
    %v181 = vadd.f32 %v180, %v158
    %v182 = vadd.f32 %v181, %v159
    %v183 = vadd.f32 %v182, %v160
    %v184 = vadd.f32 %v183, %v161
    %v185 = vadd.f32 %v184, %v162
    %v186 = vadd.f32 %v185, %v163
    %v187 = vadd.f32 %v186, %v164
    %v188 = vadd.f32 %v187, %v165
    %v189 = vadd.f32 %v188, %v166
    %v190 = vadd.f32 %v189, %v167
    %191 = vadd.xlane.f32.xlu0 %v190
    %v192 = vpop.xlane.xlu0 %191
    %v193 = vrot.slane %v192, 4
    %v194 = vadd.f32 %v192, %v193
    %v195 = vrot.slane %v194, 2
    %v196 = vadd.f32 %v194, %v195
    %v197 = vrot.slane %v196, 1
    %v198 = vadd.f32 %v196, %v197
    %s199 = vtos %v198
    %v200 = vld [vmem:[%s2] sm:$0x3]
    %v201 = vld [vmem:[%s3] sm:$0x3]
    %v202 = vadd.f32 %v201, 1.0
    %v203 = vmul.f32 %v200, %v200
    %v204 = vsub.f32 %v202, %v203
    %v205 = vmul.f32 %v201, 1.442695
    %v206 = vpow.pop %v205
    %v207 = vsub.f32 %v204, %v206
    %vm208 = vcmask 254976
    %v209 = vsel %vm208, %v207, 0.0
    %210 = vadd.xlane.f32.xlu0 %v209
    %v211 = vpop.xlane.xlu0 %210
    %v212 = vrot.slane %v211, 4
    %v213 = vadd.f32 %v211, %v212
    %v214 = vrot.slane %v213, 2
    %v215 = vadd.f32 %v213, %v214
    %v216 = vrot.slane %v215, 1
    %v217 = vadd.f32 %v215, %v216
    %s218 = vtos %v217
    %s219 = smul.f32 %s218, -0.5
    %v220 = vmul.f32 %v72, %v72
    %v221 = vmul.f32 %v73, %v73
    %v222 = vmul.f32 %v74, %v74
    %v223 = vmul.f32 %v75, %v75
    %v224 = vmul.f32 %v76, %v76
    %v225 = vmul.f32 %v77, %v77
    %v226 = vmul.f32 %v78, %v78
    %v227 = vmul.f32 %v79, %v79
    %v228 = vmul.f32 %v80, %v80
    %v229 = vmul.f32 %v81, %v81
    %v230 = vmul.f32 %v82, %v82
    %v231 = vmul.f32 %v83, %v83
    %v232 = vmul.f32 %v84, %v84
    %v233 = vmul.f32 %v85, %v85
    %v234 = vmul.f32 %v86, %v86
    %v235 = vmul.f32 %v87, %v87
    %v236 = vmul.f32 %v88, %v88
    %v237 = vmul.f32 %v89, %v89
    %v238 = vmul.f32 %v90, %v90
    %v239 = vmul.f32 %v91, %v91
    %v240 = vmul.f32 %v92, %v92
    %v241 = vmul.f32 %v93, %v93
    %v242 = vmul.f32 %v94, %v94
    %v243 = vmul.f32 %v95, %v95
    %v244 = vmul.f32 %v96, %v96
    %v245 = vmul.f32 %v97, %v97
    %v246 = vmul.f32 %v98, %v98
    %v247 = vmul.f32 %v99, %v99
    %v248 = vmul.f32 %v100, %v100
    %v249 = vmul.f32 %v101, %v101
    %v250 = vmul.f32 %v102, %v102
    %v251 = vmul.f32 %v103, %v103
    %v252 = vmul.f32 %v104, %v104
    %v253 = vmul.f32 %v105, %v105
    %v254 = vmul.f32 %v106, %v106
    %v255 = vmul.f32 %v107, %v107
    %v256 = vmul.f32 %v108, %v108
    %v257 = vmul.f32 %v109, %v109
    %v258 = vmul.f32 %v110, %v110
    %v259 = vmul.f32 %v111, %v111
    %v260 = vmul.f32 %v112, %v112
    %v261 = vmul.f32 %v113, %v113
    %v262 = vmul.f32 %v114, %v114
    %v263 = vmul.f32 %v115, %v115
    %v264 = vmul.f32 %v116, %v116
    %v265 = vmul.f32 %v117, %v117
    %v266 = vmul.f32 %v118, %v118
    %v267 = vmul.f32 %v119, %v119
    %v268 = vmul.f32 %v72, %v96
    %v269 = vmul.f32 %v73, %v97
    %v270 = vmul.f32 %v74, %v98
    %v271 = vmul.f32 %v75, %v99
    %v272 = vmul.f32 %v76, %v100
    %v273 = vmul.f32 %v77, %v101
    %v274 = vmul.f32 %v78, %v102
    %v275 = vmul.f32 %v79, %v103
    %v276 = vmul.f32 %v80, %v104
    %v277 = vmul.f32 %v81, %v105
    %v278 = vmul.f32 %v82, %v106
    %v279 = vmul.f32 %v83, %v107
    %v280 = vmul.f32 %v84, %v108
    %v281 = vmul.f32 %v85, %v109
    %v282 = vmul.f32 %v86, %v110
    %v283 = vmul.f32 %v87, %v111
    %v284 = vmul.f32 %v88, %v112
    %v285 = vmul.f32 %v89, %v113
    %v286 = vmul.f32 %v90, %v114
    %v287 = vmul.f32 %v91, %v115
    %v288 = vmul.f32 %v92, %v116
    %v289 = vmul.f32 %v93, %v117
    %v290 = vmul.f32 %v94, %v118
    %v291 = vmul.f32 %v95, %v119
    %v292 = vld [vmem:[%s4] sm:$0xff]
    %v293 = vld [vmem:[%s4 + $0x8] sm:$0xff]
    %v294 = vld [vmem:[%s4 + $0x10] sm:$0xff]
    %v295 = vld [vmem:[%s4 + $0x18] sm:$0xff]
    %v296 = vld [vmem:[%s4 + $0x20] sm:$0xff]
    %v297 = vld [vmem:[%s4 + $0x28] sm:$0xff]
    %v298 = vld [vmem:[%s4 + $0x30] sm:$0xff]
    %v299 = vld [vmem:[%s4 + $0x38] sm:$0xff]
    %v300 = vld [vmem:[%s4 + $0x40] sm:$0xff]
    %v301 = vld [vmem:[%s4 + $0x48] sm:$0xff]
    %v302 = vld [vmem:[%s4 + $0x50] sm:$0xff]
    %v303 = vld [vmem:[%s4 + $0x58] sm:$0xff]
    %v304 = vld [vmem:[%s4 + $0x60] sm:$0xff]
    %v305 = vld [vmem:[%s4 + $0x68] sm:$0xff]
    %v306 = vld [vmem:[%s4 + $0x70] sm:$0xff]
    %v307 = vld [vmem:[%s4 + $0x78] sm:$0xff]
    %v308 = vld [vmem:[%s4 + $0x80] sm:$0xff]
    %v309 = vld [vmem:[%s4 + $0x88] sm:$0xff]
    %v310 = vld [vmem:[%s4 + $0x90] sm:$0xff]
    %v311 = vld [vmem:[%s4 + $0x98] sm:$0xff]
    %v312 = vld [vmem:[%s4 + $0xa0] sm:$0xff]
    %v313 = vld [vmem:[%s4 + $0xa8] sm:$0xff]
    %v314 = vld [vmem:[%s4 + $0xb0] sm:$0xff]
    %v315 = vld [vmem:[%s4 + $0xb8] sm:$0xff]
    %v316 = vld [vmem:[%s4 + $0xc0] sm:$0xff]
    %v317 = vld [vmem:[%s4 + $0xc8] sm:$0xff]
    %v318 = vld [vmem:[%s4 + $0xd0] sm:$0xff]
    %v319 = vld [vmem:[%s4 + $0xd8] sm:$0xff]
    %v320 = vld [vmem:[%s4 + $0xe0] sm:$0xff]
    %v321 = vld [vmem:[%s4 + $0xe8] sm:$0xff]
    %v322 = vld [vmem:[%s4 + $0xf0] sm:$0xff]
    %v323 = vld [vmem:[%s4 + $0xf8] sm:$0xff]
    %v324 = vld [vmem:[%s4 + $0x100] sm:$0xff]
    %v325 = vld [vmem:[%s4 + $0x108] sm:$0xff]
    %v326 = vld [vmem:[%s4 + $0x110] sm:$0xff]
    %v327 = vld [vmem:[%s4 + $0x118] sm:$0xff]
    %v328 = vld [vmem:[%s4 + $0x120] sm:$0xff]
    %v329 = vld [vmem:[%s4 + $0x128] sm:$0xff]
    %v330 = vld [vmem:[%s4 + $0x130] sm:$0xff]
    %v331 = vld [vmem:[%s4 + $0x138] sm:$0xff]
    %v332 = vld [vmem:[%s4 + $0x140] sm:$0xff]
    %v333 = vld [vmem:[%s4 + $0x148] sm:$0xff]
    %v334 = vld [vmem:[%s4 + $0x150] sm:$0xff]
    %v335 = vld [vmem:[%s4 + $0x158] sm:$0xff]
    %v336 = vld [vmem:[%s4 + $0x160] sm:$0xff]
    %v337 = vld [vmem:[%s4 + $0x168] sm:$0xff]
    %v338 = vld [vmem:[%s4 + $0x170] sm:$0xff]
    %v339 = vld [vmem:[%s4 + $0x178] sm:$0xff]
    %v340 = vld [vmem:[%s4 + $0x180] sm:$0xff]
    %v341 = vld [vmem:[%s4 + $0x188] sm:$0xff]
    %v342 = vld [vmem:[%s4 + $0x190] sm:$0xff]
    %v343 = vld [vmem:[%s4 + $0x198] sm:$0xff]
    %v344 = vld [vmem:[%s4 + $0x1a0] sm:$0xff]
    %v345 = vld [vmem:[%s4 + $0x1a8] sm:$0xff]
    %v346 = vld [vmem:[%s4 + $0x1b0] sm:$0xff]
    %v347 = vld [vmem:[%s4 + $0x1b8] sm:$0xff]
    %v348 = vld [vmem:[%s4 + $0x1c0] sm:$0xff]
    %v349 = vld [vmem:[%s4 + $0x1c8] sm:$0xff]
    %v350 = vld [vmem:[%s4 + $0x1d0] sm:$0xff]
    %v351 = vld [vmem:[%s4 + $0x1d8] sm:$0xff]
    %v352 = vld [vmem:[%s4 + $0x1e0] sm:$0xff]
    %v353 = vld [vmem:[%s4 + $0x1e8] sm:$0xff]
    %v354 = vld [vmem:[%s4 + $0x1f0] sm:$0xff]
    %v355 = vld [vmem:[%s4 + $0x1f8] sm:$0xff]
    %v356 = vld [vmem:[%s4 + $0x200] sm:$0xff]
    %v357 = vld [vmem:[%s4 + $0x208] sm:$0xff]
    %v358 = vld [vmem:[%s4 + $0x210] sm:$0xff]
    %v359 = vld [vmem:[%s4 + $0x218] sm:$0xff]
    %v360 = vld [vmem:[%s4 + $0x220] sm:$0xff]
    %v361 = vld [vmem:[%s4 + $0x228] sm:$0xff]
    %v362 = vld [vmem:[%s4 + $0x230] sm:$0xff]
    %v363 = vld [vmem:[%s4 + $0x238] sm:$0xff]
    %v364 = vld [vmem:[%s4 + $0x240] sm:$0xff]
    %v365 = vld [vmem:[%s4 + $0x248] sm:$0xff]
    %v366 = vld [vmem:[%s4 + $0x250] sm:$0xff]
    %v367 = vld [vmem:[%s4 + $0x258] sm:$0xff]
    %v368 = vld [vmem:[%s4 + $0x260] sm:$0xff]
    %v369 = vld [vmem:[%s4 + $0x268] sm:$0xff]
    %v370 = vld [vmem:[%s4 + $0x270] sm:$0xff]
    %v371 = vld [vmem:[%s4 + $0x278] sm:$0xff]
    %v372 = vld [vmem:[%s4 + $0x280] sm:$0xff]
    %v373 = vld [vmem:[%s4 + $0x288] sm:$0xff]
    %v374 = vld [vmem:[%s4 + $0x290] sm:$0xff]
    %v375 = vld [vmem:[%s4 + $0x298] sm:$0xff]
    %v376 = vld [vmem:[%s4 + $0x2a0] sm:$0xff]
    %v377 = vld [vmem:[%s4 + $0x2a8] sm:$0xff]
    %v378 = vld [vmem:[%s4 + $0x2b0] sm:$0xff]
    %v379 = vld [vmem:[%s4 + $0x2b8] sm:$0xff]
    %v380 = vld [vmem:[%s4 + $0x2c0] sm:$0xff]
    %v381 = vld [vmem:[%s4 + $0x2c8] sm:$0xff]
    %v382 = vld [vmem:[%s4 + $0x2d0] sm:$0xff]
    %v383 = vld [vmem:[%s4 + $0x2d8] sm:$0xff]
    %v384 = vld [vmem:[%s4 + $0x2e0] sm:$0xff]
    %v385 = vld [vmem:[%s4 + $0x2e8] sm:$0xff]
    %v386 = vld [vmem:[%s4 + $0x2f0] sm:$0xff]
    %v387 = vld [vmem:[%s4 + $0x2f8] sm:$0xff]
    %v388 = vld [vmem:[%s4 + $0x300] sm:$0xff]
    %v389 = vld [vmem:[%s4 + $0x308] sm:$0xff]
    %v390 = vld [vmem:[%s4 + $0x310] sm:$0xff]
    %v391 = vld [vmem:[%s4 + $0x318] sm:$0xff]
    %v392 = vld [vmem:[%s4 + $0x320] sm:$0xff]
    %v393 = vld [vmem:[%s4 + $0x328] sm:$0xff]
    %v394 = vld [vmem:[%s4 + $0x330] sm:$0xff]
    %v395 = vld [vmem:[%s4 + $0x338] sm:$0xff]
    %v396 = vld [vmem:[%s4 + $0x340] sm:$0xff]
    %v397 = vld [vmem:[%s4 + $0x348] sm:$0xff]
    %v398 = vld [vmem:[%s4 + $0x350] sm:$0xff]
    %v399 = vld [vmem:[%s4 + $0x358] sm:$0xff]
    %v400 = vld [vmem:[%s4 + $0x360] sm:$0xff]
    %v401 = vld [vmem:[%s4 + $0x368] sm:$0xff]
    %v402 = vld [vmem:[%s4 + $0x370] sm:$0xff]
    %v403 = vld [vmem:[%s4 + $0x378] sm:$0xff]
    %v404 = vld [vmem:[%s4 + $0x380] sm:$0xff]
    %v405 = vld [vmem:[%s4 + $0x388] sm:$0xff]
    %v406 = vld [vmem:[%s4 + $0x390] sm:$0xff]
    %v407 = vld [vmem:[%s4 + $0x398] sm:$0xff]
    %v408 = vld [vmem:[%s4 + $0x3a0] sm:$0xff]
    %v409 = vld [vmem:[%s4 + $0x3a8] sm:$0xff]
    %v410 = vld [vmem:[%s4 + $0x3b0] sm:$0xff]
    %v411 = vld [vmem:[%s4 + $0x3b8] sm:$0xff]
    %vm412 = vcmask 523264
    %v414 = vsel %vm412, %v294, 0
    %v417 = vsel %vm412, %v297, 0
    %v420 = vsel %vm412, %v300, 0
    %v423 = vsel %vm412, %v303, 0
    %v426 = vsel %vm412, %v306, 0
    %v429 = vsel %vm412, %v309, 0
    %v432 = vsel %vm412, %v312, 0
    %v435 = vsel %vm412, %v315, 0
    %v438 = vsel %vm412, %v318, 0
    %v441 = vsel %vm412, %v321, 0
    %v444 = vsel %vm412, %v324, 0
    %v447 = vsel %vm412, %v327, 0
    %v450 = vsel %vm412, %v330, 0
    %v453 = vsel %vm412, %v333, 0
    %v456 = vsel %vm412, %v336, 0
    %v459 = vsel %vm412, %v339, 0
    %v462 = vsel %vm412, %v342, 0
    %v465 = vsel %vm412, %v345, 0
    %v468 = vsel %vm412, %v348, 0
    %v471 = vsel %vm412, %v351, 0
    %v474 = vsel %vm412, %v354, 0
    %v477 = vsel %vm412, %v357, 0
    %v480 = vsel %vm412, %v360, 0
    %v483 = vsel %vm412, %v363, 0
    %v486 = vsel %vm412, %v366, 0
    %v489 = vsel %vm412, %v369, 0
    %v492 = vsel %vm412, %v372, 0
    %v495 = vsel %vm412, %v375, 0
    %v498 = vsel %vm412, %v378, 0
    %v501 = vsel %vm412, %v381, 0
    %v504 = vsel %vm412, %v384, 0
    %v507 = vsel %vm412, %v387, 0
    %v510 = vsel %vm412, %v390, 0
    %v513 = vsel %vm412, %v393, 0
    %v516 = vsel %vm412, %v396, 0
    %v519 = vsel %vm412, %v399, 0
    %v522 = vsel %vm412, %v402, 0
    %v525 = vsel %vm412, %v405, 0
    %v528 = vsel %vm412, %v408, 0
    %v531 = vsel %vm412, %v411, 0
    %533 = vmatprep.subr.mxu0 %v73
    %534 = vmatpush1.msra.mxu0 %v72
    %535 = vmatprep.subr.mxu0 %v76
    %536 = vmatpush1.msra.mxu0 %v75
    %537 = vmatprep.subr.mxu0 %v79
    %538 = vmatpush1.msra.mxu0 %v78
    %539 = vmatprep.subr.mxu0 %v82
    %540 = vmatpush1.msra.mxu0 %v81
    %541 = vmatprep.subr.mxu0 %v85
    %542 = vmatpush1.msra.mxu0 %v84
    %543 = vmatprep.subr.mxu0 %v88
    %544 = vmatpush1.msra.mxu0 %v87
    %545 = vmatprep.subr.mxu0 %v91
    %546 = vmatpush1.msra.mxu0 %v90
    %547 = vmatprep.subr.mxu0 %v94
    %548 = vmatpush1.msra.mxu0 %v93
    %549 = vmatprep.subr.mxu0 %v97
    %550 = vmatpush1.msra.mxu0 %v96
    %551 = vmatprep.subr.mxu0 %v100
    %552 = vmatpush1.msra.mxu0 %v99
    %553 = vmatprep.subr.mxu0 %v103
    %554 = vmatpush1.msra.mxu0 %v102
    %555 = vmatprep.subr.mxu0 %v106
    %556 = vmatpush1.msra.mxu0 %v105
    %557 = vmatprep.subr.mxu0 %v109
    %558 = vmatpush1.msra.mxu0 %v108
    %559 = vmatprep.subr.mxu0 %v112
    %560 = vmatpush1.msra.mxu0 %v111
    %561 = vmatprep.subr.mxu0 %v115
    %562 = vmatpush1.msra.mxu0 %v114
    %563 = vmatprep.subr.mxu0 %v118
    %564 = vmatpush1.msra.mxu0 %v117
    %565 = vmatprep.subr.mxu0 %v221
    %566 = vmatpush1.msra.mxu0 %v220
    %567 = vmatprep.subr.mxu0 %v224
    %568 = vmatpush1.msra.mxu0 %v223
    %569 = vmatprep.subr.mxu0 %v227
    %570 = vmatpush1.msra.mxu0 %v226
    %571 = vmatprep.subr.mxu0 %v230
    %572 = vmatpush1.msra.mxu0 %v229
    %573 = vmatprep.subr.mxu0 %v233
    %574 = vmatpush1.msra.mxu0 %v232
    %575 = vmatprep.subr.mxu0 %v236
    %576 = vmatpush1.msra.mxu0 %v235
    %577 = vmatprep.subr.mxu0 %v239
    %578 = vmatpush1.msra.mxu0 %v238
    %579 = vmatprep.subr.mxu0 %v242
    %580 = vmatpush1.msra.mxu0 %v241
    %581 = vmatprep.subr.mxu0 %v245
    %582 = vmatpush1.msra.mxu0 %v244
    %583 = vmatprep.subr.mxu0 %v248
    %584 = vmatpush1.msra.mxu0 %v247
    %585 = vmatprep.subr.mxu0 %v251
    %586 = vmatpush1.msra.mxu0 %v250
    %587 = vmatprep.subr.mxu0 %v254
    %588 = vmatpush1.msra.mxu0 %v253
    %589 = vmatprep.subr.mxu0 %v257
    %590 = vmatpush1.msra.mxu0 %v256
    %591 = vmatprep.subr.mxu0 %v260
    %592 = vmatpush1.msra.mxu0 %v259
    %593 = vmatprep.subr.mxu0 %v263
    %594 = vmatpush1.msra.mxu0 %v262
    %595 = vmatprep.subr.mxu0 %v266
    %596 = vmatpush1.msra.mxu0 %v265
    %597 = vmatprep.mubr.f32.mxu0 %v293
    %598 = vmatmul.mubr.f32.gmra.mrb[0].mxu0 %v292
    %v599 = vpop.f32.mrb[0].mxu0
    %v600 = vadd.f32 0.0, %v599
    %v601 = vpop.f32.mrb[0].mxu0
    %v602 = vadd.f32 0.0, %v601
    %603 = vmatprep.mubr.f32.mxu0 %v296
    %604 = vmatmul.mubr.f32.gmra.mrb[0].mxu0 %v295
    %v605 = vpop.f32.mrb[0].mxu0
    %v606 = vadd.f32 0.0, %v605
    %v607 = vpop.f32.mrb[0].mxu0
    %v608 = vadd.f32 0.0, %v607
    %609 = vmatprep.mubr.f32.mxu0 %v299
    %610 = vmatmul.mubr.f32.gmra.mrb[0].mxu0 %v298
    %v611 = vpop.f32.mrb[0].mxu0
    %v612 = vadd.f32 0.0, %v611
    %v613 = vpop.f32.mrb[0].mxu0
    %v614 = vadd.f32 0.0, %v613
    %615 = vmatprep.mubr.f32.mxu0 %v302
    %616 = vmatmul.mubr.f32.gmra.mrb[0].mxu0 %v301
    %v617 = vpop.f32.mrb[0].mxu0
    %v618 = vadd.f32 0.0, %v617
    %v619 = vpop.f32.mrb[0].mxu0
    %v620 = vadd.f32 0.0, %v619
    %621 = vmatprep.mubr.f32.mxu0 %v305
    %622 = vmatmul.mubr.f32.gmra.mrb[0].mxu0 %v304
    %v623 = vpop.f32.mrb[0].mxu0
    %v624 = vadd.f32 0.0, %v623
    %v625 = vpop.f32.mrb[0].mxu0
    %v626 = vadd.f32 0.0, %v625
    %627 = vmatprep.mubr.f32.mxu0 %v308
    %628 = vmatmul.mubr.f32.gmra.mrb[0].mxu0 %v307
    %v629 = vpop.f32.mrb[0].mxu0
    %v630 = vadd.f32 0.0, %v629
    %v631 = vpop.f32.mrb[0].mxu0
    %v632 = vadd.f32 0.0, %v631
    %633 = vmatprep.mubr.f32.mxu0 %v311
    %634 = vmatmul.mubr.f32.gmra.mrb[0].mxu0 %v310
    %v635 = vpop.f32.mrb[0].mxu0
    %v636 = vadd.f32 0.0, %v635
    %v637 = vpop.f32.mrb[0].mxu0
    %v638 = vadd.f32 0.0, %v637
    %639 = vmatprep.mubr.f32.mxu0 %v314
    %640 = vmatmul.mubr.f32.gmra.mrb[0].mxu0 %v313
    %v641 = vpop.f32.mrb[0].mxu0
    %v642 = vadd.f32 0.0, %v641
    %v643 = vpop.f32.mrb[0].mxu0
    %v644 = vadd.f32 0.0, %v643
    %645 = vmatprep.mubr.f32.mxu0 %v317
    %646 = vmatmul.mubr.f32.gmra.mrb[0].mxu0 %v316
    %v647 = vpop.f32.mrb[0].mxu0
    %v648 = vadd.f32 0.0, %v647
    %v649 = vpop.f32.mrb[0].mxu0
    %v650 = vadd.f32 0.0, %v649
    %651 = vmatprep.mubr.f32.mxu0 %v320
    %652 = vmatmul.mubr.f32.gmra.mrb[0].mxu0 %v319
    %v653 = vpop.f32.mrb[0].mxu0
    %v654 = vadd.f32 0.0, %v653
    %v655 = vpop.f32.mrb[0].mxu0
    %v656 = vadd.f32 0.0, %v655
    %657 = vmatprep.mubr.f32.mxu0 %v323
    %658 = vmatmul.mubr.f32.gmra.mrb[0].mxu0 %v322
    %v659 = vpop.f32.mrb[0].mxu0
    %v660 = vadd.f32 0.0, %v659
    %v661 = vpop.f32.mrb[0].mxu0
    %v662 = vadd.f32 0.0, %v661
    %663 = vmatprep.mubr.f32.mxu0 %v326
    %664 = vmatmul.mubr.f32.gmra.mrb[0].mxu0 %v325
    %v665 = vpop.f32.mrb[0].mxu0
    %v666 = vadd.f32 0.0, %v665
    %v667 = vpop.f32.mrb[0].mxu0
    %v668 = vadd.f32 0.0, %v667
    %669 = vmatprep.mubr.f32.mxu0 %v329
    %670 = vmatmul.mubr.f32.gmra.mrb[0].mxu0 %v328
    %v671 = vpop.f32.mrb[0].mxu0
    %v672 = vadd.f32 0.0, %v671
    %v673 = vpop.f32.mrb[0].mxu0
    %v674 = vadd.f32 0.0, %v673
    %675 = vmatprep.mubr.f32.mxu0 %v332
    %676 = vmatmul.mubr.f32.gmra.mrb[0].mxu0 %v331
    %v677 = vpop.f32.mrb[0].mxu0
    %v678 = vadd.f32 0.0, %v677
    %v679 = vpop.f32.mrb[0].mxu0
    %v680 = vadd.f32 0.0, %v679
    %681 = vmatprep.mubr.f32.mxu0 %v335
    %682 = vmatmul.mubr.f32.gmra.mrb[0].mxu0 %v334
    %v683 = vpop.f32.mrb[0].mxu0
    %v684 = vadd.f32 0.0, %v683
    %v685 = vpop.f32.mrb[0].mxu0
    %v686 = vadd.f32 0.0, %v685
    %687 = vmatprep.mubr.f32.mxu0 %v338
    %688 = vmatmul.mubr.f32.gmra.mrb[0].mxu0 %v337
    %v689 = vpop.f32.mrb[0].mxu0
    %v690 = vadd.f32 0.0, %v689
    %v691 = vpop.f32.mrb[0].mxu0
    %v692 = vadd.f32 0.0, %v691
    %693 = vmatprep.mubr.f32.mxu0 %v341
    %694 = vmatmul.mubr.f32.gmra.mrb[0].mxu0 %v340
    %v695 = vpop.f32.mrb[0].mxu0
    %v696 = vadd.f32 0.0, %v695
    %v697 = vpop.f32.mrb[0].mxu0
    %v698 = vadd.f32 0.0, %v697
    %699 = vmatprep.mubr.f32.mxu0 %v344
    %700 = vmatmul.mubr.f32.gmra.mrb[0].mxu0 %v343
    %v701 = vpop.f32.mrb[0].mxu0
    %v702 = vadd.f32 0.0, %v701
    %v703 = vpop.f32.mrb[0].mxu0
    %v704 = vadd.f32 0.0, %v703
    %705 = vmatprep.mubr.f32.mxu0 %v347
    %706 = vmatmul.mubr.f32.gmra.mrb[0].mxu0 %v346
    %v707 = vpop.f32.mrb[0].mxu0
    %v708 = vadd.f32 0.0, %v707
    %v709 = vpop.f32.mrb[0].mxu0
    %v710 = vadd.f32 0.0, %v709
    %711 = vmatprep.mubr.f32.mxu0 %v350
    %712 = vmatmul.mubr.f32.gmra.mrb[0].mxu0 %v349
    %v713 = vpop.f32.mrb[0].mxu0
    %v714 = vadd.f32 0.0, %v713
    %v715 = vpop.f32.mrb[0].mxu0
    %v716 = vadd.f32 0.0, %v715
    %717 = vmatprep.mubr.f32.mxu0 %v353
    %718 = vmatmul.mubr.f32.gmra.mrb[0].mxu0 %v352
    %v719 = vpop.f32.mrb[0].mxu0
    %v720 = vadd.f32 0.0, %v719
    %v721 = vpop.f32.mrb[0].mxu0
    %v722 = vadd.f32 0.0, %v721
    %723 = vmatprep.mubr.f32.mxu0 %v356
    %724 = vmatmul.mubr.f32.gmra.mrb[0].mxu0 %v355
    %v725 = vpop.f32.mrb[0].mxu0
    %v726 = vadd.f32 0.0, %v725
    %v727 = vpop.f32.mrb[0].mxu0
    %v728 = vadd.f32 0.0, %v727
    %729 = vmatprep.mubr.f32.mxu0 %v359
    %730 = vmatmul.mubr.f32.gmra.mrb[0].mxu0 %v358
    %v731 = vpop.f32.mrb[0].mxu0
    %v732 = vadd.f32 0.0, %v731
    %v733 = vpop.f32.mrb[0].mxu0
    %v734 = vadd.f32 0.0, %v733
    %735 = vmatprep.mubr.f32.mxu0 %v362
    %736 = vmatmul.mubr.f32.gmra.mrb[0].mxu0 %v361
    %v737 = vpop.f32.mrb[0].mxu0
    %v738 = vadd.f32 0.0, %v737
    %v739 = vpop.f32.mrb[0].mxu0
    %v740 = vadd.f32 0.0, %v739
    %741 = vmatprep.mubr.f32.mxu0 %v365
    %742 = vmatmul.mubr.f32.gmra.mrb[0].mxu0 %v364
    %v743 = vpop.f32.mrb[0].mxu0
    %v744 = vadd.f32 0.0, %v743
    %v745 = vpop.f32.mrb[0].mxu0
    %v746 = vadd.f32 0.0, %v745
    %747 = vmatprep.mubr.f32.mxu0 %v368
    %748 = vmatmul.mubr.f32.gmra.mrb[0].mxu0 %v367
    %v749 = vpop.f32.mrb[0].mxu0
    %v750 = vadd.f32 0.0, %v749
    %v751 = vpop.f32.mrb[0].mxu0
    %v752 = vadd.f32 0.0, %v751
    %753 = vmatprep.mubr.f32.mxu0 %v371
    %754 = vmatmul.mubr.f32.gmra.mrb[0].mxu0 %v370
    %v755 = vpop.f32.mrb[0].mxu0
    %v756 = vadd.f32 0.0, %v755
    %v757 = vpop.f32.mrb[0].mxu0
    %v758 = vadd.f32 0.0, %v757
    %759 = vmatprep.mubr.f32.mxu0 %v374
    %760 = vmatmul.mubr.f32.gmra.mrb[0].mxu0 %v373
    %v761 = vpop.f32.mrb[0].mxu0
    %v762 = vadd.f32 0.0, %v761
    %v763 = vpop.f32.mrb[0].mxu0
    %v764 = vadd.f32 0.0, %v763
    %765 = vmatprep.mubr.f32.mxu0 %v377
    %766 = vmatmul.mubr.f32.gmra.mrb[0].mxu0 %v376
    %v767 = vpop.f32.mrb[0].mxu0
    %v768 = vadd.f32 0.0, %v767
    %v769 = vpop.f32.mrb[0].mxu0
    %v770 = vadd.f32 0.0, %v769
    %771 = vmatprep.mubr.f32.mxu0 %v380
    %772 = vmatmul.mubr.f32.gmra.mrb[0].mxu0 %v379
    %v773 = vpop.f32.mrb[0].mxu0
    %v774 = vadd.f32 0.0, %v773
    %v775 = vpop.f32.mrb[0].mxu0
    %v776 = vadd.f32 0.0, %v775
    %777 = vmatprep.mubr.f32.mxu0 %v383
    %778 = vmatmul.mubr.f32.gmra.mrb[0].mxu0 %v382
    %v779 = vpop.f32.mrb[0].mxu0
    %v780 = vadd.f32 0.0, %v779
    %v781 = vpop.f32.mrb[0].mxu0
    %v782 = vadd.f32 0.0, %v781
    %783 = vmatprep.mubr.f32.mxu0 %v386
    %784 = vmatmul.mubr.f32.gmra.mrb[0].mxu0 %v385
    %v785 = vpop.f32.mrb[0].mxu0
    %v786 = vadd.f32 0.0, %v785
    %v787 = vpop.f32.mrb[0].mxu0
    %v788 = vadd.f32 0.0, %v787
    %789 = vmatprep.mubr.f32.mxu0 %v389
    %790 = vmatmul.mubr.f32.gmra.mrb[0].mxu0 %v388
    %v791 = vpop.f32.mrb[0].mxu0
    %v792 = vadd.f32 0.0, %v791
    %v793 = vpop.f32.mrb[0].mxu0
    %v794 = vadd.f32 0.0, %v793
    %795 = vmatprep.mubr.f32.mxu0 %v392
    %796 = vmatmul.mubr.f32.gmra.mrb[0].mxu0 %v391
    %v797 = vpop.f32.mrb[0].mxu0
    %v798 = vadd.f32 0.0, %v797
    %v799 = vpop.f32.mrb[0].mxu0
    %v800 = vadd.f32 0.0, %v799
    %801 = vmatprep.mubr.f32.mxu0 %v395
    %802 = vmatmul.mubr.f32.gmra.mrb[0].mxu0 %v394
    %v803 = vpop.f32.mrb[0].mxu0
    %v804 = vadd.f32 0.0, %v803
    %v805 = vpop.f32.mrb[0].mxu0
    %v806 = vadd.f32 0.0, %v805
    %807 = vmatprep.mubr.f32.mxu0 %v398
    %808 = vmatmul.mubr.f32.gmra.mrb[0].mxu0 %v397
    %v809 = vpop.f32.mrb[0].mxu0
    %v810 = vadd.f32 0.0, %v809
    %v811 = vpop.f32.mrb[0].mxu0
    %v812 = vadd.f32 0.0, %v811
    %813 = vmatprep.mubr.f32.mxu0 %v401
    %814 = vmatmul.mubr.f32.gmra.mrb[0].mxu0 %v400
    %v815 = vpop.f32.mrb[0].mxu0
    %v816 = vadd.f32 0.0, %v815
    %v817 = vpop.f32.mrb[0].mxu0
    %v818 = vadd.f32 0.0, %v817
    %819 = vmatprep.mubr.f32.mxu0 %v404
    %820 = vmatmul.mubr.f32.gmra.mrb[0].mxu0 %v403
    %v821 = vpop.f32.mrb[0].mxu0
    %v822 = vadd.f32 0.0, %v821
    %v823 = vpop.f32.mrb[0].mxu0
    %v824 = vadd.f32 0.0, %v823
    %825 = vmatprep.mubr.f32.mxu0 %v407
    %826 = vmatmul.mubr.f32.gmra.mrb[0].mxu0 %v406
    %v827 = vpop.f32.mrb[0].mxu0
    %v828 = vadd.f32 0.0, %v827
    %v829 = vpop.f32.mrb[0].mxu0
    %v830 = vadd.f32 0.0, %v829
    %831 = vmatprep.mubr.f32.mxu0 %v410
    %832 = vmatmul.mubr.f32.gmra.mrb[0].mxu0 %v409
    %v833 = vpop.f32.mrb[0].mxu0
    %v834 = vadd.f32 0.0, %v833
    %v835 = vpop.f32.mrb[0].mxu0
    %v836 = vadd.f32 0.0, %v835
    %837 = vdwg.mxu0
    %838 = vmatprep.subr.mxu0 %v269
    %839 = vmatpush1.msra.mxu0 %v268
    %840 = vmatprep.subr.mxu0 %v272
    %841 = vmatpush1.msra.mxu0 %v271
    %842 = vmatprep.subr.mxu0 %v275
    %843 = vmatpush1.msra.mxu0 %v274
    %844 = vmatprep.subr.mxu0 %v278
    %845 = vmatpush1.msra.mxu0 %v277
    %846 = vmatprep.subr.mxu0 %v281
    %847 = vmatpush1.msra.mxu0 %v280
    %848 = vmatprep.subr.mxu0 %v284
    %849 = vmatpush1.msra.mxu0 %v283
    %850 = vmatprep.subr.mxu0 %v287
    %851 = vmatpush1.msra.mxu0 %v286
    %852 = vmatprep.subr.mxu0 %v290
    %853 = vmatpush1.msra.mxu0 %v289
    %854 = vmatprep.subr.mxu0 0.0
    %855 = vmatpush1.msra.mxu0 0.0
    %856 = vmatprep.subr.mxu0 0.0
    %857 = vmatpush1.msra.mxu0 0.0
    %858 = vmatprep.subr.mxu0 0.0
    %859 = vmatpush1.msra.mxu0 0.0
    %860 = vmatprep.subr.mxu0 0.0
    %861 = vmatpush1.msra.mxu0 0.0
    %862 = vmatprep.subr.mxu0 0.0
    %863 = vmatpush1.msra.mxu0 0.0
    %864 = vmatprep.subr.mxu0 0.0
    %865 = vmatpush1.msra.mxu0 0.0
    %866 = vmatprep.subr.mxu0 0.0
    %867 = vmatpush1.msra.mxu0 0.0
    %868 = vmatprep.subr.mxu0 0.0
    %869 = vmatpush1.msra.mxu0 0.0
    %870 = vmatprep.subr.mxu0 0.0
    %871 = vmatpush1.msra.mxu0 0.0
    %872 = vmatprep.subr.mxu0 0.0
    %873 = vmatpush1.msra.mxu0 0.0
    %874 = vmatprep.subr.mxu0 0.0
    %875 = vmatpush1.msra.mxu0 0.0
    %876 = vmatprep.subr.mxu0 0.0
    %877 = vmatpush1.msra.mxu0 0.0
    %878 = vmatprep.subr.mxu0 0.0
    %879 = vmatpush1.msra.mxu0 0.0
    %880 = vmatprep.subr.mxu0 0.0
    %881 = vmatpush1.msra.mxu0 0.0
    %882 = vmatprep.subr.mxu0 0.0
    %883 = vmatpush1.msra.mxu0 0.0
    %884 = vmatprep.subr.mxu0 0.0
    %885 = vmatpush1.msra.mxu0 0.0
    %886 = vmatprep.subr.mxu0 0.0
    %887 = vmatpush1.msra.mxu0 0.0
    %888 = vmatprep.subr.mxu0 0.0
    %889 = vmatpush1.msra.mxu0 0.0
    %890 = vmatprep.subr.mxu0 0.0
    %891 = vmatpush1.msra.mxu0 0.0
    %892 = vmatprep.subr.mxu0 0.0
    %893 = vmatpush1.msra.mxu0 0.0
    %894 = vmatprep.subr.mxu0 0.0
    %895 = vmatpush1.msra.mxu0 0.0
    %896 = vmatprep.subr.mxu0 0.0
    %897 = vmatpush1.msra.mxu0 0.0
    %898 = vmatprep.subr.mxu0 0.0
    %899 = vmatpush1.msra.mxu0 0.0
    %900 = vmatprep.subr.mxu0 0.0
    %901 = vmatpush1.msra.mxu0 0.0
    %902 = vmatprep.mubr.f32.mxu0 0.0
    %903 = vmatmul.mubr.f32.gmra.mrb[0].mxu0 %v414
    %v904 = vpop.f32.mrb[0].mxu0
    %v905 = vadd.f32 %v600, %v904
    %v906 = vpop.f32.mrb[0].mxu0
    %v907 = vadd.f32 %v602, %v906
    %908 = vmatprep.mubr.f32.mxu0 0.0
    %909 = vmatmul.mubr.f32.gmra.mrb[0].mxu0 %v417
    %v910 = vpop.f32.mrb[0].mxu0
    %v911 = vadd.f32 %v606, %v910
    %v912 = vpop.f32.mrb[0].mxu0
    %v913 = vadd.f32 %v608, %v912
    %914 = vmatprep.mubr.f32.mxu0 0.0
    %915 = vmatmul.mubr.f32.gmra.mrb[0].mxu0 %v420
    %v916 = vpop.f32.mrb[0].mxu0
    %v917 = vadd.f32 %v612, %v916
    %v918 = vpop.f32.mrb[0].mxu0
    %v919 = vadd.f32 %v614, %v918
    %920 = vmatprep.mubr.f32.mxu0 0.0
    %921 = vmatmul.mubr.f32.gmra.mrb[0].mxu0 %v423
    %v922 = vpop.f32.mrb[0].mxu0
    %v923 = vadd.f32 %v618, %v922
    %v924 = vpop.f32.mrb[0].mxu0
    %v925 = vadd.f32 %v620, %v924
    %926 = vmatprep.mubr.f32.mxu0 0.0
    %927 = vmatmul.mubr.f32.gmra.mrb[0].mxu0 %v426
    %v928 = vpop.f32.mrb[0].mxu0
    %v929 = vadd.f32 %v624, %v928
    %v930 = vpop.f32.mrb[0].mxu0
    %v931 = vadd.f32 %v626, %v930
    %932 = vmatprep.mubr.f32.mxu0 0.0
    %933 = vmatmul.mubr.f32.gmra.mrb[0].mxu0 %v429
    %v934 = vpop.f32.mrb[0].mxu0
    %v935 = vadd.f32 %v630, %v934
    %v936 = vpop.f32.mrb[0].mxu0
    %v937 = vadd.f32 %v632, %v936
    %938 = vmatprep.mubr.f32.mxu0 0.0
    %939 = vmatmul.mubr.f32.gmra.mrb[0].mxu0 %v432
    %v940 = vpop.f32.mrb[0].mxu0
    %v941 = vadd.f32 %v636, %v940
    %v942 = vpop.f32.mrb[0].mxu0
    %v943 = vadd.f32 %v638, %v942
    %944 = vmatprep.mubr.f32.mxu0 0.0
    %945 = vmatmul.mubr.f32.gmra.mrb[0].mxu0 %v435
    %v946 = vpop.f32.mrb[0].mxu0
    %v947 = vadd.f32 %v642, %v946
    %v948 = vpop.f32.mrb[0].mxu0
    %v949 = vadd.f32 %v644, %v948
    %950 = vmatprep.mubr.f32.mxu0 0.0
    %951 = vmatmul.mubr.f32.gmra.mrb[0].mxu0 %v438
    %v952 = vpop.f32.mrb[0].mxu0
    %v953 = vadd.f32 %v648, %v952
    %v954 = vpop.f32.mrb[0].mxu0
    %v955 = vadd.f32 %v650, %v954
    %956 = vmatprep.mubr.f32.mxu0 0.0
    %957 = vmatmul.mubr.f32.gmra.mrb[0].mxu0 %v441
    %v958 = vpop.f32.mrb[0].mxu0
    %v959 = vadd.f32 %v654, %v958
    %v960 = vpop.f32.mrb[0].mxu0
    %v961 = vadd.f32 %v656, %v960
    %962 = vmatprep.mubr.f32.mxu0 0.0
    %963 = vmatmul.mubr.f32.gmra.mrb[0].mxu0 %v444
    %v964 = vpop.f32.mrb[0].mxu0
    %v965 = vadd.f32 %v660, %v964
    %v966 = vpop.f32.mrb[0].mxu0
    %v967 = vadd.f32 %v662, %v966
    %968 = vmatprep.mubr.f32.mxu0 0.0
    %969 = vmatmul.mubr.f32.gmra.mrb[0].mxu0 %v447
    %v970 = vpop.f32.mrb[0].mxu0
    %v971 = vadd.f32 %v666, %v970
    %v972 = vpop.f32.mrb[0].mxu0
    %v973 = vadd.f32 %v668, %v972
    %974 = vmatprep.mubr.f32.mxu0 0.0
    %975 = vmatmul.mubr.f32.gmra.mrb[0].mxu0 %v450
    %v976 = vpop.f32.mrb[0].mxu0
    %v977 = vadd.f32 %v672, %v976
    %v978 = vpop.f32.mrb[0].mxu0
    %v979 = vadd.f32 %v674, %v978
    %980 = vmatprep.mubr.f32.mxu0 0.0
    %981 = vmatmul.mubr.f32.gmra.mrb[0].mxu0 %v453
    %v982 = vpop.f32.mrb[0].mxu0
    %v983 = vadd.f32 %v678, %v982
    %v984 = vpop.f32.mrb[0].mxu0
    %v985 = vadd.f32 %v680, %v984
    %986 = vmatprep.mubr.f32.mxu0 0.0
    %987 = vmatmul.mubr.f32.gmra.mrb[0].mxu0 %v456
    %v988 = vpop.f32.mrb[0].mxu0
    %v989 = vadd.f32 %v684, %v988
    %v990 = vpop.f32.mrb[0].mxu0
    %v991 = vadd.f32 %v686, %v990
    %992 = vmatprep.mubr.f32.mxu0 0.0
    %993 = vmatmul.mubr.f32.gmra.mrb[0].mxu0 %v459
    %v994 = vpop.f32.mrb[0].mxu0
    %v995 = vadd.f32 %v690, %v994
    %v996 = vpop.f32.mrb[0].mxu0
    %v997 = vadd.f32 %v692, %v996
    %998 = vmatprep.mubr.f32.mxu0 0.0
    %999 = vmatmul.mubr.f32.gmra.mrb[0].mxu0 %v462
    %v1000 = vpop.f32.mrb[0].mxu0
    %v1001 = vadd.f32 %v696, %v1000
    %v1002 = vpop.f32.mrb[0].mxu0
    %v1003 = vadd.f32 %v698, %v1002
    %1004 = vmatprep.mubr.f32.mxu0 0.0
    %1005 = vmatmul.mubr.f32.gmra.mrb[0].mxu0 %v465
    %v1006 = vpop.f32.mrb[0].mxu0
    %v1007 = vadd.f32 %v702, %v1006
    %v1008 = vpop.f32.mrb[0].mxu0
    %v1009 = vadd.f32 %v704, %v1008
    %1010 = vmatprep.mubr.f32.mxu0 0.0
    %1011 = vmatmul.mubr.f32.gmra.mrb[0].mxu0 %v468
    %v1012 = vpop.f32.mrb[0].mxu0
    %v1013 = vadd.f32 %v708, %v1012
    %v1014 = vpop.f32.mrb[0].mxu0
    %v1015 = vadd.f32 %v710, %v1014
    %1016 = vmatprep.mubr.f32.mxu0 0.0
    %1017 = vmatmul.mubr.f32.gmra.mrb[0].mxu0 %v471
    %v1018 = vpop.f32.mrb[0].mxu0
    %v1019 = vadd.f32 %v714, %v1018
    %v1020 = vpop.f32.mrb[0].mxu0
    %v1021 = vadd.f32 %v716, %v1020
    %1022 = vmatprep.mubr.f32.mxu0 0.0
    %1023 = vmatmul.mubr.f32.gmra.mrb[0].mxu0 %v474
    %v1024 = vpop.f32.mrb[0].mxu0
    %v1025 = vadd.f32 %v720, %v1024
    %v1026 = vpop.f32.mrb[0].mxu0
    %v1027 = vadd.f32 %v722, %v1026
    %1028 = vmatprep.mubr.f32.mxu0 0.0
    %1029 = vmatmul.mubr.f32.gmra.mrb[0].mxu0 %v477
    %v1030 = vpop.f32.mrb[0].mxu0
    %v1031 = vadd.f32 %v726, %v1030
    %v1032 = vpop.f32.mrb[0].mxu0
    %v1033 = vadd.f32 %v728, %v1032
    %1034 = vmatprep.mubr.f32.mxu0 0.0
    %1035 = vmatmul.mubr.f32.gmra.mrb[0].mxu0 %v480
    %v1036 = vpop.f32.mrb[0].mxu0
    %v1037 = vadd.f32 %v732, %v1036
    %v1038 = vpop.f32.mrb[0].mxu0
    %v1039 = vadd.f32 %v734, %v1038
    %1040 = vmatprep.mubr.f32.mxu0 0.0
    %1041 = vmatmul.mubr.f32.gmra.mrb[0].mxu0 %v483
    %v1042 = vpop.f32.mrb[0].mxu0
    %v1043 = vadd.f32 %v738, %v1042
    %v1044 = vpop.f32.mrb[0].mxu0
    %v1045 = vadd.f32 %v740, %v1044
    %1046 = vmatprep.mubr.f32.mxu0 0.0
    %1047 = vmatmul.mubr.f32.gmra.mrb[0].mxu0 %v486
    %v1048 = vpop.f32.mrb[0].mxu0
    %v1049 = vadd.f32 %v744, %v1048
    %v1050 = vpop.f32.mrb[0].mxu0
    %v1051 = vadd.f32 %v746, %v1050
    %1052 = vmatprep.mubr.f32.mxu0 0.0
    %1053 = vmatmul.mubr.f32.gmra.mrb[0].mxu0 %v489
    %v1054 = vpop.f32.mrb[0].mxu0
    %v1055 = vadd.f32 %v750, %v1054
    %v1056 = vpop.f32.mrb[0].mxu0
    %v1057 = vadd.f32 %v752, %v1056
    %1058 = vmatprep.mubr.f32.mxu0 0.0
    %1059 = vmatmul.mubr.f32.gmra.mrb[0].mxu0 %v492
    %v1060 = vpop.f32.mrb[0].mxu0
    %v1061 = vadd.f32 %v756, %v1060
    %v1062 = vpop.f32.mrb[0].mxu0
    %v1063 = vadd.f32 %v758, %v1062
    %1064 = vmatprep.mubr.f32.mxu0 0.0
    %1065 = vmatmul.mubr.f32.gmra.mrb[0].mxu0 %v495
    %v1066 = vpop.f32.mrb[0].mxu0
    %v1067 = vadd.f32 %v762, %v1066
    %v1068 = vpop.f32.mrb[0].mxu0
    %v1069 = vadd.f32 %v764, %v1068
    %1070 = vmatprep.mubr.f32.mxu0 0.0
    %1071 = vmatmul.mubr.f32.gmra.mrb[0].mxu0 %v498
    %v1072 = vpop.f32.mrb[0].mxu0
    %v1073 = vadd.f32 %v768, %v1072
    %v1074 = vpop.f32.mrb[0].mxu0
    %v1075 = vadd.f32 %v770, %v1074
    %1076 = vmatprep.mubr.f32.mxu0 0.0
    %1077 = vmatmul.mubr.f32.gmra.mrb[0].mxu0 %v501
    %v1078 = vpop.f32.mrb[0].mxu0
    %v1079 = vadd.f32 %v774, %v1078
    %v1080 = vpop.f32.mrb[0].mxu0
    %v1081 = vadd.f32 %v776, %v1080
    %1082 = vmatprep.mubr.f32.mxu0 0.0
    %1083 = vmatmul.mubr.f32.gmra.mrb[0].mxu0 %v504
    %v1084 = vpop.f32.mrb[0].mxu0
    %v1085 = vadd.f32 %v780, %v1084
    %v1086 = vpop.f32.mrb[0].mxu0
    %v1087 = vadd.f32 %v782, %v1086
    %1088 = vmatprep.mubr.f32.mxu0 0.0
    %1089 = vmatmul.mubr.f32.gmra.mrb[0].mxu0 %v507
    %v1090 = vpop.f32.mrb[0].mxu0
    %v1091 = vadd.f32 %v786, %v1090
    %v1092 = vpop.f32.mrb[0].mxu0
    %v1093 = vadd.f32 %v788, %v1092
    %1094 = vmatprep.mubr.f32.mxu0 0.0
    %1095 = vmatmul.mubr.f32.gmra.mrb[0].mxu0 %v510
    %v1096 = vpop.f32.mrb[0].mxu0
    %v1097 = vadd.f32 %v792, %v1096
    %v1098 = vpop.f32.mrb[0].mxu0
    %v1099 = vadd.f32 %v794, %v1098
    %1100 = vmatprep.mubr.f32.mxu0 0.0
    %1101 = vmatmul.mubr.f32.gmra.mrb[0].mxu0 %v513
    %v1102 = vpop.f32.mrb[0].mxu0
    %v1103 = vadd.f32 %v798, %v1102
    %v1104 = vpop.f32.mrb[0].mxu0
    %v1105 = vadd.f32 %v800, %v1104
    %1106 = vmatprep.mubr.f32.mxu0 0.0
    %1107 = vmatmul.mubr.f32.gmra.mrb[0].mxu0 %v516
    %v1108 = vpop.f32.mrb[0].mxu0
    %v1109 = vadd.f32 %v804, %v1108
    %v1110 = vpop.f32.mrb[0].mxu0
    %v1111 = vadd.f32 %v806, %v1110
    %1112 = vmatprep.mubr.f32.mxu0 0.0
    %1113 = vmatmul.mubr.f32.gmra.mrb[0].mxu0 %v519
    %v1114 = vpop.f32.mrb[0].mxu0
    %v1115 = vadd.f32 %v810, %v1114
    %v1116 = vpop.f32.mrb[0].mxu0
    %v1117 = vadd.f32 %v812, %v1116
    %1118 = vmatprep.mubr.f32.mxu0 0.0
    %1119 = vmatmul.mubr.f32.gmra.mrb[0].mxu0 %v522
    %v1120 = vpop.f32.mrb[0].mxu0
    %v1121 = vadd.f32 %v816, %v1120
    %v1122 = vpop.f32.mrb[0].mxu0
    %v1123 = vadd.f32 %v818, %v1122
    %1124 = vmatprep.mubr.f32.mxu0 0.0
    %1125 = vmatmul.mubr.f32.gmra.mrb[0].mxu0 %v525
    %v1126 = vpop.f32.mrb[0].mxu0
    %v1127 = vadd.f32 %v822, %v1126
    %v1128 = vpop.f32.mrb[0].mxu0
    %v1129 = vadd.f32 %v824, %v1128
    %1130 = vmatprep.mubr.f32.mxu0 0.0
    %1131 = vmatmul.mubr.f32.gmra.mrb[0].mxu0 %v528
    %v1132 = vpop.f32.mrb[0].mxu0
    %v1133 = vadd.f32 %v828, %v1132
    %v1134 = vpop.f32.mrb[0].mxu0
    %v1135 = vadd.f32 %v830, %v1134
    %1136 = vmatprep.mubr.f32.mxu0 0.0
    %1137 = vmatmul.mubr.f32.gmra.mrb[0].mxu0 %v531
    %v1138 = vpop.f32.mrb[0].mxu0
    %v1139 = vadd.f32 %v834, %v1138
    %v1140 = vpop.f32.mrb[0].mxu0
    %v1141 = vadd.f32 %v836, %v1140
    %1142 = vdwg.mxu0
    %1143 = vmatprep.subr.mxu0 0.0
    %1144 = vmatpush1.msra.mxu0 %v74
    %1145 = vmatprep.subr.mxu0 0.0
    %1146 = vmatpush1.msra.mxu0 %v77
    %1147 = vmatprep.subr.mxu0 0.0
    %1148 = vmatpush1.msra.mxu0 %v80
    %1149 = vmatprep.subr.mxu0 0.0
    %1150 = vmatpush1.msra.mxu0 %v83
    %1151 = vmatprep.subr.mxu0 0.0
    %1152 = vmatpush1.msra.mxu0 %v86
    %1153 = vmatprep.subr.mxu0 0.0
    %1154 = vmatpush1.msra.mxu0 %v89
    %1155 = vmatprep.subr.mxu0 0.0
    %1156 = vmatpush1.msra.mxu0 %v92
    %1157 = vmatprep.subr.mxu0 0.0
    %1158 = vmatpush1.msra.mxu0 %v95
    %1159 = vmatprep.subr.mxu0 0.0
    %1160 = vmatpush1.msra.mxu0 %v98
    %1161 = vmatprep.subr.mxu0 0.0
    %1162 = vmatpush1.msra.mxu0 %v101
    %1163 = vmatprep.subr.mxu0 0.0
    %1164 = vmatpush1.msra.mxu0 %v104
    %1165 = vmatprep.subr.mxu0 0.0
    %1166 = vmatpush1.msra.mxu0 %v107
    %1167 = vmatprep.subr.mxu0 0.0
    %1168 = vmatpush1.msra.mxu0 %v110
    %1169 = vmatprep.subr.mxu0 0.0
    %1170 = vmatpush1.msra.mxu0 %v113
    %1171 = vmatprep.subr.mxu0 0.0
    %1172 = vmatpush1.msra.mxu0 %v116
    %1173 = vmatprep.subr.mxu0 0.0
    %1174 = vmatpush1.msra.mxu0 %v119
    %1175 = vmatprep.subr.mxu0 0.0
    %1176 = vmatpush1.msra.mxu0 %v222
    %1177 = vmatprep.subr.mxu0 0.0
    %1178 = vmatpush1.msra.mxu0 %v225
    %1179 = vmatprep.subr.mxu0 0.0
    %1180 = vmatpush1.msra.mxu0 %v228
    %1181 = vmatprep.subr.mxu0 0.0
    %1182 = vmatpush1.msra.mxu0 %v231
    %1183 = vmatprep.subr.mxu0 0.0
    %1184 = vmatpush1.msra.mxu0 %v234
    %1185 = vmatprep.subr.mxu0 0.0
    %1186 = vmatpush1.msra.mxu0 %v237
    %1187 = vmatprep.subr.mxu0 0.0
    %1188 = vmatpush1.msra.mxu0 %v240
    %1189 = vmatprep.subr.mxu0 0.0
    %1190 = vmatpush1.msra.mxu0 %v243
    %1191 = vmatprep.subr.mxu0 0.0
    %1192 = vmatpush1.msra.mxu0 %v246
    %1193 = vmatprep.subr.mxu0 0.0
    %1194 = vmatpush1.msra.mxu0 %v249
    %1195 = vmatprep.subr.mxu0 0.0
    %1196 = vmatpush1.msra.mxu0 %v252
    %1197 = vmatprep.subr.mxu0 0.0
    %1198 = vmatpush1.msra.mxu0 %v255
    %1199 = vmatprep.subr.mxu0 0.0
    %1200 = vmatpush1.msra.mxu0 %v258
    %1201 = vmatprep.subr.mxu0 0.0
    %1202 = vmatpush1.msra.mxu0 %v261
    %1203 = vmatprep.subr.mxu0 0.0
    %1204 = vmatpush1.msra.mxu0 %v264
    %1205 = vmatprep.subr.mxu0 0.0
    %1206 = vmatpush1.msra.mxu0 %v267
    %1207 = vmatprep.mubr.f32.mxu0 %v293
    %1208 = vmatmul.mubr.f32.gmra.mrb[0].mxu0 %v292
    %v1209 = vpop.f32.mrb[0].mxu0
    %v1210 = vadd.f32 0.0, %v1209
    %v1211 = vpop.f32.mrb[0].mxu0
    %1212 = vmatprep.mubr.f32.mxu0 %v296
    %1213 = vmatmul.mubr.f32.gmra.mrb[0].mxu0 %v295
    %v1214 = vpop.f32.mrb[0].mxu0
    %v1215 = vadd.f32 0.0, %v1214
    %v1216 = vpop.f32.mrb[0].mxu0
    %1217 = vmatprep.mubr.f32.mxu0 %v299
    %1218 = vmatmul.mubr.f32.gmra.mrb[0].mxu0 %v298
    %v1219 = vpop.f32.mrb[0].mxu0
    %v1220 = vadd.f32 0.0, %v1219
    %v1221 = vpop.f32.mrb[0].mxu0
    %1222 = vmatprep.mubr.f32.mxu0 %v302
    %1223 = vmatmul.mubr.f32.gmra.mrb[0].mxu0 %v301
    %v1224 = vpop.f32.mrb[0].mxu0
    %v1225 = vadd.f32 0.0, %v1224
    %v1226 = vpop.f32.mrb[0].mxu0
    %1227 = vmatprep.mubr.f32.mxu0 %v305
    %1228 = vmatmul.mubr.f32.gmra.mrb[0].mxu0 %v304
    %v1229 = vpop.f32.mrb[0].mxu0
    %v1230 = vadd.f32 0.0, %v1229
    %v1231 = vpop.f32.mrb[0].mxu0
    %1232 = vmatprep.mubr.f32.mxu0 %v308
    %1233 = vmatmul.mubr.f32.gmra.mrb[0].mxu0 %v307
    %v1234 = vpop.f32.mrb[0].mxu0
    %v1235 = vadd.f32 0.0, %v1234
    %v1236 = vpop.f32.mrb[0].mxu0
    %1237 = vmatprep.mubr.f32.mxu0 %v311
    %1238 = vmatmul.mubr.f32.gmra.mrb[0].mxu0 %v310
    %v1239 = vpop.f32.mrb[0].mxu0
    %v1240 = vadd.f32 0.0, %v1239
    %v1241 = vpop.f32.mrb[0].mxu0
    %1242 = vmatprep.mubr.f32.mxu0 %v314
    %1243 = vmatmul.mubr.f32.gmra.mrb[0].mxu0 %v313
    %v1244 = vpop.f32.mrb[0].mxu0
    %v1245 = vadd.f32 0.0, %v1244
    %v1246 = vpop.f32.mrb[0].mxu0
    %1247 = vmatprep.mubr.f32.mxu0 %v317
    %1248 = vmatmul.mubr.f32.gmra.mrb[0].mxu0 %v316
    %v1249 = vpop.f32.mrb[0].mxu0
    %v1250 = vadd.f32 0.0, %v1249
    %v1251 = vpop.f32.mrb[0].mxu0
    %1252 = vmatprep.mubr.f32.mxu0 %v320
    %1253 = vmatmul.mubr.f32.gmra.mrb[0].mxu0 %v319
    %v1254 = vpop.f32.mrb[0].mxu0
    %v1255 = vadd.f32 0.0, %v1254
    %v1256 = vpop.f32.mrb[0].mxu0
    %1257 = vmatprep.mubr.f32.mxu0 %v323
    %1258 = vmatmul.mubr.f32.gmra.mrb[0].mxu0 %v322
    %v1259 = vpop.f32.mrb[0].mxu0
    %v1260 = vadd.f32 0.0, %v1259
    %v1261 = vpop.f32.mrb[0].mxu0
    %1262 = vmatprep.mubr.f32.mxu0 %v326
    %1263 = vmatmul.mubr.f32.gmra.mrb[0].mxu0 %v325
    %v1264 = vpop.f32.mrb[0].mxu0
    %v1265 = vadd.f32 0.0, %v1264
    %v1266 = vpop.f32.mrb[0].mxu0
    %1267 = vmatprep.mubr.f32.mxu0 %v329
    %1268 = vmatmul.mubr.f32.gmra.mrb[0].mxu0 %v328
    %v1269 = vpop.f32.mrb[0].mxu0
    %v1270 = vadd.f32 0.0, %v1269
    %v1271 = vpop.f32.mrb[0].mxu0
    %1272 = vmatprep.mubr.f32.mxu0 %v332
    %1273 = vmatmul.mubr.f32.gmra.mrb[0].mxu0 %v331
    %v1274 = vpop.f32.mrb[0].mxu0
    %v1275 = vadd.f32 0.0, %v1274
    %v1276 = vpop.f32.mrb[0].mxu0
    %1277 = vmatprep.mubr.f32.mxu0 %v335
    %1278 = vmatmul.mubr.f32.gmra.mrb[0].mxu0 %v334
    %v1279 = vpop.f32.mrb[0].mxu0
    %v1280 = vadd.f32 0.0, %v1279
    %v1281 = vpop.f32.mrb[0].mxu0
    %1282 = vmatprep.mubr.f32.mxu0 %v338
    %1283 = vmatmul.mubr.f32.gmra.mrb[0].mxu0 %v337
    %v1284 = vpop.f32.mrb[0].mxu0
    %v1285 = vadd.f32 0.0, %v1284
    %v1286 = vpop.f32.mrb[0].mxu0
    %1287 = vmatprep.mubr.f32.mxu0 %v341
    %1288 = vmatmul.mubr.f32.gmra.mrb[0].mxu0 %v340
    %v1289 = vpop.f32.mrb[0].mxu0
    %v1290 = vadd.f32 0.0, %v1289
    %v1291 = vpop.f32.mrb[0].mxu0
    %1292 = vmatprep.mubr.f32.mxu0 %v344
    %1293 = vmatmul.mubr.f32.gmra.mrb[0].mxu0 %v343
    %v1294 = vpop.f32.mrb[0].mxu0
    %v1295 = vadd.f32 0.0, %v1294
    %v1296 = vpop.f32.mrb[0].mxu0
    %1297 = vmatprep.mubr.f32.mxu0 %v347
    %1298 = vmatmul.mubr.f32.gmra.mrb[0].mxu0 %v346
    %v1299 = vpop.f32.mrb[0].mxu0
    %v1300 = vadd.f32 0.0, %v1299
    %v1301 = vpop.f32.mrb[0].mxu0
    %1302 = vmatprep.mubr.f32.mxu0 %v350
    %1303 = vmatmul.mubr.f32.gmra.mrb[0].mxu0 %v349
    %v1304 = vpop.f32.mrb[0].mxu0
    %v1305 = vadd.f32 0.0, %v1304
    %v1306 = vpop.f32.mrb[0].mxu0
    %1307 = vmatprep.mubr.f32.mxu0 %v353
    %1308 = vmatmul.mubr.f32.gmra.mrb[0].mxu0 %v352
    %v1309 = vpop.f32.mrb[0].mxu0
    %v1310 = vadd.f32 0.0, %v1309
    %v1311 = vpop.f32.mrb[0].mxu0
    %1312 = vmatprep.mubr.f32.mxu0 %v356
    %1313 = vmatmul.mubr.f32.gmra.mrb[0].mxu0 %v355
    %v1314 = vpop.f32.mrb[0].mxu0
    %v1315 = vadd.f32 0.0, %v1314
    %v1316 = vpop.f32.mrb[0].mxu0
    %1317 = vmatprep.mubr.f32.mxu0 %v359
    %1318 = vmatmul.mubr.f32.gmra.mrb[0].mxu0 %v358
    %v1319 = vpop.f32.mrb[0].mxu0
    %v1320 = vadd.f32 0.0, %v1319
    %v1321 = vpop.f32.mrb[0].mxu0
    %1322 = vmatprep.mubr.f32.mxu0 %v362
    %1323 = vmatmul.mubr.f32.gmra.mrb[0].mxu0 %v361
    %v1324 = vpop.f32.mrb[0].mxu0
    %v1325 = vadd.f32 0.0, %v1324
    %v1326 = vpop.f32.mrb[0].mxu0
    %1327 = vmatprep.mubr.f32.mxu0 %v365
    %1328 = vmatmul.mubr.f32.gmra.mrb[0].mxu0 %v364
    %v1329 = vpop.f32.mrb[0].mxu0
    %v1330 = vadd.f32 0.0, %v1329
    %v1331 = vpop.f32.mrb[0].mxu0
    %1332 = vmatprep.mubr.f32.mxu0 %v368
    %1333 = vmatmul.mubr.f32.gmra.mrb[0].mxu0 %v367
    %v1334 = vpop.f32.mrb[0].mxu0
    %v1335 = vadd.f32 0.0, %v1334
    %v1336 = vpop.f32.mrb[0].mxu0
    %1337 = vmatprep.mubr.f32.mxu0 %v371
    %1338 = vmatmul.mubr.f32.gmra.mrb[0].mxu0 %v370
    %v1339 = vpop.f32.mrb[0].mxu0
    %v1340 = vadd.f32 0.0, %v1339
    %v1341 = vpop.f32.mrb[0].mxu0
    %1342 = vmatprep.mubr.f32.mxu0 %v374
    %1343 = vmatmul.mubr.f32.gmra.mrb[0].mxu0 %v373
    %v1344 = vpop.f32.mrb[0].mxu0
    %v1345 = vadd.f32 0.0, %v1344
    %v1346 = vpop.f32.mrb[0].mxu0
    %1347 = vmatprep.mubr.f32.mxu0 %v377
    %1348 = vmatmul.mubr.f32.gmra.mrb[0].mxu0 %v376
    %v1349 = vpop.f32.mrb[0].mxu0
    %v1350 = vadd.f32 0.0, %v1349
    %v1351 = vpop.f32.mrb[0].mxu0
    %1352 = vmatprep.mubr.f32.mxu0 %v380
    %1353 = vmatmul.mubr.f32.gmra.mrb[0].mxu0 %v379
    %v1354 = vpop.f32.mrb[0].mxu0
    %v1355 = vadd.f32 0.0, %v1354
    %v1356 = vpop.f32.mrb[0].mxu0
    %1357 = vmatprep.mubr.f32.mxu0 %v383
    %1358 = vmatmul.mubr.f32.gmra.mrb[0].mxu0 %v382
    %v1359 = vpop.f32.mrb[0].mxu0
    %v1360 = vadd.f32 0.0, %v1359
    %v1361 = vpop.f32.mrb[0].mxu0
    %1362 = vmatprep.mubr.f32.mxu0 %v386
    %1363 = vmatmul.mubr.f32.gmra.mrb[0].mxu0 %v385
    %v1364 = vpop.f32.mrb[0].mxu0
    %v1365 = vadd.f32 0.0, %v1364
    %v1366 = vpop.f32.mrb[0].mxu0
    %1367 = vmatprep.mubr.f32.mxu0 %v389
    %1368 = vmatmul.mubr.f32.gmra.mrb[0].mxu0 %v388
    %v1369 = vpop.f32.mrb[0].mxu0
    %v1370 = vadd.f32 0.0, %v1369
    %v1371 = vpop.f32.mrb[0].mxu0
    %1372 = vmatprep.mubr.f32.mxu0 %v392
    %1373 = vmatmul.mubr.f32.gmra.mrb[0].mxu0 %v391
    %v1374 = vpop.f32.mrb[0].mxu0
    %v1375 = vadd.f32 0.0, %v1374
    %v1376 = vpop.f32.mrb[0].mxu0
    %1377 = vmatprep.mubr.f32.mxu0 %v395
    %1378 = vmatmul.mubr.f32.gmra.mrb[0].mxu0 %v394
    %v1379 = vpop.f32.mrb[0].mxu0
    %v1380 = vadd.f32 0.0, %v1379
    %v1381 = vpop.f32.mrb[0].mxu0
    %1382 = vmatprep.mubr.f32.mxu0 %v398
    %1383 = vmatmul.mubr.f32.gmra.mrb[0].mxu0 %v397
    %v1384 = vpop.f32.mrb[0].mxu0
    %v1385 = vadd.f32 0.0, %v1384
    %v1386 = vpop.f32.mrb[0].mxu0
    %1387 = vmatprep.mubr.f32.mxu0 %v401
    %1388 = vmatmul.mubr.f32.gmra.mrb[0].mxu0 %v400
    %v1389 = vpop.f32.mrb[0].mxu0
    %v1390 = vadd.f32 0.0, %v1389
    %v1391 = vpop.f32.mrb[0].mxu0
    %1392 = vmatprep.mubr.f32.mxu0 %v404
    %1393 = vmatmul.mubr.f32.gmra.mrb[0].mxu0 %v403
    %v1394 = vpop.f32.mrb[0].mxu0
    %v1395 = vadd.f32 0.0, %v1394
    %v1396 = vpop.f32.mrb[0].mxu0
    %1397 = vmatprep.mubr.f32.mxu0 %v407
    %1398 = vmatmul.mubr.f32.gmra.mrb[0].mxu0 %v406
    %v1399 = vpop.f32.mrb[0].mxu0
    %v1400 = vadd.f32 0.0, %v1399
    %v1401 = vpop.f32.mrb[0].mxu0
    %1402 = vmatprep.mubr.f32.mxu0 %v410
    %1403 = vmatmul.mubr.f32.gmra.mrb[0].mxu0 %v409
    %v1404 = vpop.f32.mrb[0].mxu0
    %v1405 = vadd.f32 0.0, %v1404
    %v1406 = vpop.f32.mrb[0].mxu0
    %1407 = vdwg.mxu0
    %1408 = vmatprep.subr.mxu0 0.0
    %1409 = vmatpush1.msra.mxu0 %v270
    %1410 = vmatprep.subr.mxu0 0.0
    %1411 = vmatpush1.msra.mxu0 %v273
    %1412 = vmatprep.subr.mxu0 0.0
    %1413 = vmatpush1.msra.mxu0 %v276
    %1414 = vmatprep.subr.mxu0 0.0
    %1415 = vmatpush1.msra.mxu0 %v279
    %1416 = vmatprep.subr.mxu0 0.0
    %1417 = vmatpush1.msra.mxu0 %v282
    %1418 = vmatprep.subr.mxu0 0.0
    %1419 = vmatpush1.msra.mxu0 %v285
    %1420 = vmatprep.subr.mxu0 0.0
    %1421 = vmatpush1.msra.mxu0 %v288
    %1422 = vmatprep.subr.mxu0 0.0
    %1423 = vmatpush1.msra.mxu0 %v291
    %1424 = vmatprep.subr.mxu0 0.0
    %1425 = vmatpush1.msra.mxu0 0.0
    %1426 = vmatprep.subr.mxu0 0.0
    %1427 = vmatpush1.msra.mxu0 0.0
    %1428 = vmatprep.subr.mxu0 0.0
    %1429 = vmatpush1.msra.mxu0 0.0
    %1430 = vmatprep.subr.mxu0 0.0
    %1431 = vmatpush1.msra.mxu0 0.0
    %1432 = vmatprep.subr.mxu0 0.0
    %1433 = vmatpush1.msra.mxu0 0.0
    %1434 = vmatprep.subr.mxu0 0.0
    %1435 = vmatpush1.msra.mxu0 0.0
    %1436 = vmatprep.subr.mxu0 0.0
    %1437 = vmatpush1.msra.mxu0 0.0
    %1438 = vmatprep.subr.mxu0 0.0
    %1439 = vmatpush1.msra.mxu0 0.0
    %1440 = vmatprep.subr.mxu0 0.0
    %1441 = vmatpush1.msra.mxu0 0.0
    %1442 = vmatprep.subr.mxu0 0.0
    %1443 = vmatpush1.msra.mxu0 0.0
    %1444 = vmatprep.subr.mxu0 0.0
    %1445 = vmatpush1.msra.mxu0 0.0
    %1446 = vmatprep.subr.mxu0 0.0
    %1447 = vmatpush1.msra.mxu0 0.0
    %1448 = vmatprep.subr.mxu0 0.0
    %1449 = vmatpush1.msra.mxu0 0.0
    %1450 = vmatprep.subr.mxu0 0.0
    %1451 = vmatpush1.msra.mxu0 0.0
    %1452 = vmatprep.subr.mxu0 0.0
    %1453 = vmatpush1.msra.mxu0 0.0
    %1454 = vmatprep.subr.mxu0 0.0
    %1455 = vmatpush1.msra.mxu0 0.0
    %1456 = vmatprep.subr.mxu0 0.0
    %1457 = vmatpush1.msra.mxu0 0.0
    %1458 = vmatprep.subr.mxu0 0.0
    %1459 = vmatpush1.msra.mxu0 0.0
    %1460 = vmatprep.subr.mxu0 0.0
    %1461 = vmatpush1.msra.mxu0 0.0
    %1462 = vmatprep.subr.mxu0 0.0
    %1463 = vmatpush1.msra.mxu0 0.0
    %1464 = vmatprep.subr.mxu0 0.0
    %1465 = vmatpush1.msra.mxu0 0.0
    %1466 = vmatprep.subr.mxu0 0.0
    %1467 = vmatpush1.msra.mxu0 0.0
    %1468 = vmatprep.subr.mxu0 0.0
    %1469 = vmatpush1.msra.mxu0 0.0
    %1470 = vmatprep.subr.mxu0 0.0
    %1471 = vmatpush1.msra.mxu0 0.0
    %1472 = vmatprep.mubr.f32.mxu0 0.0
    %1473 = vmatmul.mubr.f32.gmra.mrb[0].mxu0 %v414
    %v1474 = vpop.f32.mrb[0].mxu0
    %v1475 = vadd.f32 %v1210, %v1474
    %v1476 = vpop.f32.mrb[0].mxu0
    %1477 = vmatprep.mubr.f32.mxu0 0.0
    %1478 = vmatmul.mubr.f32.gmra.mrb[0].mxu0 %v417
    %v1479 = vpop.f32.mrb[0].mxu0
    %v1480 = vadd.f32 %v1215, %v1479
    %v1481 = vpop.f32.mrb[0].mxu0
    %1482 = vmatprep.mubr.f32.mxu0 0.0
    %1483 = vmatmul.mubr.f32.gmra.mrb[0].mxu0 %v420
    %v1484 = vpop.f32.mrb[0].mxu0
    %v1485 = vadd.f32 %v1220, %v1484
    %v1486 = vpop.f32.mrb[0].mxu0
    %1487 = vmatprep.mubr.f32.mxu0 0.0
    %1488 = vmatmul.mubr.f32.gmra.mrb[0].mxu0 %v423
    %v1489 = vpop.f32.mrb[0].mxu0
    %v1490 = vadd.f32 %v1225, %v1489
    %v1491 = vpop.f32.mrb[0].mxu0
    %1492 = vmatprep.mubr.f32.mxu0 0.0
    %1493 = vmatmul.mubr.f32.gmra.mrb[0].mxu0 %v426
    %v1494 = vpop.f32.mrb[0].mxu0
    %v1495 = vadd.f32 %v1230, %v1494
    %v1496 = vpop.f32.mrb[0].mxu0
    %1497 = vmatprep.mubr.f32.mxu0 0.0
    %1498 = vmatmul.mubr.f32.gmra.mrb[0].mxu0 %v429
    %v1499 = vpop.f32.mrb[0].mxu0
    %v1500 = vadd.f32 %v1235, %v1499
    %v1501 = vpop.f32.mrb[0].mxu0
    %1502 = vmatprep.mubr.f32.mxu0 0.0
    %1503 = vmatmul.mubr.f32.gmra.mrb[0].mxu0 %v432
    %v1504 = vpop.f32.mrb[0].mxu0
    %v1505 = vadd.f32 %v1240, %v1504
    %v1506 = vpop.f32.mrb[0].mxu0
    %1507 = vmatprep.mubr.f32.mxu0 0.0
    %1508 = vmatmul.mubr.f32.gmra.mrb[0].mxu0 %v435
    %v1509 = vpop.f32.mrb[0].mxu0
    %v1510 = vadd.f32 %v1245, %v1509
    %v1511 = vpop.f32.mrb[0].mxu0
    %1512 = vmatprep.mubr.f32.mxu0 0.0
    %1513 = vmatmul.mubr.f32.gmra.mrb[0].mxu0 %v438
    %v1514 = vpop.f32.mrb[0].mxu0
    %v1515 = vadd.f32 %v1250, %v1514
    %v1516 = vpop.f32.mrb[0].mxu0
    %1517 = vmatprep.mubr.f32.mxu0 0.0
    %1518 = vmatmul.mubr.f32.gmra.mrb[0].mxu0 %v441
    %v1519 = vpop.f32.mrb[0].mxu0
    %v1520 = vadd.f32 %v1255, %v1519
    %v1521 = vpop.f32.mrb[0].mxu0
    %1522 = vmatprep.mubr.f32.mxu0 0.0
    %1523 = vmatmul.mubr.f32.gmra.mrb[0].mxu0 %v444
    %v1524 = vpop.f32.mrb[0].mxu0
    %v1525 = vadd.f32 %v1260, %v1524
    %v1526 = vpop.f32.mrb[0].mxu0
    %1527 = vmatprep.mubr.f32.mxu0 0.0
    %1528 = vmatmul.mubr.f32.gmra.mrb[0].mxu0 %v447
    %v1529 = vpop.f32.mrb[0].mxu0
    %v1530 = vadd.f32 %v1265, %v1529
    %v1531 = vpop.f32.mrb[0].mxu0
    %1532 = vmatprep.mubr.f32.mxu0 0.0
    %1533 = vmatmul.mubr.f32.gmra.mrb[0].mxu0 %v450
    %v1534 = vpop.f32.mrb[0].mxu0
    %v1535 = vadd.f32 %v1270, %v1534
    %v1536 = vpop.f32.mrb[0].mxu0
    %1537 = vmatprep.mubr.f32.mxu0 0.0
    %1538 = vmatmul.mubr.f32.gmra.mrb[0].mxu0 %v453
    %v1539 = vpop.f32.mrb[0].mxu0
    %v1540 = vadd.f32 %v1275, %v1539
    %v1541 = vpop.f32.mrb[0].mxu0
    %1542 = vmatprep.mubr.f32.mxu0 0.0
    %1543 = vmatmul.mubr.f32.gmra.mrb[0].mxu0 %v456
    %v1544 = vpop.f32.mrb[0].mxu0
    %v1545 = vadd.f32 %v1280, %v1544
    %v1546 = vpop.f32.mrb[0].mxu0
    %1547 = vmatprep.mubr.f32.mxu0 0.0
    %1548 = vmatmul.mubr.f32.gmra.mrb[0].mxu0 %v459
    %v1549 = vpop.f32.mrb[0].mxu0
    %v1550 = vadd.f32 %v1285, %v1549
    %v1551 = vpop.f32.mrb[0].mxu0
    %1552 = vmatprep.mubr.f32.mxu0 0.0
    %1553 = vmatmul.mubr.f32.gmra.mrb[0].mxu0 %v462
    %v1554 = vpop.f32.mrb[0].mxu0
    %v1555 = vadd.f32 %v1290, %v1554
    %v1556 = vpop.f32.mrb[0].mxu0
    %1557 = vmatprep.mubr.f32.mxu0 0.0
    %1558 = vmatmul.mubr.f32.gmra.mrb[0].mxu0 %v465
    %v1559 = vpop.f32.mrb[0].mxu0
    %v1560 = vadd.f32 %v1295, %v1559
    %v1561 = vpop.f32.mrb[0].mxu0
    %1562 = vmatprep.mubr.f32.mxu0 0.0
    %1563 = vmatmul.mubr.f32.gmra.mrb[0].mxu0 %v468
    %v1564 = vpop.f32.mrb[0].mxu0
    %v1565 = vadd.f32 %v1300, %v1564
    %v1566 = vpop.f32.mrb[0].mxu0
    %1567 = vmatprep.mubr.f32.mxu0 0.0
    %1568 = vmatmul.mubr.f32.gmra.mrb[0].mxu0 %v471
    %v1569 = vpop.f32.mrb[0].mxu0
    %v1570 = vadd.f32 %v1305, %v1569
    %v1571 = vpop.f32.mrb[0].mxu0
    %1572 = vmatprep.mubr.f32.mxu0 0.0
    %1573 = vmatmul.mubr.f32.gmra.mrb[0].mxu0 %v474
    %v1574 = vpop.f32.mrb[0].mxu0
    %v1575 = vadd.f32 %v1310, %v1574
    %v1576 = vpop.f32.mrb[0].mxu0
    %1577 = vmatprep.mubr.f32.mxu0 0.0
    %1578 = vmatmul.mubr.f32.gmra.mrb[0].mxu0 %v477
    %v1579 = vpop.f32.mrb[0].mxu0
    %v1580 = vadd.f32 %v1315, %v1579
    %v1581 = vpop.f32.mrb[0].mxu0
    %1582 = vmatprep.mubr.f32.mxu0 0.0
    %1583 = vmatmul.mubr.f32.gmra.mrb[0].mxu0 %v480
    %v1584 = vpop.f32.mrb[0].mxu0
    %v1585 = vadd.f32 %v1320, %v1584
    %v1586 = vpop.f32.mrb[0].mxu0
    %1587 = vmatprep.mubr.f32.mxu0 0.0
    %1588 = vmatmul.mubr.f32.gmra.mrb[0].mxu0 %v483
    %v1589 = vpop.f32.mrb[0].mxu0
    %v1590 = vadd.f32 %v1325, %v1589
    %v1591 = vpop.f32.mrb[0].mxu0
    %1592 = vmatprep.mubr.f32.mxu0 0.0
    %1593 = vmatmul.mubr.f32.gmra.mrb[0].mxu0 %v486
    %v1594 = vpop.f32.mrb[0].mxu0
    %v1595 = vadd.f32 %v1330, %v1594
    %v1596 = vpop.f32.mrb[0].mxu0
    %1597 = vmatprep.mubr.f32.mxu0 0.0
    %1598 = vmatmul.mubr.f32.gmra.mrb[0].mxu0 %v489
    %v1599 = vpop.f32.mrb[0].mxu0
    %v1600 = vadd.f32 %v1335, %v1599
    %v1601 = vpop.f32.mrb[0].mxu0
    %1602 = vmatprep.mubr.f32.mxu0 0.0
    %1603 = vmatmul.mubr.f32.gmra.mrb[0].mxu0 %v492
    %v1604 = vpop.f32.mrb[0].mxu0
    %v1605 = vadd.f32 %v1340, %v1604
    %v1606 = vpop.f32.mrb[0].mxu0
    %1607 = vmatprep.mubr.f32.mxu0 0.0
    %1608 = vmatmul.mubr.f32.gmra.mrb[0].mxu0 %v495
    %v1609 = vpop.f32.mrb[0].mxu0
    %v1610 = vadd.f32 %v1345, %v1609
    %v1611 = vpop.f32.mrb[0].mxu0
    %1612 = vmatprep.mubr.f32.mxu0 0.0
    %1613 = vmatmul.mubr.f32.gmra.mrb[0].mxu0 %v498
    %v1614 = vpop.f32.mrb[0].mxu0
    %v1615 = vadd.f32 %v1350, %v1614
    %v1616 = vpop.f32.mrb[0].mxu0
    %1617 = vmatprep.mubr.f32.mxu0 0.0
    %1618 = vmatmul.mubr.f32.gmra.mrb[0].mxu0 %v501
    %v1619 = vpop.f32.mrb[0].mxu0
    %v1620 = vadd.f32 %v1355, %v1619
    %v1621 = vpop.f32.mrb[0].mxu0
    %1622 = vmatprep.mubr.f32.mxu0 0.0
    %1623 = vmatmul.mubr.f32.gmra.mrb[0].mxu0 %v504
    %v1624 = vpop.f32.mrb[0].mxu0
    %v1625 = vadd.f32 %v1360, %v1624
    %v1626 = vpop.f32.mrb[0].mxu0
    %1627 = vmatprep.mubr.f32.mxu0 0.0
    %1628 = vmatmul.mubr.f32.gmra.mrb[0].mxu0 %v507
    %v1629 = vpop.f32.mrb[0].mxu0
    %v1630 = vadd.f32 %v1365, %v1629
    %v1631 = vpop.f32.mrb[0].mxu0
    %1632 = vmatprep.mubr.f32.mxu0 0.0
    %1633 = vmatmul.mubr.f32.gmra.mrb[0].mxu0 %v510
    %v1634 = vpop.f32.mrb[0].mxu0
    %v1635 = vadd.f32 %v1370, %v1634
    %v1636 = vpop.f32.mrb[0].mxu0
    %1637 = vmatprep.mubr.f32.mxu0 0.0
    %1638 = vmatmul.mubr.f32.gmra.mrb[0].mxu0 %v513
    %v1639 = vpop.f32.mrb[0].mxu0
    %v1640 = vadd.f32 %v1375, %v1639
    %v1641 = vpop.f32.mrb[0].mxu0
    %1642 = vmatprep.mubr.f32.mxu0 0.0
    %1643 = vmatmul.mubr.f32.gmra.mrb[0].mxu0 %v516
    %v1644 = vpop.f32.mrb[0].mxu0
    %v1645 = vadd.f32 %v1380, %v1644
    %v1646 = vpop.f32.mrb[0].mxu0
    %1647 = vmatprep.mubr.f32.mxu0 0.0
    %1648 = vmatmul.mubr.f32.gmra.mrb[0].mxu0 %v519
    %v1649 = vpop.f32.mrb[0].mxu0
    %v1650 = vadd.f32 %v1385, %v1649
    %v1651 = vpop.f32.mrb[0].mxu0
    %1652 = vmatprep.mubr.f32.mxu0 0.0
    %1653 = vmatmul.mubr.f32.gmra.mrb[0].mxu0 %v522
    %v1654 = vpop.f32.mrb[0].mxu0
    %v1655 = vadd.f32 %v1390, %v1654
    %v1656 = vpop.f32.mrb[0].mxu0
    %1657 = vmatprep.mubr.f32.mxu0 0.0
    %1658 = vmatmul.mubr.f32.gmra.mrb[0].mxu0 %v525
    %v1659 = vpop.f32.mrb[0].mxu0
    %v1660 = vadd.f32 %v1395, %v1659
    %v1661 = vpop.f32.mrb[0].mxu0
    %1662 = vmatprep.mubr.f32.mxu0 0.0
    %1663 = vmatmul.mubr.f32.gmra.mrb[0].mxu0 %v528
    %v1664 = vpop.f32.mrb[0].mxu0
    %v1665 = vadd.f32 %v1400, %v1664
    %v1666 = vpop.f32.mrb[0].mxu0
    %1667 = vmatprep.mubr.f32.mxu0 0.0
    %1668 = vmatmul.mubr.f32.gmra.mrb[0].mxu0 %v531
    %v1669 = vpop.f32.mrb[0].mxu0
    %v1670 = vadd.f32 %v1405, %v1669
    %v1671 = vpop.f32.mrb[0].mxu0
    %1672 = vdwg.mxu0
    %v1673 = vld [vmem:[%s5] sm:$0xff]
    %v1674 = vld [vmem:[%s5 + $0x8] sm:$0xff]
    %v1675 = vld [vmem:[%s5 + $0x10] sm:$0xff]
    %v1676 = vld [vmem:[%s5 + $0x18] sm:$0xff]
    %v1677 = vld [vmem:[%s5 + $0x20] sm:$0xff]
    %v1678 = vld [vmem:[%s5 + $0x28] sm:$0xff]
    %v1679 = vld [vmem:[%s5 + $0x30] sm:$0xff]
    %v1680 = vld [vmem:[%s5 + $0x38] sm:$0xff]
    %v1681 = vld [vmem:[%s5 + $0x40] sm:$0xff]
    %v1682 = vld [vmem:[%s5 + $0x48] sm:$0xff]
    %v1683 = vld [vmem:[%s5 + $0x50] sm:$0xff]
    %v1684 = vld [vmem:[%s5 + $0x58] sm:$0xff]
    %v1685 = vld [vmem:[%s5 + $0x60] sm:$0xff]
    %v1686 = vld [vmem:[%s5 + $0x68] sm:$0xff]
    %v1687 = vld [vmem:[%s5 + $0x70] sm:$0xff]
    %v1688 = vld [vmem:[%s5 + $0x78] sm:$0xff]
    %v1689 = vld [vmem:[%s5 + $0x80] sm:$0xff]
    %v1690 = vld [vmem:[%s5 + $0x88] sm:$0xff]
    %v1691 = vld [vmem:[%s5 + $0x90] sm:$0xff]
    %v1692 = vld [vmem:[%s5 + $0x98] sm:$0xff]
    %v1693 = vld [vmem:[%s5 + $0xa0] sm:$0xff]
    %v1694 = vld [vmem:[%s5 + $0xa8] sm:$0xff]
    %v1695 = vld [vmem:[%s5 + $0xb0] sm:$0xff]
    %v1696 = vld [vmem:[%s5 + $0xb8] sm:$0xff]
    %v1697 = vld [vmem:[%s5 + $0xc0] sm:$0xff]
    %v1698 = vld [vmem:[%s5 + $0xc8] sm:$0xff]
    %v1699 = vld [vmem:[%s5 + $0xd0] sm:$0xff]
    %v1700 = vld [vmem:[%s5 + $0xd8] sm:$0xff]
    %v1701 = vld [vmem:[%s5 + $0xe0] sm:$0xff]
    %v1702 = vld [vmem:[%s5 + $0xe8] sm:$0xff]
    %v1703 = vld [vmem:[%s5 + $0xf0] sm:$0xff]
    %v1704 = vld [vmem:[%s5 + $0xf8] sm:$0xff]
    %v1705 = vld [vmem:[%s5 + $0x100] sm:$0xff]
    %v1706 = vld [vmem:[%s5 + $0x108] sm:$0xff]
    %v1707 = vld [vmem:[%s5 + $0x110] sm:$0xff]
    %v1708 = vld [vmem:[%s5 + $0x118] sm:$0xff]
    %v1709 = vld [vmem:[%s5 + $0x120] sm:$0xff]
    %v1710 = vld [vmem:[%s5 + $0x128] sm:$0xff]
    %v1711 = vld [vmem:[%s5 + $0x130] sm:$0xff]
    %v1712 = vld [vmem:[%s5 + $0x138] sm:$0xff]
    %v1713 = vld [vmem:[%s5 + $0x140] sm:$0xff]
    %v1714 = vld [vmem:[%s5 + $0x148] sm:$0xff]
    %v1715 = vld [vmem:[%s5 + $0x150] sm:$0xff]
    %v1716 = vld [vmem:[%s5 + $0x158] sm:$0xff]
    %v1717 = vld [vmem:[%s5 + $0x160] sm:$0xff]
    %v1718 = vld [vmem:[%s5 + $0x168] sm:$0xff]
    %v1719 = vld [vmem:[%s5 + $0x170] sm:$0xff]
    %v1720 = vld [vmem:[%s5 + $0x178] sm:$0xff]
    %v1721 = vld [vmem:[%s5 + $0x180] sm:$0xff]
    %v1722 = vld [vmem:[%s5 + $0x188] sm:$0xff]
    %v1723 = vld [vmem:[%s5 + $0x190] sm:$0xff]
    %v1724 = vld [vmem:[%s5 + $0x198] sm:$0xff]
    %v1725 = vld [vmem:[%s5 + $0x1a0] sm:$0xff]
    %v1726 = vld [vmem:[%s5 + $0x1a8] sm:$0xff]
    %v1727 = vld [vmem:[%s5 + $0x1b0] sm:$0xff]
    %v1728 = vld [vmem:[%s5 + $0x1b8] sm:$0xff]
    %v1729 = vld [vmem:[%s5 + $0x1c0] sm:$0xff]
    %v1730 = vld [vmem:[%s5 + $0x1c8] sm:$0xff]
    %v1731 = vld [vmem:[%s5 + $0x1d0] sm:$0xff]
    %v1732 = vld [vmem:[%s5 + $0x1d8] sm:$0xff]
    %v1733 = vld [vmem:[%s5 + $0x1e0] sm:$0xff]
    %v1734 = vld [vmem:[%s5 + $0x1e8] sm:$0xff]
    %v1735 = vld [vmem:[%s5 + $0x1f0] sm:$0xff]
    %v1736 = vld [vmem:[%s5 + $0x1f8] sm:$0xff]
    %v1737 = vld [vmem:[%s5 + $0x200] sm:$0xff]
    %v1738 = vld [vmem:[%s5 + $0x208] sm:$0xff]
    %v1739 = vld [vmem:[%s5 + $0x210] sm:$0xff]
    %v1740 = vld [vmem:[%s5 + $0x218] sm:$0xff]
    %v1741 = vld [vmem:[%s5 + $0x220] sm:$0xff]
    %v1742 = vld [vmem:[%s5 + $0x228] sm:$0xff]
    %v1743 = vld [vmem:[%s5 + $0x230] sm:$0xff]
    %v1744 = vld [vmem:[%s5 + $0x238] sm:$0xff]
    %v1745 = vld [vmem:[%s5 + $0x240] sm:$0xff]
    %v1746 = vld [vmem:[%s5 + $0x248] sm:$0xff]
    %v1747 = vld [vmem:[%s5 + $0x250] sm:$0xff]
    %v1748 = vld [vmem:[%s5 + $0x258] sm:$0xff]
    %v1749 = vld [vmem:[%s5 + $0x260] sm:$0xff]
    %v1750 = vld [vmem:[%s5 + $0x268] sm:$0xff]
    %v1751 = vld [vmem:[%s5 + $0x270] sm:$0xff]
    %v1752 = vld [vmem:[%s5 + $0x278] sm:$0xff]
    %v1753 = vld [vmem:[%s5 + $0x280] sm:$0xff]
    %v1754 = vld [vmem:[%s5 + $0x288] sm:$0xff]
    %v1755 = vld [vmem:[%s5 + $0x290] sm:$0xff]
    %v1756 = vld [vmem:[%s5 + $0x298] sm:$0xff]
    %v1757 = vld [vmem:[%s5 + $0x2a0] sm:$0xff]
    %v1758 = vld [vmem:[%s5 + $0x2a8] sm:$0xff]
    %v1759 = vld [vmem:[%s5 + $0x2b0] sm:$0xff]
    %v1760 = vld [vmem:[%s5 + $0x2b8] sm:$0xff]
    %v1761 = vld [vmem:[%s5 + $0x2c0] sm:$0xff]
    %v1762 = vld [vmem:[%s5 + $0x2c8] sm:$0xff]
    %v1763 = vld [vmem:[%s5 + $0x2d0] sm:$0xff]
    %v1764 = vld [vmem:[%s5 + $0x2d8] sm:$0xff]
    %v1765 = vld [vmem:[%s5 + $0x2e0] sm:$0xff]
    %v1766 = vld [vmem:[%s5 + $0x2e8] sm:$0xff]
    %v1767 = vld [vmem:[%s5 + $0x2f0] sm:$0xff]
    %v1768 = vld [vmem:[%s5 + $0x2f8] sm:$0xff]
    %v1769 = vld [vmem:[%s5 + $0x300] sm:$0xff]
    %v1770 = vld [vmem:[%s5 + $0x308] sm:$0xff]
    %v1771 = vld [vmem:[%s5 + $0x310] sm:$0xff]
    %v1772 = vld [vmem:[%s5 + $0x318] sm:$0xff]
    %v1773 = vld [vmem:[%s5 + $0x320] sm:$0xff]
    %v1774 = vld [vmem:[%s5 + $0x328] sm:$0xff]
    %v1775 = vld [vmem:[%s5 + $0x330] sm:$0xff]
    %v1776 = vld [vmem:[%s5 + $0x338] sm:$0xff]
    %v1777 = vld [vmem:[%s5 + $0x340] sm:$0xff]
    %v1778 = vld [vmem:[%s5 + $0x348] sm:$0xff]
    %v1779 = vld [vmem:[%s5 + $0x350] sm:$0xff]
    %v1780 = vld [vmem:[%s5 + $0x358] sm:$0xff]
    %v1781 = vld [vmem:[%s5 + $0x360] sm:$0xff]
    %v1782 = vld [vmem:[%s5 + $0x368] sm:$0xff]
    %v1783 = vld [vmem:[%s5 + $0x370] sm:$0xff]
    %v1784 = vld [vmem:[%s5 + $0x378] sm:$0xff]
    %v1785 = vld [vmem:[%s5 + $0x380] sm:$0xff]
    %v1786 = vld [vmem:[%s5 + $0x388] sm:$0xff]
    %v1787 = vld [vmem:[%s5 + $0x390] sm:$0xff]
    %v1788 = vld [vmem:[%s5 + $0x398] sm:$0xff]
    %v1789 = vld [vmem:[%s5 + $0x3a0] sm:$0xff]
    %v1790 = vld [vmem:[%s5 + $0x3a8] sm:$0xff]
    %v1791 = vld [vmem:[%s5 + $0x3b0] sm:$0xff]
    %v1792 = vld [vmem:[%s5 + $0x3b8] sm:$0xff]
    %v1793 = vld [vmem:[%s5 + $0x3c0] sm:$0xff]
    %v1794 = vld [vmem:[%s5 + $0x3c8] sm:$0xff]
    %v1795 = vld [vmem:[%s5 + $0x3d0] sm:$0xff]
    %v1796 = vld [vmem:[%s5 + $0x3d8] sm:$0xff]
    %v1797 = vld [vmem:[%s5 + $0x3e0] sm:$0xff]
    %v1798 = vld [vmem:[%s5 + $0x3e8] sm:$0xff]
    %v1799 = vld [vmem:[%s5 + $0x3f0] sm:$0xff]
    %v1800 = vld [vmem:[%s5 + $0x3f8] sm:$0xff]
    %v1801 = vld [vmem:[%s5 + $0x400] sm:$0xff]
    %v1802 = vld [vmem:[%s5 + $0x408] sm:$0xff]
    %v1803 = vld [vmem:[%s5 + $0x410] sm:$0xff]
    %v1804 = vld [vmem:[%s5 + $0x418] sm:$0xff]
    %v1805 = vld [vmem:[%s5 + $0x420] sm:$0xff]
    %v1806 = vld [vmem:[%s5 + $0x428] sm:$0xff]
    %v1807 = vld [vmem:[%s5 + $0x430] sm:$0xff]
    %v1808 = vld [vmem:[%s5 + $0x438] sm:$0xff]
    %v1809 = vld [vmem:[%s5 + $0x440] sm:$0xff]
    %v1810 = vld [vmem:[%s5 + $0x448] sm:$0xff]
    %v1811 = vld [vmem:[%s5 + $0x450] sm:$0xff]
    %v1812 = vld [vmem:[%s5 + $0x458] sm:$0xff]
    %v1813 = vld [vmem:[%s5 + $0x460] sm:$0xff]
    %v1814 = vld [vmem:[%s5 + $0x468] sm:$0xff]
    %v1815 = vld [vmem:[%s5 + $0x470] sm:$0xff]
    %v1816 = vld [vmem:[%s5 + $0x478] sm:$0xff]
    %1817 = vmatprep.subr.mxu0 %v1674
    %1818 = vmatpush1.msra.mxu0 %v1673
    %1819 = vmatprep.subr.mxu0 %v1677
    %1820 = vmatpush1.msra.mxu0 %v1676
    %1821 = vmatprep.subr.mxu0 %v1680
    %1822 = vmatpush1.msra.mxu0 %v1679
    %1823 = vmatprep.subr.mxu0 %v1683
    %1824 = vmatpush1.msra.mxu0 %v1682
    %1825 = vmatprep.subr.mxu0 %v1686
    %1826 = vmatpush1.msra.mxu0 %v1685
    %1827 = vmatprep.subr.mxu0 %v1689
    %1828 = vmatpush1.msra.mxu0 %v1688
    %1829 = vmatprep.subr.mxu0 %v1692
    %1830 = vmatpush1.msra.mxu0 %v1691
    %1831 = vmatprep.subr.mxu0 %v1695
    %1832 = vmatpush1.msra.mxu0 %v1694
    %1833 = vmatprep.subr.mxu0 %v1698
    %1834 = vmatpush1.msra.mxu0 %v1697
    %1835 = vmatprep.subr.mxu0 %v1701
    %1836 = vmatpush1.msra.mxu0 %v1700
    %1837 = vmatprep.subr.mxu0 %v1704
    %1838 = vmatpush1.msra.mxu0 %v1703
    %1839 = vmatprep.subr.mxu0 %v1707
    %1840 = vmatpush1.msra.mxu0 %v1706
    %1841 = vmatprep.subr.mxu0 %v1710
    %1842 = vmatpush1.msra.mxu0 %v1709
    %1843 = vmatprep.subr.mxu0 %v1713
    %1844 = vmatpush1.msra.mxu0 %v1712
    %1845 = vmatprep.subr.mxu0 %v1716
    %1846 = vmatpush1.msra.mxu0 %v1715
    %1847 = vmatprep.subr.mxu0 %v1719
    %1848 = vmatpush1.msra.mxu0 %v1718
    %1849 = vmatprep.subr.mxu0 %v1722
    %1850 = vmatpush1.msra.mxu0 %v1721
    %1851 = vmatprep.subr.mxu0 %v1725
    %1852 = vmatpush1.msra.mxu0 %v1724
    %1853 = vmatprep.subr.mxu0 %v1728
    %1854 = vmatpush1.msra.mxu0 %v1727
    %1855 = vmatprep.subr.mxu0 %v1731
    %1856 = vmatpush1.msra.mxu0 %v1730
    %1857 = vmatprep.subr.mxu0 %v1734
    %1858 = vmatpush1.msra.mxu0 %v1733
    %1859 = vmatprep.subr.mxu0 %v1737
    %1860 = vmatpush1.msra.mxu0 %v1736
    %1861 = vmatprep.subr.mxu0 %v1740
    %1862 = vmatpush1.msra.mxu0 %v1739
    %1863 = vmatprep.subr.mxu0 %v1743
    %1864 = vmatpush1.msra.mxu0 %v1742
    %1865 = vmatprep.subr.mxu0 %v1746
    %1866 = vmatpush1.msra.mxu0 %v1745
    %1867 = vmatprep.subr.mxu0 %v1749
    %1868 = vmatpush1.msra.mxu0 %v1748
    %1869 = vmatprep.subr.mxu0 %v1752
    %1870 = vmatpush1.msra.mxu0 %v1751
    %1871 = vmatprep.subr.mxu0 %v1755
    %1872 = vmatpush1.msra.mxu0 %v1754
    %1873 = vmatprep.subr.mxu0 %v1758
    %1874 = vmatpush1.msra.mxu0 %v1757
    %1875 = vmatprep.subr.mxu0 %v1761
    %1876 = vmatpush1.msra.mxu0 %v1760
    %1877 = vmatprep.subr.mxu0 %v1764
    %1878 = vmatpush1.msra.mxu0 %v1763
    %1879 = vmatprep.subr.mxu0 %v1767
    %1880 = vmatpush1.msra.mxu0 %v1766
    %1881 = vmatprep.mubr.f32.mxu0 %v907
    %1882 = vmatmul.mubr.f32.gmra.mrb[0].mxu0 %v905
    %v1883 = vpop.f32.mrb[0].mxu0
    %v1884 = vadd.f32 0.0, %v1883
    %v1885 = vpop.f32.mrb[0].mxu0
    %v1886 = vadd.f32 0.0, %v1885
    %1887 = vmatprep.mubr.f32.mxu0 %v913
    %1888 = vmatmul.mubr.f32.gmra.mrb[0].mxu0 %v911
    %v1889 = vpop.f32.mrb[0].mxu0
    %v1890 = vadd.f32 0.0, %v1889
    %v1891 = vpop.f32.mrb[0].mxu0
    %v1892 = vadd.f32 0.0, %v1891
    %1893 = vmatprep.mubr.f32.mxu0 %v919
    %1894 = vmatmul.mubr.f32.gmra.mrb[0].mxu0 %v917
    %v1895 = vpop.f32.mrb[0].mxu0
    %v1896 = vadd.f32 0.0, %v1895
    %v1897 = vpop.f32.mrb[0].mxu0
    %v1898 = vadd.f32 0.0, %v1897
    %1899 = vmatprep.mubr.f32.mxu0 %v925
    %1900 = vmatmul.mubr.f32.gmra.mrb[0].mxu0 %v923
    %v1901 = vpop.f32.mrb[0].mxu0
    %v1902 = vadd.f32 0.0, %v1901
    %v1903 = vpop.f32.mrb[0].mxu0
    %v1904 = vadd.f32 0.0, %v1903
    %1905 = vmatprep.mubr.f32.mxu0 %v931
    %1906 = vmatmul.mubr.f32.gmra.mrb[0].mxu0 %v929
    %v1907 = vpop.f32.mrb[0].mxu0
    %v1908 = vadd.f32 0.0, %v1907
    %v1909 = vpop.f32.mrb[0].mxu0
    %v1910 = vadd.f32 0.0, %v1909
    %1911 = vmatprep.mubr.f32.mxu0 %v937
    %1912 = vmatmul.mubr.f32.gmra.mrb[0].mxu0 %v935
    %v1913 = vpop.f32.mrb[0].mxu0
    %v1914 = vadd.f32 0.0, %v1913
    %v1915 = vpop.f32.mrb[0].mxu0
    %v1916 = vadd.f32 0.0, %v1915
    %1917 = vmatprep.mubr.f32.mxu0 %v943
    %1918 = vmatmul.mubr.f32.gmra.mrb[0].mxu0 %v941
    %v1919 = vpop.f32.mrb[0].mxu0
    %v1920 = vadd.f32 0.0, %v1919
    %v1921 = vpop.f32.mrb[0].mxu0
    %v1922 = vadd.f32 0.0, %v1921
    %1923 = vmatprep.mubr.f32.mxu0 %v949
    %1924 = vmatmul.mubr.f32.gmra.mrb[0].mxu0 %v947
    %v1925 = vpop.f32.mrb[0].mxu0
    %v1926 = vadd.f32 0.0, %v1925
    %v1927 = vpop.f32.mrb[0].mxu0
    %v1928 = vadd.f32 0.0, %v1927
    %1929 = vmatprep.mubr.f32.mxu0 %v955
    %1930 = vmatmul.mubr.f32.gmra.mrb[0].mxu0 %v953
    %v1931 = vpop.f32.mrb[0].mxu0
    %v1932 = vadd.f32 0.0, %v1931
    %v1933 = vpop.f32.mrb[0].mxu0
    %v1934 = vadd.f32 0.0, %v1933
    %1935 = vmatprep.mubr.f32.mxu0 %v961
    %1936 = vmatmul.mubr.f32.gmra.mrb[0].mxu0 %v959
    %v1937 = vpop.f32.mrb[0].mxu0
    %v1938 = vadd.f32 0.0, %v1937
    %v1939 = vpop.f32.mrb[0].mxu0
    %v1940 = vadd.f32 0.0, %v1939
    %1941 = vmatprep.mubr.f32.mxu0 %v967
    %1942 = vmatmul.mubr.f32.gmra.mrb[0].mxu0 %v965
    %v1943 = vpop.f32.mrb[0].mxu0
    %v1944 = vadd.f32 0.0, %v1943
    %v1945 = vpop.f32.mrb[0].mxu0
    %v1946 = vadd.f32 0.0, %v1945
    %1947 = vmatprep.mubr.f32.mxu0 %v973
    %1948 = vmatmul.mubr.f32.gmra.mrb[0].mxu0 %v971
    %v1949 = vpop.f32.mrb[0].mxu0
    %v1950 = vadd.f32 0.0, %v1949
    %v1951 = vpop.f32.mrb[0].mxu0
    %v1952 = vadd.f32 0.0, %v1951
    %1953 = vmatprep.mubr.f32.mxu0 %v979
    %1954 = vmatmul.mubr.f32.gmra.mrb[0].mxu0 %v977
    %v1955 = vpop.f32.mrb[0].mxu0
    %v1956 = vadd.f32 0.0, %v1955
    %v1957 = vpop.f32.mrb[0].mxu0
    %v1958 = vadd.f32 0.0, %v1957
    %1959 = vmatprep.mubr.f32.mxu0 %v985
    %1960 = vmatmul.mubr.f32.gmra.mrb[0].mxu0 %v983
    %v1961 = vpop.f32.mrb[0].mxu0
    %v1962 = vadd.f32 0.0, %v1961
    %v1963 = vpop.f32.mrb[0].mxu0
    %v1964 = vadd.f32 0.0, %v1963
    %1965 = vmatprep.mubr.f32.mxu0 %v991
    %1966 = vmatmul.mubr.f32.gmra.mrb[0].mxu0 %v989
    %v1967 = vpop.f32.mrb[0].mxu0
    %v1968 = vadd.f32 0.0, %v1967
    %v1969 = vpop.f32.mrb[0].mxu0
    %v1970 = vadd.f32 0.0, %v1969
    %1971 = vmatprep.mubr.f32.mxu0 %v997
    %1972 = vmatmul.mubr.f32.gmra.mrb[0].mxu0 %v995
    %v1973 = vpop.f32.mrb[0].mxu0
    %v1974 = vadd.f32 0.0, %v1973
    %v1975 = vpop.f32.mrb[0].mxu0
    %v1976 = vadd.f32 0.0, %v1975
    %1977 = vmatprep.mubr.f32.mxu0 %v1003
    %1978 = vmatmul.mubr.f32.gmra.mrb[0].mxu0 %v1001
    %v1979 = vpop.f32.mrb[0].mxu0
    %v1980 = vadd.f32 0.0, %v1979
    %v1981 = vpop.f32.mrb[0].mxu0
    %v1982 = vadd.f32 0.0, %v1981
    %1983 = vmatprep.mubr.f32.mxu0 %v1009
    %1984 = vmatmul.mubr.f32.gmra.mrb[0].mxu0 %v1007
    %v1985 = vpop.f32.mrb[0].mxu0
    %v1986 = vadd.f32 0.0, %v1985
    %v1987 = vpop.f32.mrb[0].mxu0
    %v1988 = vadd.f32 0.0, %v1987
    %1989 = vmatprep.mubr.f32.mxu0 %v1015
    %1990 = vmatmul.mubr.f32.gmra.mrb[0].mxu0 %v1013
    %v1991 = vpop.f32.mrb[0].mxu0
    %v1992 = vadd.f32 0.0, %v1991
    %v1993 = vpop.f32.mrb[0].mxu0
    %v1994 = vadd.f32 0.0, %v1993
    %1995 = vmatprep.mubr.f32.mxu0 %v1021
    %1996 = vmatmul.mubr.f32.gmra.mrb[0].mxu0 %v1019
    %v1997 = vpop.f32.mrb[0].mxu0
    %v1998 = vadd.f32 0.0, %v1997
    %v1999 = vpop.f32.mrb[0].mxu0
    %v2000 = vadd.f32 0.0, %v1999
    %2001 = vmatprep.mubr.f32.mxu0 %v1027
    %2002 = vmatmul.mubr.f32.gmra.mrb[0].mxu0 %v1025
    %v2003 = vpop.f32.mrb[0].mxu0
    %v2004 = vadd.f32 0.0, %v2003
    %v2005 = vpop.f32.mrb[0].mxu0
    %v2006 = vadd.f32 0.0, %v2005
    %2007 = vmatprep.mubr.f32.mxu0 %v1033
    %2008 = vmatmul.mubr.f32.gmra.mrb[0].mxu0 %v1031
    %v2009 = vpop.f32.mrb[0].mxu0
    %v2010 = vadd.f32 0.0, %v2009
    %v2011 = vpop.f32.mrb[0].mxu0
    %v2012 = vadd.f32 0.0, %v2011
    %2013 = vmatprep.mubr.f32.mxu0 %v1039
    %2014 = vmatmul.mubr.f32.gmra.mrb[0].mxu0 %v1037
    %v2015 = vpop.f32.mrb[0].mxu0
    %v2016 = vadd.f32 0.0, %v2015
    %v2017 = vpop.f32.mrb[0].mxu0
    %v2018 = vadd.f32 0.0, %v2017
    %2019 = vmatprep.mubr.f32.mxu0 %v1045
    %2020 = vmatmul.mubr.f32.gmra.mrb[0].mxu0 %v1043
    %v2021 = vpop.f32.mrb[0].mxu0
    %v2022 = vadd.f32 0.0, %v2021
    %v2023 = vpop.f32.mrb[0].mxu0
    %v2024 = vadd.f32 0.0, %v2023
    %2025 = vmatprep.mubr.f32.mxu0 %v1051
    %2026 = vmatmul.mubr.f32.gmra.mrb[0].mxu0 %v1049
    %v2027 = vpop.f32.mrb[0].mxu0
    %v2028 = vadd.f32 0.0, %v2027
    %v2029 = vpop.f32.mrb[0].mxu0
    %v2030 = vadd.f32 0.0, %v2029
    %2031 = vmatprep.mubr.f32.mxu0 %v1057
    %2032 = vmatmul.mubr.f32.gmra.mrb[0].mxu0 %v1055
    %v2033 = vpop.f32.mrb[0].mxu0
    %v2034 = vadd.f32 0.0, %v2033
    %v2035 = vpop.f32.mrb[0].mxu0
    %v2036 = vadd.f32 0.0, %v2035
    %2037 = vmatprep.mubr.f32.mxu0 %v1063
    %2038 = vmatmul.mubr.f32.gmra.mrb[0].mxu0 %v1061
    %v2039 = vpop.f32.mrb[0].mxu0
    %v2040 = vadd.f32 0.0, %v2039
    %v2041 = vpop.f32.mrb[0].mxu0
    %v2042 = vadd.f32 0.0, %v2041
    %2043 = vmatprep.mubr.f32.mxu0 %v1069
    %2044 = vmatmul.mubr.f32.gmra.mrb[0].mxu0 %v1067
    %v2045 = vpop.f32.mrb[0].mxu0
    %v2046 = vadd.f32 0.0, %v2045
    %v2047 = vpop.f32.mrb[0].mxu0
    %v2048 = vadd.f32 0.0, %v2047
    %2049 = vmatprep.mubr.f32.mxu0 %v1075
    %2050 = vmatmul.mubr.f32.gmra.mrb[0].mxu0 %v1073
    %v2051 = vpop.f32.mrb[0].mxu0
    %v2052 = vadd.f32 0.0, %v2051
    %v2053 = vpop.f32.mrb[0].mxu0
    %v2054 = vadd.f32 0.0, %v2053
    %2055 = vmatprep.mubr.f32.mxu0 %v1081
    %2056 = vmatmul.mubr.f32.gmra.mrb[0].mxu0 %v1079
    %v2057 = vpop.f32.mrb[0].mxu0
    %v2058 = vadd.f32 0.0, %v2057
    %v2059 = vpop.f32.mrb[0].mxu0
    %v2060 = vadd.f32 0.0, %v2059
    %2061 = vmatprep.mubr.f32.mxu0 %v1087
    %2062 = vmatmul.mubr.f32.gmra.mrb[0].mxu0 %v1085
    %v2063 = vpop.f32.mrb[0].mxu0
    %v2064 = vadd.f32 0.0, %v2063
    %v2065 = vpop.f32.mrb[0].mxu0
    %v2066 = vadd.f32 0.0, %v2065
    %2067 = vmatprep.mubr.f32.mxu0 %v1093
    %2068 = vmatmul.mubr.f32.gmra.mrb[0].mxu0 %v1091
    %v2069 = vpop.f32.mrb[0].mxu0
    %v2070 = vadd.f32 0.0, %v2069
    %v2071 = vpop.f32.mrb[0].mxu0
    %v2072 = vadd.f32 0.0, %v2071
    %2073 = vmatprep.mubr.f32.mxu0 %v1099
    %2074 = vmatmul.mubr.f32.gmra.mrb[0].mxu0 %v1097
    %v2075 = vpop.f32.mrb[0].mxu0
    %v2076 = vadd.f32 0.0, %v2075
    %v2077 = vpop.f32.mrb[0].mxu0
    %v2078 = vadd.f32 0.0, %v2077
    %2079 = vmatprep.mubr.f32.mxu0 %v1105
    %2080 = vmatmul.mubr.f32.gmra.mrb[0].mxu0 %v1103
    %v2081 = vpop.f32.mrb[0].mxu0
    %v2082 = vadd.f32 0.0, %v2081
    %v2083 = vpop.f32.mrb[0].mxu0
    %v2084 = vadd.f32 0.0, %v2083
    %2085 = vmatprep.mubr.f32.mxu0 %v1111
    %2086 = vmatmul.mubr.f32.gmra.mrb[0].mxu0 %v1109
    %v2087 = vpop.f32.mrb[0].mxu0
    %v2088 = vadd.f32 0.0, %v2087
    %v2089 = vpop.f32.mrb[0].mxu0
    %v2090 = vadd.f32 0.0, %v2089
    %2091 = vmatprep.mubr.f32.mxu0 %v1117
    %2092 = vmatmul.mubr.f32.gmra.mrb[0].mxu0 %v1115
    %v2093 = vpop.f32.mrb[0].mxu0
    %v2094 = vadd.f32 0.0, %v2093
    %v2095 = vpop.f32.mrb[0].mxu0
    %v2096 = vadd.f32 0.0, %v2095
    %2097 = vmatprep.mubr.f32.mxu0 %v1123
    %2098 = vmatmul.mubr.f32.gmra.mrb[0].mxu0 %v1121
    %v2099 = vpop.f32.mrb[0].mxu0
    %v2100 = vadd.f32 0.0, %v2099
    %v2101 = vpop.f32.mrb[0].mxu0
    %v2102 = vadd.f32 0.0, %v2101
    %2103 = vmatprep.mubr.f32.mxu0 %v1129
    %2104 = vmatmul.mubr.f32.gmra.mrb[0].mxu0 %v1127
    %v2105 = vpop.f32.mrb[0].mxu0
    %v2106 = vadd.f32 0.0, %v2105
    %v2107 = vpop.f32.mrb[0].mxu0
    %v2108 = vadd.f32 0.0, %v2107
    %2109 = vmatprep.mubr.f32.mxu0 %v1135
    %2110 = vmatmul.mubr.f32.gmra.mrb[0].mxu0 %v1133
    %v2111 = vpop.f32.mrb[0].mxu0
    %v2112 = vadd.f32 0.0, %v2111
    %v2113 = vpop.f32.mrb[0].mxu0
    %v2114 = vadd.f32 0.0, %v2113
    %2115 = vmatprep.mubr.f32.mxu0 %v1141
    %2116 = vmatmul.mubr.f32.gmra.mrb[0].mxu0 %v1139
    %v2117 = vpop.f32.mrb[0].mxu0
    %v2118 = vadd.f32 0.0, %v2117
    %v2119 = vpop.f32.mrb[0].mxu0
    %v2120 = vadd.f32 0.0, %v2119
    %2121 = vdwg.mxu0
    %2122 = vmatprep.subr.mxu0 %v1770
    %2123 = vmatpush1.msra.mxu0 %v1769
    %2124 = vmatprep.subr.mxu0 %v1773
    %2125 = vmatpush1.msra.mxu0 %v1772
    %2126 = vmatprep.subr.mxu0 %v1776
    %2127 = vmatpush1.msra.mxu0 %v1775
    %2128 = vmatprep.subr.mxu0 %v1779
    %2129 = vmatpush1.msra.mxu0 %v1778
    %2130 = vmatprep.subr.mxu0 %v1782
    %2131 = vmatpush1.msra.mxu0 %v1781
    %2132 = vmatprep.subr.mxu0 %v1785
    %2133 = vmatpush1.msra.mxu0 %v1784
    %2134 = vmatprep.subr.mxu0 %v1788
    %2135 = vmatpush1.msra.mxu0 %v1787
    %2136 = vmatprep.subr.mxu0 %v1791
    %2137 = vmatpush1.msra.mxu0 %v1790
    %2138 = vmatprep.subr.mxu0 %v1794
    %2139 = vmatpush1.msra.mxu0 %v1793
    %2140 = vmatprep.subr.mxu0 %v1797
    %2141 = vmatpush1.msra.mxu0 %v1796
    %2142 = vmatprep.subr.mxu0 %v1800
    %2143 = vmatpush1.msra.mxu0 %v1799
    %2144 = vmatprep.subr.mxu0 %v1803
    %2145 = vmatpush1.msra.mxu0 %v1802
    %2146 = vmatprep.subr.mxu0 %v1806
    %2147 = vmatpush1.msra.mxu0 %v1805
    %2148 = vmatprep.subr.mxu0 %v1809
    %2149 = vmatpush1.msra.mxu0 %v1808
    %2150 = vmatprep.subr.mxu0 %v1812
    %2151 = vmatpush1.msra.mxu0 %v1811
    %2152 = vmatprep.subr.mxu0 %v1815
    %2153 = vmatpush1.msra.mxu0 %v1814
    %2154 = vmatprep.subr.mxu0 0.0
    %2155 = vmatpush1.msra.mxu0 0.0
    %2156 = vmatprep.subr.mxu0 0.0
    %2157 = vmatpush1.msra.mxu0 0.0
    %2158 = vmatprep.subr.mxu0 0.0
    %2159 = vmatpush1.msra.mxu0 0.0
    %2160 = vmatprep.subr.mxu0 0.0
    %2161 = vmatpush1.msra.mxu0 0.0
    %2162 = vmatprep.subr.mxu0 0.0
    %2163 = vmatpush1.msra.mxu0 0.0
    %2164 = vmatprep.subr.mxu0 0.0
    %2165 = vmatpush1.msra.mxu0 0.0
    %2166 = vmatprep.subr.mxu0 0.0
    %2167 = vmatpush1.msra.mxu0 0.0
    %2168 = vmatprep.subr.mxu0 0.0
    %2169 = vmatpush1.msra.mxu0 0.0
    %2170 = vmatprep.subr.mxu0 0.0
    %2171 = vmatpush1.msra.mxu0 0.0
    %2172 = vmatprep.subr.mxu0 0.0
    %2173 = vmatpush1.msra.mxu0 0.0
    %2174 = vmatprep.subr.mxu0 0.0
    %2175 = vmatpush1.msra.mxu0 0.0
    %2176 = vmatprep.subr.mxu0 0.0
    %2177 = vmatpush1.msra.mxu0 0.0
    %2178 = vmatprep.subr.mxu0 0.0
    %2179 = vmatpush1.msra.mxu0 0.0
    %2180 = vmatprep.subr.mxu0 0.0
    %2181 = vmatpush1.msra.mxu0 0.0
    %2182 = vmatprep.subr.mxu0 0.0
    %2183 = vmatpush1.msra.mxu0 0.0
    %2184 = vmatprep.subr.mxu0 0.0
    %2185 = vmatpush1.msra.mxu0 0.0
    %2186 = vmatprep.mubr.f32.mxu0 0.0
    %2187 = vmatmul.mubr.f32.gmra.mrb[0].mxu0 %v1475
    %v2188 = vpop.f32.mrb[0].mxu0
    %v2189 = vadd.f32 %v1884, %v2188
    %v2190 = vpop.f32.mrb[0].mxu0
    %v2191 = vadd.f32 %v1886, %v2190
    %2192 = vmatprep.mubr.f32.mxu0 0.0
    %2193 = vmatmul.mubr.f32.gmra.mrb[0].mxu0 %v1480
    %v2194 = vpop.f32.mrb[0].mxu0
    %v2195 = vadd.f32 %v1890, %v2194
    %v2196 = vpop.f32.mrb[0].mxu0
    %v2197 = vadd.f32 %v1892, %v2196
    %2198 = vmatprep.mubr.f32.mxu0 0.0
    %2199 = vmatmul.mubr.f32.gmra.mrb[0].mxu0 %v1485
    %v2200 = vpop.f32.mrb[0].mxu0
    %v2201 = vadd.f32 %v1896, %v2200
    %v2202 = vpop.f32.mrb[0].mxu0
    %v2203 = vadd.f32 %v1898, %v2202
    %2204 = vmatprep.mubr.f32.mxu0 0.0
    %2205 = vmatmul.mubr.f32.gmra.mrb[0].mxu0 %v1490
    %v2206 = vpop.f32.mrb[0].mxu0
    %v2207 = vadd.f32 %v1902, %v2206
    %v2208 = vpop.f32.mrb[0].mxu0
    %v2209 = vadd.f32 %v1904, %v2208
    %2210 = vmatprep.mubr.f32.mxu0 0.0
    %2211 = vmatmul.mubr.f32.gmra.mrb[0].mxu0 %v1495
    %v2212 = vpop.f32.mrb[0].mxu0
    %v2213 = vadd.f32 %v1908, %v2212
    %v2214 = vpop.f32.mrb[0].mxu0
    %v2215 = vadd.f32 %v1910, %v2214
    %2216 = vmatprep.mubr.f32.mxu0 0.0
    %2217 = vmatmul.mubr.f32.gmra.mrb[0].mxu0 %v1500
    %v2218 = vpop.f32.mrb[0].mxu0
    %v2219 = vadd.f32 %v1914, %v2218
    %v2220 = vpop.f32.mrb[0].mxu0
    %v2221 = vadd.f32 %v1916, %v2220
    %2222 = vmatprep.mubr.f32.mxu0 0.0
    %2223 = vmatmul.mubr.f32.gmra.mrb[0].mxu0 %v1505
    %v2224 = vpop.f32.mrb[0].mxu0
    %v2225 = vadd.f32 %v1920, %v2224
    %v2226 = vpop.f32.mrb[0].mxu0
    %v2227 = vadd.f32 %v1922, %v2226
    %2228 = vmatprep.mubr.f32.mxu0 0.0
    %2229 = vmatmul.mubr.f32.gmra.mrb[0].mxu0 %v1510
    %v2230 = vpop.f32.mrb[0].mxu0
    %v2231 = vadd.f32 %v1926, %v2230
    %v2232 = vpop.f32.mrb[0].mxu0
    %v2233 = vadd.f32 %v1928, %v2232
    %2234 = vmatprep.mubr.f32.mxu0 0.0
    %2235 = vmatmul.mubr.f32.gmra.mrb[0].mxu0 %v1515
    %v2236 = vpop.f32.mrb[0].mxu0
    %v2237 = vadd.f32 %v1932, %v2236
    %v2238 = vpop.f32.mrb[0].mxu0
    %v2239 = vadd.f32 %v1934, %v2238
    %2240 = vmatprep.mubr.f32.mxu0 0.0
    %2241 = vmatmul.mubr.f32.gmra.mrb[0].mxu0 %v1520
    %v2242 = vpop.f32.mrb[0].mxu0
    %v2243 = vadd.f32 %v1938, %v2242
    %v2244 = vpop.f32.mrb[0].mxu0
    %v2245 = vadd.f32 %v1940, %v2244
    %2246 = vmatprep.mubr.f32.mxu0 0.0
    %2247 = vmatmul.mubr.f32.gmra.mrb[0].mxu0 %v1525
    %v2248 = vpop.f32.mrb[0].mxu0
    %v2249 = vadd.f32 %v1944, %v2248
    %v2250 = vpop.f32.mrb[0].mxu0
    %v2251 = vadd.f32 %v1946, %v2250
    %2252 = vmatprep.mubr.f32.mxu0 0.0
    %2253 = vmatmul.mubr.f32.gmra.mrb[0].mxu0 %v1530
    %v2254 = vpop.f32.mrb[0].mxu0
    %v2255 = vadd.f32 %v1950, %v2254
    %v2256 = vpop.f32.mrb[0].mxu0
    %v2257 = vadd.f32 %v1952, %v2256
    %2258 = vmatprep.mubr.f32.mxu0 0.0
    %2259 = vmatmul.mubr.f32.gmra.mrb[0].mxu0 %v1535
    %v2260 = vpop.f32.mrb[0].mxu0
    %v2261 = vadd.f32 %v1956, %v2260
    %v2262 = vpop.f32.mrb[0].mxu0
    %v2263 = vadd.f32 %v1958, %v2262
    %2264 = vmatprep.mubr.f32.mxu0 0.0
    %2265 = vmatmul.mubr.f32.gmra.mrb[0].mxu0 %v1540
    %v2266 = vpop.f32.mrb[0].mxu0
    %v2267 = vadd.f32 %v1962, %v2266
    %v2268 = vpop.f32.mrb[0].mxu0
    %v2269 = vadd.f32 %v1964, %v2268
    %2270 = vmatprep.mubr.f32.mxu0 0.0
    %2271 = vmatmul.mubr.f32.gmra.mrb[0].mxu0 %v1545
    %v2272 = vpop.f32.mrb[0].mxu0
    %v2273 = vadd.f32 %v1968, %v2272
    %v2274 = vpop.f32.mrb[0].mxu0
    %v2275 = vadd.f32 %v1970, %v2274
    %2276 = vmatprep.mubr.f32.mxu0 0.0
    %2277 = vmatmul.mubr.f32.gmra.mrb[0].mxu0 %v1550
    %v2278 = vpop.f32.mrb[0].mxu0
    %v2279 = vadd.f32 %v1974, %v2278
    %v2280 = vpop.f32.mrb[0].mxu0
    %v2281 = vadd.f32 %v1976, %v2280
    %2282 = vmatprep.mubr.f32.mxu0 0.0
    %2283 = vmatmul.mubr.f32.gmra.mrb[0].mxu0 %v1555
    %v2284 = vpop.f32.mrb[0].mxu0
    %v2285 = vadd.f32 %v1980, %v2284
    %v2286 = vpop.f32.mrb[0].mxu0
    %v2287 = vadd.f32 %v1982, %v2286
    %2288 = vmatprep.mubr.f32.mxu0 0.0
    %2289 = vmatmul.mubr.f32.gmra.mrb[0].mxu0 %v1560
    %v2290 = vpop.f32.mrb[0].mxu0
    %v2291 = vadd.f32 %v1986, %v2290
    %v2292 = vpop.f32.mrb[0].mxu0
    %v2293 = vadd.f32 %v1988, %v2292
    %2294 = vmatprep.mubr.f32.mxu0 0.0
    %2295 = vmatmul.mubr.f32.gmra.mrb[0].mxu0 %v1565
    %v2296 = vpop.f32.mrb[0].mxu0
    %v2297 = vadd.f32 %v1992, %v2296
    %v2298 = vpop.f32.mrb[0].mxu0
    %v2299 = vadd.f32 %v1994, %v2298
    %2300 = vmatprep.mubr.f32.mxu0 0.0
    %2301 = vmatmul.mubr.f32.gmra.mrb[0].mxu0 %v1570
    %v2302 = vpop.f32.mrb[0].mxu0
    %v2303 = vadd.f32 %v1998, %v2302
    %v2304 = vpop.f32.mrb[0].mxu0
    %v2305 = vadd.f32 %v2000, %v2304
    %2306 = vmatprep.mubr.f32.mxu0 0.0
    %2307 = vmatmul.mubr.f32.gmra.mrb[0].mxu0 %v1575
    %v2308 = vpop.f32.mrb[0].mxu0
    %v2309 = vadd.f32 %v2004, %v2308
    %v2310 = vpop.f32.mrb[0].mxu0
    %v2311 = vadd.f32 %v2006, %v2310
    %2312 = vmatprep.mubr.f32.mxu0 0.0
    %2313 = vmatmul.mubr.f32.gmra.mrb[0].mxu0 %v1580
    %v2314 = vpop.f32.mrb[0].mxu0
    %v2315 = vadd.f32 %v2010, %v2314
    %v2316 = vpop.f32.mrb[0].mxu0
    %v2317 = vadd.f32 %v2012, %v2316
    %2318 = vmatprep.mubr.f32.mxu0 0.0
    %2319 = vmatmul.mubr.f32.gmra.mrb[0].mxu0 %v1585
    %v2320 = vpop.f32.mrb[0].mxu0
    %v2321 = vadd.f32 %v2016, %v2320
    %v2322 = vpop.f32.mrb[0].mxu0
    %v2323 = vadd.f32 %v2018, %v2322
    %2324 = vmatprep.mubr.f32.mxu0 0.0
    %2325 = vmatmul.mubr.f32.gmra.mrb[0].mxu0 %v1590
    %v2326 = vpop.f32.mrb[0].mxu0
    %v2327 = vadd.f32 %v2022, %v2326
    %v2328 = vpop.f32.mrb[0].mxu0
    %v2329 = vadd.f32 %v2024, %v2328
    %2330 = vmatprep.mubr.f32.mxu0 0.0
    %2331 = vmatmul.mubr.f32.gmra.mrb[0].mxu0 %v1595
    %v2332 = vpop.f32.mrb[0].mxu0
    %v2333 = vadd.f32 %v2028, %v2332
    %v2334 = vpop.f32.mrb[0].mxu0
    %v2335 = vadd.f32 %v2030, %v2334
    %2336 = vmatprep.mubr.f32.mxu0 0.0
    %2337 = vmatmul.mubr.f32.gmra.mrb[0].mxu0 %v1600
    %v2338 = vpop.f32.mrb[0].mxu0
    %v2339 = vadd.f32 %v2034, %v2338
    %v2340 = vpop.f32.mrb[0].mxu0
    %v2341 = vadd.f32 %v2036, %v2340
    %2342 = vmatprep.mubr.f32.mxu0 0.0
    %2343 = vmatmul.mubr.f32.gmra.mrb[0].mxu0 %v1605
    %v2344 = vpop.f32.mrb[0].mxu0
    %v2345 = vadd.f32 %v2040, %v2344
    %v2346 = vpop.f32.mrb[0].mxu0
    %v2347 = vadd.f32 %v2042, %v2346
    %2348 = vmatprep.mubr.f32.mxu0 0.0
    %2349 = vmatmul.mubr.f32.gmra.mrb[0].mxu0 %v1610
    %v2350 = vpop.f32.mrb[0].mxu0
    %v2351 = vadd.f32 %v2046, %v2350
    %v2352 = vpop.f32.mrb[0].mxu0
    %v2353 = vadd.f32 %v2048, %v2352
    %2354 = vmatprep.mubr.f32.mxu0 0.0
    %2355 = vmatmul.mubr.f32.gmra.mrb[0].mxu0 %v1615
    %v2356 = vpop.f32.mrb[0].mxu0
    %v2357 = vadd.f32 %v2052, %v2356
    %v2358 = vpop.f32.mrb[0].mxu0
    %v2359 = vadd.f32 %v2054, %v2358
    %2360 = vmatprep.mubr.f32.mxu0 0.0
    %2361 = vmatmul.mubr.f32.gmra.mrb[0].mxu0 %v1620
    %v2362 = vpop.f32.mrb[0].mxu0
    %v2363 = vadd.f32 %v2058, %v2362
    %v2364 = vpop.f32.mrb[0].mxu0
    %v2365 = vadd.f32 %v2060, %v2364
    %2366 = vmatprep.mubr.f32.mxu0 0.0
    %2367 = vmatmul.mubr.f32.gmra.mrb[0].mxu0 %v1625
    %v2368 = vpop.f32.mrb[0].mxu0
    %v2369 = vadd.f32 %v2064, %v2368
    %v2370 = vpop.f32.mrb[0].mxu0
    %v2371 = vadd.f32 %v2066, %v2370
    %2372 = vmatprep.mubr.f32.mxu0 0.0
    %2373 = vmatmul.mubr.f32.gmra.mrb[0].mxu0 %v1630
    %v2374 = vpop.f32.mrb[0].mxu0
    %v2375 = vadd.f32 %v2070, %v2374
    %v2376 = vpop.f32.mrb[0].mxu0
    %v2377 = vadd.f32 %v2072, %v2376
    %2378 = vmatprep.mubr.f32.mxu0 0.0
    %2379 = vmatmul.mubr.f32.gmra.mrb[0].mxu0 %v1635
    %v2380 = vpop.f32.mrb[0].mxu0
    %v2381 = vadd.f32 %v2076, %v2380
    %v2382 = vpop.f32.mrb[0].mxu0
    %v2383 = vadd.f32 %v2078, %v2382
    %2384 = vmatprep.mubr.f32.mxu0 0.0
    %2385 = vmatmul.mubr.f32.gmra.mrb[0].mxu0 %v1640
    %v2386 = vpop.f32.mrb[0].mxu0
    %v2387 = vadd.f32 %v2082, %v2386
    %v2388 = vpop.f32.mrb[0].mxu0
    %v2389 = vadd.f32 %v2084, %v2388
    %2390 = vmatprep.mubr.f32.mxu0 0.0
    %2391 = vmatmul.mubr.f32.gmra.mrb[0].mxu0 %v1645
    %v2392 = vpop.f32.mrb[0].mxu0
    %v2393 = vadd.f32 %v2088, %v2392
    %v2394 = vpop.f32.mrb[0].mxu0
    %v2395 = vadd.f32 %v2090, %v2394
    %2396 = vmatprep.mubr.f32.mxu0 0.0
    %2397 = vmatmul.mubr.f32.gmra.mrb[0].mxu0 %v1650
    %v2398 = vpop.f32.mrb[0].mxu0
    %v2399 = vadd.f32 %v2094, %v2398
    %v2400 = vpop.f32.mrb[0].mxu0
    %v2401 = vadd.f32 %v2096, %v2400
    %2402 = vmatprep.mubr.f32.mxu0 0.0
    %2403 = vmatmul.mubr.f32.gmra.mrb[0].mxu0 %v1655
    %v2404 = vpop.f32.mrb[0].mxu0
    %v2405 = vadd.f32 %v2100, %v2404
    %v2406 = vpop.f32.mrb[0].mxu0
    %v2407 = vadd.f32 %v2102, %v2406
    %2408 = vmatprep.mubr.f32.mxu0 0.0
    %2409 = vmatmul.mubr.f32.gmra.mrb[0].mxu0 %v1660
    %v2410 = vpop.f32.mrb[0].mxu0
    %v2411 = vadd.f32 %v2106, %v2410
    %v2412 = vpop.f32.mrb[0].mxu0
    %v2413 = vadd.f32 %v2108, %v2412
    %2414 = vmatprep.mubr.f32.mxu0 0.0
    %2415 = vmatmul.mubr.f32.gmra.mrb[0].mxu0 %v1665
    %v2416 = vpop.f32.mrb[0].mxu0
    %v2417 = vadd.f32 %v2112, %v2416
    %v2418 = vpop.f32.mrb[0].mxu0
    %v2419 = vadd.f32 %v2114, %v2418
    %2420 = vmatprep.mubr.f32.mxu0 0.0
    %2421 = vmatmul.mubr.f32.gmra.mrb[0].mxu0 %v1670
    %v2422 = vpop.f32.mrb[0].mxu0
    %v2423 = vadd.f32 %v2118, %v2422
    %v2424 = vpop.f32.mrb[0].mxu0
    %v2425 = vadd.f32 %v2120, %v2424
    %2426 = vdwg.mxu0
    %2427 = vmatprep.subr.mxu0 0.0
    %2428 = vmatpush1.msra.mxu0 %v1675
    %2429 = vmatprep.subr.mxu0 0.0
    %2430 = vmatpush1.msra.mxu0 %v1678
    %2431 = vmatprep.subr.mxu0 0.0
    %2432 = vmatpush1.msra.mxu0 %v1681
    %2433 = vmatprep.subr.mxu0 0.0
    %2434 = vmatpush1.msra.mxu0 %v1684
    %2435 = vmatprep.subr.mxu0 0.0
    %2436 = vmatpush1.msra.mxu0 %v1687
    %2437 = vmatprep.subr.mxu0 0.0
    %2438 = vmatpush1.msra.mxu0 %v1690
    %2439 = vmatprep.subr.mxu0 0.0
    %2440 = vmatpush1.msra.mxu0 %v1693
    %2441 = vmatprep.subr.mxu0 0.0
    %2442 = vmatpush1.msra.mxu0 %v1696
    %2443 = vmatprep.subr.mxu0 0.0
    %2444 = vmatpush1.msra.mxu0 %v1699
    %2445 = vmatprep.subr.mxu0 0.0
    %2446 = vmatpush1.msra.mxu0 %v1702
    %2447 = vmatprep.subr.mxu0 0.0
    %2448 = vmatpush1.msra.mxu0 %v1705
    %2449 = vmatprep.subr.mxu0 0.0
    %2450 = vmatpush1.msra.mxu0 %v1708
    %2451 = vmatprep.subr.mxu0 0.0
    %2452 = vmatpush1.msra.mxu0 %v1711
    %2453 = vmatprep.subr.mxu0 0.0
    %2454 = vmatpush1.msra.mxu0 %v1714
    %2455 = vmatprep.subr.mxu0 0.0
    %2456 = vmatpush1.msra.mxu0 %v1717
    %2457 = vmatprep.subr.mxu0 0.0
    %2458 = vmatpush1.msra.mxu0 %v1720
    %2459 = vmatprep.subr.mxu0 0.0
    %2460 = vmatpush1.msra.mxu0 %v1723
    %2461 = vmatprep.subr.mxu0 0.0
    %2462 = vmatpush1.msra.mxu0 %v1726
    %2463 = vmatprep.subr.mxu0 0.0
    %2464 = vmatpush1.msra.mxu0 %v1729
    %2465 = vmatprep.subr.mxu0 0.0
    %2466 = vmatpush1.msra.mxu0 %v1732
    %2467 = vmatprep.subr.mxu0 0.0
    %2468 = vmatpush1.msra.mxu0 %v1735
    %2469 = vmatprep.subr.mxu0 0.0
    %2470 = vmatpush1.msra.mxu0 %v1738
    %2471 = vmatprep.subr.mxu0 0.0
    %2472 = vmatpush1.msra.mxu0 %v1741
    %2473 = vmatprep.subr.mxu0 0.0
    %2474 = vmatpush1.msra.mxu0 %v1744
    %2475 = vmatprep.subr.mxu0 0.0
    %2476 = vmatpush1.msra.mxu0 %v1747
    %2477 = vmatprep.subr.mxu0 0.0
    %2478 = vmatpush1.msra.mxu0 %v1750
    %2479 = vmatprep.subr.mxu0 0.0
    %2480 = vmatpush1.msra.mxu0 %v1753
    %2481 = vmatprep.subr.mxu0 0.0
    %2482 = vmatpush1.msra.mxu0 %v1756
    %2483 = vmatprep.subr.mxu0 0.0
    %2484 = vmatpush1.msra.mxu0 %v1759
    %2485 = vmatprep.subr.mxu0 0.0
    %2486 = vmatpush1.msra.mxu0 %v1762
    %2487 = vmatprep.subr.mxu0 0.0
    %2488 = vmatpush1.msra.mxu0 %v1765
    %2489 = vmatprep.subr.mxu0 0.0
    %2490 = vmatpush1.msra.mxu0 %v1768
    %2491 = vmatprep.mubr.f32.mxu0 %v907
    %2492 = vmatmul.mubr.f32.gmra.mrb[0].mxu0 %v905
    %v2493 = vpop.f32.mrb[0].mxu0
    %v2494 = vadd.f32 0.0, %v2493
    %v2495 = vpop.f32.mrb[0].mxu0
    %2496 = vmatprep.mubr.f32.mxu0 %v913
    %2497 = vmatmul.mubr.f32.gmra.mrb[0].mxu0 %v911
    %v2498 = vpop.f32.mrb[0].mxu0
    %v2499 = vadd.f32 0.0, %v2498
    %v2500 = vpop.f32.mrb[0].mxu0
    %2501 = vmatprep.mubr.f32.mxu0 %v919
    %2502 = vmatmul.mubr.f32.gmra.mrb[0].mxu0 %v917
    %v2503 = vpop.f32.mrb[0].mxu0
    %v2504 = vadd.f32 0.0, %v2503
    %v2505 = vpop.f32.mrb[0].mxu0
    %2506 = vmatprep.mubr.f32.mxu0 %v925
    %2507 = vmatmul.mubr.f32.gmra.mrb[0].mxu0 %v923
    %v2508 = vpop.f32.mrb[0].mxu0
    %v2509 = vadd.f32 0.0, %v2508
    %v2510 = vpop.f32.mrb[0].mxu0
    %2511 = vmatprep.mubr.f32.mxu0 %v931
    %2512 = vmatmul.mubr.f32.gmra.mrb[0].mxu0 %v929
    %v2513 = vpop.f32.mrb[0].mxu0
    %v2514 = vadd.f32 0.0, %v2513
    %v2515 = vpop.f32.mrb[0].mxu0
    %2516 = vmatprep.mubr.f32.mxu0 %v937
    %2517 = vmatmul.mubr.f32.gmra.mrb[0].mxu0 %v935
    %v2518 = vpop.f32.mrb[0].mxu0
    %v2519 = vadd.f32 0.0, %v2518
    %v2520 = vpop.f32.mrb[0].mxu0
    %2521 = vmatprep.mubr.f32.mxu0 %v943
    %2522 = vmatmul.mubr.f32.gmra.mrb[0].mxu0 %v941
    %v2523 = vpop.f32.mrb[0].mxu0
    %v2524 = vadd.f32 0.0, %v2523
    %v2525 = vpop.f32.mrb[0].mxu0
    %2526 = vmatprep.mubr.f32.mxu0 %v949
    %2527 = vmatmul.mubr.f32.gmra.mrb[0].mxu0 %v947
    %v2528 = vpop.f32.mrb[0].mxu0
    %v2529 = vadd.f32 0.0, %v2528
    %v2530 = vpop.f32.mrb[0].mxu0
    %2531 = vmatprep.mubr.f32.mxu0 %v955
    %2532 = vmatmul.mubr.f32.gmra.mrb[0].mxu0 %v953
    %v2533 = vpop.f32.mrb[0].mxu0
    %v2534 = vadd.f32 0.0, %v2533
    %v2535 = vpop.f32.mrb[0].mxu0
    %2536 = vmatprep.mubr.f32.mxu0 %v961
    %2537 = vmatmul.mubr.f32.gmra.mrb[0].mxu0 %v959
    %v2538 = vpop.f32.mrb[0].mxu0
    %v2539 = vadd.f32 0.0, %v2538
    %v2540 = vpop.f32.mrb[0].mxu0
    %2541 = vmatprep.mubr.f32.mxu0 %v967
    %2542 = vmatmul.mubr.f32.gmra.mrb[0].mxu0 %v965
    %v2543 = vpop.f32.mrb[0].mxu0
    %v2544 = vadd.f32 0.0, %v2543
    %v2545 = vpop.f32.mrb[0].mxu0
    %2546 = vmatprep.mubr.f32.mxu0 %v973
    %2547 = vmatmul.mubr.f32.gmra.mrb[0].mxu0 %v971
    %v2548 = vpop.f32.mrb[0].mxu0
    %v2549 = vadd.f32 0.0, %v2548
    %v2550 = vpop.f32.mrb[0].mxu0
    %2551 = vmatprep.mubr.f32.mxu0 %v979
    %2552 = vmatmul.mubr.f32.gmra.mrb[0].mxu0 %v977
    %v2553 = vpop.f32.mrb[0].mxu0
    %v2554 = vadd.f32 0.0, %v2553
    %v2555 = vpop.f32.mrb[0].mxu0
    %2556 = vmatprep.mubr.f32.mxu0 %v985
    %2557 = vmatmul.mubr.f32.gmra.mrb[0].mxu0 %v983
    %v2558 = vpop.f32.mrb[0].mxu0
    %v2559 = vadd.f32 0.0, %v2558
    %v2560 = vpop.f32.mrb[0].mxu0
    %2561 = vmatprep.mubr.f32.mxu0 %v991
    %2562 = vmatmul.mubr.f32.gmra.mrb[0].mxu0 %v989
    %v2563 = vpop.f32.mrb[0].mxu0
    %v2564 = vadd.f32 0.0, %v2563
    %v2565 = vpop.f32.mrb[0].mxu0
    %2566 = vmatprep.mubr.f32.mxu0 %v997
    %2567 = vmatmul.mubr.f32.gmra.mrb[0].mxu0 %v995
    %v2568 = vpop.f32.mrb[0].mxu0
    %v2569 = vadd.f32 0.0, %v2568
    %v2570 = vpop.f32.mrb[0].mxu0
    %2571 = vmatprep.mubr.f32.mxu0 %v1003
    %2572 = vmatmul.mubr.f32.gmra.mrb[0].mxu0 %v1001
    %v2573 = vpop.f32.mrb[0].mxu0
    %v2574 = vadd.f32 0.0, %v2573
    %v2575 = vpop.f32.mrb[0].mxu0
    %2576 = vmatprep.mubr.f32.mxu0 %v1009
    %2577 = vmatmul.mubr.f32.gmra.mrb[0].mxu0 %v1007
    %v2578 = vpop.f32.mrb[0].mxu0
    %v2579 = vadd.f32 0.0, %v2578
    %v2580 = vpop.f32.mrb[0].mxu0
    %2581 = vmatprep.mubr.f32.mxu0 %v1015
    %2582 = vmatmul.mubr.f32.gmra.mrb[0].mxu0 %v1013
    %v2583 = vpop.f32.mrb[0].mxu0
    %v2584 = vadd.f32 0.0, %v2583
    %v2585 = vpop.f32.mrb[0].mxu0
    %2586 = vmatprep.mubr.f32.mxu0 %v1021
    %2587 = vmatmul.mubr.f32.gmra.mrb[0].mxu0 %v1019
    %v2588 = vpop.f32.mrb[0].mxu0
    %v2589 = vadd.f32 0.0, %v2588
    %v2590 = vpop.f32.mrb[0].mxu0
    %2591 = vmatprep.mubr.f32.mxu0 %v1027
    %2592 = vmatmul.mubr.f32.gmra.mrb[0].mxu0 %v1025
    %v2593 = vpop.f32.mrb[0].mxu0
    %v2594 = vadd.f32 0.0, %v2593
    %v2595 = vpop.f32.mrb[0].mxu0
    %2596 = vmatprep.mubr.f32.mxu0 %v1033
    %2597 = vmatmul.mubr.f32.gmra.mrb[0].mxu0 %v1031
    %v2598 = vpop.f32.mrb[0].mxu0
    %v2599 = vadd.f32 0.0, %v2598
    %v2600 = vpop.f32.mrb[0].mxu0
    %2601 = vmatprep.mubr.f32.mxu0 %v1039
    %2602 = vmatmul.mubr.f32.gmra.mrb[0].mxu0 %v1037
    %v2603 = vpop.f32.mrb[0].mxu0
    %v2604 = vadd.f32 0.0, %v2603
    %v2605 = vpop.f32.mrb[0].mxu0
    %2606 = vmatprep.mubr.f32.mxu0 %v1045
    %2607 = vmatmul.mubr.f32.gmra.mrb[0].mxu0 %v1043
    %v2608 = vpop.f32.mrb[0].mxu0
    %v2609 = vadd.f32 0.0, %v2608
    %v2610 = vpop.f32.mrb[0].mxu0
    %2611 = vmatprep.mubr.f32.mxu0 %v1051
    %2612 = vmatmul.mubr.f32.gmra.mrb[0].mxu0 %v1049
    %v2613 = vpop.f32.mrb[0].mxu0
    %v2614 = vadd.f32 0.0, %v2613
    %v2615 = vpop.f32.mrb[0].mxu0
    %2616 = vmatprep.mubr.f32.mxu0 %v1057
    %2617 = vmatmul.mubr.f32.gmra.mrb[0].mxu0 %v1055
    %v2618 = vpop.f32.mrb[0].mxu0
    %v2619 = vadd.f32 0.0, %v2618
    %v2620 = vpop.f32.mrb[0].mxu0
    %2621 = vmatprep.mubr.f32.mxu0 %v1063
    %2622 = vmatmul.mubr.f32.gmra.mrb[0].mxu0 %v1061
    %v2623 = vpop.f32.mrb[0].mxu0
    %v2624 = vadd.f32 0.0, %v2623
    %v2625 = vpop.f32.mrb[0].mxu0
    %2626 = vmatprep.mubr.f32.mxu0 %v1069
    %2627 = vmatmul.mubr.f32.gmra.mrb[0].mxu0 %v1067
    %v2628 = vpop.f32.mrb[0].mxu0
    %v2629 = vadd.f32 0.0, %v2628
    %v2630 = vpop.f32.mrb[0].mxu0
    %2631 = vmatprep.mubr.f32.mxu0 %v1075
    %2632 = vmatmul.mubr.f32.gmra.mrb[0].mxu0 %v1073
    %v2633 = vpop.f32.mrb[0].mxu0
    %v2634 = vadd.f32 0.0, %v2633
    %v2635 = vpop.f32.mrb[0].mxu0
    %2636 = vmatprep.mubr.f32.mxu0 %v1081
    %2637 = vmatmul.mubr.f32.gmra.mrb[0].mxu0 %v1079
    %v2638 = vpop.f32.mrb[0].mxu0
    %v2639 = vadd.f32 0.0, %v2638
    %v2640 = vpop.f32.mrb[0].mxu0
    %2641 = vmatprep.mubr.f32.mxu0 %v1087
    %2642 = vmatmul.mubr.f32.gmra.mrb[0].mxu0 %v1085
    %v2643 = vpop.f32.mrb[0].mxu0
    %v2644 = vadd.f32 0.0, %v2643
    %v2645 = vpop.f32.mrb[0].mxu0
    %2646 = vmatprep.mubr.f32.mxu0 %v1093
    %2647 = vmatmul.mubr.f32.gmra.mrb[0].mxu0 %v1091
    %v2648 = vpop.f32.mrb[0].mxu0
    %v2649 = vadd.f32 0.0, %v2648
    %v2650 = vpop.f32.mrb[0].mxu0
    %2651 = vmatprep.mubr.f32.mxu0 %v1099
    %2652 = vmatmul.mubr.f32.gmra.mrb[0].mxu0 %v1097
    %v2653 = vpop.f32.mrb[0].mxu0
    %v2654 = vadd.f32 0.0, %v2653
    %v2655 = vpop.f32.mrb[0].mxu0
    %2656 = vmatprep.mubr.f32.mxu0 %v1105
    %2657 = vmatmul.mubr.f32.gmra.mrb[0].mxu0 %v1103
    %v2658 = vpop.f32.mrb[0].mxu0
    %v2659 = vadd.f32 0.0, %v2658
    %v2660 = vpop.f32.mrb[0].mxu0
    %2661 = vmatprep.mubr.f32.mxu0 %v1111
    %2662 = vmatmul.mubr.f32.gmra.mrb[0].mxu0 %v1109
    %v2663 = vpop.f32.mrb[0].mxu0
    %v2664 = vadd.f32 0.0, %v2663
    %v2665 = vpop.f32.mrb[0].mxu0
    %2666 = vmatprep.mubr.f32.mxu0 %v1117
    %2667 = vmatmul.mubr.f32.gmra.mrb[0].mxu0 %v1115
    %v2668 = vpop.f32.mrb[0].mxu0
    %v2669 = vadd.f32 0.0, %v2668
    %v2670 = vpop.f32.mrb[0].mxu0
    %2671 = vmatprep.mubr.f32.mxu0 %v1123
    %2672 = vmatmul.mubr.f32.gmra.mrb[0].mxu0 %v1121
    %v2673 = vpop.f32.mrb[0].mxu0
    %v2674 = vadd.f32 0.0, %v2673
    %v2675 = vpop.f32.mrb[0].mxu0
    %2676 = vmatprep.mubr.f32.mxu0 %v1129
    %2677 = vmatmul.mubr.f32.gmra.mrb[0].mxu0 %v1127
    %v2678 = vpop.f32.mrb[0].mxu0
    %v2679 = vadd.f32 0.0, %v2678
    %v2680 = vpop.f32.mrb[0].mxu0
    %2681 = vmatprep.mubr.f32.mxu0 %v1135
    %2682 = vmatmul.mubr.f32.gmra.mrb[0].mxu0 %v1133
    %v2683 = vpop.f32.mrb[0].mxu0
    %v2684 = vadd.f32 0.0, %v2683
    %v2685 = vpop.f32.mrb[0].mxu0
    %2686 = vmatprep.mubr.f32.mxu0 %v1141
    %2687 = vmatmul.mubr.f32.gmra.mrb[0].mxu0 %v1139
    %v2688 = vpop.f32.mrb[0].mxu0
    %v2689 = vadd.f32 0.0, %v2688
    %v2690 = vpop.f32.mrb[0].mxu0
    %2691 = vdwg.mxu0
    %2692 = vmatprep.subr.mxu0 0.0
    %2693 = vmatpush1.msra.mxu0 %v1771
    %2694 = vmatprep.subr.mxu0 0.0
    %2695 = vmatpush1.msra.mxu0 %v1774
    %2696 = vmatprep.subr.mxu0 0.0
    %2697 = vmatpush1.msra.mxu0 %v1777
    %2698 = vmatprep.subr.mxu0 0.0
    %2699 = vmatpush1.msra.mxu0 %v1780
    %2700 = vmatprep.subr.mxu0 0.0
    %2701 = vmatpush1.msra.mxu0 %v1783
    %2702 = vmatprep.subr.mxu0 0.0
    %2703 = vmatpush1.msra.mxu0 %v1786
    %2704 = vmatprep.subr.mxu0 0.0
    %2705 = vmatpush1.msra.mxu0 %v1789
    %2706 = vmatprep.subr.mxu0 0.0
    %2707 = vmatpush1.msra.mxu0 %v1792
    %2708 = vmatprep.subr.mxu0 0.0
    %2709 = vmatpush1.msra.mxu0 %v1795
    %2710 = vmatprep.subr.mxu0 0.0
    %2711 = vmatpush1.msra.mxu0 %v1798
    %2712 = vmatprep.subr.mxu0 0.0
    %2713 = vmatpush1.msra.mxu0 %v1801
    %2714 = vmatprep.subr.mxu0 0.0
    %2715 = vmatpush1.msra.mxu0 %v1804
    %2716 = vmatprep.subr.mxu0 0.0
    %2717 = vmatpush1.msra.mxu0 %v1807
    %2718 = vmatprep.subr.mxu0 0.0
    %2719 = vmatpush1.msra.mxu0 %v1810
    %2720 = vmatprep.subr.mxu0 0.0
    %2721 = vmatpush1.msra.mxu0 %v1813
    %2722 = vmatprep.subr.mxu0 0.0
    %2723 = vmatpush1.msra.mxu0 %v1816
    %2724 = vmatprep.subr.mxu0 0.0
    %2725 = vmatpush1.msra.mxu0 0.0
    %2726 = vmatprep.subr.mxu0 0.0
    %2727 = vmatpush1.msra.mxu0 0.0
    %2728 = vmatprep.subr.mxu0 0.0
    %2729 = vmatpush1.msra.mxu0 0.0
    %2730 = vmatprep.subr.mxu0 0.0
    %2731 = vmatpush1.msra.mxu0 0.0
    %2732 = vmatprep.subr.mxu0 0.0
    %2733 = vmatpush1.msra.mxu0 0.0
    %2734 = vmatprep.subr.mxu0 0.0
    %2735 = vmatpush1.msra.mxu0 0.0
    %2736 = vmatprep.subr.mxu0 0.0
    %2737 = vmatpush1.msra.mxu0 0.0
    %2738 = vmatprep.subr.mxu0 0.0
    %2739 = vmatpush1.msra.mxu0 0.0
    %2740 = vmatprep.subr.mxu0 0.0
    %2741 = vmatpush1.msra.mxu0 0.0
    %2742 = vmatprep.subr.mxu0 0.0
    %2743 = vmatpush1.msra.mxu0 0.0
    %2744 = vmatprep.subr.mxu0 0.0
    %2745 = vmatpush1.msra.mxu0 0.0
    %2746 = vmatprep.subr.mxu0 0.0
    %2747 = vmatpush1.msra.mxu0 0.0
    %2748 = vmatprep.subr.mxu0 0.0
    %2749 = vmatpush1.msra.mxu0 0.0
    %2750 = vmatprep.subr.mxu0 0.0
    %2751 = vmatpush1.msra.mxu0 0.0
    %2752 = vmatprep.subr.mxu0 0.0
    %2753 = vmatpush1.msra.mxu0 0.0
    %2754 = vmatprep.subr.mxu0 0.0
    %2755 = vmatpush1.msra.mxu0 0.0
    %2756 = vmatprep.mubr.f32.mxu0 0.0
    %2757 = vmatmul.mubr.f32.gmra.mrb[0].mxu0 %v1475
    %v2758 = vpop.f32.mrb[0].mxu0
    %v2759 = vadd.f32 %v2494, %v2758
    %v2760 = vpop.f32.mrb[0].mxu0
    %2761 = vmatprep.mubr.f32.mxu0 0.0
    %2762 = vmatmul.mubr.f32.gmra.mrb[0].mxu0 %v1480
    %v2763 = vpop.f32.mrb[0].mxu0
    %v2764 = vadd.f32 %v2499, %v2763
    %v2765 = vpop.f32.mrb[0].mxu0
    %2766 = vmatprep.mubr.f32.mxu0 0.0
    %2767 = vmatmul.mubr.f32.gmra.mrb[0].mxu0 %v1485
    %v2768 = vpop.f32.mrb[0].mxu0
    %v2769 = vadd.f32 %v2504, %v2768
    %v2770 = vpop.f32.mrb[0].mxu0
    %2771 = vmatprep.mubr.f32.mxu0 0.0
    %2772 = vmatmul.mubr.f32.gmra.mrb[0].mxu0 %v1490
    %v2773 = vpop.f32.mrb[0].mxu0
    %v2774 = vadd.f32 %v2509, %v2773
    %v2775 = vpop.f32.mrb[0].mxu0
    %2776 = vmatprep.mubr.f32.mxu0 0.0
    %2777 = vmatmul.mubr.f32.gmra.mrb[0].mxu0 %v1495
    %v2778 = vpop.f32.mrb[0].mxu0
    %v2779 = vadd.f32 %v2514, %v2778
    %v2780 = vpop.f32.mrb[0].mxu0
    %2781 = vmatprep.mubr.f32.mxu0 0.0
    %2782 = vmatmul.mubr.f32.gmra.mrb[0].mxu0 %v1500
    %v2783 = vpop.f32.mrb[0].mxu0
    %v2784 = vadd.f32 %v2519, %v2783
    %v2785 = vpop.f32.mrb[0].mxu0
    %2786 = vmatprep.mubr.f32.mxu0 0.0
    %2787 = vmatmul.mubr.f32.gmra.mrb[0].mxu0 %v1505
    %v2788 = vpop.f32.mrb[0].mxu0
    %v2789 = vadd.f32 %v2524, %v2788
    %v2790 = vpop.f32.mrb[0].mxu0
    %2791 = vmatprep.mubr.f32.mxu0 0.0
    %2792 = vmatmul.mubr.f32.gmra.mrb[0].mxu0 %v1510
    %v2793 = vpop.f32.mrb[0].mxu0
    %v2794 = vadd.f32 %v2529, %v2793
    %v2795 = vpop.f32.mrb[0].mxu0
    %2796 = vmatprep.mubr.f32.mxu0 0.0
    %2797 = vmatmul.mubr.f32.gmra.mrb[0].mxu0 %v1515
    %v2798 = vpop.f32.mrb[0].mxu0
    %v2799 = vadd.f32 %v2534, %v2798
    %v2800 = vpop.f32.mrb[0].mxu0
    %2801 = vmatprep.mubr.f32.mxu0 0.0
    %2802 = vmatmul.mubr.f32.gmra.mrb[0].mxu0 %v1520
    %v2803 = vpop.f32.mrb[0].mxu0
    %v2804 = vadd.f32 %v2539, %v2803
    %v2805 = vpop.f32.mrb[0].mxu0
    %2806 = vmatprep.mubr.f32.mxu0 0.0
    %2807 = vmatmul.mubr.f32.gmra.mrb[0].mxu0 %v1525
    %v2808 = vpop.f32.mrb[0].mxu0
    %v2809 = vadd.f32 %v2544, %v2808
    %v2810 = vpop.f32.mrb[0].mxu0
    %2811 = vmatprep.mubr.f32.mxu0 0.0
    %2812 = vmatmul.mubr.f32.gmra.mrb[0].mxu0 %v1530
    %v2813 = vpop.f32.mrb[0].mxu0
    %v2814 = vadd.f32 %v2549, %v2813
    %v2815 = vpop.f32.mrb[0].mxu0
    %2816 = vmatprep.mubr.f32.mxu0 0.0
    %2817 = vmatmul.mubr.f32.gmra.mrb[0].mxu0 %v1535
    %v2818 = vpop.f32.mrb[0].mxu0
    %v2819 = vadd.f32 %v2554, %v2818
    %v2820 = vpop.f32.mrb[0].mxu0
    %2821 = vmatprep.mubr.f32.mxu0 0.0
    %2822 = vmatmul.mubr.f32.gmra.mrb[0].mxu0 %v1540
    %v2823 = vpop.f32.mrb[0].mxu0
    %v2824 = vadd.f32 %v2559, %v2823
    %v2825 = vpop.f32.mrb[0].mxu0
    %2826 = vmatprep.mubr.f32.mxu0 0.0
    %2827 = vmatmul.mubr.f32.gmra.mrb[0].mxu0 %v1545
    %v2828 = vpop.f32.mrb[0].mxu0
    %v2829 = vadd.f32 %v2564, %v2828
    %v2830 = vpop.f32.mrb[0].mxu0
    %2831 = vmatprep.mubr.f32.mxu0 0.0
    %2832 = vmatmul.mubr.f32.gmra.mrb[0].mxu0 %v1550
    %v2833 = vpop.f32.mrb[0].mxu0
    %v2834 = vadd.f32 %v2569, %v2833
    %v2835 = vpop.f32.mrb[0].mxu0
    %2836 = vmatprep.mubr.f32.mxu0 0.0
    %2837 = vmatmul.mubr.f32.gmra.mrb[0].mxu0 %v1555
    %v2838 = vpop.f32.mrb[0].mxu0
    %v2839 = vadd.f32 %v2574, %v2838
    %v2840 = vpop.f32.mrb[0].mxu0
    %2841 = vmatprep.mubr.f32.mxu0 0.0
    %2842 = vmatmul.mubr.f32.gmra.mrb[0].mxu0 %v1560
    %v2843 = vpop.f32.mrb[0].mxu0
    %v2844 = vadd.f32 %v2579, %v2843
    %v2845 = vpop.f32.mrb[0].mxu0
    %2846 = vmatprep.mubr.f32.mxu0 0.0
    %2847 = vmatmul.mubr.f32.gmra.mrb[0].mxu0 %v1565
    %v2848 = vpop.f32.mrb[0].mxu0
    %v2849 = vadd.f32 %v2584, %v2848
    %v2850 = vpop.f32.mrb[0].mxu0
    %2851 = vmatprep.mubr.f32.mxu0 0.0
    %2852 = vmatmul.mubr.f32.gmra.mrb[0].mxu0 %v1570
    %v2853 = vpop.f32.mrb[0].mxu0
    %v2854 = vadd.f32 %v2589, %v2853
    %v2855 = vpop.f32.mrb[0].mxu0
    %2856 = vmatprep.mubr.f32.mxu0 0.0
    %2857 = vmatmul.mubr.f32.gmra.mrb[0].mxu0 %v1575
    %v2858 = vpop.f32.mrb[0].mxu0
    %v2859 = vadd.f32 %v2594, %v2858
    %v2860 = vpop.f32.mrb[0].mxu0
    %2861 = vmatprep.mubr.f32.mxu0 0.0
    %2862 = vmatmul.mubr.f32.gmra.mrb[0].mxu0 %v1580
    %v2863 = vpop.f32.mrb[0].mxu0
    %v2864 = vadd.f32 %v2599, %v2863
    %v2865 = vpop.f32.mrb[0].mxu0
    %2866 = vmatprep.mubr.f32.mxu0 0.0
    %2867 = vmatmul.mubr.f32.gmra.mrb[0].mxu0 %v1585
    %v2868 = vpop.f32.mrb[0].mxu0
    %v2869 = vadd.f32 %v2604, %v2868
    %v2870 = vpop.f32.mrb[0].mxu0
    %2871 = vmatprep.mubr.f32.mxu0 0.0
    %2872 = vmatmul.mubr.f32.gmra.mrb[0].mxu0 %v1590
    %v2873 = vpop.f32.mrb[0].mxu0
    %v2874 = vadd.f32 %v2609, %v2873
    %v2875 = vpop.f32.mrb[0].mxu0
    %2876 = vmatprep.mubr.f32.mxu0 0.0
    %2877 = vmatmul.mubr.f32.gmra.mrb[0].mxu0 %v1595
    %v2878 = vpop.f32.mrb[0].mxu0
    %v2879 = vadd.f32 %v2614, %v2878
    %v2880 = vpop.f32.mrb[0].mxu0
    %2881 = vmatprep.mubr.f32.mxu0 0.0
    %2882 = vmatmul.mubr.f32.gmra.mrb[0].mxu0 %v1600
    %v2883 = vpop.f32.mrb[0].mxu0
    %v2884 = vadd.f32 %v2619, %v2883
    %v2885 = vpop.f32.mrb[0].mxu0
    %2886 = vmatprep.mubr.f32.mxu0 0.0
    %2887 = vmatmul.mubr.f32.gmra.mrb[0].mxu0 %v1605
    %v2888 = vpop.f32.mrb[0].mxu0
    %v2889 = vadd.f32 %v2624, %v2888
    %v2890 = vpop.f32.mrb[0].mxu0
    %2891 = vmatprep.mubr.f32.mxu0 0.0
    %2892 = vmatmul.mubr.f32.gmra.mrb[0].mxu0 %v1610
    %v2893 = vpop.f32.mrb[0].mxu0
    %v2894 = vadd.f32 %v2629, %v2893
    %v2895 = vpop.f32.mrb[0].mxu0
    %2896 = vmatprep.mubr.f32.mxu0 0.0
    %2897 = vmatmul.mubr.f32.gmra.mrb[0].mxu0 %v1615
    %v2898 = vpop.f32.mrb[0].mxu0
    %v2899 = vadd.f32 %v2634, %v2898
    %v2900 = vpop.f32.mrb[0].mxu0
    %2901 = vmatprep.mubr.f32.mxu0 0.0
    %2902 = vmatmul.mubr.f32.gmra.mrb[0].mxu0 %v1620
    %v2903 = vpop.f32.mrb[0].mxu0
    %v2904 = vadd.f32 %v2639, %v2903
    %v2905 = vpop.f32.mrb[0].mxu0
    %2906 = vmatprep.mubr.f32.mxu0 0.0
    %2907 = vmatmul.mubr.f32.gmra.mrb[0].mxu0 %v1625
    %v2908 = vpop.f32.mrb[0].mxu0
    %v2909 = vadd.f32 %v2644, %v2908
    %v2910 = vpop.f32.mrb[0].mxu0
    %2911 = vmatprep.mubr.f32.mxu0 0.0
    %2912 = vmatmul.mubr.f32.gmra.mrb[0].mxu0 %v1630
    %v2913 = vpop.f32.mrb[0].mxu0
    %v2914 = vadd.f32 %v2649, %v2913
    %v2915 = vpop.f32.mrb[0].mxu0
    %2916 = vmatprep.mubr.f32.mxu0 0.0
    %2917 = vmatmul.mubr.f32.gmra.mrb[0].mxu0 %v1635
    %v2918 = vpop.f32.mrb[0].mxu0
    %v2919 = vadd.f32 %v2654, %v2918
    %v2920 = vpop.f32.mrb[0].mxu0
    %2921 = vmatprep.mubr.f32.mxu0 0.0
    %2922 = vmatmul.mubr.f32.gmra.mrb[0].mxu0 %v1640
    %v2923 = vpop.f32.mrb[0].mxu0
    %v2924 = vadd.f32 %v2659, %v2923
    %v2925 = vpop.f32.mrb[0].mxu0
    %2926 = vmatprep.mubr.f32.mxu0 0.0
    %2927 = vmatmul.mubr.f32.gmra.mrb[0].mxu0 %v1645
    %v2928 = vpop.f32.mrb[0].mxu0
    %v2929 = vadd.f32 %v2664, %v2928
    %v2930 = vpop.f32.mrb[0].mxu0
    %2931 = vmatprep.mubr.f32.mxu0 0.0
    %2932 = vmatmul.mubr.f32.gmra.mrb[0].mxu0 %v1650
    %v2933 = vpop.f32.mrb[0].mxu0
    %v2934 = vadd.f32 %v2669, %v2933
    %v2935 = vpop.f32.mrb[0].mxu0
    %2936 = vmatprep.mubr.f32.mxu0 0.0
    %2937 = vmatmul.mubr.f32.gmra.mrb[0].mxu0 %v1655
    %v2938 = vpop.f32.mrb[0].mxu0
    %v2939 = vadd.f32 %v2674, %v2938
    %v2940 = vpop.f32.mrb[0].mxu0
    %2941 = vmatprep.mubr.f32.mxu0 0.0
    %2942 = vmatmul.mubr.f32.gmra.mrb[0].mxu0 %v1660
    %v2943 = vpop.f32.mrb[0].mxu0
    %v2944 = vadd.f32 %v2679, %v2943
    %v2945 = vpop.f32.mrb[0].mxu0
    %2946 = vmatprep.mubr.f32.mxu0 0.0
    %2947 = vmatmul.mubr.f32.gmra.mrb[0].mxu0 %v1665
    %v2948 = vpop.f32.mrb[0].mxu0
    %v2949 = vadd.f32 %v2684, %v2948
    %v2950 = vpop.f32.mrb[0].mxu0
    %2951 = vmatprep.mubr.f32.mxu0 0.0
    %2952 = vmatmul.mubr.f32.gmra.mrb[0].mxu0 %v1670
    %v2953 = vpop.f32.mrb[0].mxu0
    %v2954 = vadd.f32 %v2689, %v2953
    %v2955 = vpop.f32.mrb[0].mxu0
    %2956 = vdwg.mxu0
    %v2957 = vmul.f32 %v2189, %v2237
    %v2958 = vmul.f32 %v2191, %v2239
    %v2959 = vmul.f32 %v2759, %v2799
    %v2960 = vmul.f32 %v2195, %v2243
    %v2961 = vmul.f32 %v2197, %v2245
    %v2962 = vmul.f32 %v2764, %v2804
    %v2963 = vmul.f32 %v2201, %v2249
    %v2964 = vmul.f32 %v2203, %v2251
    %v2965 = vmul.f32 %v2769, %v2809
    %v2966 = vmul.f32 %v2207, %v2255
    %v2967 = vmul.f32 %v2209, %v2257
    %v2968 = vmul.f32 %v2774, %v2814
    %v2969 = vmul.f32 %v2213, %v2261
    %v2970 = vmul.f32 %v2215, %v2263
    %v2971 = vmul.f32 %v2779, %v2819
    %v2972 = vmul.f32 %v2219, %v2267
    %v2973 = vmul.f32 %v2221, %v2269
    %v2974 = vmul.f32 %v2784, %v2824
    %v2975 = vmul.f32 %v2225, %v2273
    %v2976 = vmul.f32 %v2227, %v2275
    %v2977 = vmul.f32 %v2789, %v2829
    %v2978 = vmul.f32 %v2231, %v2279
    %v2979 = vmul.f32 %v2233, %v2281
    %v2980 = vmul.f32 %v2794, %v2834
    %v2981 = vmul.f32 %v2189, %v2189
    %v2982 = vmul.f32 %v2191, %v2191
    %v2983 = vmul.f32 %v2759, %v2759
    %v2984 = vmul.f32 %v2195, %v2195
    %v2985 = vmul.f32 %v2197, %v2197
    %v2986 = vmul.f32 %v2764, %v2764
    %v2987 = vmul.f32 %v2201, %v2201
    %v2988 = vmul.f32 %v2203, %v2203
    %v2989 = vmul.f32 %v2769, %v2769
    %v2990 = vmul.f32 %v2207, %v2207
    %v2991 = vmul.f32 %v2209, %v2209
    %v2992 = vmul.f32 %v2774, %v2774
    %v2993 = vmul.f32 %v2213, %v2213
    %v2994 = vmul.f32 %v2215, %v2215
    %v2995 = vmul.f32 %v2779, %v2779
    %v2996 = vmul.f32 %v2219, %v2219
    %v2997 = vmul.f32 %v2221, %v2221
    %v2998 = vmul.f32 %v2784, %v2784
    %v2999 = vmul.f32 %v2225, %v2225
    %v3000 = vmul.f32 %v2227, %v2227
    %v3001 = vmul.f32 %v2789, %v2789
    %v3002 = vmul.f32 %v2231, %v2231
    %v3003 = vmul.f32 %v2233, %v2233
    %v3004 = vmul.f32 %v2794, %v2794
    %v3005 = vsub.f32 %v2285, %v2981
    %v3006 = vsub.f32 %v2287, %v2982
    %v3007 = vsub.f32 %v2839, %v2983
    %v3008 = vsub.f32 %v2291, %v2984
    %v3009 = vsub.f32 %v2293, %v2985
    %v3010 = vsub.f32 %v2844, %v2986
    %v3011 = vsub.f32 %v2297, %v2987
    %v3012 = vsub.f32 %v2299, %v2988
    %v3013 = vsub.f32 %v2849, %v2989
    %v3014 = vsub.f32 %v2303, %v2990
    %v3015 = vsub.f32 %v2305, %v2991
    %v3016 = vsub.f32 %v2854, %v2992
    %v3017 = vsub.f32 %v2309, %v2993
    %v3018 = vsub.f32 %v2311, %v2994
    %v3019 = vsub.f32 %v2859, %v2995
    %v3020 = vsub.f32 %v2315, %v2996
    %v3021 = vsub.f32 %v2317, %v2997
    %v3022 = vsub.f32 %v2864, %v2998
    %v3023 = vsub.f32 %v2321, %v2999
    %v3024 = vsub.f32 %v2323, %v3000
    %v3025 = vsub.f32 %v2869, %v3001
    %v3026 = vsub.f32 %v2327, %v3002
    %v3027 = vsub.f32 %v2329, %v3003
    %v3028 = vsub.f32 %v2874, %v3004
    %v3029 = vmul.f32 %v2237, %v2237
    %v3030 = vmul.f32 %v2239, %v2239
    %v3031 = vmul.f32 %v2799, %v2799
    %v3032 = vmul.f32 %v2243, %v2243
    %v3033 = vmul.f32 %v2245, %v2245
    %v3034 = vmul.f32 %v2804, %v2804
    %v3035 = vmul.f32 %v2249, %v2249
    %v3036 = vmul.f32 %v2251, %v2251
    %v3037 = vmul.f32 %v2809, %v2809
    %v3038 = vmul.f32 %v2255, %v2255
    %v3039 = vmul.f32 %v2257, %v2257
    %v3040 = vmul.f32 %v2814, %v2814
    %v3041 = vmul.f32 %v2261, %v2261
    %v3042 = vmul.f32 %v2263, %v2263
    %v3043 = vmul.f32 %v2819, %v2819
    %v3044 = vmul.f32 %v2267, %v2267
    %v3045 = vmul.f32 %v2269, %v2269
    %v3046 = vmul.f32 %v2824, %v2824
    %v3047 = vmul.f32 %v2273, %v2273
    %v3048 = vmul.f32 %v2275, %v2275
    %v3049 = vmul.f32 %v2829, %v2829
    %v3050 = vmul.f32 %v2279, %v2279
    %v3051 = vmul.f32 %v2281, %v2281
    %v3052 = vmul.f32 %v2834, %v2834
    %v3053 = vsub.f32 %v2333, %v3029
    %v3054 = vsub.f32 %v2335, %v3030
    %v3055 = vsub.f32 %v2879, %v3031
    %v3056 = vsub.f32 %v2339, %v3032
    %v3057 = vsub.f32 %v2341, %v3033
    %v3058 = vsub.f32 %v2884, %v3034
    %v3059 = vsub.f32 %v2345, %v3035
    %v3060 = vsub.f32 %v2347, %v3036
    %v3061 = vsub.f32 %v2889, %v3037
    %v3062 = vsub.f32 %v2351, %v3038
    %v3063 = vsub.f32 %v2353, %v3039
    %v3064 = vsub.f32 %v2894, %v3040
    %v3065 = vsub.f32 %v2357, %v3041
    %v3066 = vsub.f32 %v2359, %v3042
    %v3067 = vsub.f32 %v2899, %v3043
    %v3068 = vsub.f32 %v2363, %v3044
    %v3069 = vsub.f32 %v2365, %v3045
    %v3070 = vsub.f32 %v2904, %v3046
    %v3071 = vsub.f32 %v2369, %v3047
    %v3072 = vsub.f32 %v2371, %v3048
    %v3073 = vsub.f32 %v2909, %v3049
    %v3074 = vsub.f32 %v2375, %v3050
    %v3075 = vsub.f32 %v2377, %v3051
    %v3076 = vsub.f32 %v2914, %v3052
    %v3077 = vsub.f32 %v2381, %v2957
    %v3078 = vsub.f32 %v2383, %v2958
    %v3079 = vsub.f32 %v2919, %v2959
    %v3080 = vsub.f32 %v2387, %v2960
    %v3081 = vsub.f32 %v2389, %v2961
    %v3082 = vsub.f32 %v2924, %v2962
    %v3083 = vsub.f32 %v2393, %v2963
    %v3084 = vsub.f32 %v2395, %v2964
    %v3085 = vsub.f32 %v2929, %v2965
    %v3086 = vsub.f32 %v2399, %v2966
    %v3087 = vsub.f32 %v2401, %v2967
    %v3088 = vsub.f32 %v2934, %v2968
    %v3089 = vsub.f32 %v2405, %v2969
    %v3090 = vsub.f32 %v2407, %v2970
    %v3091 = vsub.f32 %v2939, %v2971
    %v3092 = vsub.f32 %v2411, %v2972
    %v3093 = vsub.f32 %v2413, %v2973
    %v3094 = vsub.f32 %v2944, %v2974
    %v3095 = vsub.f32 %v2417, %v2975
    %v3096 = vsub.f32 %v2419, %v2976
    %v3097 = vsub.f32 %v2949, %v2977
    %v3098 = vsub.f32 %v2423, %v2978
    %v3099 = vsub.f32 %v2425, %v2979
    %v3100 = vsub.f32 %v2954, %v2980
    %v3101 = vmul.f32 %v3077, 2.0
    %v3102 = vmul.f32 %v3078, 2.0
    %v3103 = vmul.f32 %v3079, 2.0
    %v3104 = vmul.f32 %v3080, 2.0
    %v3105 = vmul.f32 %v3081, 2.0
    %v3106 = vmul.f32 %v3082, 2.0
    %v3107 = vmul.f32 %v3083, 2.0
    %v3108 = vmul.f32 %v3084, 2.0
    %v3109 = vmul.f32 %v3085, 2.0
    %v3110 = vmul.f32 %v3086, 2.0
    %v3111 = vmul.f32 %v3087, 2.0
    %v3112 = vmul.f32 %v3088, 2.0
    %v3113 = vmul.f32 %v3089, 2.0
    %v3114 = vmul.f32 %v3090, 2.0
    %v3115 = vmul.f32 %v3091, 2.0
    %v3116 = vmul.f32 %v3092, 2.0
    %v3117 = vmul.f32 %v3093, 2.0
    %v3118 = vmul.f32 %v3094, 2.0
    %v3119 = vmul.f32 %v3095, 2.0
    %v3120 = vmul.f32 %v3096, 2.0
    %v3121 = vmul.f32 %v3097, 2.0
    %v3122 = vmul.f32 %v3098, 2.0
    %v3123 = vmul.f32 %v3099, 2.0
    %v3124 = vmul.f32 %v3100, 2.0
    %v3125 = vadd.f32 %v3101, 0.0009
    %v3126 = vadd.f32 %v3102, 0.0009
    %v3127 = vadd.f32 %v3103, 0.0009
    %v3128 = vadd.f32 %v3104, 0.0009
    %v3129 = vadd.f32 %v3105, 0.0009
    %v3130 = vadd.f32 %v3106, 0.0009
    %v3131 = vadd.f32 %v3107, 0.0009
    %v3132 = vadd.f32 %v3108, 0.0009
    %v3133 = vadd.f32 %v3109, 0.0009
    %v3134 = vadd.f32 %v3110, 0.0009
    %v3135 = vadd.f32 %v3111, 0.0009
    %v3136 = vadd.f32 %v3112, 0.0009
    %v3137 = vadd.f32 %v3113, 0.0009
    %v3138 = vadd.f32 %v3114, 0.0009
    %v3139 = vadd.f32 %v3115, 0.0009
    %v3140 = vadd.f32 %v3116, 0.0009
    %v3141 = vadd.f32 %v3117, 0.0009
    %v3142 = vadd.f32 %v3118, 0.0009
    %v3143 = vadd.f32 %v3119, 0.0009
    %v3144 = vadd.f32 %v3120, 0.0009
    %v3145 = vadd.f32 %v3121, 0.0009
    %v3146 = vadd.f32 %v3122, 0.0009
    %v3147 = vadd.f32 %v3123, 0.0009
    %v3148 = vadd.f32 %v3124, 0.0009
    %v3149 = vadd.f32 %v3005, %v3053
    %v3150 = vadd.f32 %v3006, %v3054
    %v3151 = vadd.f32 %v3007, %v3055
    %v3152 = vadd.f32 %v3008, %v3056
    %v3153 = vadd.f32 %v3009, %v3057
    %v3154 = vadd.f32 %v3010, %v3058
    %v3155 = vadd.f32 %v3011, %v3059
    %v3156 = vadd.f32 %v3012, %v3060
    %v3157 = vadd.f32 %v3013, %v3061
    %v3158 = vadd.f32 %v3014, %v3062
    %v3159 = vadd.f32 %v3015, %v3063
    %v3160 = vadd.f32 %v3016, %v3064
    %v3161 = vadd.f32 %v3017, %v3065
    %v3162 = vadd.f32 %v3018, %v3066
    %v3163 = vadd.f32 %v3019, %v3067
    %v3164 = vadd.f32 %v3020, %v3068
    %v3165 = vadd.f32 %v3021, %v3069
    %v3166 = vadd.f32 %v3022, %v3070
    %v3167 = vadd.f32 %v3023, %v3071
    %v3168 = vadd.f32 %v3024, %v3072
    %v3169 = vadd.f32 %v3025, %v3073
    %v3170 = vadd.f32 %v3026, %v3074
    %v3171 = vadd.f32 %v3027, %v3075
    %v3172 = vadd.f32 %v3028, %v3076
    %v3173 = vadd.f32 %v3149, 0.0009
    %v3174 = vadd.f32 %v3150, 0.0009
    %v3175 = vadd.f32 %v3151, 0.0009
    %v3176 = vadd.f32 %v3152, 0.0009
    %v3177 = vadd.f32 %v3153, 0.0009
    %v3178 = vadd.f32 %v3154, 0.0009
    %v3179 = vadd.f32 %v3155, 0.0009
    %v3180 = vadd.f32 %v3156, 0.0009
    %v3181 = vadd.f32 %v3157, 0.0009
    %v3182 = vadd.f32 %v3158, 0.0009
    %v3183 = vadd.f32 %v3159, 0.0009
    %v3184 = vadd.f32 %v3160, 0.0009
    %v3185 = vadd.f32 %v3161, 0.0009
    %v3186 = vadd.f32 %v3162, 0.0009
    %v3187 = vadd.f32 %v3163, 0.0009
    %v3188 = vadd.f32 %v3164, 0.0009
    %v3189 = vadd.f32 %v3165, 0.0009
    %v3190 = vadd.f32 %v3166, 0.0009
    %v3191 = vadd.f32 %v3167, 0.0009
    %v3192 = vadd.f32 %v3168, 0.0009
    %v3193 = vadd.f32 %v3169, 0.0009
    %v3194 = vadd.f32 %v3170, 0.0009
    %v3195 = vadd.f32 %v3171, 0.0009
    %v3196 = vadd.f32 %v3172, 0.0009
    %v3197 = vrcp.pop %v3173
    %v3198 = vmul.f32 %v3125, %v3197
    %v3199 = vrcp.pop %v3174
    %v3200 = vmul.f32 %v3126, %v3199
    %v3201 = vrcp.pop %v3175
    %v3202 = vmul.f32 %v3127, %v3201
    %v3203 = vrcp.pop %v3176
    %v3204 = vmul.f32 %v3128, %v3203
    %v3205 = vrcp.pop %v3177
    %v3206 = vmul.f32 %v3129, %v3205
    %v3207 = vrcp.pop %v3178
    %v3208 = vmul.f32 %v3130, %v3207
    %v3209 = vrcp.pop %v3179
    %v3210 = vmul.f32 %v3131, %v3209
    %v3211 = vrcp.pop %v3180
    %v3212 = vmul.f32 %v3132, %v3211
    %v3213 = vrcp.pop %v3181
    %v3214 = vmul.f32 %v3133, %v3213
    %v3215 = vrcp.pop %v3182
    %v3216 = vmul.f32 %v3134, %v3215
    %v3217 = vrcp.pop %v3183
    %v3218 = vmul.f32 %v3135, %v3217
    %v3219 = vrcp.pop %v3184
    %v3220 = vmul.f32 %v3136, %v3219
    %v3221 = vrcp.pop %v3185
    %v3222 = vmul.f32 %v3137, %v3221
    %v3223 = vrcp.pop %v3186
    %v3224 = vmul.f32 %v3138, %v3223
    %v3225 = vrcp.pop %v3187
    %v3226 = vmul.f32 %v3139, %v3225
    %v3227 = vrcp.pop %v3188
    %v3228 = vmul.f32 %v3140, %v3227
    %v3229 = vrcp.pop %v3189
    %v3230 = vmul.f32 %v3141, %v3229
    %v3231 = vrcp.pop %v3190
    %v3232 = vmul.f32 %v3142, %v3231
    %v3233 = vrcp.pop %v3191
    %v3234 = vmul.f32 %v3143, %v3233
    %v3235 = vrcp.pop %v3192
    %v3236 = vmul.f32 %v3144, %v3235
    %v3237 = vrcp.pop %v3193
    %v3238 = vmul.f32 %v3145, %v3237
    %v3239 = vrcp.pop %v3194
    %v3240 = vmul.f32 %v3146, %v3239
    %v3241 = vrcp.pop %v3195
    %v3242 = vmul.f32 %v3147, %v3241
    %v3243 = vrcp.pop %v3196
    %v3244 = vmul.f32 %v3148, %v3243
    %v3245 = vld [vmem:[%s6] sm:$0xff]
    %v3246 = vld [vmem:[%s6 + $0x8] sm:$0xff]
    %v3247 = vld [vmem:[%s6 + $0x10] sm:$0xff]
    %v3248 = vld [vmem:[%s6 + $0x18] sm:$0xff]
    %v3249 = vld [vmem:[%s6 + $0x20] sm:$0xff]
    %v3250 = vld [vmem:[%s6 + $0x28] sm:$0xff]
    %v3251 = vld [vmem:[%s6 + $0x30] sm:$0xff]
    %v3252 = vld [vmem:[%s6 + $0x38] sm:$0xff]
    %v3253 = vld [vmem:[%s6 + $0x40] sm:$0xff]
    %v3254 = vld [vmem:[%s6 + $0x48] sm:$0xff]
    %v3255 = vld [vmem:[%s6 + $0x50] sm:$0xff]
    %v3256 = vld [vmem:[%s6 + $0x58] sm:$0xff]
    %v3257 = vld [vmem:[%s6 + $0x60] sm:$0xff]
    %v3258 = vld [vmem:[%s6 + $0x68] sm:$0xff]
    %v3259 = vld [vmem:[%s6 + $0x70] sm:$0xff]
    %v3260 = vld [vmem:[%s6 + $0x78] sm:$0xff]
    %v3261 = vld [vmem:[%s6 + $0x80] sm:$0xff]
    %v3262 = vld [vmem:[%s6 + $0x88] sm:$0xff]
    %v3263 = vld [vmem:[%s6 + $0x90] sm:$0xff]
    %v3264 = vld [vmem:[%s6 + $0x98] sm:$0xff]
    %v3265 = vld [vmem:[%s6 + $0xa0] sm:$0xff]
    %v3266 = vld [vmem:[%s6 + $0xa8] sm:$0xff]
    %v3267 = vld [vmem:[%s6 + $0xb0] sm:$0xff]
    %v3268 = vld [vmem:[%s6 + $0xb8] sm:$0xff]
    %v3269 = vld [vmem:[%s6 + $0xc0] sm:$0xff]
    %v3270 = vld [vmem:[%s6 + $0xc8] sm:$0xff]
    %v3271 = vld [vmem:[%s6 + $0xd0] sm:$0xff]
    %v3272 = vld [vmem:[%s6 + $0xd8] sm:$0xff]
    %v3273 = vld [vmem:[%s6 + $0xe0] sm:$0xff]
    %v3274 = vld [vmem:[%s6 + $0xe8] sm:$0xff]
    %v3275 = vld [vmem:[%s6 + $0xf0] sm:$0xff]
    %v3276 = vld [vmem:[%s6 + $0xf8] sm:$0xff]
    %v3277 = vld [vmem:[%s6 + $0x100] sm:$0xff]
    %v3278 = vld [vmem:[%s6 + $0x108] sm:$0xff]
    %v3279 = vld [vmem:[%s6 + $0x110] sm:$0xff]
    %v3280 = vld [vmem:[%s6 + $0x118] sm:$0xff]
    %v3281 = vld [vmem:[%s6 + $0x120] sm:$0xff]
    %v3282 = vld [vmem:[%s6 + $0x128] sm:$0xff]
    %v3283 = vld [vmem:[%s6 + $0x130] sm:$0xff]
    %v3284 = vld [vmem:[%s6 + $0x138] sm:$0xff]
    %v3285 = vld [vmem:[%s6 + $0x140] sm:$0xff]
    %v3286 = vld [vmem:[%s6 + $0x148] sm:$0xff]
    %v3287 = vld [vmem:[%s6 + $0x150] sm:$0xff]
    %v3288 = vld [vmem:[%s6 + $0x158] sm:$0xf]
    %vm3289 = vcmask 752640
    %v3291 = vsel %vm3289, %v3202, 0
    %v3294 = vsel %vm3289, %v3208, 0
    %v3297 = vsel %vm3289, %v3214, 0
    %v3300 = vsel %vm3289, %v3220, 0
    %v3303 = vsel %vm3289, %v3226, 0
    %v3306 = vsel %vm3289, %v3232, 0
    %v3309 = vsel %vm3289, %v3238, 0
    %v3312 = vsel %vm3289, %v3244, 0
    %vm3314 = vcmask 1043456
    %v3316 = vsel %vm3314, %v3288, 0
    %3318 = vmatprep.subr.mxu0 0.0
    %3319 = vmatpush1.msra.mxu0 %v3245
    %3320 = vmatprep.subr.mxu0 0.0
    %3321 = vmatpush1.msra.mxu0 %v3246
    %3322 = vmatprep.subr.mxu0 0.0
    %3323 = vmatpush1.msra.mxu0 %v3247
    %3324 = vmatprep.subr.mxu0 0.0
    %3325 = vmatpush1.msra.mxu0 %v3248
    %3326 = vmatprep.subr.mxu0 0.0
    %3327 = vmatpush1.msra.mxu0 %v3249
    %3328 = vmatprep.subr.mxu0 0.0
    %3329 = vmatpush1.msra.mxu0 %v3250
    %3330 = vmatprep.subr.mxu0 0.0
    %3331 = vmatpush1.msra.mxu0 %v3251
    %3332 = vmatprep.subr.mxu0 0.0
    %3333 = vmatpush1.msra.mxu0 %v3252
    %3334 = vmatprep.subr.mxu0 0.0
    %3335 = vmatpush1.msra.mxu0 %v3253
    %3336 = vmatprep.subr.mxu0 0.0
    %3337 = vmatpush1.msra.mxu0 %v3254
    %3338 = vmatprep.subr.mxu0 0.0
    %3339 = vmatpush1.msra.mxu0 %v3255
    %3340 = vmatprep.subr.mxu0 0.0
    %3341 = vmatpush1.msra.mxu0 %v3256
    %3342 = vmatprep.subr.mxu0 0.0
    %3343 = vmatpush1.msra.mxu0 %v3257
    %3344 = vmatprep.subr.mxu0 0.0
    %3345 = vmatpush1.msra.mxu0 %v3258
    %3346 = vmatprep.subr.mxu0 0.0
    %3347 = vmatpush1.msra.mxu0 %v3259
    %3348 = vmatprep.subr.mxu0 0.0
    %3349 = vmatpush1.msra.mxu0 %v3260
    %3350 = vmatprep.subr.mxu0 0.0
    %3351 = vmatpush1.msra.mxu0 %v3261
    %3352 = vmatprep.subr.mxu0 0.0
    %3353 = vmatpush1.msra.mxu0 %v3262
    %3354 = vmatprep.subr.mxu0 0.0
    %3355 = vmatpush1.msra.mxu0 %v3263
    %3356 = vmatprep.subr.mxu0 0.0
    %3357 = vmatpush1.msra.mxu0 %v3264
    %3358 = vmatprep.subr.mxu0 0.0
    %3359 = vmatpush1.msra.mxu0 %v3265
    %3360 = vmatprep.subr.mxu0 0.0
    %3361 = vmatpush1.msra.mxu0 %v3266
    %3362 = vmatprep.subr.mxu0 0.0
    %3363 = vmatpush1.msra.mxu0 %v3267
    %3364 = vmatprep.subr.mxu0 0.0
    %3365 = vmatpush1.msra.mxu0 %v3268
    %3366 = vmatprep.subr.mxu0 0.0
    %3367 = vmatpush1.msra.mxu0 %v3269
    %3368 = vmatprep.subr.mxu0 0.0
    %3369 = vmatpush1.msra.mxu0 %v3270
    %3370 = vmatprep.subr.mxu0 0.0
    %3371 = vmatpush1.msra.mxu0 %v3271
    %3372 = vmatprep.subr.mxu0 0.0
    %3373 = vmatpush1.msra.mxu0 %v3272
    %3374 = vmatprep.subr.mxu0 0.0
    %3375 = vmatpush1.msra.mxu0 %v3273
    %3376 = vmatprep.subr.mxu0 0.0
    %3377 = vmatpush1.msra.mxu0 %v3274
    %3378 = vmatprep.subr.mxu0 0.0
    %3379 = vmatpush1.msra.mxu0 %v3275
    %3380 = vmatprep.subr.mxu0 0.0
    %3381 = vmatpush1.msra.mxu0 %v3276
    %3382 = vmatprep.mubr.f32.mxu0 %v3200
    %3383 = vmatmul.mubr.f32.gmra.mrb[0].mxu0 %v3198
    %v3384 = vpop.f32.mrb[0].mxu0
    %v3385 = vadd.f32 0.0, %v3384
    %v3386 = vpop.f32.mrb[0].mxu0
    %3387 = vmatprep.mubr.f32.mxu0 %v3206
    %3388 = vmatmul.mubr.f32.gmra.mrb[0].mxu0 %v3204
    %v3389 = vpop.f32.mrb[0].mxu0
    %v3390 = vadd.f32 0.0, %v3389
    %v3391 = vpop.f32.mrb[0].mxu0
    %3392 = vmatprep.mubr.f32.mxu0 %v3212
    %3393 = vmatmul.mubr.f32.gmra.mrb[0].mxu0 %v3210
    %v3394 = vpop.f32.mrb[0].mxu0
    %v3395 = vadd.f32 0.0, %v3394
    %v3396 = vpop.f32.mrb[0].mxu0
    %3397 = vmatprep.mubr.f32.mxu0 %v3218
    %3398 = vmatmul.mubr.f32.gmra.mrb[0].mxu0 %v3216
    %v3399 = vpop.f32.mrb[0].mxu0
    %v3400 = vadd.f32 0.0, %v3399
    %v3401 = vpop.f32.mrb[0].mxu0
    %3402 = vmatprep.mubr.f32.mxu0 %v3224
    %3403 = vmatmul.mubr.f32.gmra.mrb[0].mxu0 %v3222
    %v3404 = vpop.f32.mrb[0].mxu0
    %v3405 = vadd.f32 0.0, %v3404
    %v3406 = vpop.f32.mrb[0].mxu0
    %3407 = vmatprep.mubr.f32.mxu0 %v3230
    %3408 = vmatmul.mubr.f32.gmra.mrb[0].mxu0 %v3228
    %v3409 = vpop.f32.mrb[0].mxu0
    %v3410 = vadd.f32 0.0, %v3409
    %v3411 = vpop.f32.mrb[0].mxu0
    %3412 = vmatprep.mubr.f32.mxu0 %v3236
    %3413 = vmatmul.mubr.f32.gmra.mrb[0].mxu0 %v3234
    %v3414 = vpop.f32.mrb[0].mxu0
    %v3415 = vadd.f32 0.0, %v3414
    %v3416 = vpop.f32.mrb[0].mxu0
    %3417 = vmatprep.mubr.f32.mxu0 %v3242
    %3418 = vmatmul.mubr.f32.gmra.mrb[0].mxu0 %v3240
    %v3419 = vpop.f32.mrb[0].mxu0
    %v3420 = vadd.f32 0.0, %v3419
    %v3421 = vpop.f32.mrb[0].mxu0
    %3422 = vdwg.mxu0
    %3423 = vmatprep.subr.mxu0 0.0
    %3424 = vmatpush1.msra.mxu0 %v3277
    %3425 = vmatprep.subr.mxu0 0.0
    %3426 = vmatpush1.msra.mxu0 %v3278
    %3427 = vmatprep.subr.mxu0 0.0
    %3428 = vmatpush1.msra.mxu0 %v3279
    %3429 = vmatprep.subr.mxu0 0.0
    %3430 = vmatpush1.msra.mxu0 %v3280
    %3431 = vmatprep.subr.mxu0 0.0
    %3432 = vmatpush1.msra.mxu0 %v3281
    %3433 = vmatprep.subr.mxu0 0.0
    %3434 = vmatpush1.msra.mxu0 %v3282
    %3435 = vmatprep.subr.mxu0 0.0
    %3436 = vmatpush1.msra.mxu0 %v3283
    %3437 = vmatprep.subr.mxu0 0.0
    %3438 = vmatpush1.msra.mxu0 %v3284
    %3439 = vmatprep.subr.mxu0 0.0
    %3440 = vmatpush1.msra.mxu0 %v3285
    %3441 = vmatprep.subr.mxu0 0.0
    %3442 = vmatpush1.msra.mxu0 %v3286
    %3443 = vmatprep.subr.mxu0 0.0
    %3444 = vmatpush1.msra.mxu0 %v3287
    %3445 = vmatprep.subr.mxu0 0.0
    %3446 = vmatpush1.msra.mxu0 %v3316
    %3447 = vmatprep.subr.mxu0 0.0
    %3448 = vmatpush1.msra.mxu0 0.0
    %3449 = vmatprep.subr.mxu0 0.0
    %3450 = vmatpush1.msra.mxu0 0.0
    %3451 = vmatprep.subr.mxu0 0.0
    %3452 = vmatpush1.msra.mxu0 0.0
    %3453 = vmatprep.subr.mxu0 0.0
    %3454 = vmatpush1.msra.mxu0 0.0
    %3455 = vmatprep.subr.mxu0 0.0
    %3456 = vmatpush1.msra.mxu0 0.0
    %3457 = vmatprep.subr.mxu0 0.0
    %3458 = vmatpush1.msra.mxu0 0.0
    %3459 = vmatprep.subr.mxu0 0.0
    %3460 = vmatpush1.msra.mxu0 0.0
    %3461 = vmatprep.subr.mxu0 0.0
    %3462 = vmatpush1.msra.mxu0 0.0
    %3463 = vmatprep.subr.mxu0 0.0
    %3464 = vmatpush1.msra.mxu0 0.0
    %3465 = vmatprep.subr.mxu0 0.0
    %3466 = vmatpush1.msra.mxu0 0.0
    %3467 = vmatprep.subr.mxu0 0.0
    %3468 = vmatpush1.msra.mxu0 0.0
    %3469 = vmatprep.subr.mxu0 0.0
    %3470 = vmatpush1.msra.mxu0 0.0
    %3471 = vmatprep.subr.mxu0 0.0
    %3472 = vmatpush1.msra.mxu0 0.0
    %3473 = vmatprep.subr.mxu0 0.0
    %3474 = vmatpush1.msra.mxu0 0.0
    %3475 = vmatprep.subr.mxu0 0.0
    %3476 = vmatpush1.msra.mxu0 0.0
    %3477 = vmatprep.subr.mxu0 0.0
    %3478 = vmatpush1.msra.mxu0 0.0
    %3479 = vmatprep.subr.mxu0 0.0
    %3480 = vmatpush1.msra.mxu0 0.0
    %3481 = vmatprep.subr.mxu0 0.0
    %3482 = vmatpush1.msra.mxu0 0.0
    %3483 = vmatprep.subr.mxu0 0.0
    %3484 = vmatpush1.msra.mxu0 0.0
    %3485 = vmatprep.subr.mxu0 0.0
    %3486 = vmatpush1.msra.mxu0 0.0
    %3487 = vmatprep.mubr.f32.mxu0 0.0
    %3488 = vmatmul.mubr.f32.gmra.mrb[0].mxu0 %v3291
    %v3489 = vpop.f32.mrb[0].mxu0
    %v3490 = vadd.f32 %v3385, %v3489
    %v3491 = vpop.f32.mrb[0].mxu0
    %3492 = vmatprep.mubr.f32.mxu0 0.0
    %3493 = vmatmul.mubr.f32.gmra.mrb[0].mxu0 %v3294
    %v3494 = vpop.f32.mrb[0].mxu0
    %v3495 = vadd.f32 %v3390, %v3494
    %v3496 = vpop.f32.mrb[0].mxu0
    %3497 = vmatprep.mubr.f32.mxu0 0.0
    %3498 = vmatmul.mubr.f32.gmra.mrb[0].mxu0 %v3297
    %v3499 = vpop.f32.mrb[0].mxu0
    %v3500 = vadd.f32 %v3395, %v3499
    %v3501 = vpop.f32.mrb[0].mxu0
    %3502 = vmatprep.mubr.f32.mxu0 0.0
    %3503 = vmatmul.mubr.f32.gmra.mrb[0].mxu0 %v3300
    %v3504 = vpop.f32.mrb[0].mxu0
    %v3505 = vadd.f32 %v3400, %v3504
    %v3506 = vpop.f32.mrb[0].mxu0
    %3507 = vmatprep.mubr.f32.mxu0 0.0
    %3508 = vmatmul.mubr.f32.gmra.mrb[0].mxu0 %v3303
    %v3509 = vpop.f32.mrb[0].mxu0
    %v3510 = vadd.f32 %v3405, %v3509
    %v3511 = vpop.f32.mrb[0].mxu0
    %3512 = vmatprep.mubr.f32.mxu0 0.0
    %3513 = vmatmul.mubr.f32.gmra.mrb[0].mxu0 %v3306
    %v3514 = vpop.f32.mrb[0].mxu0
    %v3515 = vadd.f32 %v3410, %v3514
    %v3516 = vpop.f32.mrb[0].mxu0
    %3517 = vmatprep.mubr.f32.mxu0 0.0
    %3518 = vmatmul.mubr.f32.gmra.mrb[0].mxu0 %v3309
    %v3519 = vpop.f32.mrb[0].mxu0
    %v3520 = vadd.f32 %v3415, %v3519
    %v3521 = vpop.f32.mrb[0].mxu0
    %3522 = vmatprep.mubr.f32.mxu0 0.0
    %3523 = vmatmul.mubr.f32.gmra.mrb[0].mxu0 %v3312
    %v3524 = vpop.f32.mrb[0].mxu0
    %v3525 = vadd.f32 %v3420, %v3524
    %v3526 = vpop.f32.mrb[0].mxu0
    %3527 = vdwg.mxu0
    %vm3528 = vcmask 48128
    %v3529 = vsel %vm3528, %v3490, 0.0
    %v3530 = vsel %vm3528, %v3495, 0.0
    %v3531 = vadd.f32 %v3529, %v3530
    %v3532 = vsel %vm3528, %v3500, 0.0
    %v3533 = vadd.f32 %v3531, %v3532
    %v3534 = vsel %vm3528, %v3505, 0.0
    %v3535 = vadd.f32 %v3533, %v3534
    %v3536 = vsel %vm3528, %v3510, 0.0
    %v3537 = vadd.f32 %v3535, %v3536
    %v3538 = vsel %vm3528, %v3515, 0.0
    %v3539 = vadd.f32 %v3537, %v3538
    %v3540 = vsel %vm3528, %v3520, 0.0
    %v3541 = vadd.f32 %v3539, %v3540
    %vm3542 = vcmask 41984
    %v3543 = vsel %vm3542, %v3525, 0.0
    %v3544 = vadd.f32 %v3541, %v3543
    %v3545 = vrot.slane %v3544, 4
    %v3546 = vadd.f32 %v3544, %v3545
    %v3547 = vrot.slane %v3546, 2
    %v3548 = vadd.f32 %v3546, %v3547
    %v3549 = vrot.slane %v3548, 1
    %v3550 = vadd.f32 %v3548, %v3549
    %v3551 = vmax.f32 %v3550, 0.0
    %v3552 = vmax.f32 %v3551, 1e-30
    %v3553 = vlog2.pop %v3552
    %v3554 = vmul.f32 %v3553, 0.6931472
    %v3555 = vmul.f32 %v3554, 0.0448
    %v3556 = vmul.f32 %v3555, 1.442695
    %v3557 = vpow.pop %v3556
    %vm3558 = vcmp.gt.f32.partialorder %v3551, 0.0
    %v3559 = vsel %vm3558, %v3557, 0.0
    %v3560 = vld [vmem:[%s16] sm:$0xff]
    %v3561 = vld [vmem:[%s16 + $0x8] sm:$0xff]
    %v3562 = vld [vmem:[%s16 + $0x10] sm:$0xff]
    %v3563 = vld [vmem:[%s16 + $0x18] sm:$0xff]
    %v3564 = vld [vmem:[%s17] sm:$0xff]
    %v3565 = vld [vmem:[%s17 + $0x8] sm:$0xff]
    %v3566 = vld [vmem:[%s17 + $0x10] sm:$0xff]
    %v3567 = vld [vmem:[%s17 + $0x18] sm:$0xff]
    %v3568 = vld [vmem:[%s17 + $0x20] sm:$0xff]
    %v3569 = vld [vmem:[%s17 + $0x28] sm:$0xff]
    %v3570 = vld [vmem:[%s17 + $0x30] sm:$0xff]
    %v3571 = vld [vmem:[%s17 + $0x38] sm:$0xff]
    %v3572 = vld [vmem:[%s17 + $0x40] sm:$0xff]
    %v3573 = vld [vmem:[%s17 + $0x48] sm:$0xff]
    %v3574 = vld [vmem:[%s17 + $0x50] sm:$0xff]
    %v3575 = vld [vmem:[%s17 + $0x58] sm:$0xff]
    %v3576 = vld [vmem:[%s17 + $0x60] sm:$0xff]
    %v3577 = vld [vmem:[%s17 + $0x68] sm:$0xff]
    %v3578 = vld [vmem:[%s17 + $0x70] sm:$0xff]
    %v3579 = vld [vmem:[%s17 + $0x78] sm:$0xff]
    %v3580 = vld [vmem:[%s17 + $0x80] sm:$0xff]
    %v3581 = vld [vmem:[%s17 + $0x88] sm:$0xff]
    %v3582 = vld [vmem:[%s17 + $0x90] sm:$0xff]
    %v3583 = vld [vmem:[%s17 + $0x98] sm:$0xff]
    %v3584 = vld [vmem:[%s17 + $0xa0] sm:$0xff]
    %v3585 = vld [vmem:[%s17 + $0xa8] sm:$0xff]
    %v3586 = vld [vmem:[%s17 + $0xb0] sm:$0xff]
    %v3587 = vld [vmem:[%s17 + $0xb8] sm:$0xff]
    %v3588 = vld [vmem:[%s17 + $0xc0] sm:$0xff]
    %v3589 = vld [vmem:[%s17 + $0xc8] sm:$0xff]
    %v3590 = vld [vmem:[%s17 + $0xd0] sm:$0xff]
    %v3591 = vld [vmem:[%s17 + $0xd8] sm:$0xff]
    %v3592 = vld [vmem:[%s17 + $0xe0] sm:$0xff]
    %v3593 = vld [vmem:[%s17 + $0xe8] sm:$0xff]
    %v3594 = vld [vmem:[%s17 + $0xf0] sm:$0xff]
    %v3595 = vld [vmem:[%s17 + $0xf8] sm:$0xff]
    %v3596 = vld [vmem:[%s17 + $0x100] sm:$0xff]
    %v3597 = vld [vmem:[%s17 + $0x108] sm:$0xff]
    %v3598 = vld [vmem:[%s17 + $0x110] sm:$0xff]
    %v3599 = vld [vmem:[%s17 + $0x118] sm:$0xff]
    %v3600 = vld [vmem:[%s17 + $0x120] sm:$0xff]
    %v3601 = vld [vmem:[%s17 + $0x128] sm:$0xff]
    %v3602 = vld [vmem:[%s17 + $0x130] sm:$0xff]
    %v3603 = vld [vmem:[%s17 + $0x138] sm:$0xff]
    %v3604 = vld [vmem:[%s17 + $0x140] sm:$0xff]
    %v3605 = vld [vmem:[%s17 + $0x148] sm:$0xff]
    %v3606 = vld [vmem:[%s17 + $0x150] sm:$0xff]
    %v3607 = vld [vmem:[%s17 + $0x158] sm:$0xff]
    %v3608 = vld [vmem:[%s17 + $0x160] sm:$0xff]
    %v3609 = vld [vmem:[%s17 + $0x168] sm:$0xff]
    %v3610 = vld [vmem:[%s17 + $0x170] sm:$0xff]
    %v3611 = vld [vmem:[%s17 + $0x178] sm:$0xff]
    %v3612 = vld [vmem:[%s17 + $0x180] sm:$0xff]
    %v3613 = vld [vmem:[%s17 + $0x188] sm:$0xff]
    %v3614 = vld [vmem:[%s17 + $0x190] sm:$0xff]
    %v3615 = vld [vmem:[%s17 + $0x198] sm:$0xff]
    %v3616 = vld [vmem:[%s17 + $0x1a0] sm:$0xff]
    %v3617 = vld [vmem:[%s17 + $0x1a8] sm:$0xff]
    %v3618 = vld [vmem:[%s17 + $0x1b0] sm:$0xff]
    %v3619 = vld [vmem:[%s17 + $0x1b8] sm:$0xff]
    %v3620 = vld [vmem:[%s17 + $0x1c0] sm:$0xff]
    %v3621 = vld [vmem:[%s17 + $0x1c8] sm:$0xff]
    %v3622 = vld [vmem:[%s17 + $0x1d0] sm:$0xff]
    %v3623 = vld [vmem:[%s17 + $0x1d8] sm:$0xff]
    %v3624 = vld [vmem:[%s17 + $0x1e0] sm:$0xff]
    %v3625 = vld [vmem:[%s17 + $0x1e8] sm:$0xff]
    %v3626 = vld [vmem:[%s17 + $0x1f0] sm:$0xff]
    %v3627 = vld [vmem:[%s17 + $0x1f8] sm:$0xff]
    %v3628 = vld [vmem:[%s17 + $0x200] sm:$0xff]
    %v3629 = vld [vmem:[%s17 + $0x208] sm:$0xff]
    %v3630 = vld [vmem:[%s17 + $0x210] sm:$0xff]
    %v3631 = vld [vmem:[%s17 + $0x218] sm:$0xff]
    %v3632 = vld [vmem:[%s17 + $0x220] sm:$0xff]
    %v3633 = vld [vmem:[%s17 + $0x228] sm:$0xff]
    %v3634 = vld [vmem:[%s17 + $0x230] sm:$0xff]
    %v3635 = vld [vmem:[%s17 + $0x238] sm:$0xff]
    %v3636 = vld [vmem:[%s17 + $0x240] sm:$0xff]
    %v3637 = vld [vmem:[%s17 + $0x248] sm:$0xff]
    %v3638 = vld [vmem:[%s17 + $0x250] sm:$0xff]
    %v3639 = vld [vmem:[%s17 + $0x258] sm:$0xff]
    %v3640 = vld [vmem:[%s17 + $0x260] sm:$0xff]
    %v3641 = vld [vmem:[%s17 + $0x268] sm:$0xff]
    %v3642 = vld [vmem:[%s17 + $0x270] sm:$0xff]
    %v3643 = vld [vmem:[%s17 + $0x278] sm:$0xff]
    %v3644 = vld [vmem:[%s17 + $0x280] sm:$0xff]
    %v3645 = vld [vmem:[%s17 + $0x288] sm:$0xff]
    %v3646 = vld [vmem:[%s17 + $0x290] sm:$0xff]
    %v3647 = vld [vmem:[%s17 + $0x298] sm:$0xff]
    %v3648 = vld [vmem:[%s17 + $0x2a0] sm:$0xff]
    %v3649 = vld [vmem:[%s17 + $0x2a8] sm:$0xff]
    %v3650 = vld [vmem:[%s17 + $0x2b0] sm:$0xff]
    %v3651 = vld [vmem:[%s17 + $0x2b8] sm:$0xff]
    %v3652 = vld [vmem:[%s17 + $0x2c0] sm:$0xff]
    %v3653 = vld [vmem:[%s17 + $0x2c8] sm:$0xff]
    %v3654 = vld [vmem:[%s17 + $0x2d0] sm:$0xff]
    %v3655 = vld [vmem:[%s17 + $0x2d8] sm:$0xff]
    %v3656 = vld [vmem:[%s17 + $0x2e0] sm:$0xff]
    %v3657 = vld [vmem:[%s17 + $0x2e8] sm:$0xff]
    %v3658 = vld [vmem:[%s17 + $0x2f0] sm:$0xff]
    %v3659 = vld [vmem:[%s17 + $0x2f8] sm:$0xff]
    %v3661 = vsel %vm412, %v3560, 0
    %v3664 = vsel %vm412, %v3561, 0
    %v3667 = vsel %vm412, %v3562, 0
    %v3670 = vsel %vm412, %v3563, 0
    %3672 = vmatprep.subr.mxu0 %v73
    %3673 = vmatpush1.msra.mxu0 %v72
    %3674 = vmatprep.subr.mxu0 %v76
    %3675 = vmatpush1.msra.mxu0 %v75
    %3676 = vmatprep.subr.mxu0 %v79
    %3677 = vmatpush1.msra.mxu0 %v78
    %3678 = vmatprep.subr.mxu0 %v82
    %3679 = vmatpush1.msra.mxu0 %v81
    %3680 = vmatprep.subr.mxu0 %v85
    %3681 = vmatpush1.msra.mxu0 %v84
    %3682 = vmatprep.subr.mxu0 %v88
    %3683 = vmatpush1.msra.mxu0 %v87
    %3684 = vmatprep.subr.mxu0 %v91
    %3685 = vmatpush1.msra.mxu0 %v90
    %3686 = vmatprep.subr.mxu0 %v94
    %3687 = vmatpush1.msra.mxu0 %v93
    %3688 = vmatprep.subr.mxu0 0.0
    %3689 = vmatpush1.msra.mxu0 0.0
    %3690 = vmatprep.subr.mxu0 0.0
    %3691 = vmatpush1.msra.mxu0 0.0
    %3692 = vmatprep.subr.mxu0 0.0
    %3693 = vmatpush1.msra.mxu0 0.0
    %3694 = vmatprep.subr.mxu0 0.0
    %3695 = vmatpush1.msra.mxu0 0.0
    %3696 = vmatprep.subr.mxu0 0.0
    %3697 = vmatpush1.msra.mxu0 0.0
    %3698 = vmatprep.subr.mxu0 0.0
    %3699 = vmatpush1.msra.mxu0 0.0
    %3700 = vmatprep.subr.mxu0 0.0
    %3701 = vmatpush1.msra.mxu0 0.0
    %3702 = vmatprep.subr.mxu0 0.0
    %3703 = vmatpush1.msra.mxu0 0.0
    %3704 = vmatprep.subr.mxu0 0.0
    %3705 = vmatpush1.msra.mxu0 0.0
    %3706 = vmatprep.subr.mxu0 0.0
    %3707 = vmatpush1.msra.mxu0 0.0
    %3708 = vmatprep.subr.mxu0 0.0
    %3709 = vmatpush1.msra.mxu0 0.0
    %3710 = vmatprep.subr.mxu0 0.0
    %3711 = vmatpush1.msra.mxu0 0.0
    %3712 = vmatprep.subr.mxu0 0.0
    %3713 = vmatpush1.msra.mxu0 0.0
    %3714 = vmatprep.subr.mxu0 0.0
    %3715 = vmatpush1.msra.mxu0 0.0
    %3716 = vmatprep.subr.mxu0 0.0
    %3717 = vmatpush1.msra.mxu0 0.0
    %3718 = vmatprep.subr.mxu0 0.0
    %3719 = vmatpush1.msra.mxu0 0.0
    %3720 = vmatprep.subr.mxu0 0.0
    %3721 = vmatpush1.msra.mxu0 0.0
    %3722 = vmatprep.subr.mxu0 0.0
    %3723 = vmatpush1.msra.mxu0 0.0
    %3724 = vmatprep.subr.mxu0 0.0
    %3725 = vmatpush1.msra.mxu0 0.0
    %3726 = vmatprep.subr.mxu0 0.0
    %3727 = vmatpush1.msra.mxu0 0.0
    %3728 = vmatprep.subr.mxu0 0.0
    %3729 = vmatpush1.msra.mxu0 0.0
    %3730 = vmatprep.subr.mxu0 0.0
    %3731 = vmatpush1.msra.mxu0 0.0
    %3732 = vmatprep.subr.mxu0 0.0
    %3733 = vmatpush1.msra.mxu0 0.0
    %3734 = vmatprep.subr.mxu0 0.0
    %3735 = vmatpush1.msra.mxu0 0.0
    %3736 = vmatprep.mubr.f32.mxu0 0.0
    %3737 = vmatmul.mubr.f32.gmra.mrb[0].mxu0 %v3661
    %v3738 = vpop.f32.mrb[0].mxu0
    %v3739 = vadd.f32 0.0, %v3738
    %v3740 = vpop.f32.mrb[0].mxu0
    %v3741 = vadd.f32 0.0, %v3740
    %3742 = vmatprep.mubr.f32.mxu0 0.0
    %3743 = vmatmul.mubr.f32.gmra.mrb[0].mxu0 %v3664
    %v3744 = vpop.f32.mrb[0].mxu0
    %v3745 = vadd.f32 0.0, %v3744
    %v3746 = vpop.f32.mrb[0].mxu0
    %v3747 = vadd.f32 0.0, %v3746
    %3748 = vmatprep.mubr.f32.mxu0 0.0
    %3749 = vmatmul.mubr.f32.gmra.mrb[0].mxu0 %v3667
    %v3750 = vpop.f32.mrb[0].mxu0
    %v3751 = vadd.f32 0.0, %v3750
    %v3752 = vpop.f32.mrb[0].mxu0
    %v3753 = vadd.f32 0.0, %v3752
    %3754 = vmatprep.mubr.f32.mxu0 0.0
    %3755 = vmatmul.mubr.f32.gmra.mrb[0].mxu0 %v3670
    %v3756 = vpop.f32.mrb[0].mxu0
    %v3757 = vadd.f32 0.0, %v3756
    %v3758 = vpop.f32.mrb[0].mxu0
    %v3759 = vadd.f32 0.0, %v3758
    %3760 = vdwg.mxu0
    %3761 = vmatprep.subr.mxu0 0.0
    %3762 = vmatpush1.msra.mxu0 %v74
    %3763 = vmatprep.subr.mxu0 0.0
    %3764 = vmatpush1.msra.mxu0 %v77
    %3765 = vmatprep.subr.mxu0 0.0
    %3766 = vmatpush1.msra.mxu0 %v80
    %3767 = vmatprep.subr.mxu0 0.0
    %3768 = vmatpush1.msra.mxu0 %v83
    %3769 = vmatprep.subr.mxu0 0.0
    %3770 = vmatpush1.msra.mxu0 %v86
    %3771 = vmatprep.subr.mxu0 0.0
    %3772 = vmatpush1.msra.mxu0 %v89
    %3773 = vmatprep.subr.mxu0 0.0
    %3774 = vmatpush1.msra.mxu0 %v92
    %3775 = vmatprep.subr.mxu0 0.0
    %3776 = vmatpush1.msra.mxu0 %v95
    %3777 = vmatprep.subr.mxu0 0.0
    %3778 = vmatpush1.msra.mxu0 0.0
    %3779 = vmatprep.subr.mxu0 0.0
    %3780 = vmatpush1.msra.mxu0 0.0
    %3781 = vmatprep.subr.mxu0 0.0
    %3782 = vmatpush1.msra.mxu0 0.0
    %3783 = vmatprep.subr.mxu0 0.0
    %3784 = vmatpush1.msra.mxu0 0.0
    %3785 = vmatprep.subr.mxu0 0.0
    %3786 = vmatpush1.msra.mxu0 0.0
    %3787 = vmatprep.subr.mxu0 0.0
    %3788 = vmatpush1.msra.mxu0 0.0
    %3789 = vmatprep.subr.mxu0 0.0
    %3790 = vmatpush1.msra.mxu0 0.0
    %3791 = vmatprep.subr.mxu0 0.0
    %3792 = vmatpush1.msra.mxu0 0.0
    %3793 = vmatprep.subr.mxu0 0.0
    %3794 = vmatpush1.msra.mxu0 0.0
    %3795 = vmatprep.subr.mxu0 0.0
    %3796 = vmatpush1.msra.mxu0 0.0
    %3797 = vmatprep.subr.mxu0 0.0
    %3798 = vmatpush1.msra.mxu0 0.0
    %3799 = vmatprep.subr.mxu0 0.0
    %3800 = vmatpush1.msra.mxu0 0.0
    %3801 = vmatprep.subr.mxu0 0.0
    %3802 = vmatpush1.msra.mxu0 0.0
    %3803 = vmatprep.subr.mxu0 0.0
    %3804 = vmatpush1.msra.mxu0 0.0
    %3805 = vmatprep.subr.mxu0 0.0
    %3806 = vmatpush1.msra.mxu0 0.0
    %3807 = vmatprep.subr.mxu0 0.0
    %3808 = vmatpush1.msra.mxu0 0.0
    %3809 = vmatprep.subr.mxu0 0.0
    %3810 = vmatpush1.msra.mxu0 0.0
    %3811 = vmatprep.subr.mxu0 0.0
    %3812 = vmatpush1.msra.mxu0 0.0
    %3813 = vmatprep.subr.mxu0 0.0
    %3814 = vmatpush1.msra.mxu0 0.0
    %3815 = vmatprep.subr.mxu0 0.0
    %3816 = vmatpush1.msra.mxu0 0.0
    %3817 = vmatprep.subr.mxu0 0.0
    %3818 = vmatpush1.msra.mxu0 0.0
    %3819 = vmatprep.subr.mxu0 0.0
    %3820 = vmatpush1.msra.mxu0 0.0
    %3821 = vmatprep.subr.mxu0 0.0
    %3822 = vmatpush1.msra.mxu0 0.0
    %3823 = vmatprep.subr.mxu0 0.0
    %3824 = vmatpush1.msra.mxu0 0.0
    %3825 = vmatprep.mubr.f32.mxu0 0.0
    %3826 = vmatmul.mubr.f32.gmra.mrb[0].mxu0 %v3661
    %v3827 = vpop.f32.mrb[0].mxu0
    %v3828 = vadd.f32 0.0, %v3827
    %v3829 = vpop.f32.mrb[0].mxu0
    %3830 = vmatprep.mubr.f32.mxu0 0.0
    %3831 = vmatmul.mubr.f32.gmra.mrb[0].mxu0 %v3664
    %v3832 = vpop.f32.mrb[0].mxu0
    %v3833 = vadd.f32 0.0, %v3832
    %v3834 = vpop.f32.mrb[0].mxu0
    %3835 = vmatprep.mubr.f32.mxu0 0.0
    %3836 = vmatmul.mubr.f32.gmra.mrb[0].mxu0 %v3667
    %v3837 = vpop.f32.mrb[0].mxu0
    %v3838 = vadd.f32 0.0, %v3837
    %v3839 = vpop.f32.mrb[0].mxu0
    %3840 = vmatprep.mubr.f32.mxu0 0.0
    %3841 = vmatmul.mubr.f32.gmra.mrb[0].mxu0 %v3670
    %v3842 = vpop.f32.mrb[0].mxu0
    %v3843 = vadd.f32 0.0, %v3842
    %v3844 = vpop.f32.mrb[0].mxu0
    %3845 = vdwg.mxu0
    %3846 = vmatprep.subr.mxu0 %v3565
    %3847 = vmatpush1.msra.mxu0 %v3564
    %3848 = vmatprep.subr.mxu0 %v3567
    %3849 = vmatpush1.msra.mxu0 %v3566
    %3850 = vmatprep.subr.mxu0 %v3569
    %3851 = vmatpush1.msra.mxu0 %v3568
    %3852 = vmatprep.subr.mxu0 %v3571
    %3853 = vmatpush1.msra.mxu0 %v3570
    %3854 = vmatprep.subr.mxu0 %v3573
    %3855 = vmatpush1.msra.mxu0 %v3572
    %3856 = vmatprep.subr.mxu0 %v3575
    %3857 = vmatpush1.msra.mxu0 %v3574
    %3858 = vmatprep.subr.mxu0 %v3577
    %3859 = vmatpush1.msra.mxu0 %v3576
    %3860 = vmatprep.subr.mxu0 %v3579
    %3861 = vmatpush1.msra.mxu0 %v3578
    %3862 = vmatprep.subr.mxu0 %v3581
    %3863 = vmatpush1.msra.mxu0 %v3580
    %3864 = vmatprep.subr.mxu0 %v3583
    %3865 = vmatpush1.msra.mxu0 %v3582
    %3866 = vmatprep.subr.mxu0 %v3585
    %3867 = vmatpush1.msra.mxu0 %v3584
    %3868 = vmatprep.subr.mxu0 %v3587
    %3869 = vmatpush1.msra.mxu0 %v3586
    %3870 = vmatprep.subr.mxu0 %v3589
    %3871 = vmatpush1.msra.mxu0 %v3588
    %3872 = vmatprep.subr.mxu0 %v3591
    %3873 = vmatpush1.msra.mxu0 %v3590
    %3874 = vmatprep.subr.mxu0 %v3593
    %3875 = vmatpush1.msra.mxu0 %v3592
    %3876 = vmatprep.subr.mxu0 %v3595
    %3877 = vmatpush1.msra.mxu0 %v3594
    %3878 = vmatprep.subr.mxu0 %v3597
    %3879 = vmatpush1.msra.mxu0 %v3596
    %3880 = vmatprep.subr.mxu0 %v3599
    %3881 = vmatpush1.msra.mxu0 %v3598
    %3882 = vmatprep.subr.mxu0 %v3601
    %3883 = vmatpush1.msra.mxu0 %v3600
    %3884 = vmatprep.subr.mxu0 %v3603
    %3885 = vmatpush1.msra.mxu0 %v3602
    %3886 = vmatprep.subr.mxu0 %v3605
    %3887 = vmatpush1.msra.mxu0 %v3604
    %3888 = vmatprep.subr.mxu0 %v3607
    %3889 = vmatpush1.msra.mxu0 %v3606
    %3890 = vmatprep.subr.mxu0 %v3609
    %3891 = vmatpush1.msra.mxu0 %v3608
    %3892 = vmatprep.subr.mxu0 %v3611
    %3893 = vmatpush1.msra.mxu0 %v3610
    %3894 = vmatprep.subr.mxu0 %v3613
    %3895 = vmatpush1.msra.mxu0 %v3612
    %3896 = vmatprep.subr.mxu0 %v3615
    %3897 = vmatpush1.msra.mxu0 %v3614
    %3898 = vmatprep.subr.mxu0 %v3617
    %3899 = vmatpush1.msra.mxu0 %v3616
    %3900 = vmatprep.subr.mxu0 %v3619
    %3901 = vmatpush1.msra.mxu0 %v3618
    %3902 = vmatprep.subr.mxu0 %v3621
    %3903 = vmatpush1.msra.mxu0 %v3620
    %3904 = vmatprep.subr.mxu0 %v3623
    %3905 = vmatpush1.msra.mxu0 %v3622
    %3906 = vmatprep.subr.mxu0 %v3625
    %3907 = vmatpush1.msra.mxu0 %v3624
    %3908 = vmatprep.subr.mxu0 %v3627
    %3909 = vmatpush1.msra.mxu0 %v3626
    %3910 = vmatprep.mubr.f32.mxu0 %v3741
    %3911 = vmatmul.mubr.f32.gmra.mrb[0].mxu0 %v3739
    %v3912 = vpop.f32.mrb[0].mxu0
    %v3913 = vadd.f32 0.0, %v3912
    %v3914 = vpop.f32.mrb[0].mxu0
    %v3915 = vadd.f32 0.0, %v3914
    %3916 = vmatprep.mubr.f32.mxu0 %v3747
    %3917 = vmatmul.mubr.f32.gmra.mrb[0].mxu0 %v3745
    %v3918 = vpop.f32.mrb[0].mxu0
    %v3919 = vadd.f32 0.0, %v3918
    %v3920 = vpop.f32.mrb[0].mxu0
    %v3921 = vadd.f32 0.0, %v3920
    %3922 = vmatprep.mubr.f32.mxu0 %v3753
    %3923 = vmatmul.mubr.f32.gmra.mrb[0].mxu0 %v3751
    %v3924 = vpop.f32.mrb[0].mxu0
    %v3925 = vadd.f32 0.0, %v3924
    %v3926 = vpop.f32.mrb[0].mxu0
    %v3927 = vadd.f32 0.0, %v3926
    %3928 = vmatprep.mubr.f32.mxu0 %v3759
    %3929 = vmatmul.mubr.f32.gmra.mrb[0].mxu0 %v3757
    %v3930 = vpop.f32.mrb[0].mxu0
    %v3931 = vadd.f32 0.0, %v3930
    %v3932 = vpop.f32.mrb[0].mxu0
    %v3933 = vadd.f32 0.0, %v3932
    %3934 = vdwg.mxu0
    %3935 = vmatprep.subr.mxu0 %v3629
    %3936 = vmatpush1.msra.mxu0 %v3628
    %3937 = vmatprep.subr.mxu0 %v3631
    %3938 = vmatpush1.msra.mxu0 %v3630
    %3939 = vmatprep.subr.mxu0 %v3633
    %3940 = vmatpush1.msra.mxu0 %v3632
    %3941 = vmatprep.subr.mxu0 %v3635
    %3942 = vmatpush1.msra.mxu0 %v3634
    %3943 = vmatprep.subr.mxu0 %v3637
    %3944 = vmatpush1.msra.mxu0 %v3636
    %3945 = vmatprep.subr.mxu0 %v3639
    %3946 = vmatpush1.msra.mxu0 %v3638
    %3947 = vmatprep.subr.mxu0 %v3641
    %3948 = vmatpush1.msra.mxu0 %v3640
    %3949 = vmatprep.subr.mxu0 %v3643
    %3950 = vmatpush1.msra.mxu0 %v3642
    %3951 = vmatprep.subr.mxu0 %v3645
    %3952 = vmatpush1.msra.mxu0 %v3644
    %3953 = vmatprep.subr.mxu0 %v3647
    %3954 = vmatpush1.msra.mxu0 %v3646
    %3955 = vmatprep.subr.mxu0 %v3649
    %3956 = vmatpush1.msra.mxu0 %v3648
    %3957 = vmatprep.subr.mxu0 %v3651
    %3958 = vmatpush1.msra.mxu0 %v3650
    %3959 = vmatprep.subr.mxu0 %v3653
    %3960 = vmatpush1.msra.mxu0 %v3652
    %3961 = vmatprep.subr.mxu0 %v3655
    %3962 = vmatpush1.msra.mxu0 %v3654
    %3963 = vmatprep.subr.mxu0 %v3657
    %3964 = vmatpush1.msra.mxu0 %v3656
    %3965 = vmatprep.subr.mxu0 %v3659
    %3966 = vmatpush1.msra.mxu0 %v3658
    %3967 = vmatprep.subr.mxu0 0.0
    %3968 = vmatpush1.msra.mxu0 0.0
    %3969 = vmatprep.subr.mxu0 0.0
    %3970 = vmatpush1.msra.mxu0 0.0
    %3971 = vmatprep.subr.mxu0 0.0
    %3972 = vmatpush1.msra.mxu0 0.0
    %3973 = vmatprep.subr.mxu0 0.0
    %3974 = vmatpush1.msra.mxu0 0.0
    %3975 = vmatprep.subr.mxu0 0.0
    %3976 = vmatpush1.msra.mxu0 0.0
    %3977 = vmatprep.subr.mxu0 0.0
    %3978 = vmatpush1.msra.mxu0 0.0
    %3979 = vmatprep.subr.mxu0 0.0
    %3980 = vmatpush1.msra.mxu0 0.0
    %3981 = vmatprep.subr.mxu0 0.0
    %3982 = vmatpush1.msra.mxu0 0.0
    %3983 = vmatprep.subr.mxu0 0.0
    %3984 = vmatpush1.msra.mxu0 0.0
    %3985 = vmatprep.subr.mxu0 0.0
    %3986 = vmatpush1.msra.mxu0 0.0
    %3987 = vmatprep.subr.mxu0 0.0
    %3988 = vmatpush1.msra.mxu0 0.0
    %3989 = vmatprep.subr.mxu0 0.0
    %3990 = vmatpush1.msra.mxu0 0.0
    %3991 = vmatprep.subr.mxu0 0.0
    %3992 = vmatpush1.msra.mxu0 0.0
    %3993 = vmatprep.subr.mxu0 0.0
    %3994 = vmatpush1.msra.mxu0 0.0
    %3995 = vmatprep.subr.mxu0 0.0
    %3996 = vmatpush1.msra.mxu0 0.0
    %3997 = vmatprep.subr.mxu0 0.0
    %3998 = vmatpush1.msra.mxu0 0.0
    %3999 = vmatprep.mubr.f32.mxu0 0.0
    %4000 = vmatmul.mubr.f32.gmra.mrb[0].mxu0 %v3828
    %v4001 = vpop.f32.mrb[0].mxu0
    %v4002 = vadd.f32 %v3913, %v4001
    %v4003 = vpop.f32.mrb[0].mxu0
    %v4004 = vadd.f32 %v3915, %v4003
    %4005 = vmatprep.mubr.f32.mxu0 0.0
    %4006 = vmatmul.mubr.f32.gmra.mrb[0].mxu0 %v3833
    %v4007 = vpop.f32.mrb[0].mxu0
    %v4008 = vadd.f32 %v3919, %v4007
    %v4009 = vpop.f32.mrb[0].mxu0
    %v4010 = vadd.f32 %v3921, %v4009
    %4011 = vmatprep.mubr.f32.mxu0 0.0
    %4012 = vmatmul.mubr.f32.gmra.mrb[0].mxu0 %v3838
    %v4013 = vpop.f32.mrb[0].mxu0
    %v4014 = vadd.f32 %v3925, %v4013
    %v4015 = vpop.f32.mrb[0].mxu0
    %v4016 = vadd.f32 %v3927, %v4015
    %4017 = vmatprep.mubr.f32.mxu0 0.0
    %4018 = vmatmul.mubr.f32.gmra.mrb[0].mxu0 %v3843
    %v4019 = vpop.f32.mrb[0].mxu0
    %v4020 = vadd.f32 %v3931, %v4019
    %v4021 = vpop.f32.mrb[0].mxu0
    %v4022 = vadd.f32 %v3933, %v4021
    %4023 = vdwg.mxu0
    %4024 = vmatprep.subr.mxu0 %v97
    %4025 = vmatpush1.msra.mxu0 %v96
    %4026 = vmatprep.subr.mxu0 %v100
    %4027 = vmatpush1.msra.mxu0 %v99
    %4028 = vmatprep.subr.mxu0 %v103
    %4029 = vmatpush1.msra.mxu0 %v102
    %4030 = vmatprep.subr.mxu0 %v106
    %4031 = vmatpush1.msra.mxu0 %v105
    %4032 = vmatprep.subr.mxu0 %v109
    %4033 = vmatpush1.msra.mxu0 %v108
    %4034 = vmatprep.subr.mxu0 %v112
    %4035 = vmatpush1.msra.mxu0 %v111
    %4036 = vmatprep.subr.mxu0 %v115
    %4037 = vmatpush1.msra.mxu0 %v114
    %4038 = vmatprep.subr.mxu0 %v118
    %4039 = vmatpush1.msra.mxu0 %v117
    %4040 = vmatprep.subr.mxu0 0.0
    %4041 = vmatpush1.msra.mxu0 0.0
    %4042 = vmatprep.subr.mxu0 0.0
    %4043 = vmatpush1.msra.mxu0 0.0
    %4044 = vmatprep.subr.mxu0 0.0
    %4045 = vmatpush1.msra.mxu0 0.0
    %4046 = vmatprep.subr.mxu0 0.0
    %4047 = vmatpush1.msra.mxu0 0.0
    %4048 = vmatprep.subr.mxu0 0.0
    %4049 = vmatpush1.msra.mxu0 0.0
    %4050 = vmatprep.subr.mxu0 0.0
    %4051 = vmatpush1.msra.mxu0 0.0
    %4052 = vmatprep.subr.mxu0 0.0
    %4053 = vmatpush1.msra.mxu0 0.0
    %4054 = vmatprep.subr.mxu0 0.0
    %4055 = vmatpush1.msra.mxu0 0.0
    %4056 = vmatprep.subr.mxu0 0.0
    %4057 = vmatpush1.msra.mxu0 0.0
    %4058 = vmatprep.subr.mxu0 0.0
    %4059 = vmatpush1.msra.mxu0 0.0
    %4060 = vmatprep.subr.mxu0 0.0
    %4061 = vmatpush1.msra.mxu0 0.0
    %4062 = vmatprep.subr.mxu0 0.0
    %4063 = vmatpush1.msra.mxu0 0.0
    %4064 = vmatprep.subr.mxu0 0.0
    %4065 = vmatpush1.msra.mxu0 0.0
    %4066 = vmatprep.subr.mxu0 0.0
    %4067 = vmatpush1.msra.mxu0 0.0
    %4068 = vmatprep.subr.mxu0 0.0
    %4069 = vmatpush1.msra.mxu0 0.0
    %4070 = vmatprep.subr.mxu0 0.0
    %4071 = vmatpush1.msra.mxu0 0.0
    %4072 = vmatprep.subr.mxu0 0.0
    %4073 = vmatpush1.msra.mxu0 0.0
    %4074 = vmatprep.subr.mxu0 0.0
    %4075 = vmatpush1.msra.mxu0 0.0
    %4076 = vmatprep.subr.mxu0 0.0
    %4077 = vmatpush1.msra.mxu0 0.0
    %4078 = vmatprep.subr.mxu0 0.0
    %4079 = vmatpush1.msra.mxu0 0.0
    %4080 = vmatprep.subr.mxu0 0.0
    %4081 = vmatpush1.msra.mxu0 0.0
    %4082 = vmatprep.subr.mxu0 0.0
    %4083 = vmatpush1.msra.mxu0 0.0
    %4084 = vmatprep.subr.mxu0 0.0
    %4085 = vmatpush1.msra.mxu0 0.0
    %4086 = vmatprep.subr.mxu0 0.0
    %4087 = vmatpush1.msra.mxu0 0.0
    %4088 = vmatprep.mubr.f32.mxu0 0.0
    %4089 = vmatmul.mubr.f32.gmra.mrb[0].mxu0 %v3661
    %v4090 = vpop.f32.mrb[0].mxu0
    %v4091 = vadd.f32 0.0, %v4090
    %v4092 = vpop.f32.mrb[0].mxu0
    %v4093 = vadd.f32 0.0, %v4092
    %4094 = vmatprep.mubr.f32.mxu0 0.0
    %4095 = vmatmul.mubr.f32.gmra.mrb[0].mxu0 %v3664
    %v4096 = vpop.f32.mrb[0].mxu0
    %v4097 = vadd.f32 0.0, %v4096
    %v4098 = vpop.f32.mrb[0].mxu0
    %v4099 = vadd.f32 0.0, %v4098
    %4100 = vmatprep.mubr.f32.mxu0 0.0
    %4101 = vmatmul.mubr.f32.gmra.mrb[0].mxu0 %v3667
    %v4102 = vpop.f32.mrb[0].mxu0
    %v4103 = vadd.f32 0.0, %v4102
    %v4104 = vpop.f32.mrb[0].mxu0
    %v4105 = vadd.f32 0.0, %v4104
    %4106 = vmatprep.mubr.f32.mxu0 0.0
    %4107 = vmatmul.mubr.f32.gmra.mrb[0].mxu0 %v3670
    %v4108 = vpop.f32.mrb[0].mxu0
    %v4109 = vadd.f32 0.0, %v4108
    %v4110 = vpop.f32.mrb[0].mxu0
    %v4111 = vadd.f32 0.0, %v4110
    %4112 = vdwg.mxu0
    %4113 = vmatprep.subr.mxu0 0.0
    %4114 = vmatpush1.msra.mxu0 %v98
    %4115 = vmatprep.subr.mxu0 0.0
    %4116 = vmatpush1.msra.mxu0 %v101
    %4117 = vmatprep.subr.mxu0 0.0
    %4118 = vmatpush1.msra.mxu0 %v104
    %4119 = vmatprep.subr.mxu0 0.0
    %4120 = vmatpush1.msra.mxu0 %v107
    %4121 = vmatprep.subr.mxu0 0.0
    %4122 = vmatpush1.msra.mxu0 %v110
    %4123 = vmatprep.subr.mxu0 0.0
    %4124 = vmatpush1.msra.mxu0 %v113
    %4125 = vmatprep.subr.mxu0 0.0
    %4126 = vmatpush1.msra.mxu0 %v116
    %4127 = vmatprep.subr.mxu0 0.0
    %4128 = vmatpush1.msra.mxu0 %v119
    %4129 = vmatprep.subr.mxu0 0.0
    %4130 = vmatpush1.msra.mxu0 0.0
    %4131 = vmatprep.subr.mxu0 0.0
    %4132 = vmatpush1.msra.mxu0 0.0
    %4133 = vmatprep.subr.mxu0 0.0
    %4134 = vmatpush1.msra.mxu0 0.0
    %4135 = vmatprep.subr.mxu0 0.0
    %4136 = vmatpush1.msra.mxu0 0.0
    %4137 = vmatprep.subr.mxu0 0.0
    %4138 = vmatpush1.msra.mxu0 0.0
    %4139 = vmatprep.subr.mxu0 0.0
    %4140 = vmatpush1.msra.mxu0 0.0
    %4141 = vmatprep.subr.mxu0 0.0
    %4142 = vmatpush1.msra.mxu0 0.0
    %4143 = vmatprep.subr.mxu0 0.0
    %4144 = vmatpush1.msra.mxu0 0.0
    %4145 = vmatprep.subr.mxu0 0.0
    %4146 = vmatpush1.msra.mxu0 0.0
    %4147 = vmatprep.subr.mxu0 0.0
    %4148 = vmatpush1.msra.mxu0 0.0
    %4149 = vmatprep.subr.mxu0 0.0
    %4150 = vmatpush1.msra.mxu0 0.0
    %4151 = vmatprep.subr.mxu0 0.0
    %4152 = vmatpush1.msra.mxu0 0.0
    %4153 = vmatprep.subr.mxu0 0.0
    %4154 = vmatpush1.msra.mxu0 0.0
    %4155 = vmatprep.subr.mxu0 0.0
    %4156 = vmatpush1.msra.mxu0 0.0
    %4157 = vmatprep.subr.mxu0 0.0
    %4158 = vmatpush1.msra.mxu0 0.0
    %4159 = vmatprep.subr.mxu0 0.0
    %4160 = vmatpush1.msra.mxu0 0.0
    %4161 = vmatprep.subr.mxu0 0.0
    %4162 = vmatpush1.msra.mxu0 0.0
    %4163 = vmatprep.subr.mxu0 0.0
    %4164 = vmatpush1.msra.mxu0 0.0
    %4165 = vmatprep.subr.mxu0 0.0
    %4166 = vmatpush1.msra.mxu0 0.0
    %4167 = vmatprep.subr.mxu0 0.0
    %4168 = vmatpush1.msra.mxu0 0.0
    %4169 = vmatprep.subr.mxu0 0.0
    %4170 = vmatpush1.msra.mxu0 0.0
    %4171 = vmatprep.subr.mxu0 0.0
    %4172 = vmatpush1.msra.mxu0 0.0
    %4173 = vmatprep.subr.mxu0 0.0
    %4174 = vmatpush1.msra.mxu0 0.0
    %4175 = vmatprep.subr.mxu0 0.0
    %4176 = vmatpush1.msra.mxu0 0.0
    %4177 = vmatprep.mubr.f32.mxu0 0.0
    %4178 = vmatmul.mubr.f32.gmra.mrb[0].mxu0 %v3661
    %v4179 = vpop.f32.mrb[0].mxu0
    %v4180 = vadd.f32 0.0, %v4179
    %v4181 = vpop.f32.mrb[0].mxu0
    %4182 = vmatprep.mubr.f32.mxu0 0.0
    %4183 = vmatmul.mubr.f32.gmra.mrb[0].mxu0 %v3664
    %v4184 = vpop.f32.mrb[0].mxu0
    %v4185 = vadd.f32 0.0, %v4184
    %v4186 = vpop.f32.mrb[0].mxu0
    %4187 = vmatprep.mubr.f32.mxu0 0.0
    %4188 = vmatmul.mubr.f32.gmra.mrb[0].mxu0 %v3667
    %v4189 = vpop.f32.mrb[0].mxu0
    %v4190 = vadd.f32 0.0, %v4189
    %v4191 = vpop.f32.mrb[0].mxu0
    %4192 = vmatprep.mubr.f32.mxu0 0.0
    %4193 = vmatmul.mubr.f32.gmra.mrb[0].mxu0 %v3670
    %v4194 = vpop.f32.mrb[0].mxu0
    %v4195 = vadd.f32 0.0, %v4194
    %v4196 = vpop.f32.mrb[0].mxu0
    %4197 = vdwg.mxu0
    %4198 = vmatprep.subr.mxu0 %v3565
    %4199 = vmatpush1.msra.mxu0 %v3564
    %4200 = vmatprep.subr.mxu0 %v3567
    %4201 = vmatpush1.msra.mxu0 %v3566
    %4202 = vmatprep.subr.mxu0 %v3569
    %4203 = vmatpush1.msra.mxu0 %v3568
    %4204 = vmatprep.subr.mxu0 %v3571
    %4205 = vmatpush1.msra.mxu0 %v3570
    %4206 = vmatprep.subr.mxu0 %v3573
    %4207 = vmatpush1.msra.mxu0 %v3572
    %4208 = vmatprep.subr.mxu0 %v3575
    %4209 = vmatpush1.msra.mxu0 %v3574
    %4210 = vmatprep.subr.mxu0 %v3577
    %4211 = vmatpush1.msra.mxu0 %v3576
    %4212 = vmatprep.subr.mxu0 %v3579
    %4213 = vmatpush1.msra.mxu0 %v3578
    %4214 = vmatprep.subr.mxu0 %v3581
    %4215 = vmatpush1.msra.mxu0 %v3580
    %4216 = vmatprep.subr.mxu0 %v3583
    %4217 = vmatpush1.msra.mxu0 %v3582
    %4218 = vmatprep.subr.mxu0 %v3585
    %4219 = vmatpush1.msra.mxu0 %v3584
    %4220 = vmatprep.subr.mxu0 %v3587
    %4221 = vmatpush1.msra.mxu0 %v3586
    %4222 = vmatprep.subr.mxu0 %v3589
    %4223 = vmatpush1.msra.mxu0 %v3588
    %4224 = vmatprep.subr.mxu0 %v3591
    %4225 = vmatpush1.msra.mxu0 %v3590
    %4226 = vmatprep.subr.mxu0 %v3593
    %4227 = vmatpush1.msra.mxu0 %v3592
    %4228 = vmatprep.subr.mxu0 %v3595
    %4229 = vmatpush1.msra.mxu0 %v3594
    %4230 = vmatprep.subr.mxu0 %v3597
    %4231 = vmatpush1.msra.mxu0 %v3596
    %4232 = vmatprep.subr.mxu0 %v3599
    %4233 = vmatpush1.msra.mxu0 %v3598
    %4234 = vmatprep.subr.mxu0 %v3601
    %4235 = vmatpush1.msra.mxu0 %v3600
    %4236 = vmatprep.subr.mxu0 %v3603
    %4237 = vmatpush1.msra.mxu0 %v3602
    %4238 = vmatprep.subr.mxu0 %v3605
    %4239 = vmatpush1.msra.mxu0 %v3604
    %4240 = vmatprep.subr.mxu0 %v3607
    %4241 = vmatpush1.msra.mxu0 %v3606
    %4242 = vmatprep.subr.mxu0 %v3609
    %4243 = vmatpush1.msra.mxu0 %v3608
    %4244 = vmatprep.subr.mxu0 %v3611
    %4245 = vmatpush1.msra.mxu0 %v3610
    %4246 = vmatprep.subr.mxu0 %v3613
    %4247 = vmatpush1.msra.mxu0 %v3612
    %4248 = vmatprep.subr.mxu0 %v3615
    %4249 = vmatpush1.msra.mxu0 %v3614
    %4250 = vmatprep.subr.mxu0 %v3617
    %4251 = vmatpush1.msra.mxu0 %v3616
    %4252 = vmatprep.subr.mxu0 %v3619
    %4253 = vmatpush1.msra.mxu0 %v3618
    %4254 = vmatprep.subr.mxu0 %v3621
    %4255 = vmatpush1.msra.mxu0 %v3620
    %4256 = vmatprep.subr.mxu0 %v3623
    %4257 = vmatpush1.msra.mxu0 %v3622
    %4258 = vmatprep.subr.mxu0 %v3625
    %4259 = vmatpush1.msra.mxu0 %v3624
    %4260 = vmatprep.subr.mxu0 %v3627
    %4261 = vmatpush1.msra.mxu0 %v3626
    %4262 = vmatprep.mubr.f32.mxu0 %v4093
    %4263 = vmatmul.mubr.f32.gmra.mrb[0].mxu0 %v4091
    %v4264 = vpop.f32.mrb[0].mxu0
    %v4265 = vadd.f32 0.0, %v4264
    %v4266 = vpop.f32.mrb[0].mxu0
    %v4267 = vadd.f32 0.0, %v4266
    %4268 = vmatprep.mubr.f32.mxu0 %v4099
    %4269 = vmatmul.mubr.f32.gmra.mrb[0].mxu0 %v4097
    %v4270 = vpop.f32.mrb[0].mxu0
    %v4271 = vadd.f32 0.0, %v4270
    %v4272 = vpop.f32.mrb[0].mxu0
    %v4273 = vadd.f32 0.0, %v4272
    %4274 = vmatprep.mubr.f32.mxu0 %v4105
    %4275 = vmatmul.mubr.f32.gmra.mrb[0].mxu0 %v4103
    %v4276 = vpop.f32.mrb[0].mxu0
    %v4277 = vadd.f32 0.0, %v4276
    %v4278 = vpop.f32.mrb[0].mxu0
    %v4279 = vadd.f32 0.0, %v4278
    %4280 = vmatprep.mubr.f32.mxu0 %v4111
    %4281 = vmatmul.mubr.f32.gmra.mrb[0].mxu0 %v4109
    %v4282 = vpop.f32.mrb[0].mxu0
    %v4283 = vadd.f32 0.0, %v4282
    %v4284 = vpop.f32.mrb[0].mxu0
    %v4285 = vadd.f32 0.0, %v4284
    %4286 = vdwg.mxu0
    %4287 = vmatprep.subr.mxu0 %v3629
    %4288 = vmatpush1.msra.mxu0 %v3628
    %4289 = vmatprep.subr.mxu0 %v3631
    %4290 = vmatpush1.msra.mxu0 %v3630
    %4291 = vmatprep.subr.mxu0 %v3633
    %4292 = vmatpush1.msra.mxu0 %v3632
    %4293 = vmatprep.subr.mxu0 %v3635
    %4294 = vmatpush1.msra.mxu0 %v3634
    %4295 = vmatprep.subr.mxu0 %v3637
    %4296 = vmatpush1.msra.mxu0 %v3636
    %4297 = vmatprep.subr.mxu0 %v3639
    %4298 = vmatpush1.msra.mxu0 %v3638
    %4299 = vmatprep.subr.mxu0 %v3641
    %4300 = vmatpush1.msra.mxu0 %v3640
    %4301 = vmatprep.subr.mxu0 %v3643
    %4302 = vmatpush1.msra.mxu0 %v3642
    %4303 = vmatprep.subr.mxu0 %v3645
    %4304 = vmatpush1.msra.mxu0 %v3644
    %4305 = vmatprep.subr.mxu0 %v3647
    %4306 = vmatpush1.msra.mxu0 %v3646
    %4307 = vmatprep.subr.mxu0 %v3649
    %4308 = vmatpush1.msra.mxu0 %v3648
    %4309 = vmatprep.subr.mxu0 %v3651
    %4310 = vmatpush1.msra.mxu0 %v3650
    %4311 = vmatprep.subr.mxu0 %v3653
    %4312 = vmatpush1.msra.mxu0 %v3652
    %4313 = vmatprep.subr.mxu0 %v3655
    %4314 = vmatpush1.msra.mxu0 %v3654
    %4315 = vmatprep.subr.mxu0 %v3657
    %4316 = vmatpush1.msra.mxu0 %v3656
    %4317 = vmatprep.subr.mxu0 %v3659
    %4318 = vmatpush1.msra.mxu0 %v3658
    %4319 = vmatprep.subr.mxu0 0.0
    %4320 = vmatpush1.msra.mxu0 0.0
    %4321 = vmatprep.subr.mxu0 0.0
    %4322 = vmatpush1.msra.mxu0 0.0
    %4323 = vmatprep.subr.mxu0 0.0
    %4324 = vmatpush1.msra.mxu0 0.0
    %4325 = vmatprep.subr.mxu0 0.0
    %4326 = vmatpush1.msra.mxu0 0.0
    %4327 = vmatprep.subr.mxu0 0.0
    %4328 = vmatpush1.msra.mxu0 0.0
    %4329 = vmatprep.subr.mxu0 0.0
    %4330 = vmatpush1.msra.mxu0 0.0
    %4331 = vmatprep.subr.mxu0 0.0
    %4332 = vmatpush1.msra.mxu0 0.0
    %4333 = vmatprep.subr.mxu0 0.0
    %4334 = vmatpush1.msra.mxu0 0.0
    %4335 = vmatprep.subr.mxu0 0.0
    %4336 = vmatpush1.msra.mxu0 0.0
    %4337 = vmatprep.subr.mxu0 0.0
    %4338 = vmatpush1.msra.mxu0 0.0
    %4339 = vmatprep.subr.mxu0 0.0
    %4340 = vmatpush1.msra.mxu0 0.0
    %4341 = vmatprep.subr.mxu0 0.0
    %4342 = vmatpush1.msra.mxu0 0.0
    %4343 = vmatprep.subr.mxu0 0.0
    %4344 = vmatpush1.msra.mxu0 0.0
    %4345 = vmatprep.subr.mxu0 0.0
    %4346 = vmatpush1.msra.mxu0 0.0
    %4347 = vmatprep.subr.mxu0 0.0
    %4348 = vmatpush1.msra.mxu0 0.0
    %4349 = vmatprep.subr.mxu0 0.0
    %4350 = vmatpush1.msra.mxu0 0.0
    %4351 = vmatprep.mubr.f32.mxu0 0.0
    %4352 = vmatmul.mubr.f32.gmra.mrb[0].mxu0 %v4180
    %v4353 = vpop.f32.mrb[0].mxu0
    %v4354 = vadd.f32 %v4265, %v4353
    %v4355 = vpop.f32.mrb[0].mxu0
    %v4356 = vadd.f32 %v4267, %v4355
    %4357 = vmatprep.mubr.f32.mxu0 0.0
    %4358 = vmatmul.mubr.f32.gmra.mrb[0].mxu0 %v4185
    %v4359 = vpop.f32.mrb[0].mxu0
    %v4360 = vadd.f32 %v4271, %v4359
    %v4361 = vpop.f32.mrb[0].mxu0
    %v4362 = vadd.f32 %v4273, %v4361
    %4363 = vmatprep.mubr.f32.mxu0 0.0
    %4364 = vmatmul.mubr.f32.gmra.mrb[0].mxu0 %v4190
    %v4365 = vpop.f32.mrb[0].mxu0
    %v4366 = vadd.f32 %v4277, %v4365
    %v4367 = vpop.f32.mrb[0].mxu0
    %v4368 = vadd.f32 %v4279, %v4367
    %4369 = vmatprep.mubr.f32.mxu0 0.0
    %4370 = vmatmul.mubr.f32.gmra.mrb[0].mxu0 %v4195
    %v4371 = vpop.f32.mrb[0].mxu0
    %v4372 = vadd.f32 %v4283, %v4371
    %v4373 = vpop.f32.mrb[0].mxu0
    %v4374 = vadd.f32 %v4285, %v4373
    %4375 = vdwg.mxu0
    %v4376 = vmul.f32 %v4002, %v4002
    %v4377 = vmul.f32 %v4004, %v4004
    %v4378 = vmul.f32 %v4008, %v4008
    %v4379 = vmul.f32 %v4010, %v4010
    %v4380 = vmul.f32 %v4014, %v4014
    %v4381 = vmul.f32 %v4016, %v4016
    %v4382 = vmul.f32 %v4020, %v4020
    %v4383 = vmul.f32 %v4022, %v4022
    %v4384 = vmul.f32 %v4354, %v4354
    %v4385 = vmul.f32 %v4356, %v4356
    %v4386 = vmul.f32 %v4360, %v4360
    %v4387 = vmul.f32 %v4362, %v4362
    %v4388 = vmul.f32 %v4366, %v4366
    %v4389 = vmul.f32 %v4368, %v4368
    %v4390 = vmul.f32 %v4372, %v4372
    %v4391 = vmul.f32 %v4374, %v4374
    %v4392 = vmul.f32 %v4002, %v4354
    %v4393 = vmul.f32 %v4004, %v4356
    %v4394 = vmul.f32 %v4008, %v4360
    %v4395 = vmul.f32 %v4010, %v4362
    %v4396 = vmul.f32 %v4014, %v4366
    %v4397 = vmul.f32 %v4016, %v4368
    %v4398 = vmul.f32 %v4020, %v4372
    %v4399 = vmul.f32 %v4022, %v4374
    %v4400 = vld [vmem:[%s7] sm:$0xff]
    %v4401 = vld [vmem:[%s7 + $0x8] sm:$0xff]
    %v4402 = vld [vmem:[%s7 + $0x10] sm:$0xff]
    %v4403 = vld [vmem:[%s7 + $0x18] sm:$0xff]
    %v4404 = vld [vmem:[%s7 + $0x20] sm:$0xff]
    %v4405 = vld [vmem:[%s7 + $0x28] sm:$0xff]
    %v4406 = vld [vmem:[%s7 + $0x30] sm:$0xff]
    %v4407 = vld [vmem:[%s7 + $0x38] sm:$0xff]
    %v4408 = vld [vmem:[%s7 + $0x40] sm:$0xff]
    %v4409 = vld [vmem:[%s7 + $0x48] sm:$0xff]
    %v4410 = vld [vmem:[%s7 + $0x50] sm:$0xff]
    %v4411 = vld [vmem:[%s7 + $0x58] sm:$0xff]
    %v4412 = vld [vmem:[%s7 + $0x60] sm:$0xff]
    %v4413 = vld [vmem:[%s7 + $0x68] sm:$0xff]
    %v4414 = vld [vmem:[%s7 + $0x70] sm:$0xff]
    %v4415 = vld [vmem:[%s7 + $0x78] sm:$0xff]
    %v4416 = vld [vmem:[%s7 + $0x80] sm:$0xff]
    %v4417 = vld [vmem:[%s7 + $0x88] sm:$0xff]
    %v4418 = vld [vmem:[%s7 + $0x90] sm:$0xff]
    %v4419 = vld [vmem:[%s7 + $0x98] sm:$0xff]
    %v4420 = vld [vmem:[%s7 + $0xa0] sm:$0xff]
    %v4421 = vld [vmem:[%s7 + $0xa8] sm:$0xff]
    %v4422 = vld [vmem:[%s7 + $0xb0] sm:$0xff]
    %v4423 = vld [vmem:[%s7 + $0xb8] sm:$0xff]
    %v4424 = vld [vmem:[%s7 + $0xc0] sm:$0xff]
    %v4425 = vld [vmem:[%s7 + $0xc8] sm:$0xff]
    %v4426 = vld [vmem:[%s7 + $0xd0] sm:$0xff]
    %v4427 = vld [vmem:[%s7 + $0xd8] sm:$0xff]
    %v4428 = vld [vmem:[%s7 + $0xe0] sm:$0xff]
    %v4429 = vld [vmem:[%s7 + $0xe8] sm:$0xff]
    %v4430 = vld [vmem:[%s7 + $0xf0] sm:$0xff]
    %v4431 = vld [vmem:[%s7 + $0xf8] sm:$0xff]
    %v4432 = vld [vmem:[%s7 + $0x100] sm:$0xff]
    %v4433 = vld [vmem:[%s7 + $0x108] sm:$0xff]
    %v4434 = vld [vmem:[%s7 + $0x110] sm:$0xff]
    %v4435 = vld [vmem:[%s7 + $0x118] sm:$0xff]
    %v4436 = vld [vmem:[%s7 + $0x120] sm:$0xff]
    %v4437 = vld [vmem:[%s7 + $0x128] sm:$0xff]
    %v4438 = vld [vmem:[%s7 + $0x130] sm:$0xff]
    %v4439 = vld [vmem:[%s7 + $0x138] sm:$0xff]
    %vm4440 = vcmask 261120
    %v4442 = vsel %vm4440, %v4401, 0
    %v4445 = vsel %vm4440, %v4403, 0
    %v4448 = vsel %vm4440, %v4405, 0
    %v4451 = vsel %vm4440, %v4407, 0
    %v4454 = vsel %vm4440, %v4409, 0
    %v4457 = vsel %vm4440, %v4411, 0
    %v4460 = vsel %vm4440, %v4413, 0
    %v4463 = vsel %vm4440, %v4415, 0
    %v4466 = vsel %vm4440, %v4417, 0
    %v4469 = vsel %vm4440, %v4419, 0
    %v4472 = vsel %vm4440, %v4421, 0
    %v4475 = vsel %vm4440, %v4423, 0
    %v4478 = vsel %vm4440, %v4425, 0
    %v4481 = vsel %vm4440, %v4427, 0
    %v4484 = vsel %vm4440, %v4429, 0
    %v4487 = vsel %vm4440, %v4431, 0
    %v4490 = vsel %vm4440, %v4433, 0
    %v4493 = vsel %vm4440, %v4435, 0
    %v4496 = vsel %vm4440, %v4437, 0
    %v4499 = vsel %vm4440, %v4439, 0
    %4501 = vmatprep.subr.mxu0 %v4004
    %4502 = vmatpush1.msra.mxu0 %v4002
    %4503 = vmatprep.subr.mxu0 %v4010
    %4504 = vmatpush1.msra.mxu0 %v4008
    %4505 = vmatprep.subr.mxu0 %v4016
    %4506 = vmatpush1.msra.mxu0 %v4014
    %4507 = vmatprep.subr.mxu0 %v4022
    %4508 = vmatpush1.msra.mxu0 %v4020
    %4509 = vmatprep.subr.mxu0 %v4356
    %4510 = vmatpush1.msra.mxu0 %v4354
    %4511 = vmatprep.subr.mxu0 %v4362
    %4512 = vmatpush1.msra.mxu0 %v4360
    %4513 = vmatprep.subr.mxu0 %v4368
    %4514 = vmatpush1.msra.mxu0 %v4366
    %4515 = vmatprep.subr.mxu0 %v4374
    %4516 = vmatpush1.msra.mxu0 %v4372
    %4517 = vmatprep.subr.mxu0 %v4377
    %4518 = vmatpush1.msra.mxu0 %v4376
    %4519 = vmatprep.subr.mxu0 %v4379
    %4520 = vmatpush1.msra.mxu0 %v4378
    %4521 = vmatprep.subr.mxu0 %v4381
    %4522 = vmatpush1.msra.mxu0 %v4380
    %4523 = vmatprep.subr.mxu0 %v4383
    %4524 = vmatpush1.msra.mxu0 %v4382
    %4525 = vmatprep.subr.mxu0 %v4385
    %4526 = vmatpush1.msra.mxu0 %v4384
    %4527 = vmatprep.subr.mxu0 %v4387
    %4528 = vmatpush1.msra.mxu0 %v4386
    %4529 = vmatprep.subr.mxu0 %v4389
    %4530 = vmatpush1.msra.mxu0 %v4388
    %4531 = vmatprep.subr.mxu0 %v4391
    %4532 = vmatpush1.msra.mxu0 %v4390
    %4533 = vmatprep.subr.mxu0 %v4393
    %4534 = vmatpush1.msra.mxu0 %v4392
    %4535 = vmatprep.subr.mxu0 %v4395
    %4536 = vmatpush1.msra.mxu0 %v4394
    %4537 = vmatprep.subr.mxu0 %v4397
    %4538 = vmatpush1.msra.mxu0 %v4396
    %4539 = vmatprep.subr.mxu0 %v4399
    %4540 = vmatpush1.msra.mxu0 %v4398
    %4541 = vmatprep.subr.mxu0 0.0
    %4542 = vmatpush1.msra.mxu0 0.0
    %4543 = vmatprep.subr.mxu0 0.0
    %4544 = vmatpush1.msra.mxu0 0.0
    %4545 = vmatprep.subr.mxu0 0.0
    %4546 = vmatpush1.msra.mxu0 0.0
    %4547 = vmatprep.subr.mxu0 0.0
    %4548 = vmatpush1.msra.mxu0 0.0
    %4549 = vmatprep.subr.mxu0 0.0
    %4550 = vmatpush1.msra.mxu0 0.0
    %4551 = vmatprep.subr.mxu0 0.0
    %4552 = vmatpush1.msra.mxu0 0.0
    %4553 = vmatprep.subr.mxu0 0.0
    %4554 = vmatpush1.msra.mxu0 0.0
    %4555 = vmatprep.subr.mxu0 0.0
    %4556 = vmatpush1.msra.mxu0 0.0
    %4557 = vmatprep.subr.mxu0 0.0
    %4558 = vmatpush1.msra.mxu0 0.0
    %4559 = vmatprep.subr.mxu0 0.0
    %4560 = vmatpush1.msra.mxu0 0.0
    %4561 = vmatprep.subr.mxu0 0.0
    %4562 = vmatpush1.msra.mxu0 0.0
    %4563 = vmatprep.subr.mxu0 0.0
    %4564 = vmatpush1.msra.mxu0 0.0
    %4565 = vmatprep.mubr.f32.mxu0 %v4442
    %4566 = vmatmul.mubr.f32.gmra.mrb[0].mxu0 %v4400
    %v4567 = vpop.f32.mrb[0].mxu0
    %v4568 = vadd.f32 0.0, %v4567
    %v4569 = vpop.f32.mrb[0].mxu0
    %v4570 = vadd.f32 0.0, %v4569
    %4571 = vmatprep.mubr.f32.mxu0 %v4445
    %4572 = vmatmul.mubr.f32.gmra.mrb[0].mxu0 %v4402
    %v4573 = vpop.f32.mrb[0].mxu0
    %v4574 = vadd.f32 0.0, %v4573
    %v4575 = vpop.f32.mrb[0].mxu0
    %v4576 = vadd.f32 0.0, %v4575
    %4577 = vmatprep.mubr.f32.mxu0 %v4448
    %4578 = vmatmul.mubr.f32.gmra.mrb[0].mxu0 %v4404
    %v4579 = vpop.f32.mrb[0].mxu0
    %v4580 = vadd.f32 0.0, %v4579
    %v4581 = vpop.f32.mrb[0].mxu0
    %v4582 = vadd.f32 0.0, %v4581
    %4583 = vmatprep.mubr.f32.mxu0 %v4451
    %4584 = vmatmul.mubr.f32.gmra.mrb[0].mxu0 %v4406
    %v4585 = vpop.f32.mrb[0].mxu0
    %v4586 = vadd.f32 0.0, %v4585
    %v4587 = vpop.f32.mrb[0].mxu0
    %v4588 = vadd.f32 0.0, %v4587
    %4589 = vmatprep.mubr.f32.mxu0 %v4454
    %4590 = vmatmul.mubr.f32.gmra.mrb[0].mxu0 %v4408
    %v4591 = vpop.f32.mrb[0].mxu0
    %v4592 = vadd.f32 0.0, %v4591
    %v4593 = vpop.f32.mrb[0].mxu0
    %v4594 = vadd.f32 0.0, %v4593
    %4595 = vmatprep.mubr.f32.mxu0 %v4457
    %4596 = vmatmul.mubr.f32.gmra.mrb[0].mxu0 %v4410
    %v4597 = vpop.f32.mrb[0].mxu0
    %v4598 = vadd.f32 0.0, %v4597
    %v4599 = vpop.f32.mrb[0].mxu0
    %v4600 = vadd.f32 0.0, %v4599
    %4601 = vmatprep.mubr.f32.mxu0 %v4460
    %4602 = vmatmul.mubr.f32.gmra.mrb[0].mxu0 %v4412
    %v4603 = vpop.f32.mrb[0].mxu0
    %v4604 = vadd.f32 0.0, %v4603
    %v4605 = vpop.f32.mrb[0].mxu0
    %v4606 = vadd.f32 0.0, %v4605
    %4607 = vmatprep.mubr.f32.mxu0 %v4463
    %4608 = vmatmul.mubr.f32.gmra.mrb[0].mxu0 %v4414
    %v4609 = vpop.f32.mrb[0].mxu0
    %v4610 = vadd.f32 0.0, %v4609
    %v4611 = vpop.f32.mrb[0].mxu0
    %v4612 = vadd.f32 0.0, %v4611
    %4613 = vmatprep.mubr.f32.mxu0 %v4466
    %4614 = vmatmul.mubr.f32.gmra.mrb[0].mxu0 %v4416
    %v4615 = vpop.f32.mrb[0].mxu0
    %v4616 = vadd.f32 0.0, %v4615
    %v4617 = vpop.f32.mrb[0].mxu0
    %v4618 = vadd.f32 0.0, %v4617
    %4619 = vmatprep.mubr.f32.mxu0 %v4469
    %4620 = vmatmul.mubr.f32.gmra.mrb[0].mxu0 %v4418
    %v4621 = vpop.f32.mrb[0].mxu0
    %v4622 = vadd.f32 0.0, %v4621
    %v4623 = vpop.f32.mrb[0].mxu0
    %v4624 = vadd.f32 0.0, %v4623
    %4625 = vmatprep.mubr.f32.mxu0 %v4472
    %4626 = vmatmul.mubr.f32.gmra.mrb[0].mxu0 %v4420
    %v4627 = vpop.f32.mrb[0].mxu0
    %v4628 = vadd.f32 0.0, %v4627
    %v4629 = vpop.f32.mrb[0].mxu0
    %v4630 = vadd.f32 0.0, %v4629
    %4631 = vmatprep.mubr.f32.mxu0 %v4475
    %4632 = vmatmul.mubr.f32.gmra.mrb[0].mxu0 %v4422
    %v4633 = vpop.f32.mrb[0].mxu0
    %v4634 = vadd.f32 0.0, %v4633
    %v4635 = vpop.f32.mrb[0].mxu0
    %v4636 = vadd.f32 0.0, %v4635
    %4637 = vmatprep.mubr.f32.mxu0 %v4478
    %4638 = vmatmul.mubr.f32.gmra.mrb[0].mxu0 %v4424
    %v4639 = vpop.f32.mrb[0].mxu0
    %v4640 = vadd.f32 0.0, %v4639
    %v4641 = vpop.f32.mrb[0].mxu0
    %v4642 = vadd.f32 0.0, %v4641
    %4643 = vmatprep.mubr.f32.mxu0 %v4481
    %4644 = vmatmul.mubr.f32.gmra.mrb[0].mxu0 %v4426
    %v4645 = vpop.f32.mrb[0].mxu0
    %v4646 = vadd.f32 0.0, %v4645
    %v4647 = vpop.f32.mrb[0].mxu0
    %v4648 = vadd.f32 0.0, %v4647
    %4649 = vmatprep.mubr.f32.mxu0 %v4484
    %4650 = vmatmul.mubr.f32.gmra.mrb[0].mxu0 %v4428
    %v4651 = vpop.f32.mrb[0].mxu0
    %v4652 = vadd.f32 0.0, %v4651
    %v4653 = vpop.f32.mrb[0].mxu0
    %v4654 = vadd.f32 0.0, %v4653
    %4655 = vmatprep.mubr.f32.mxu0 %v4487
    %4656 = vmatmul.mubr.f32.gmra.mrb[0].mxu0 %v4430
    %v4657 = vpop.f32.mrb[0].mxu0
    %v4658 = vadd.f32 0.0, %v4657
    %v4659 = vpop.f32.mrb[0].mxu0
    %v4660 = vadd.f32 0.0, %v4659
    %4661 = vmatprep.mubr.f32.mxu0 %v4490
    %4662 = vmatmul.mubr.f32.gmra.mrb[0].mxu0 %v4432
    %v4663 = vpop.f32.mrb[0].mxu0
    %v4664 = vadd.f32 0.0, %v4663
    %v4665 = vpop.f32.mrb[0].mxu0
    %v4666 = vadd.f32 0.0, %v4665
    %4667 = vmatprep.mubr.f32.mxu0 %v4493
    %4668 = vmatmul.mubr.f32.gmra.mrb[0].mxu0 %v4434
    %v4669 = vpop.f32.mrb[0].mxu0
    %v4670 = vadd.f32 0.0, %v4669
    %v4671 = vpop.f32.mrb[0].mxu0
    %v4672 = vadd.f32 0.0, %v4671
    %4673 = vmatprep.mubr.f32.mxu0 %v4496
    %4674 = vmatmul.mubr.f32.gmra.mrb[0].mxu0 %v4436
    %v4675 = vpop.f32.mrb[0].mxu0
    %v4676 = vadd.f32 0.0, %v4675
    %v4677 = vpop.f32.mrb[0].mxu0
    %v4678 = vadd.f32 0.0, %v4677
    %4679 = vmatprep.mubr.f32.mxu0 %v4499
    %4680 = vmatmul.mubr.f32.gmra.mrb[0].mxu0 %v4438
    %v4681 = vpop.f32.mrb[0].mxu0
    %v4682 = vadd.f32 0.0, %v4681
    %v4683 = vpop.f32.mrb[0].mxu0
    %v4684 = vadd.f32 0.0, %v4683
    %4685 = vdwg.mxu0
    %v4686 = vld [vmem:[%s8] sm:$0xff]
    %v4687 = vld [vmem:[%s8 + $0x8] sm:$0xff]
    %v4688 = vld [vmem:[%s8 + $0x10] sm:$0xff]
    %v4689 = vld [vmem:[%s8 + $0x18] sm:$0xff]
    %v4690 = vld [vmem:[%s8 + $0x20] sm:$0xff]
    %v4691 = vld [vmem:[%s8 + $0x28] sm:$0xff]
    %v4692 = vld [vmem:[%s8 + $0x30] sm:$0xff]
    %v4693 = vld [vmem:[%s8 + $0x38] sm:$0xff]
    %v4694 = vld [vmem:[%s8 + $0x40] sm:$0xff]
    %v4695 = vld [vmem:[%s8 + $0x48] sm:$0xff]
    %v4696 = vld [vmem:[%s8 + $0x50] sm:$0xff]
    %v4697 = vld [vmem:[%s8 + $0x58] sm:$0xff]
    %v4698 = vld [vmem:[%s8 + $0x60] sm:$0xff]
    %v4699 = vld [vmem:[%s8 + $0x68] sm:$0xff]
    %v4700 = vld [vmem:[%s8 + $0x70] sm:$0xff]
    %v4701 = vld [vmem:[%s8 + $0x78] sm:$0xff]
    %v4702 = vld [vmem:[%s8 + $0x80] sm:$0xff]
    %v4703 = vld [vmem:[%s8 + $0x88] sm:$0xff]
    %v4704 = vld [vmem:[%s8 + $0x90] sm:$0xff]
    %v4705 = vld [vmem:[%s8 + $0x98] sm:$0xff]
    %v4706 = vld [vmem:[%s8 + $0xa0] sm:$0xff]
    %v4707 = vld [vmem:[%s8 + $0xa8] sm:$0xff]
    %v4708 = vld [vmem:[%s8 + $0xb0] sm:$0xff]
    %v4709 = vld [vmem:[%s8 + $0xb8] sm:$0xff]
    %v4710 = vld [vmem:[%s8 + $0xc0] sm:$0xff]
    %v4711 = vld [vmem:[%s8 + $0xc8] sm:$0xff]
    %v4712 = vld [vmem:[%s8 + $0xd0] sm:$0xff]
    %v4713 = vld [vmem:[%s8 + $0xd8] sm:$0xff]
    %v4714 = vld [vmem:[%s8 + $0xe0] sm:$0xff]
    %v4715 = vld [vmem:[%s8 + $0xe8] sm:$0xff]
    %v4716 = vld [vmem:[%s8 + $0xf0] sm:$0xff]
    %v4717 = vld [vmem:[%s8 + $0xf8] sm:$0xff]
    %v4718 = vld [vmem:[%s8 + $0x100] sm:$0xff]
    %v4719 = vld [vmem:[%s8 + $0x108] sm:$0xff]
    %v4720 = vld [vmem:[%s8 + $0x110] sm:$0xff]
    %v4721 = vld [vmem:[%s8 + $0x118] sm:$0xff]
    %v4722 = vld [vmem:[%s8 + $0x120] sm:$0xff]
    %v4723 = vld [vmem:[%s8 + $0x128] sm:$0xff]
    %v4724 = vld [vmem:[%s8 + $0x130] sm:$0xff]
    %v4725 = vld [vmem:[%s8 + $0x138] sm:$0xff]
    %v4726 = vld [vmem:[%s8 + $0x140] sm:$0xff]
    %v4727 = vld [vmem:[%s8 + $0x148] sm:$0xff]
    %v4728 = vld [vmem:[%s8 + $0x150] sm:$0xff]
    %v4729 = vld [vmem:[%s8 + $0x158] sm:$0xff]
    %v4730 = vld [vmem:[%s8 + $0x160] sm:$0xff]
    %v4731 = vld [vmem:[%s8 + $0x168] sm:$0xff]
    %v4732 = vld [vmem:[%s8 + $0x170] sm:$0xff]
    %v4733 = vld [vmem:[%s8 + $0x178] sm:$0xff]
    %v4735 = vsel %vm412, %v4570, 0
    %v4738 = vsel %vm412, %v4576, 0
    %v4741 = vsel %vm412, %v4582, 0
    %v4744 = vsel %vm412, %v4588, 0
    %v4747 = vsel %vm412, %v4594, 0
    %v4750 = vsel %vm412, %v4600, 0
    %v4753 = vsel %vm412, %v4606, 0
    %v4756 = vsel %vm412, %v4612, 0
    %v4759 = vsel %vm412, %v4618, 0
    %v4762 = vsel %vm412, %v4624, 0
    %v4765 = vsel %vm412, %v4630, 0
    %v4768 = vsel %vm412, %v4636, 0
    %v4771 = vsel %vm412, %v4642, 0
    %v4774 = vsel %vm412, %v4648, 0
    %v4777 = vsel %vm412, %v4654, 0
    %v4780 = vsel %vm412, %v4660, 0
    %v4783 = vsel %vm412, %v4666, 0
    %v4786 = vsel %vm412, %v4672, 0
    %v4789 = vsel %vm412, %v4678, 0
    %v4792 = vsel %vm412, %v4684, 0
    %4794 = vmatprep.subr.mxu0 %v4687
    %4795 = vmatpush1.msra.mxu0 %v4686
    %4796 = vmatprep.subr.mxu0 %v4689
    %4797 = vmatpush1.msra.mxu0 %v4688
    %4798 = vmatprep.subr.mxu0 %v4691
    %4799 = vmatpush1.msra.mxu0 %v4690
    %4800 = vmatprep.subr.mxu0 %v4693
    %4801 = vmatpush1.msra.mxu0 %v4692
    %4802 = vmatprep.subr.mxu0 %v4695
    %4803 = vmatpush1.msra.mxu0 %v4694
    %4804 = vmatprep.subr.mxu0 %v4697
    %4805 = vmatpush1.msra.mxu0 %v4696
    %4806 = vmatprep.subr.mxu0 %v4699
    %4807 = vmatpush1.msra.mxu0 %v4698
    %4808 = vmatprep.subr.mxu0 %v4701
    %4809 = vmatpush1.msra.mxu0 %v4700
    %4810 = vmatprep.subr.mxu0 %v4703
    %4811 = vmatpush1.msra.mxu0 %v4702
    %4812 = vmatprep.subr.mxu0 %v4705
    %4813 = vmatpush1.msra.mxu0 %v4704
    %4814 = vmatprep.subr.mxu0 %v4707
    %4815 = vmatpush1.msra.mxu0 %v4706
    %4816 = vmatprep.subr.mxu0 %v4709
    %4817 = vmatpush1.msra.mxu0 %v4708
    %4818 = vmatprep.subr.mxu0 %v4711
    %4819 = vmatpush1.msra.mxu0 %v4710
    %4820 = vmatprep.subr.mxu0 %v4713
    %4821 = vmatpush1.msra.mxu0 %v4712
    %4822 = vmatprep.subr.mxu0 %v4715
    %4823 = vmatpush1.msra.mxu0 %v4714
    %4824 = vmatprep.subr.mxu0 %v4717
    %4825 = vmatpush1.msra.mxu0 %v4716
    %4826 = vmatprep.subr.mxu0 %v4719
    %4827 = vmatpush1.msra.mxu0 %v4718
    %4828 = vmatprep.subr.mxu0 %v4721
    %4829 = vmatpush1.msra.mxu0 %v4720
    %4830 = vmatprep.subr.mxu0 %v4723
    %4831 = vmatpush1.msra.mxu0 %v4722
    %4832 = vmatprep.subr.mxu0 %v4725
    %4833 = vmatpush1.msra.mxu0 %v4724
    %4834 = vmatprep.subr.mxu0 %v4727
    %4835 = vmatpush1.msra.mxu0 %v4726
    %4836 = vmatprep.subr.mxu0 %v4729
    %4837 = vmatpush1.msra.mxu0 %v4728
    %4838 = vmatprep.subr.mxu0 %v4731
    %4839 = vmatpush1.msra.mxu0 %v4730
    %4840 = vmatprep.subr.mxu0 %v4733
    %4841 = vmatpush1.msra.mxu0 %v4732
    %4842 = vmatprep.subr.mxu0 0.0
    %4843 = vmatpush1.msra.mxu0 0.0
    %4844 = vmatprep.subr.mxu0 0.0
    %4845 = vmatpush1.msra.mxu0 0.0
    %4846 = vmatprep.subr.mxu0 0.0
    %4847 = vmatpush1.msra.mxu0 0.0
    %4848 = vmatprep.subr.mxu0 0.0
    %4849 = vmatpush1.msra.mxu0 0.0
    %4850 = vmatprep.subr.mxu0 0.0
    %4851 = vmatpush1.msra.mxu0 0.0
    %4852 = vmatprep.subr.mxu0 0.0
    %4853 = vmatpush1.msra.mxu0 0.0
    %4854 = vmatprep.subr.mxu0 0.0
    %4855 = vmatpush1.msra.mxu0 0.0
    %4856 = vmatprep.subr.mxu0 0.0
    %4857 = vmatpush1.msra.mxu0 0.0
    %4858 = vmatprep.mubr.f32.mxu0 %v4735
    %4859 = vmatmul.mubr.f32.gmra.mrb[0].mxu0 %v4568
    %v4860 = vpop.f32.mrb[0].mxu0
    %v4861 = vadd.f32 0.0, %v4860
    %v4862 = vpop.f32.mrb[0].mxu0
    %v4863 = vadd.f32 0.0, %v4862
    %4864 = vmatprep.mubr.f32.mxu0 %v4738
    %4865 = vmatmul.mubr.f32.gmra.mrb[0].mxu0 %v4574
    %v4866 = vpop.f32.mrb[0].mxu0
    %v4867 = vadd.f32 0.0, %v4866
    %v4868 = vpop.f32.mrb[0].mxu0
    %v4869 = vadd.f32 0.0, %v4868
    %4870 = vmatprep.mubr.f32.mxu0 %v4741
    %4871 = vmatmul.mubr.f32.gmra.mrb[0].mxu0 %v4580
    %v4872 = vpop.f32.mrb[0].mxu0
    %v4873 = vadd.f32 0.0, %v4872
    %v4874 = vpop.f32.mrb[0].mxu0
    %v4875 = vadd.f32 0.0, %v4874
    %4876 = vmatprep.mubr.f32.mxu0 %v4744
    %4877 = vmatmul.mubr.f32.gmra.mrb[0].mxu0 %v4586
    %v4878 = vpop.f32.mrb[0].mxu0
    %v4879 = vadd.f32 0.0, %v4878
    %v4880 = vpop.f32.mrb[0].mxu0
    %v4881 = vadd.f32 0.0, %v4880
    %4882 = vmatprep.mubr.f32.mxu0 %v4747
    %4883 = vmatmul.mubr.f32.gmra.mrb[0].mxu0 %v4592
    %v4884 = vpop.f32.mrb[0].mxu0
    %v4885 = vadd.f32 0.0, %v4884
    %v4886 = vpop.f32.mrb[0].mxu0
    %v4887 = vadd.f32 0.0, %v4886
    %4888 = vmatprep.mubr.f32.mxu0 %v4750
    %4889 = vmatmul.mubr.f32.gmra.mrb[0].mxu0 %v4598
    %v4890 = vpop.f32.mrb[0].mxu0
    %v4891 = vadd.f32 0.0, %v4890
    %v4892 = vpop.f32.mrb[0].mxu0
    %v4893 = vadd.f32 0.0, %v4892
    %4894 = vmatprep.mubr.f32.mxu0 %v4753
    %4895 = vmatmul.mubr.f32.gmra.mrb[0].mxu0 %v4604
    %v4896 = vpop.f32.mrb[0].mxu0
    %v4897 = vadd.f32 0.0, %v4896
    %v4898 = vpop.f32.mrb[0].mxu0
    %v4899 = vadd.f32 0.0, %v4898
    %4900 = vmatprep.mubr.f32.mxu0 %v4756
    %4901 = vmatmul.mubr.f32.gmra.mrb[0].mxu0 %v4610
    %v4902 = vpop.f32.mrb[0].mxu0
    %v4903 = vadd.f32 0.0, %v4902
    %v4904 = vpop.f32.mrb[0].mxu0
    %v4905 = vadd.f32 0.0, %v4904
    %4906 = vmatprep.mubr.f32.mxu0 %v4759
    %4907 = vmatmul.mubr.f32.gmra.mrb[0].mxu0 %v4616
    %v4908 = vpop.f32.mrb[0].mxu0
    %v4909 = vadd.f32 0.0, %v4908
    %v4910 = vpop.f32.mrb[0].mxu0
    %v4911 = vadd.f32 0.0, %v4910
    %4912 = vmatprep.mubr.f32.mxu0 %v4762
    %4913 = vmatmul.mubr.f32.gmra.mrb[0].mxu0 %v4622
    %v4914 = vpop.f32.mrb[0].mxu0
    %v4915 = vadd.f32 0.0, %v4914
    %v4916 = vpop.f32.mrb[0].mxu0
    %v4917 = vadd.f32 0.0, %v4916
    %4918 = vmatprep.mubr.f32.mxu0 %v4765
    %4919 = vmatmul.mubr.f32.gmra.mrb[0].mxu0 %v4628
    %v4920 = vpop.f32.mrb[0].mxu0
    %v4921 = vadd.f32 0.0, %v4920
    %v4922 = vpop.f32.mrb[0].mxu0
    %v4923 = vadd.f32 0.0, %v4922
    %4924 = vmatprep.mubr.f32.mxu0 %v4768
    %4925 = vmatmul.mubr.f32.gmra.mrb[0].mxu0 %v4634
    %v4926 = vpop.f32.mrb[0].mxu0
    %v4927 = vadd.f32 0.0, %v4926
    %v4928 = vpop.f32.mrb[0].mxu0
    %v4929 = vadd.f32 0.0, %v4928
    %4930 = vmatprep.mubr.f32.mxu0 %v4771
    %4931 = vmatmul.mubr.f32.gmra.mrb[0].mxu0 %v4640
    %v4932 = vpop.f32.mrb[0].mxu0
    %v4933 = vadd.f32 0.0, %v4932
    %v4934 = vpop.f32.mrb[0].mxu0
    %v4935 = vadd.f32 0.0, %v4934
    %4936 = vmatprep.mubr.f32.mxu0 %v4774
    %4937 = vmatmul.mubr.f32.gmra.mrb[0].mxu0 %v4646
    %v4938 = vpop.f32.mrb[0].mxu0
    %v4939 = vadd.f32 0.0, %v4938
    %v4940 = vpop.f32.mrb[0].mxu0
    %v4941 = vadd.f32 0.0, %v4940
    %4942 = vmatprep.mubr.f32.mxu0 %v4777
    %4943 = vmatmul.mubr.f32.gmra.mrb[0].mxu0 %v4652
    %v4944 = vpop.f32.mrb[0].mxu0
    %v4945 = vadd.f32 0.0, %v4944
    %v4946 = vpop.f32.mrb[0].mxu0
    %v4947 = vadd.f32 0.0, %v4946
    %4948 = vmatprep.mubr.f32.mxu0 %v4780
    %4949 = vmatmul.mubr.f32.gmra.mrb[0].mxu0 %v4658
    %v4950 = vpop.f32.mrb[0].mxu0
    %v4951 = vadd.f32 0.0, %v4950
    %v4952 = vpop.f32.mrb[0].mxu0
    %v4953 = vadd.f32 0.0, %v4952
    %4954 = vmatprep.mubr.f32.mxu0 %v4783
    %4955 = vmatmul.mubr.f32.gmra.mrb[0].mxu0 %v4664
    %v4956 = vpop.f32.mrb[0].mxu0
    %v4957 = vadd.f32 0.0, %v4956
    %v4958 = vpop.f32.mrb[0].mxu0
    %v4959 = vadd.f32 0.0, %v4958
    %4960 = vmatprep.mubr.f32.mxu0 %v4786
    %4961 = vmatmul.mubr.f32.gmra.mrb[0].mxu0 %v4670
    %v4962 = vpop.f32.mrb[0].mxu0
    %v4963 = vadd.f32 0.0, %v4962
    %v4964 = vpop.f32.mrb[0].mxu0
    %v4965 = vadd.f32 0.0, %v4964
    %4966 = vmatprep.mubr.f32.mxu0 %v4789
    %4967 = vmatmul.mubr.f32.gmra.mrb[0].mxu0 %v4676
    %v4968 = vpop.f32.mrb[0].mxu0
    %v4969 = vadd.f32 0.0, %v4968
    %v4970 = vpop.f32.mrb[0].mxu0
    %v4971 = vadd.f32 0.0, %v4970
    %4972 = vmatprep.mubr.f32.mxu0 %v4792
    %4973 = vmatmul.mubr.f32.gmra.mrb[0].mxu0 %v4682
    %v4974 = vpop.f32.mrb[0].mxu0
    %v4975 = vadd.f32 0.0, %v4974
    %v4976 = vpop.f32.mrb[0].mxu0
    %v4977 = vadd.f32 0.0, %v4976
    %4978 = vdwg.mxu0
    %v4979 = vmul.f32 %v4861, %v4885
    %v4980 = vmul.f32 %v4863, %v4887
    %v4981 = vmul.f32 %v4867, %v4891
    %v4982 = vmul.f32 %v4869, %v4893
    %v4983 = vmul.f32 %v4873, %v4897
    %v4984 = vmul.f32 %v4875, %v4899
    %v4985 = vmul.f32 %v4879, %v4903
    %v4986 = vmul.f32 %v4881, %v4905
    %v4987 = vmul.f32 %v4861, %v4861
    %v4988 = vmul.f32 %v4863, %v4863
    %v4989 = vmul.f32 %v4867, %v4867
    %v4990 = vmul.f32 %v4869, %v4869
    %v4991 = vmul.f32 %v4873, %v4873
    %v4992 = vmul.f32 %v4875, %v4875
    %v4993 = vmul.f32 %v4879, %v4879
    %v4994 = vmul.f32 %v4881, %v4881
    %v4995 = vsub.f32 %v4909, %v4987
    %v4996 = vsub.f32 %v4911, %v4988
    %v4997 = vsub.f32 %v4915, %v4989
    %v4998 = vsub.f32 %v4917, %v4990
    %v4999 = vsub.f32 %v4921, %v4991
    %v5000 = vsub.f32 %v4923, %v4992
    %v5001 = vsub.f32 %v4927, %v4993
    %v5002 = vsub.f32 %v4929, %v4994
    %v5003 = vmul.f32 %v4885, %v4885
    %v5004 = vmul.f32 %v4887, %v4887
    %v5005 = vmul.f32 %v4891, %v4891
    %v5006 = vmul.f32 %v4893, %v4893
    %v5007 = vmul.f32 %v4897, %v4897
    %v5008 = vmul.f32 %v4899, %v4899
    %v5009 = vmul.f32 %v4903, %v4903
    %v5010 = vmul.f32 %v4905, %v4905
    %v5011 = vsub.f32 %v4933, %v5003
    %v5012 = vsub.f32 %v4935, %v5004
    %v5013 = vsub.f32 %v4939, %v5005
    %v5014 = vsub.f32 %v4941, %v5006
    %v5015 = vsub.f32 %v4945, %v5007
    %v5016 = vsub.f32 %v4947, %v5008
    %v5017 = vsub.f32 %v4951, %v5009
    %v5018 = vsub.f32 %v4953, %v5010
    %v5019 = vsub.f32 %v4957, %v4979
    %v5020 = vsub.f32 %v4959, %v4980
    %v5021 = vsub.f32 %v4963, %v4981
    %v5022 = vsub.f32 %v4965, %v4982
    %v5023 = vsub.f32 %v4969, %v4983
    %v5024 = vsub.f32 %v4971, %v4984
    %v5025 = vsub.f32 %v4975, %v4985
    %v5026 = vsub.f32 %v4977, %v4986
    %v5027 = vmul.f32 %v5019, 2.0
    %v5028 = vmul.f32 %v5020, 2.0
    %v5029 = vmul.f32 %v5021, 2.0
    %v5030 = vmul.f32 %v5022, 2.0
    %v5031 = vmul.f32 %v5023, 2.0
    %v5032 = vmul.f32 %v5024, 2.0
    %v5033 = vmul.f32 %v5025, 2.0
    %v5034 = vmul.f32 %v5026, 2.0
    %v5035 = vadd.f32 %v5027, 0.0009
    %v5036 = vadd.f32 %v5028, 0.0009
    %v5037 = vadd.f32 %v5029, 0.0009
    %v5038 = vadd.f32 %v5030, 0.0009
    %v5039 = vadd.f32 %v5031, 0.0009
    %v5040 = vadd.f32 %v5032, 0.0009
    %v5041 = vadd.f32 %v5033, 0.0009
    %v5042 = vadd.f32 %v5034, 0.0009
    %v5043 = vadd.f32 %v4995, %v5011
    %v5044 = vadd.f32 %v4996, %v5012
    %v5045 = vadd.f32 %v4997, %v5013
    %v5046 = vadd.f32 %v4998, %v5014
    %v5047 = vadd.f32 %v4999, %v5015
    %v5048 = vadd.f32 %v5000, %v5016
    %v5049 = vadd.f32 %v5001, %v5017
    %v5050 = vadd.f32 %v5002, %v5018
    %v5051 = vadd.f32 %v5043, 0.0009
    %v5052 = vadd.f32 %v5044, 0.0009
    %v5053 = vadd.f32 %v5045, 0.0009
    %v5054 = vadd.f32 %v5046, 0.0009
    %v5055 = vadd.f32 %v5047, 0.0009
    %v5056 = vadd.f32 %v5048, 0.0009
    %v5057 = vadd.f32 %v5049, 0.0009
    %v5058 = vadd.f32 %v5050, 0.0009
    %v5059 = vrcp.pop %v5051
    %v5060 = vmul.f32 %v5035, %v5059
    %v5061 = vrcp.pop %v5052
    %v5062 = vmul.f32 %v5036, %v5061
    %v5063 = vrcp.pop %v5053
    %v5064 = vmul.f32 %v5037, %v5063
    %v5065 = vrcp.pop %v5054
    %v5066 = vmul.f32 %v5038, %v5065
    %v5067 = vrcp.pop %v5055
    %v5068 = vmul.f32 %v5039, %v5067
    %v5069 = vrcp.pop %v5056
    %v5070 = vmul.f32 %v5040, %v5069
    %v5071 = vrcp.pop %v5057
    %v5072 = vmul.f32 %v5041, %v5071
    %v5073 = vrcp.pop %v5058
    %v5074 = vmul.f32 %v5042, %v5073
    %v5075 = vld [vmem:[%s9] sm:$0xff]
    %v5076 = vld [vmem:[%s9 + $0x8] sm:$0xff]
    %v5077 = vld [vmem:[%s9 + $0x10] sm:$0xff]
    %v5078 = vld [vmem:[%s9 + $0x18] sm:$0xff]
    %v5079 = vld [vmem:[%s9 + $0x20] sm:$0xff]
    %v5080 = vld [vmem:[%s9 + $0x28] sm:$0xff]
    %v5081 = vld [vmem:[%s9 + $0x30] sm:$0xff]
    %v5082 = vld [vmem:[%s9 + $0x38] sm:$0xff]
    %v5083 = vld [vmem:[%s9 + $0x40] sm:$0xff]
    %v5084 = vld [vmem:[%s9 + $0x48] sm:$0xff]
    %v5085 = vld [vmem:[%s9 + $0x50] sm:$0xff]
    %v5086 = vld [vmem:[%s9 + $0x58] sm:$0xff]
    %v5087 = vld [vmem:[%s9 + $0x60] sm:$0xff]
    %v5088 = vld [vmem:[%s9 + $0x68] sm:$0xff]
    %v5089 = vld [vmem:[%s9 + $0x70] sm:$0xff]
    %v5090 = vld [vmem:[%s9 + $0x78] sm:$0xff]
    %v5091 = vld [vmem:[%s9 + $0x80] sm:$0xff]
    %v5092 = vld [vmem:[%s9 + $0x88] sm:$0xff]
    %v5093 = vld [vmem:[%s9 + $0x90] sm:$0xff]
    %v5094 = vld [vmem:[%s9 + $0x98] sm:$0xf]
    %vm5095 = vcmask 228352
    %v5097 = vsel %vm5095, %v5062, 0
    %v5100 = vsel %vm5095, %v5066, 0
    %v5103 = vsel %vm5095, %v5070, 0
    %v5106 = vsel %vm5095, %v5074, 0
    %v5109 = vsel %vm3314, %v5094, 0
    %5111 = vmatprep.subr.mxu0 0.0
    %5112 = vmatpush1.msra.mxu0 %v5075
    %5113 = vmatprep.subr.mxu0 0.0
    %5114 = vmatpush1.msra.mxu0 %v5076
    %5115 = vmatprep.subr.mxu0 0.0
    %5116 = vmatpush1.msra.mxu0 %v5077
    %5117 = vmatprep.subr.mxu0 0.0
    %5118 = vmatpush1.msra.mxu0 %v5078
    %5119 = vmatprep.subr.mxu0 0.0
    %5120 = vmatpush1.msra.mxu0 %v5079
    %5121 = vmatprep.subr.mxu0 0.0
    %5122 = vmatpush1.msra.mxu0 %v5080
    %5123 = vmatprep.subr.mxu0 0.0
    %5124 = vmatpush1.msra.mxu0 %v5081
    %5125 = vmatprep.subr.mxu0 0.0
    %5126 = vmatpush1.msra.mxu0 %v5082
    %5127 = vmatprep.subr.mxu0 0.0
    %5128 = vmatpush1.msra.mxu0 %v5083
    %5129 = vmatprep.subr.mxu0 0.0
    %5130 = vmatpush1.msra.mxu0 %v5084
    %5131 = vmatprep.subr.mxu0 0.0
    %5132 = vmatpush1.msra.mxu0 %v5085
    %5133 = vmatprep.subr.mxu0 0.0
    %5134 = vmatpush1.msra.mxu0 %v5086
    %5135 = vmatprep.subr.mxu0 0.0
    %5136 = vmatpush1.msra.mxu0 %v5087
    %5137 = vmatprep.subr.mxu0 0.0
    %5138 = vmatpush1.msra.mxu0 %v5088
    %5139 = vmatprep.subr.mxu0 0.0
    %5140 = vmatpush1.msra.mxu0 %v5089
    %5141 = vmatprep.subr.mxu0 0.0
    %5142 = vmatpush1.msra.mxu0 %v5090
    %5143 = vmatprep.subr.mxu0 0.0
    %5144 = vmatpush1.msra.mxu0 %v5091
    %5145 = vmatprep.subr.mxu0 0.0
    %5146 = vmatpush1.msra.mxu0 %v5092
    %5147 = vmatprep.subr.mxu0 0.0
    %5148 = vmatpush1.msra.mxu0 %v5093
    %5149 = vmatprep.subr.mxu0 0.0
    %5150 = vmatpush1.msra.mxu0 %v5109
    %5151 = vmatprep.subr.mxu0 0.0
    %5152 = vmatpush1.msra.mxu0 0.0
    %5153 = vmatprep.subr.mxu0 0.0
    %5154 = vmatpush1.msra.mxu0 0.0
    %5155 = vmatprep.subr.mxu0 0.0
    %5156 = vmatpush1.msra.mxu0 0.0
    %5157 = vmatprep.subr.mxu0 0.0
    %5158 = vmatpush1.msra.mxu0 0.0
    %5159 = vmatprep.subr.mxu0 0.0
    %5160 = vmatpush1.msra.mxu0 0.0
    %5161 = vmatprep.subr.mxu0 0.0
    %5162 = vmatpush1.msra.mxu0 0.0
    %5163 = vmatprep.subr.mxu0 0.0
    %5164 = vmatpush1.msra.mxu0 0.0
    %5165 = vmatprep.subr.mxu0 0.0
    %5166 = vmatpush1.msra.mxu0 0.0
    %5167 = vmatprep.subr.mxu0 0.0
    %5168 = vmatpush1.msra.mxu0 0.0
    %5169 = vmatprep.subr.mxu0 0.0
    %5170 = vmatpush1.msra.mxu0 0.0
    %5171 = vmatprep.subr.mxu0 0.0
    %5172 = vmatpush1.msra.mxu0 0.0
    %5173 = vmatprep.subr.mxu0 0.0
    %5174 = vmatpush1.msra.mxu0 0.0
    %5175 = vmatprep.mubr.f32.mxu0 %v5097
    %5176 = vmatmul.mubr.f32.gmra.mrb[0].mxu0 %v5060
    %v5177 = vpop.f32.mrb[0].mxu0
    %v5178 = vadd.f32 0.0, %v5177
    %v5179 = vpop.f32.mrb[0].mxu0
    %5180 = vmatprep.mubr.f32.mxu0 %v5100
    %5181 = vmatmul.mubr.f32.gmra.mrb[0].mxu0 %v5064
    %v5182 = vpop.f32.mrb[0].mxu0
    %v5183 = vadd.f32 0.0, %v5182
    %v5184 = vpop.f32.mrb[0].mxu0
    %5185 = vmatprep.mubr.f32.mxu0 %v5103
    %5186 = vmatmul.mubr.f32.gmra.mrb[0].mxu0 %v5068
    %v5187 = vpop.f32.mrb[0].mxu0
    %v5188 = vadd.f32 0.0, %v5187
    %v5189 = vpop.f32.mrb[0].mxu0
    %5190 = vmatprep.mubr.f32.mxu0 %v5106
    %5191 = vmatmul.mubr.f32.gmra.mrb[0].mxu0 %v5072
    %v5192 = vpop.f32.mrb[0].mxu0
    %v5193 = vadd.f32 0.0, %v5192
    %v5194 = vpop.f32.mrb[0].mxu0
    %5195 = vdwg.mxu0
    %v5196 = vsel %vm3528, %v5178, 0.0
    %v5197 = vsel %vm3528, %v5183, 0.0
    %v5198 = vadd.f32 %v5196, %v5197
    %v5199 = vsel %vm3528, %v5188, 0.0
    %v5200 = vadd.f32 %v5198, %v5199
    %v5201 = vsel %vm3542, %v5193, 0.0
    %v5202 = vadd.f32 %v5200, %v5201
    %v5203 = vrot.slane %v5202, 4
    %v5204 = vadd.f32 %v5202, %v5203
    %v5205 = vrot.slane %v5204, 2
    %v5206 = vadd.f32 %v5204, %v5205
    %v5207 = vrot.slane %v5206, 1
    %v5208 = vadd.f32 %v5206, %v5207
    %v5209 = vmax.f32 %v5208, 0.0
    %v5210 = vmax.f32 %v5209, 1e-30
    %v5211 = vlog2.pop %v5210
    %v5212 = vmul.f32 %v5211, 0.6931472
    %v5213 = vmul.f32 %v5212, 0.2856
    %v5214 = vmul.f32 %v5213, 1.442695
    %v5215 = vpow.pop %v5214
    %vm5216 = vcmp.gt.f32.partialorder %v5209, 0.0
    %v5217 = vsel %vm5216, %v5215, 0.0
    %v5218 = vmul.f32 %v3559, %v5217
    %v5219 = vld [vmem:[%s18] sm:$0xff]
    %v5220 = vld [vmem:[%s18 + $0x8] sm:$0xff]
    %v5221 = vld [vmem:[%s19] sm:$0xff]
    %v5222 = vld [vmem:[%s19 + $0x8] sm:$0xff]
    %v5223 = vld [vmem:[%s19 + $0x10] sm:$0xff]
    %v5224 = vld [vmem:[%s19 + $0x18] sm:$0xff]
    %v5225 = vld [vmem:[%s19 + $0x20] sm:$0xff]
    %v5226 = vld [vmem:[%s19 + $0x28] sm:$0xff]
    %v5227 = vld [vmem:[%s19 + $0x30] sm:$0xff]
    %v5228 = vld [vmem:[%s19 + $0x38] sm:$0xff]
    %v5229 = vld [vmem:[%s19 + $0x40] sm:$0xff]
    %v5230 = vld [vmem:[%s19 + $0x48] sm:$0xff]
    %v5231 = vld [vmem:[%s19 + $0x50] sm:$0xff]
    %v5232 = vld [vmem:[%s19 + $0x58] sm:$0xff]
    %v5233 = vld [vmem:[%s19 + $0x60] sm:$0xff]
    %v5234 = vld [vmem:[%s19 + $0x68] sm:$0xff]
    %v5235 = vld [vmem:[%s19 + $0x70] sm:$0xff]
    %v5236 = vld [vmem:[%s19 + $0x78] sm:$0xff]
    %v5237 = vld [vmem:[%s19 + $0x80] sm:$0xff]
    %v5238 = vld [vmem:[%s19 + $0x88] sm:$0xff]
    %v5239 = vld [vmem:[%s19 + $0x90] sm:$0xff]
    %v5240 = vld [vmem:[%s19 + $0x98] sm:$0xff]
    %v5241 = vld [vmem:[%s19 + $0xa0] sm:$0xff]
    %v5242 = vld [vmem:[%s19 + $0xa8] sm:$0xff]
    %v5243 = vld [vmem:[%s19 + $0xb0] sm:$0xff]
    %v5244 = vld [vmem:[%s19 + $0xb8] sm:$0xff]
    %v5246 = vsel %vm4440, %v5219, 0
    %v5249 = vsel %vm4440, %v5220, 0
    %5251 = vmatprep.subr.mxu0 %v4004
    %5252 = vmatpush1.msra.mxu0 %v4002
    %5253 = vmatprep.subr.mxu0 %v4010
    %5254 = vmatpush1.msra.mxu0 %v4008
    %5255 = vmatprep.subr.mxu0 %v4016
    %5256 = vmatpush1.msra.mxu0 %v4014
    %5257 = vmatprep.subr.mxu0 %v4022
    %5258 = vmatpush1.msra.mxu0 %v4020
    %5259 = vmatprep.subr.mxu0 0.0
    %5260 = vmatpush1.msra.mxu0 0.0
    %5261 = vmatprep.subr.mxu0 0.0
    %5262 = vmatpush1.msra.mxu0 0.0
    %5263 = vmatprep.subr.mxu0 0.0
    %5264 = vmatpush1.msra.mxu0 0.0
    %5265 = vmatprep.subr.mxu0 0.0
    %5266 = vmatpush1.msra.mxu0 0.0
    %5267 = vmatprep.subr.mxu0 0.0
    %5268 = vmatpush1.msra.mxu0 0.0
    %5269 = vmatprep.subr.mxu0 0.0
    %5270 = vmatpush1.msra.mxu0 0.0
    %5271 = vmatprep.subr.mxu0 0.0
    %5272 = vmatpush1.msra.mxu0 0.0
    %5273 = vmatprep.subr.mxu0 0.0
    %5274 = vmatpush1.msra.mxu0 0.0
    %5275 = vmatprep.subr.mxu0 0.0
    %5276 = vmatpush1.msra.mxu0 0.0
    %5277 = vmatprep.subr.mxu0 0.0
    %5278 = vmatpush1.msra.mxu0 0.0
    %5279 = vmatprep.subr.mxu0 0.0
    %5280 = vmatpush1.msra.mxu0 0.0
    %5281 = vmatprep.subr.mxu0 0.0
    %5282 = vmatpush1.msra.mxu0 0.0
    %5283 = vmatprep.subr.mxu0 0.0
    %5284 = vmatpush1.msra.mxu0 0.0
    %5285 = vmatprep.subr.mxu0 0.0
    %5286 = vmatpush1.msra.mxu0 0.0
    %5287 = vmatprep.subr.mxu0 0.0
    %5288 = vmatpush1.msra.mxu0 0.0
    %5289 = vmatprep.subr.mxu0 0.0
    %5290 = vmatpush1.msra.mxu0 0.0
    %5291 = vmatprep.subr.mxu0 0.0
    %5292 = vmatpush1.msra.mxu0 0.0
    %5293 = vmatprep.subr.mxu0 0.0
    %5294 = vmatpush1.msra.mxu0 0.0
    %5295 = vmatprep.subr.mxu0 0.0
    %5296 = vmatpush1.msra.mxu0 0.0
    %5297 = vmatprep.subr.mxu0 0.0
    %5298 = vmatpush1.msra.mxu0 0.0
    %5299 = vmatprep.subr.mxu0 0.0
    %5300 = vmatpush1.msra.mxu0 0.0
    %5301 = vmatprep.subr.mxu0 0.0
    %5302 = vmatpush1.msra.mxu0 0.0
    %5303 = vmatprep.subr.mxu0 0.0
    %5304 = vmatpush1.msra.mxu0 0.0
    %5305 = vmatprep.subr.mxu0 0.0
    %5306 = vmatpush1.msra.mxu0 0.0
    %5307 = vmatprep.subr.mxu0 0.0
    %5308 = vmatpush1.msra.mxu0 0.0
    %5309 = vmatprep.subr.mxu0 0.0
    %5310 = vmatpush1.msra.mxu0 0.0
    %5311 = vmatprep.subr.mxu0 0.0
    %5312 = vmatpush1.msra.mxu0 0.0
    %5313 = vmatprep.subr.mxu0 0.0
    %5314 = vmatpush1.msra.mxu0 0.0
    %5315 = vmatprep.mubr.f32.mxu0 0.0
    %5316 = vmatmul.mubr.f32.gmra.mrb[0].mxu0 %v5246
    %v5317 = vpop.f32.mrb[0].mxu0
    %v5318 = vadd.f32 0.0, %v5317
    %v5319 = vpop.f32.mrb[0].mxu0
    %v5320 = vadd.f32 0.0, %v5319
    %5321 = vmatprep.mubr.f32.mxu0 0.0
    %5322 = vmatmul.mubr.f32.gmra.mrb[0].mxu0 %v5249
    %v5323 = vpop.f32.mrb[0].mxu0
    %v5324 = vadd.f32 0.0, %v5323
    %v5325 = vpop.f32.mrb[0].mxu0
    %v5326 = vadd.f32 0.0, %v5325
    %5327 = vdwg.mxu0
    %v5329 = vsel %vm412, %v5320, 0
    %v5332 = vsel %vm412, %v5326, 0
    %5334 = vmatprep.subr.mxu0 0.0
    %5335 = vmatpush1.msra.mxu0 %v5221
    %5336 = vmatprep.subr.mxu0 0.0
    %5337 = vmatpush1.msra.mxu0 %v5222
    %5338 = vmatprep.subr.mxu0 0.0
    %5339 = vmatpush1.msra.mxu0 %v5223
    %5340 = vmatprep.subr.mxu0 0.0
    %5341 = vmatpush1.msra.mxu0 %v5224
    %5342 = vmatprep.subr.mxu0 0.0
    %5343 = vmatpush1.msra.mxu0 %v5225
    %5344 = vmatprep.subr.mxu0 0.0
    %5345 = vmatpush1.msra.mxu0 %v5226
    %5346 = vmatprep.subr.mxu0 0.0
    %5347 = vmatpush1.msra.mxu0 %v5227
    %5348 = vmatprep.subr.mxu0 0.0
    %5349 = vmatpush1.msra.mxu0 %v5228
    %5350 = vmatprep.subr.mxu0 0.0
    %5351 = vmatpush1.msra.mxu0 %v5229
    %5352 = vmatprep.subr.mxu0 0.0
    %5353 = vmatpush1.msra.mxu0 %v5230
    %5354 = vmatprep.subr.mxu0 0.0
    %5355 = vmatpush1.msra.mxu0 %v5231
    %5356 = vmatprep.subr.mxu0 0.0
    %5357 = vmatpush1.msra.mxu0 %v5232
    %5358 = vmatprep.subr.mxu0 0.0
    %5359 = vmatpush1.msra.mxu0 %v5233
    %5360 = vmatprep.subr.mxu0 0.0
    %5361 = vmatpush1.msra.mxu0 %v5234
    %5362 = vmatprep.subr.mxu0 0.0
    %5363 = vmatpush1.msra.mxu0 %v5235
    %5364 = vmatprep.subr.mxu0 0.0
    %5365 = vmatpush1.msra.mxu0 %v5236
    %5366 = vmatprep.subr.mxu0 0.0
    %5367 = vmatpush1.msra.mxu0 %v5237
    %5368 = vmatprep.subr.mxu0 0.0
    %5369 = vmatpush1.msra.mxu0 %v5238
    %5370 = vmatprep.subr.mxu0 0.0
    %5371 = vmatpush1.msra.mxu0 %v5239
    %5372 = vmatprep.subr.mxu0 0.0
    %5373 = vmatpush1.msra.mxu0 %v5240
    %5374 = vmatprep.subr.mxu0 0.0
    %5375 = vmatpush1.msra.mxu0 %v5241
    %5376 = vmatprep.subr.mxu0 0.0
    %5377 = vmatpush1.msra.mxu0 %v5242
    %5378 = vmatprep.subr.mxu0 0.0
    %5379 = vmatpush1.msra.mxu0 %v5243
    %5380 = vmatprep.subr.mxu0 0.0
    %5381 = vmatpush1.msra.mxu0 %v5244
    %5382 = vmatprep.subr.mxu0 0.0
    %5383 = vmatpush1.msra.mxu0 0.0
    %5384 = vmatprep.subr.mxu0 0.0
    %5385 = vmatpush1.msra.mxu0 0.0
    %5386 = vmatprep.subr.mxu0 0.0
    %5387 = vmatpush1.msra.mxu0 0.0
    %5388 = vmatprep.subr.mxu0 0.0
    %5389 = vmatpush1.msra.mxu0 0.0
    %5390 = vmatprep.subr.mxu0 0.0
    %5391 = vmatpush1.msra.mxu0 0.0
    %5392 = vmatprep.subr.mxu0 0.0
    %5393 = vmatpush1.msra.mxu0 0.0
    %5394 = vmatprep.subr.mxu0 0.0
    %5395 = vmatpush1.msra.mxu0 0.0
    %5396 = vmatprep.subr.mxu0 0.0
    %5397 = vmatpush1.msra.mxu0 0.0
    %5398 = vmatprep.mubr.f32.mxu0 %v5329
    %5399 = vmatmul.mubr.f32.gmra.mrb[0].mxu0 %v5318
    %v5400 = vpop.f32.mrb[0].mxu0
    %v5401 = vadd.f32 0.0, %v5400
    %v5402 = vpop.f32.mrb[0].mxu0
    %5403 = vmatprep.mubr.f32.mxu0 %v5332
    %5404 = vmatmul.mubr.f32.gmra.mrb[0].mxu0 %v5324
    %v5405 = vpop.f32.mrb[0].mxu0
    %v5406 = vadd.f32 0.0, %v5405
    %v5407 = vpop.f32.mrb[0].mxu0
    %5408 = vdwg.mxu0
    %5409 = vmatprep.subr.mxu0 %v4356
    %5410 = vmatpush1.msra.mxu0 %v4354
    %5411 = vmatprep.subr.mxu0 %v4362
    %5412 = vmatpush1.msra.mxu0 %v4360
    %5413 = vmatprep.subr.mxu0 %v4368
    %5414 = vmatpush1.msra.mxu0 %v4366
    %5415 = vmatprep.subr.mxu0 %v4374
    %5416 = vmatpush1.msra.mxu0 %v4372
    %5417 = vmatprep.subr.mxu0 0.0
    %5418 = vmatpush1.msra.mxu0 0.0
    %5419 = vmatprep.subr.mxu0 0.0
    %5420 = vmatpush1.msra.mxu0 0.0
    %5421 = vmatprep.subr.mxu0 0.0
    %5422 = vmatpush1.msra.mxu0 0.0
    %5423 = vmatprep.subr.mxu0 0.0
    %5424 = vmatpush1.msra.mxu0 0.0
    %5425 = vmatprep.subr.mxu0 0.0
    %5426 = vmatpush1.msra.mxu0 0.0
    %5427 = vmatprep.subr.mxu0 0.0
    %5428 = vmatpush1.msra.mxu0 0.0
    %5429 = vmatprep.subr.mxu0 0.0
    %5430 = vmatpush1.msra.mxu0 0.0
    %5431 = vmatprep.subr.mxu0 0.0
    %5432 = vmatpush1.msra.mxu0 0.0
    %5433 = vmatprep.subr.mxu0 0.0
    %5434 = vmatpush1.msra.mxu0 0.0
    %5435 = vmatprep.subr.mxu0 0.0
    %5436 = vmatpush1.msra.mxu0 0.0
    %5437 = vmatprep.subr.mxu0 0.0
    %5438 = vmatpush1.msra.mxu0 0.0
    %5439 = vmatprep.subr.mxu0 0.0
    %5440 = vmatpush1.msra.mxu0 0.0
    %5441 = vmatprep.subr.mxu0 0.0
    %5442 = vmatpush1.msra.mxu0 0.0
    %5443 = vmatprep.subr.mxu0 0.0
    %5444 = vmatpush1.msra.mxu0 0.0
    %5445 = vmatprep.subr.mxu0 0.0
    %5446 = vmatpush1.msra.mxu0 0.0
    %5447 = vmatprep.subr.mxu0 0.0
    %5448 = vmatpush1.msra.mxu0 0.0
    %5449 = vmatprep.subr.mxu0 0.0
    %5450 = vmatpush1.msra.mxu0 0.0
    %5451 = vmatprep.subr.mxu0 0.0
    %5452 = vmatpush1.msra.mxu0 0.0
    %5453 = vmatprep.subr.mxu0 0.0
    %5454 = vmatpush1.msra.mxu0 0.0
    %5455 = vmatprep.subr.mxu0 0.0
    %5456 = vmatpush1.msra.mxu0 0.0
    %5457 = vmatprep.subr.mxu0 0.0
    %5458 = vmatpush1.msra.mxu0 0.0
    %5459 = vmatprep.subr.mxu0 0.0
    %5460 = vmatpush1.msra.mxu0 0.0
    %5461 = vmatprep.subr.mxu0 0.0
    %5462 = vmatpush1.msra.mxu0 0.0
    %5463 = vmatprep.subr.mxu0 0.0
    %5464 = vmatpush1.msra.mxu0 0.0
    %5465 = vmatprep.subr.mxu0 0.0
    %5466 = vmatpush1.msra.mxu0 0.0
    %5467 = vmatprep.subr.mxu0 0.0
    %5468 = vmatpush1.msra.mxu0 0.0
    %5469 = vmatprep.subr.mxu0 0.0
    %5470 = vmatpush1.msra.mxu0 0.0
    %5471 = vmatprep.subr.mxu0 0.0
    %5472 = vmatpush1.msra.mxu0 0.0
    %5473 = vmatprep.mubr.f32.mxu0 0.0
    %5474 = vmatmul.mubr.f32.gmra.mrb[0].mxu0 %v5246
    %v5475 = vpop.f32.mrb[0].mxu0
    %v5476 = vadd.f32 0.0, %v5475
    %v5477 = vpop.f32.mrb[0].mxu0
    %v5478 = vadd.f32 0.0, %v5477
    %5479 = vmatprep.mubr.f32.mxu0 0.0
    %5480 = vmatmul.mubr.f32.gmra.mrb[0].mxu0 %v5249
    %v5481 = vpop.f32.mrb[0].mxu0
    %v5482 = vadd.f32 0.0, %v5481
    %v5483 = vpop.f32.mrb[0].mxu0
    %v5484 = vadd.f32 0.0, %v5483
    %5485 = vdwg.mxu0
    %v5487 = vsel %vm412, %v5478, 0
    %v5490 = vsel %vm412, %v5484, 0
    %5492 = vmatprep.subr.mxu0 0.0
    %5493 = vmatpush1.msra.mxu0 %v5221
    %5494 = vmatprep.subr.mxu0 0.0
    %5495 = vmatpush1.msra.mxu0 %v5222
    %5496 = vmatprep.subr.mxu0 0.0
    %5497 = vmatpush1.msra.mxu0 %v5223
    %5498 = vmatprep.subr.mxu0 0.0
    %5499 = vmatpush1.msra.mxu0 %v5224
    %5500 = vmatprep.subr.mxu0 0.0
    %5501 = vmatpush1.msra.mxu0 %v5225
    %5502 = vmatprep.subr.mxu0 0.0
    %5503 = vmatpush1.msra.mxu0 %v5226
    %5504 = vmatprep.subr.mxu0 0.0
    %5505 = vmatpush1.msra.mxu0 %v5227
    %5506 = vmatprep.subr.mxu0 0.0
    %5507 = vmatpush1.msra.mxu0 %v5228
    %5508 = vmatprep.subr.mxu0 0.0
    %5509 = vmatpush1.msra.mxu0 %v5229
    %5510 = vmatprep.subr.mxu0 0.0
    %5511 = vmatpush1.msra.mxu0 %v5230
    %5512 = vmatprep.subr.mxu0 0.0
    %5513 = vmatpush1.msra.mxu0 %v5231
    %5514 = vmatprep.subr.mxu0 0.0
    %5515 = vmatpush1.msra.mxu0 %v5232
    %5516 = vmatprep.subr.mxu0 0.0
    %5517 = vmatpush1.msra.mxu0 %v5233
    %5518 = vmatprep.subr.mxu0 0.0
    %5519 = vmatpush1.msra.mxu0 %v5234
    %5520 = vmatprep.subr.mxu0 0.0
    %5521 = vmatpush1.msra.mxu0 %v5235
    %5522 = vmatprep.subr.mxu0 0.0
    %5523 = vmatpush1.msra.mxu0 %v5236
    %5524 = vmatprep.subr.mxu0 0.0
    %5525 = vmatpush1.msra.mxu0 %v5237
    %5526 = vmatprep.subr.mxu0 0.0
    %5527 = vmatpush1.msra.mxu0 %v5238
    %5528 = vmatprep.subr.mxu0 0.0
    %5529 = vmatpush1.msra.mxu0 %v5239
    %5530 = vmatprep.subr.mxu0 0.0
    %5531 = vmatpush1.msra.mxu0 %v5240
    %5532 = vmatprep.subr.mxu0 0.0
    %5533 = vmatpush1.msra.mxu0 %v5241
    %5534 = vmatprep.subr.mxu0 0.0
    %5535 = vmatpush1.msra.mxu0 %v5242
    %5536 = vmatprep.subr.mxu0 0.0
    %5537 = vmatpush1.msra.mxu0 %v5243
    %5538 = vmatprep.subr.mxu0 0.0
    %5539 = vmatpush1.msra.mxu0 %v5244
    %5540 = vmatprep.subr.mxu0 0.0
    %5541 = vmatpush1.msra.mxu0 0.0
    %5542 = vmatprep.subr.mxu0 0.0
    %5543 = vmatpush1.msra.mxu0 0.0
    %5544 = vmatprep.subr.mxu0 0.0
    %5545 = vmatpush1.msra.mxu0 0.0
    %5546 = vmatprep.subr.mxu0 0.0
    %5547 = vmatpush1.msra.mxu0 0.0
    %5548 = vmatprep.subr.mxu0 0.0
    %5549 = vmatpush1.msra.mxu0 0.0
    %5550 = vmatprep.subr.mxu0 0.0
    %5551 = vmatpush1.msra.mxu0 0.0
    %5552 = vmatprep.subr.mxu0 0.0
    %5553 = vmatpush1.msra.mxu0 0.0
    %5554 = vmatprep.subr.mxu0 0.0
    %5555 = vmatpush1.msra.mxu0 0.0
    %5556 = vmatprep.mubr.f32.mxu0 %v5487
    %5557 = vmatmul.mubr.f32.gmra.mrb[0].mxu0 %v5476
    %v5558 = vpop.f32.mrb[0].mxu0
    %v5559 = vadd.f32 0.0, %v5558
    %v5560 = vpop.f32.mrb[0].mxu0
    %5561 = vmatprep.mubr.f32.mxu0 %v5490
    %5562 = vmatmul.mubr.f32.gmra.mrb[0].mxu0 %v5482
    %v5563 = vpop.f32.mrb[0].mxu0
    %v5564 = vadd.f32 0.0, %v5563
    %v5565 = vpop.f32.mrb[0].mxu0
    %5566 = vdwg.mxu0
    %v5567 = vmul.f32 %v5401, %v5401
    %v5568 = vmul.f32 %v5406, %v5406
    %v5569 = vmul.f32 %v5559, %v5559
    %v5570 = vmul.f32 %v5564, %v5564
    %v5571 = vmul.f32 %v5401, %v5559
    %v5572 = vmul.f32 %v5406, %v5564
    %v5573 = vld [vmem:[%s10] sm:$0xff]
    %v5574 = vld [vmem:[%s10 + $0x8] sm:$0xff]
    %v5575 = vld [vmem:[%s10 + $0x10] sm:$0xff]
    %v5576 = vld [vmem:[%s10 + $0x18] sm:$0xff]
    %v5577 = vld [vmem:[%s10 + $0x20] sm:$0xff]
    %v5578 = vld [vmem:[%s10 + $0x28] sm:$0xff]
    %v5579 = vld [vmem:[%s10 + $0x30] sm:$0xff]
    %v5580 = vld [vmem:[%s10 + $0x38] sm:$0xff]
    %v5581 = vld [vmem:[%s10 + $0x40] sm:$0xff]
    %v5582 = vld [vmem:[%s10 + $0x48] sm:$0xff]
    %vm5583 = vcmask 654336
    %v5585 = vsel %vm5583, %v5573, 0
    %v5588 = vsel %vm5583, %v5574, 0
    %v5591 = vsel %vm5583, %v5575, 0
    %v5594 = vsel %vm5583, %v5576, 0
    %v5597 = vsel %vm5583, %v5577, 0
    %v5600 = vsel %vm5583, %v5578, 0
    %v5603 = vsel %vm5583, %v5579, 0
    %v5606 = vsel %vm5583, %v5580, 0
    %v5609 = vsel %vm5583, %v5581, 0
    %v5612 = vsel %vm5583, %v5582, 0
    %5614 = vmatprep.subr.mxu0 0.0
    %5615 = vmatpush1.msra.mxu0 %v5401
    %5616 = vmatprep.subr.mxu0 0.0
    %5617 = vmatpush1.msra.mxu0 %v5406
    %5618 = vmatprep.subr.mxu0 0.0
    %5619 = vmatpush1.msra.mxu0 %v5559
    %5620 = vmatprep.subr.mxu0 0.0
    %5621 = vmatpush1.msra.mxu0 %v5564
    %5622 = vmatprep.subr.mxu0 0.0
    %5623 = vmatpush1.msra.mxu0 %v5567
    %5624 = vmatprep.subr.mxu0 0.0
    %5625 = vmatpush1.msra.mxu0 %v5568
    %5626 = vmatprep.subr.mxu0 0.0
    %5627 = vmatpush1.msra.mxu0 %v5569
    %5628 = vmatprep.subr.mxu0 0.0
    %5629 = vmatpush1.msra.mxu0 %v5570
    %5630 = vmatprep.subr.mxu0 0.0
    %5631 = vmatpush1.msra.mxu0 %v5571
    %5632 = vmatprep.subr.mxu0 0.0
    %5633 = vmatpush1.msra.mxu0 %v5572
    %5634 = vmatprep.subr.mxu0 0.0
    %5635 = vmatpush1.msra.mxu0 0.0
    %5636 = vmatprep.subr.mxu0 0.0
    %5637 = vmatpush1.msra.mxu0 0.0
    %5638 = vmatprep.subr.mxu0 0.0
    %5639 = vmatpush1.msra.mxu0 0.0
    %5640 = vmatprep.subr.mxu0 0.0
    %5641 = vmatpush1.msra.mxu0 0.0
    %5642 = vmatprep.subr.mxu0 0.0
    %5643 = vmatpush1.msra.mxu0 0.0
    %5644 = vmatprep.subr.mxu0 0.0
    %5645 = vmatpush1.msra.mxu0 0.0
    %5646 = vmatprep.subr.mxu0 0.0
    %5647 = vmatpush1.msra.mxu0 0.0
    %5648 = vmatprep.subr.mxu0 0.0
    %5649 = vmatpush1.msra.mxu0 0.0
    %5650 = vmatprep.subr.mxu0 0.0
    %5651 = vmatpush1.msra.mxu0 0.0
    %5652 = vmatprep.subr.mxu0 0.0
    %5653 = vmatpush1.msra.mxu0 0.0
    %5654 = vmatprep.subr.mxu0 0.0
    %5655 = vmatpush1.msra.mxu0 0.0
    %5656 = vmatprep.subr.mxu0 0.0
    %5657 = vmatpush1.msra.mxu0 0.0
    %5658 = vmatprep.subr.mxu0 0.0
    %5659 = vmatpush1.msra.mxu0 0.0
    %5660 = vmatprep.subr.mxu0 0.0
    %5661 = vmatpush1.msra.mxu0 0.0
    %5662 = vmatprep.subr.mxu0 0.0
    %5663 = vmatpush1.msra.mxu0 0.0
    %5664 = vmatprep.subr.mxu0 0.0
    %5665 = vmatpush1.msra.mxu0 0.0
    %5666 = vmatprep.subr.mxu0 0.0
    %5667 = vmatpush1.msra.mxu0 0.0
    %5668 = vmatprep.subr.mxu0 0.0
    %5669 = vmatpush1.msra.mxu0 0.0
    %5670 = vmatprep.subr.mxu0 0.0
    %5671 = vmatpush1.msra.mxu0 0.0
    %5672 = vmatprep.subr.mxu0 0.0
    %5673 = vmatpush1.msra.mxu0 0.0
    %5674 = vmatprep.subr.mxu0 0.0
    %5675 = vmatpush1.msra.mxu0 0.0
    %5676 = vmatprep.subr.mxu0 0.0
    %5677 = vmatpush1.msra.mxu0 0.0
    %5678 = vmatprep.mubr.f32.mxu0 0.0
    %5679 = vmatmul.mubr.f32.gmra.mrb[0].mxu0 %v5585
    %v5680 = vpop.f32.mrb[0].mxu0
    %v5681 = vadd.f32 0.0, %v5680
    %v5682 = vpop.f32.mrb[0].mxu0
    %5683 = vmatprep.mubr.f32.mxu0 0.0
    %5684 = vmatmul.mubr.f32.gmra.mrb[0].mxu0 %v5588
    %v5685 = vpop.f32.mrb[0].mxu0
    %v5686 = vadd.f32 0.0, %v5685
    %v5687 = vpop.f32.mrb[0].mxu0
    %5688 = vmatprep.mubr.f32.mxu0 0.0
    %5689 = vmatmul.mubr.f32.gmra.mrb[0].mxu0 %v5591
    %v5690 = vpop.f32.mrb[0].mxu0
    %v5691 = vadd.f32 0.0, %v5690
    %v5692 = vpop.f32.mrb[0].mxu0
    %5693 = vmatprep.mubr.f32.mxu0 0.0
    %5694 = vmatmul.mubr.f32.gmra.mrb[0].mxu0 %v5594
    %v5695 = vpop.f32.mrb[0].mxu0
    %v5696 = vadd.f32 0.0, %v5695
    %v5697 = vpop.f32.mrb[0].mxu0
    %5698 = vmatprep.mubr.f32.mxu0 0.0
    %5699 = vmatmul.mubr.f32.gmra.mrb[0].mxu0 %v5597
    %v5700 = vpop.f32.mrb[0].mxu0
    %v5701 = vadd.f32 0.0, %v5700
    %v5702 = vpop.f32.mrb[0].mxu0
    %5703 = vmatprep.mubr.f32.mxu0 0.0
    %5704 = vmatmul.mubr.f32.gmra.mrb[0].mxu0 %v5600
    %v5705 = vpop.f32.mrb[0].mxu0
    %v5706 = vadd.f32 0.0, %v5705
    %v5707 = vpop.f32.mrb[0].mxu0
    %5708 = vmatprep.mubr.f32.mxu0 0.0
    %5709 = vmatmul.mubr.f32.gmra.mrb[0].mxu0 %v5603
    %v5710 = vpop.f32.mrb[0].mxu0
    %v5711 = vadd.f32 0.0, %v5710
    %v5712 = vpop.f32.mrb[0].mxu0
    %5713 = vmatprep.mubr.f32.mxu0 0.0
    %5714 = vmatmul.mubr.f32.gmra.mrb[0].mxu0 %v5606
    %v5715 = vpop.f32.mrb[0].mxu0
    %v5716 = vadd.f32 0.0, %v5715
    %v5717 = vpop.f32.mrb[0].mxu0
    %5718 = vmatprep.mubr.f32.mxu0 0.0
    %5719 = vmatmul.mubr.f32.gmra.mrb[0].mxu0 %v5609
    %v5720 = vpop.f32.mrb[0].mxu0
    %v5721 = vadd.f32 0.0, %v5720
    %v5722 = vpop.f32.mrb[0].mxu0
    %5723 = vmatprep.mubr.f32.mxu0 0.0
    %5724 = vmatmul.mubr.f32.gmra.mrb[0].mxu0 %v5612
    %v5725 = vpop.f32.mrb[0].mxu0
    %v5726 = vadd.f32 0.0, %v5725
    %v5727 = vpop.f32.mrb[0].mxu0
    %5728 = vdwg.mxu0
    %v5729 = vld [vmem:[%s11] sm:$0xff]
    %v5730 = vld [vmem:[%s11 + $0x8] sm:$0xff]
    %v5731 = vld [vmem:[%s11 + $0x10] sm:$0xff]
    %v5732 = vld [vmem:[%s11 + $0x18] sm:$0xff]
    %v5733 = vld [vmem:[%s11 + $0x20] sm:$0xff]
    %v5734 = vld [vmem:[%s11 + $0x28] sm:$0xff]
    %v5735 = vld [vmem:[%s11 + $0x30] sm:$0xff]
    %v5736 = vld [vmem:[%s11 + $0x38] sm:$0xff]
    %v5737 = vld [vmem:[%s11 + $0x40] sm:$0xff]
    %v5738 = vld [vmem:[%s11 + $0x48] sm:$0xff]
    %v5739 = vld [vmem:[%s11 + $0x50] sm:$0xff]
    %v5740 = vld [vmem:[%s11 + $0x58] sm:$0xff]
    %vm5741 = vcmask 785408
    %v5743 = vsel %vm5741, %v5681, 0
    %v5746 = vsel %vm5741, %v5686, 0
    %v5749 = vsel %vm5741, %v5691, 0
    %v5752 = vsel %vm5741, %v5696, 0
    %v5755 = vsel %vm5741, %v5701, 0
    %v5758 = vsel %vm5741, %v5706, 0
    %v5761 = vsel %vm5741, %v5711, 0
    %v5764 = vsel %vm5741, %v5716, 0
    %v5767 = vsel %vm5741, %v5721, 0
    %v5770 = vsel %vm5741, %v5726, 0
    %5772 = vmatprep.subr.mxu0 0.0
    %5773 = vmatpush1.msra.mxu0 %v5729
    %5774 = vmatprep.subr.mxu0 0.0
    %5775 = vmatpush1.msra.mxu0 %v5730
    %5776 = vmatprep.subr.mxu0 0.0
    %5777 = vmatpush1.msra.mxu0 %v5731
    %5778 = vmatprep.subr.mxu0 0.0
    %5779 = vmatpush1.msra.mxu0 %v5732
    %5780 = vmatprep.subr.mxu0 0.0
    %5781 = vmatpush1.msra.mxu0 %v5733
    %5782 = vmatprep.subr.mxu0 0.0
    %5783 = vmatpush1.msra.mxu0 %v5734
    %5784 = vmatprep.subr.mxu0 0.0
    %5785 = vmatpush1.msra.mxu0 %v5735
    %5786 = vmatprep.subr.mxu0 0.0
    %5787 = vmatpush1.msra.mxu0 %v5736
    %5788 = vmatprep.subr.mxu0 0.0
    %5789 = vmatpush1.msra.mxu0 %v5737
    %5790 = vmatprep.subr.mxu0 0.0
    %5791 = vmatpush1.msra.mxu0 %v5738
    %5792 = vmatprep.subr.mxu0 0.0
    %5793 = vmatpush1.msra.mxu0 %v5739
    %5794 = vmatprep.subr.mxu0 0.0
    %5795 = vmatpush1.msra.mxu0 %v5740
    %5796 = vmatprep.subr.mxu0 0.0
    %5797 = vmatpush1.msra.mxu0 0.0
    %5798 = vmatprep.subr.mxu0 0.0
    %5799 = vmatpush1.msra.mxu0 0.0
    %5800 = vmatprep.subr.mxu0 0.0
    %5801 = vmatpush1.msra.mxu0 0.0
    %5802 = vmatprep.subr.mxu0 0.0
    %5803 = vmatpush1.msra.mxu0 0.0
    %5804 = vmatprep.subr.mxu0 0.0
    %5805 = vmatpush1.msra.mxu0 0.0
    %5806 = vmatprep.subr.mxu0 0.0
    %5807 = vmatpush1.msra.mxu0 0.0
    %5808 = vmatprep.subr.mxu0 0.0
    %5809 = vmatpush1.msra.mxu0 0.0
    %5810 = vmatprep.subr.mxu0 0.0
    %5811 = vmatpush1.msra.mxu0 0.0
    %5812 = vmatprep.subr.mxu0 0.0
    %5813 = vmatpush1.msra.mxu0 0.0
    %5814 = vmatprep.subr.mxu0 0.0
    %5815 = vmatpush1.msra.mxu0 0.0
    %5816 = vmatprep.subr.mxu0 0.0
    %5817 = vmatpush1.msra.mxu0 0.0
    %5818 = vmatprep.subr.mxu0 0.0
    %5819 = vmatpush1.msra.mxu0 0.0
    %5820 = vmatprep.subr.mxu0 0.0
    %5821 = vmatpush1.msra.mxu0 0.0
    %5822 = vmatprep.subr.mxu0 0.0
    %5823 = vmatpush1.msra.mxu0 0.0
    %5824 = vmatprep.subr.mxu0 0.0
    %5825 = vmatpush1.msra.mxu0 0.0
    %5826 = vmatprep.subr.mxu0 0.0
    %5827 = vmatpush1.msra.mxu0 0.0
    %5828 = vmatprep.subr.mxu0 0.0
    %5829 = vmatpush1.msra.mxu0 0.0
    %5830 = vmatprep.subr.mxu0 0.0
    %5831 = vmatpush1.msra.mxu0 0.0
    %5832 = vmatprep.subr.mxu0 0.0
    %5833 = vmatpush1.msra.mxu0 0.0
    %5834 = vmatprep.subr.mxu0 0.0
    %5835 = vmatpush1.msra.mxu0 0.0
    %5836 = vmatprep.mubr.f32.mxu0 0.0
    %5837 = vmatmul.mubr.f32.gmra.mrb[0].mxu0 %v5743
    %v5838 = vpop.f32.mrb[0].mxu0
    %v5839 = vadd.f32 0.0, %v5838
    %v5840 = vpop.f32.mrb[0].mxu0
    %5841 = vmatprep.mubr.f32.mxu0 0.0
    %5842 = vmatmul.mubr.f32.gmra.mrb[0].mxu0 %v5746
    %v5843 = vpop.f32.mrb[0].mxu0
    %v5844 = vadd.f32 0.0, %v5843
    %v5845 = vpop.f32.mrb[0].mxu0
    %5846 = vmatprep.mubr.f32.mxu0 0.0
    %5847 = vmatmul.mubr.f32.gmra.mrb[0].mxu0 %v5749
    %v5848 = vpop.f32.mrb[0].mxu0
    %v5849 = vadd.f32 0.0, %v5848
    %v5850 = vpop.f32.mrb[0].mxu0
    %5851 = vmatprep.mubr.f32.mxu0 0.0
    %5852 = vmatmul.mubr.f32.gmra.mrb[0].mxu0 %v5752
    %v5853 = vpop.f32.mrb[0].mxu0
    %v5854 = vadd.f32 0.0, %v5853
    %v5855 = vpop.f32.mrb[0].mxu0
    %5856 = vmatprep.mubr.f32.mxu0 0.0
    %5857 = vmatmul.mubr.f32.gmra.mrb[0].mxu0 %v5755
    %v5858 = vpop.f32.mrb[0].mxu0
    %v5859 = vadd.f32 0.0, %v5858
    %v5860 = vpop.f32.mrb[0].mxu0
    %5861 = vmatprep.mubr.f32.mxu0 0.0
    %5862 = vmatmul.mubr.f32.gmra.mrb[0].mxu0 %v5758
    %v5863 = vpop.f32.mrb[0].mxu0
    %v5864 = vadd.f32 0.0, %v5863
    %v5865 = vpop.f32.mrb[0].mxu0
    %5866 = vmatprep.mubr.f32.mxu0 0.0
    %5867 = vmatmul.mubr.f32.gmra.mrb[0].mxu0 %v5761
    %v5868 = vpop.f32.mrb[0].mxu0
    %v5869 = vadd.f32 0.0, %v5868
    %v5870 = vpop.f32.mrb[0].mxu0
    %5871 = vmatprep.mubr.f32.mxu0 0.0
    %5872 = vmatmul.mubr.f32.gmra.mrb[0].mxu0 %v5764
    %v5873 = vpop.f32.mrb[0].mxu0
    %v5874 = vadd.f32 0.0, %v5873
    %v5875 = vpop.f32.mrb[0].mxu0
    %5876 = vmatprep.mubr.f32.mxu0 0.0
    %5877 = vmatmul.mubr.f32.gmra.mrb[0].mxu0 %v5767
    %v5878 = vpop.f32.mrb[0].mxu0
    %v5879 = vadd.f32 0.0, %v5878
    %v5880 = vpop.f32.mrb[0].mxu0
    %5881 = vmatprep.mubr.f32.mxu0 0.0
    %5882 = vmatmul.mubr.f32.gmra.mrb[0].mxu0 %v5770
    %v5883 = vpop.f32.mrb[0].mxu0
    %v5884 = vadd.f32 0.0, %v5883
    %v5885 = vpop.f32.mrb[0].mxu0
    %5886 = vdwg.mxu0
    %v5887 = vmul.f32 %v5839, %v5849
    %v5888 = vmul.f32 %v5844, %v5854
    %v5889 = vmul.f32 %v5839, %v5839
    %v5890 = vmul.f32 %v5844, %v5844
    %v5891 = vsub.f32 %v5859, %v5889
    %v5892 = vsub.f32 %v5864, %v5890
    %v5893 = vmul.f32 %v5849, %v5849
    %v5894 = vmul.f32 %v5854, %v5854
    %v5895 = vsub.f32 %v5869, %v5893
    %v5896 = vsub.f32 %v5874, %v5894
    %v5897 = vsub.f32 %v5879, %v5887
    %v5898 = vsub.f32 %v5884, %v5888
    %v5899 = vmul.f32 %v5897, 2.0
    %v5900 = vmul.f32 %v5898, 2.0
    %v5901 = vadd.f32 %v5899, 0.0009
    %v5902 = vadd.f32 %v5900, 0.0009
    %v5903 = vadd.f32 %v5891, %v5895
    %v5904 = vadd.f32 %v5892, %v5896
    %v5905 = vadd.f32 %v5903, 0.0009
    %v5906 = vadd.f32 %v5904, 0.0009
    %v5907 = vrcp.pop %v5905
    %v5908 = vmul.f32 %v5901, %v5907
    %v5909 = vrcp.pop %v5906
    %v5910 = vmul.f32 %v5902, %v5909
    %v5911 = vld [vmem:[%s12] sm:$0xff]
    %v5912 = vld [vmem:[%s12 + $0x8] sm:$0xff]
    %v5913 = vld [vmem:[%s12 + $0x10] sm:$0xff]
    %v5914 = vld [vmem:[%s12 + $0x18] sm:$0xff]
    %v5915 = vld [vmem:[%s12 + $0x20] sm:$0xff]
    %v5916 = vld [vmem:[%s12 + $0x28] sm:$0xff]
    %v5917 = vld [vmem:[%s12 + $0x30] sm:$0xff]
    %v5918 = vld [vmem:[%s12 + $0x38] sm:$0xf]
    %vm5919 = vcmask 490496
    %v5921 = vsel %vm5919, %v5908, 0
    %v5924 = vsel %vm5919, %v5910, 0
    %v5927 = vsel %vm3314, %v5918, 0
    %5929 = vmatprep.subr.mxu0 0.0
    %5930 = vmatpush1.msra.mxu0 %v5911
    %5931 = vmatprep.subr.mxu0 0.0
    %5932 = vmatpush1.msra.mxu0 %v5912
    %5933 = vmatprep.subr.mxu0 0.0
    %5934 = vmatpush1.msra.mxu0 %v5913
    %5935 = vmatprep.subr.mxu0 0.0
    %5936 = vmatpush1.msra.mxu0 %v5914
    %5937 = vmatprep.subr.mxu0 0.0
    %5938 = vmatpush1.msra.mxu0 %v5915
    %5939 = vmatprep.subr.mxu0 0.0
    %5940 = vmatpush1.msra.mxu0 %v5916
    %5941 = vmatprep.subr.mxu0 0.0
    %5942 = vmatpush1.msra.mxu0 %v5917
    %5943 = vmatprep.subr.mxu0 0.0
    %5944 = vmatpush1.msra.mxu0 %v5927
    %5945 = vmatprep.subr.mxu0 0.0
    %5946 = vmatpush1.msra.mxu0 0.0
    %5947 = vmatprep.subr.mxu0 0.0
    %5948 = vmatpush1.msra.mxu0 0.0
    %5949 = vmatprep.subr.mxu0 0.0
    %5950 = vmatpush1.msra.mxu0 0.0
    %5951 = vmatprep.subr.mxu0 0.0
    %5952 = vmatpush1.msra.mxu0 0.0
    %5953 = vmatprep.subr.mxu0 0.0
    %5954 = vmatpush1.msra.mxu0 0.0
    %5955 = vmatprep.subr.mxu0 0.0
    %5956 = vmatpush1.msra.mxu0 0.0
    %5957 = vmatprep.subr.mxu0 0.0
    %5958 = vmatpush1.msra.mxu0 0.0
    %5959 = vmatprep.subr.mxu0 0.0
    %5960 = vmatpush1.msra.mxu0 0.0
    %5961 = vmatprep.subr.mxu0 0.0
    %5962 = vmatpush1.msra.mxu0 0.0
    %5963 = vmatprep.subr.mxu0 0.0
    %5964 = vmatpush1.msra.mxu0 0.0
    %5965 = vmatprep.subr.mxu0 0.0
    %5966 = vmatpush1.msra.mxu0 0.0
    %5967 = vmatprep.subr.mxu0 0.0
    %5968 = vmatpush1.msra.mxu0 0.0
    %5969 = vmatprep.subr.mxu0 0.0
    %5970 = vmatpush1.msra.mxu0 0.0
    %5971 = vmatprep.subr.mxu0 0.0
    %5972 = vmatpush1.msra.mxu0 0.0
    %5973 = vmatprep.subr.mxu0 0.0
    %5974 = vmatpush1.msra.mxu0 0.0
    %5975 = vmatprep.subr.mxu0 0.0
    %5976 = vmatpush1.msra.mxu0 0.0
    %5977 = vmatprep.subr.mxu0 0.0
    %5978 = vmatpush1.msra.mxu0 0.0
    %5979 = vmatprep.subr.mxu0 0.0
    %5980 = vmatpush1.msra.mxu0 0.0
    %5981 = vmatprep.subr.mxu0 0.0
    %5982 = vmatpush1.msra.mxu0 0.0
    %5983 = vmatprep.subr.mxu0 0.0
    %5984 = vmatpush1.msra.mxu0 0.0
    %5985 = vmatprep.subr.mxu0 0.0
    %5986 = vmatpush1.msra.mxu0 0.0
    %5987 = vmatprep.subr.mxu0 0.0
    %5988 = vmatpush1.msra.mxu0 0.0
    %5989 = vmatprep.subr.mxu0 0.0
    %5990 = vmatpush1.msra.mxu0 0.0
    %5991 = vmatprep.subr.mxu0 0.0
    %5992 = vmatpush1.msra.mxu0 0.0
    %5993 = vmatprep.mubr.f32.mxu0 0.0
    %5994 = vmatmul.mubr.f32.gmra.mrb[0].mxu0 %v5921
    %v5995 = vpop.f32.mrb[0].mxu0
    %v5996 = vadd.f32 0.0, %v5995
    %v5997 = vpop.f32.mrb[0].mxu0
    %5998 = vmatprep.mubr.f32.mxu0 0.0
    %5999 = vmatmul.mubr.f32.gmra.mrb[0].mxu0 %v5924
    %v6000 = vpop.f32.mrb[0].mxu0
    %v6001 = vadd.f32 0.0, %v6000
    %v6002 = vpop.f32.mrb[0].mxu0
    %6003 = vdwg.mxu0
    %v6004 = vsel %vm3528, %v5996, 0.0
    %v6005 = vsel %vm3542, %v6001, 0.0
    %v6006 = vadd.f32 %v6004, %v6005
    %v6007 = vrot.slane %v6006, 4
    %v6008 = vadd.f32 %v6006, %v6007
    %v6009 = vrot.slane %v6008, 2
    %v6010 = vadd.f32 %v6008, %v6009
    %v6011 = vrot.slane %v6010, 1
    %v6012 = vadd.f32 %v6010, %v6011
    %v6013 = vmax.f32 %v6012, 0.0
    %v6014 = vmax.f32 %v6013, 1e-30
    %v6015 = vlog2.pop %v6014
    %v6016 = vmul.f32 %v6015, 0.6931472
    %v6017 = vmul.f32 %v6016, 0.3001
    %v6018 = vmul.f32 %v6017, 1.442695
    %v6019 = vpow.pop %v6018
    %vm6020 = vcmp.gt.f32.partialorder %v6013, 0.0
    %v6021 = vsel %vm6020, %v6019, 0.0
    %v6022 = vmul.f32 %v5218, %v6021
    %v6023 = vld [vmem:[%s20] sm:$0xff]
    %v6024 = vld [vmem:[%s21] sm:$0xff]
    %v6025 = vld [vmem:[%s21 + $0x8] sm:$0xff]
    %v6026 = vld [vmem:[%s21 + $0x10] sm:$0xff]
    %v6027 = vld [vmem:[%s21 + $0x18] sm:$0xff]
    %v6028 = vld [vmem:[%s21 + $0x20] sm:$0xff]
    %v6029 = vld [vmem:[%s21 + $0x28] sm:$0xff]
    %v6030 = vld [vmem:[%s21 + $0x30] sm:$0xff]
    %v6031 = vld [vmem:[%s21 + $0x38] sm:$0xff]
    %v6032 = vld [vmem:[%s21 + $0x40] sm:$0xff]
    %v6033 = vld [vmem:[%s21 + $0x48] sm:$0xff]
    %v6034 = vld [vmem:[%s21 + $0x50] sm:$0xff]
    %v6035 = vld [vmem:[%s21 + $0x58] sm:$0xff]
    %vm6036 = vcmask 130048
    %v6038 = vsel %vm6036, %v6023, 0
    %6040 = vmatprep.subr.mxu0 0.0
    %6041 = vmatpush1.msra.mxu0 %v5401
    %6042 = vmatprep.subr.mxu0 0.0
    %6043 = vmatpush1.msra.mxu0 %v5406
    %6044 = vmatprep.subr.mxu0 0.0
    %6045 = vmatpush1.msra.mxu0 0.0
    %6046 = vmatprep.subr.mxu0 0.0
    %6047 = vmatpush1.msra.mxu0 0.0
    %6048 = vmatprep.subr.mxu0 0.0
    %6049 = vmatpush1.msra.mxu0 0.0
    %6050 = vmatprep.subr.mxu0 0.0
    %6051 = vmatpush1.msra.mxu0 0.0
    %6052 = vmatprep.subr.mxu0 0.0
    %6053 = vmatpush1.msra.mxu0 0.0
    %6054 = vmatprep.subr.mxu0 0.0
    %6055 = vmatpush1.msra.mxu0 0.0
    %6056 = vmatprep.subr.mxu0 0.0
    %6057 = vmatpush1.msra.mxu0 0.0
    %6058 = vmatprep.subr.mxu0 0.0
    %6059 = vmatpush1.msra.mxu0 0.0
    %6060 = vmatprep.subr.mxu0 0.0
    %6061 = vmatpush1.msra.mxu0 0.0
    %6062 = vmatprep.subr.mxu0 0.0
    %6063 = vmatpush1.msra.mxu0 0.0
    %6064 = vmatprep.subr.mxu0 0.0
    %6065 = vmatpush1.msra.mxu0 0.0
    %6066 = vmatprep.subr.mxu0 0.0
    %6067 = vmatpush1.msra.mxu0 0.0
    %6068 = vmatprep.subr.mxu0 0.0
    %6069 = vmatpush1.msra.mxu0 0.0
    %6070 = vmatprep.subr.mxu0 0.0
    %6071 = vmatpush1.msra.mxu0 0.0
    %6072 = vmatprep.subr.mxu0 0.0
    %6073 = vmatpush1.msra.mxu0 0.0
    %6074 = vmatprep.subr.mxu0 0.0
    %6075 = vmatpush1.msra.mxu0 0.0
    %6076 = vmatprep.subr.mxu0 0.0
    %6077 = vmatpush1.msra.mxu0 0.0
    %6078 = vmatprep.subr.mxu0 0.0
    %6079 = vmatpush1.msra.mxu0 0.0
    %6080 = vmatprep.subr.mxu0 0.0
    %6081 = vmatpush1.msra.mxu0 0.0
    %6082 = vmatprep.subr.mxu0 0.0
    %6083 = vmatpush1.msra.mxu0 0.0
    %6084 = vmatprep.subr.mxu0 0.0
    %6085 = vmatpush1.msra.mxu0 0.0
    %6086 = vmatprep.subr.mxu0 0.0
    %6087 = vmatpush1.msra.mxu0 0.0
    %6088 = vmatprep.subr.mxu0 0.0
    %6089 = vmatpush1.msra.mxu0 0.0
    %6090 = vmatprep.subr.mxu0 0.0
    %6091 = vmatpush1.msra.mxu0 0.0
    %6092 = vmatprep.subr.mxu0 0.0
    %6093 = vmatpush1.msra.mxu0 0.0
    %6094 = vmatprep.subr.mxu0 0.0
    %6095 = vmatpush1.msra.mxu0 0.0
    %6096 = vmatprep.subr.mxu0 0.0
    %6097 = vmatpush1.msra.mxu0 0.0
    %6098 = vmatprep.subr.mxu0 0.0
    %6099 = vmatpush1.msra.mxu0 0.0
    %6100 = vmatprep.subr.mxu0 0.0
    %6101 = vmatpush1.msra.mxu0 0.0
    %6102 = vmatprep.subr.mxu0 0.0
    %6103 = vmatpush1.msra.mxu0 0.0
    %6104 = vmatprep.mubr.f32.mxu0 0.0
    %6105 = vmatmul.mubr.f32.gmra.mrb[0].mxu0 %v6038
    %v6106 = vpop.f32.mrb[0].mxu0
    %v6107 = vadd.f32 0.0, %v6106
    %v6108 = vpop.f32.mrb[0].mxu0
    %6109 = vdwg.mxu0
    %v6111 = vsel %vm5741, %v6107, 0
    %6113 = vmatprep.subr.mxu0 0.0
    %6114 = vmatpush1.msra.mxu0 %v6024
    %6115 = vmatprep.subr.mxu0 0.0
    %6116 = vmatpush1.msra.mxu0 %v6025
    %6117 = vmatprep.subr.mxu0 0.0
    %6118 = vmatpush1.msra.mxu0 %v6026
    %6119 = vmatprep.subr.mxu0 0.0
    %6120 = vmatpush1.msra.mxu0 %v6027
    %6121 = vmatprep.subr.mxu0 0.0
    %6122 = vmatpush1.msra.mxu0 %v6028
    %6123 = vmatprep.subr.mxu0 0.0
    %6124 = vmatpush1.msra.mxu0 %v6029
    %6125 = vmatprep.subr.mxu0 0.0
    %6126 = vmatpush1.msra.mxu0 %v6030
    %6127 = vmatprep.subr.mxu0 0.0
    %6128 = vmatpush1.msra.mxu0 %v6031
    %6129 = vmatprep.subr.mxu0 0.0
    %6130 = vmatpush1.msra.mxu0 %v6032
    %6131 = vmatprep.subr.mxu0 0.0
    %6132 = vmatpush1.msra.mxu0 %v6033
    %6133 = vmatprep.subr.mxu0 0.0
    %6134 = vmatpush1.msra.mxu0 %v6034
    %6135 = vmatprep.subr.mxu0 0.0
    %6136 = vmatpush1.msra.mxu0 %v6035
    %6137 = vmatprep.subr.mxu0 0.0
    %6138 = vmatpush1.msra.mxu0 0.0
    %6139 = vmatprep.subr.mxu0 0.0
    %6140 = vmatpush1.msra.mxu0 0.0
    %6141 = vmatprep.subr.mxu0 0.0
    %6142 = vmatpush1.msra.mxu0 0.0
    %6143 = vmatprep.subr.mxu0 0.0
    %6144 = vmatpush1.msra.mxu0 0.0
    %6145 = vmatprep.subr.mxu0 0.0
    %6146 = vmatpush1.msra.mxu0 0.0
    %6147 = vmatprep.subr.mxu0 0.0
    %6148 = vmatpush1.msra.mxu0 0.0
    %6149 = vmatprep.subr.mxu0 0.0
    %6150 = vmatpush1.msra.mxu0 0.0
    %6151 = vmatprep.subr.mxu0 0.0
    %6152 = vmatpush1.msra.mxu0 0.0
    %6153 = vmatprep.subr.mxu0 0.0
    %6154 = vmatpush1.msra.mxu0 0.0
    %6155 = vmatprep.subr.mxu0 0.0
    %6156 = vmatpush1.msra.mxu0 0.0
    %6157 = vmatprep.subr.mxu0 0.0
    %6158 = vmatpush1.msra.mxu0 0.0
    %6159 = vmatprep.subr.mxu0 0.0
    %6160 = vmatpush1.msra.mxu0 0.0
    %6161 = vmatprep.subr.mxu0 0.0
    %6162 = vmatpush1.msra.mxu0 0.0
    %6163 = vmatprep.subr.mxu0 0.0
    %6164 = vmatpush1.msra.mxu0 0.0
    %6165 = vmatprep.subr.mxu0 0.0
    %6166 = vmatpush1.msra.mxu0 0.0
    %6167 = vmatprep.subr.mxu0 0.0
    %6168 = vmatpush1.msra.mxu0 0.0
    %6169 = vmatprep.subr.mxu0 0.0
    %6170 = vmatpush1.msra.mxu0 0.0
    %6171 = vmatprep.subr.mxu0 0.0
    %6172 = vmatpush1.msra.mxu0 0.0
    %6173 = vmatprep.subr.mxu0 0.0
    %6174 = vmatpush1.msra.mxu0 0.0
    %6175 = vmatprep.subr.mxu0 0.0
    %6176 = vmatpush1.msra.mxu0 0.0
    %6177 = vmatprep.mubr.f32.mxu0 0.0
    %6178 = vmatmul.mubr.f32.gmra.mrb[0].mxu0 %v6111
    %v6179 = vpop.f32.mrb[0].mxu0
    %v6180 = vadd.f32 0.0, %v6179
    %v6181 = vpop.f32.mrb[0].mxu0
    %6182 = vdwg.mxu0
    %6183 = vmatprep.subr.mxu0 0.0
    %6184 = vmatpush1.msra.mxu0 %v5559
    %6185 = vmatprep.subr.mxu0 0.0
    %6186 = vmatpush1.msra.mxu0 %v5564
    %6187 = vmatprep.subr.mxu0 0.0
    %6188 = vmatpush1.msra.mxu0 0.0
    %6189 = vmatprep.subr.mxu0 0.0
    %6190 = vmatpush1.msra.mxu0 0.0
    %6191 = vmatprep.subr.mxu0 0.0
    %6192 = vmatpush1.msra.mxu0 0.0
    %6193 = vmatprep.subr.mxu0 0.0
    %6194 = vmatpush1.msra.mxu0 0.0
    %6195 = vmatprep.subr.mxu0 0.0
    %6196 = vmatpush1.msra.mxu0 0.0
    %6197 = vmatprep.subr.mxu0 0.0
    %6198 = vmatpush1.msra.mxu0 0.0
    %6199 = vmatprep.subr.mxu0 0.0
    %6200 = vmatpush1.msra.mxu0 0.0
    %6201 = vmatprep.subr.mxu0 0.0
    %6202 = vmatpush1.msra.mxu0 0.0
    %6203 = vmatprep.subr.mxu0 0.0
    %6204 = vmatpush1.msra.mxu0 0.0
    %6205 = vmatprep.subr.mxu0 0.0
    %6206 = vmatpush1.msra.mxu0 0.0
    %6207 = vmatprep.subr.mxu0 0.0
    %6208 = vmatpush1.msra.mxu0 0.0
    %6209 = vmatprep.subr.mxu0 0.0
    %6210 = vmatpush1.msra.mxu0 0.0
    %6211 = vmatprep.subr.mxu0 0.0
    %6212 = vmatpush1.msra.mxu0 0.0
    %6213 = vmatprep.subr.mxu0 0.0
    %6214 = vmatpush1.msra.mxu0 0.0
    %6215 = vmatprep.subr.mxu0 0.0
    %6216 = vmatpush1.msra.mxu0 0.0
    %6217 = vmatprep.subr.mxu0 0.0
    %6218 = vmatpush1.msra.mxu0 0.0
    %6219 = vmatprep.subr.mxu0 0.0
    %6220 = vmatpush1.msra.mxu0 0.0
    %6221 = vmatprep.subr.mxu0 0.0
    %6222 = vmatpush1.msra.mxu0 0.0
    %6223 = vmatprep.subr.mxu0 0.0
    %6224 = vmatpush1.msra.mxu0 0.0
    %6225 = vmatprep.subr.mxu0 0.0
    %6226 = vmatpush1.msra.mxu0 0.0
    %6227 = vmatprep.subr.mxu0 0.0
    %6228 = vmatpush1.msra.mxu0 0.0
    %6229 = vmatprep.subr.mxu0 0.0
    %6230 = vmatpush1.msra.mxu0 0.0
    %6231 = vmatprep.subr.mxu0 0.0
    %6232 = vmatpush1.msra.mxu0 0.0
    %6233 = vmatprep.subr.mxu0 0.0
    %6234 = vmatpush1.msra.mxu0 0.0
    %6235 = vmatprep.subr.mxu0 0.0
    %6236 = vmatpush1.msra.mxu0 0.0
    %6237 = vmatprep.subr.mxu0 0.0
    %6238 = vmatpush1.msra.mxu0 0.0
    %6239 = vmatprep.subr.mxu0 0.0
    %6240 = vmatpush1.msra.mxu0 0.0
    %6241 = vmatprep.subr.mxu0 0.0
    %6242 = vmatpush1.msra.mxu0 0.0
    %6243 = vmatprep.subr.mxu0 0.0
    %6244 = vmatpush1.msra.mxu0 0.0
    %6245 = vmatprep.subr.mxu0 0.0
    %6246 = vmatpush1.msra.mxu0 0.0
    %6247 = vmatprep.mubr.f32.mxu0 0.0
    %6248 = vmatmul.mubr.f32.gmra.mrb[0].mxu0 %v6038
    %v6249 = vpop.f32.mrb[0].mxu0
    %v6250 = vadd.f32 0.0, %v6249
    %v6251 = vpop.f32.mrb[0].mxu0
    %6252 = vdwg.mxu0
    %v6254 = vsel %vm5741, %v6250, 0
    %6256 = vmatprep.subr.mxu0 0.0
    %6257 = vmatpush1.msra.mxu0 %v6024
    %6258 = vmatprep.subr.mxu0 0.0
    %6259 = vmatpush1.msra.mxu0 %v6025
    %6260 = vmatprep.subr.mxu0 0.0
    %6261 = vmatpush1.msra.mxu0 %v6026
    %6262 = vmatprep.subr.mxu0 0.0
    %6263 = vmatpush1.msra.mxu0 %v6027
    %6264 = vmatprep.subr.mxu0 0.0
    %6265 = vmatpush1.msra.mxu0 %v6028
    %6266 = vmatprep.subr.mxu0 0.0
    %6267 = vmatpush1.msra.mxu0 %v6029
    %6268 = vmatprep.subr.mxu0 0.0
    %6269 = vmatpush1.msra.mxu0 %v6030
    %6270 = vmatprep.subr.mxu0 0.0
    %6271 = vmatpush1.msra.mxu0 %v6031
    %6272 = vmatprep.subr.mxu0 0.0
    %6273 = vmatpush1.msra.mxu0 %v6032
    %6274 = vmatprep.subr.mxu0 0.0
    %6275 = vmatpush1.msra.mxu0 %v6033
    %6276 = vmatprep.subr.mxu0 0.0
    %6277 = vmatpush1.msra.mxu0 %v6034
    %6278 = vmatprep.subr.mxu0 0.0
    %6279 = vmatpush1.msra.mxu0 %v6035
    %6280 = vmatprep.subr.mxu0 0.0
    %6281 = vmatpush1.msra.mxu0 0.0
    %6282 = vmatprep.subr.mxu0 0.0
    %6283 = vmatpush1.msra.mxu0 0.0
    %6284 = vmatprep.subr.mxu0 0.0
    %6285 = vmatpush1.msra.mxu0 0.0
    %6286 = vmatprep.subr.mxu0 0.0
    %6287 = vmatpush1.msra.mxu0 0.0
    %6288 = vmatprep.subr.mxu0 0.0
    %6289 = vmatpush1.msra.mxu0 0.0
    %6290 = vmatprep.subr.mxu0 0.0
    %6291 = vmatpush1.msra.mxu0 0.0
    %6292 = vmatprep.subr.mxu0 0.0
    %6293 = vmatpush1.msra.mxu0 0.0
    %6294 = vmatprep.subr.mxu0 0.0
    %6295 = vmatpush1.msra.mxu0 0.0
    %6296 = vmatprep.subr.mxu0 0.0
    %6297 = vmatpush1.msra.mxu0 0.0
    %6298 = vmatprep.subr.mxu0 0.0
    %6299 = vmatpush1.msra.mxu0 0.0
    %6300 = vmatprep.subr.mxu0 0.0
    %6301 = vmatpush1.msra.mxu0 0.0
    %6302 = vmatprep.subr.mxu0 0.0
    %6303 = vmatpush1.msra.mxu0 0.0
    %6304 = vmatprep.subr.mxu0 0.0
    %6305 = vmatpush1.msra.mxu0 0.0
    %6306 = vmatprep.subr.mxu0 0.0
    %6307 = vmatpush1.msra.mxu0 0.0
    %6308 = vmatprep.subr.mxu0 0.0
    %6309 = vmatpush1.msra.mxu0 0.0
    %6310 = vmatprep.subr.mxu0 0.0
    %6311 = vmatpush1.msra.mxu0 0.0
    %6312 = vmatprep.subr.mxu0 0.0
    %6313 = vmatpush1.msra.mxu0 0.0
    %6314 = vmatprep.subr.mxu0 0.0
    %6315 = vmatpush1.msra.mxu0 0.0
    %6316 = vmatprep.subr.mxu0 0.0
    %6317 = vmatpush1.msra.mxu0 0.0
    %6318 = vmatprep.subr.mxu0 0.0
    %6319 = vmatpush1.msra.mxu0 0.0
    %6320 = vmatprep.mubr.f32.mxu0 0.0
    %6321 = vmatmul.mubr.f32.gmra.mrb[0].mxu0 %v6254
    %v6322 = vpop.f32.mrb[0].mxu0
    %v6323 = vadd.f32 0.0, %v6322
    %v6324 = vpop.f32.mrb[0].mxu0
    %6325 = vdwg.mxu0
    %v6326 = vmul.f32 %v6180, %v6180
    %v6327 = vmul.f32 %v6323, %v6323
    %v6328 = vmul.f32 %v6180, %v6323
    %v6329 = vld [vmem:[%s13] sm:$0xff]
    %v6330 = vld [vmem:[%s13 + $0x8] sm:$0xff]
    %v6331 = vld [vmem:[%s13 + $0x10] sm:$0xff]
    %v6332 = vld [vmem:[%s13 + $0x18] sm:$0xff]
    %v6333 = vld [vmem:[%s13 + $0x20] sm:$0xff]
    %vm6334 = vcmask 326656
    %v6336 = vsel %vm6334, %v6329, 0
    %v6339 = vsel %vm6334, %v6330, 0
    %v6342 = vsel %vm6334, %v6331, 0
    %v6345 = vsel %vm6334, %v6332, 0
    %v6348 = vsel %vm6334, %v6333, 0
    %6350 = vmatprep.subr.mxu0 0.0
    %6351 = vmatpush1.msra.mxu0 %v6180
    %6352 = vmatprep.subr.mxu0 0.0
    %6353 = vmatpush1.msra.mxu0 %v6323
    %6354 = vmatprep.subr.mxu0 0.0
    %6355 = vmatpush1.msra.mxu0 %v6326
    %6356 = vmatprep.subr.mxu0 0.0
    %6357 = vmatpush1.msra.mxu0 %v6327
    %6358 = vmatprep.subr.mxu0 0.0
    %6359 = vmatpush1.msra.mxu0 %v6328
    %6360 = vmatprep.subr.mxu0 0.0
    %6361 = vmatpush1.msra.mxu0 0.0
    %6362 = vmatprep.subr.mxu0 0.0
    %6363 = vmatpush1.msra.mxu0 0.0
    %6364 = vmatprep.subr.mxu0 0.0
    %6365 = vmatpush1.msra.mxu0 0.0
    %6366 = vmatprep.subr.mxu0 0.0
    %6367 = vmatpush1.msra.mxu0 0.0
    %6368 = vmatprep.subr.mxu0 0.0
    %6369 = vmatpush1.msra.mxu0 0.0
    %6370 = vmatprep.subr.mxu0 0.0
    %6371 = vmatpush1.msra.mxu0 0.0
    %6372 = vmatprep.subr.mxu0 0.0
    %6373 = vmatpush1.msra.mxu0 0.0
    %6374 = vmatprep.subr.mxu0 0.0
    %6375 = vmatpush1.msra.mxu0 0.0
    %6376 = vmatprep.subr.mxu0 0.0
    %6377 = vmatpush1.msra.mxu0 0.0
    %6378 = vmatprep.subr.mxu0 0.0
    %6379 = vmatpush1.msra.mxu0 0.0
    %6380 = vmatprep.subr.mxu0 0.0
    %6381 = vmatpush1.msra.mxu0 0.0
    %6382 = vmatprep.subr.mxu0 0.0
    %6383 = vmatpush1.msra.mxu0 0.0
    %6384 = vmatprep.subr.mxu0 0.0
    %6385 = vmatpush1.msra.mxu0 0.0
    %6386 = vmatprep.subr.mxu0 0.0
    %6387 = vmatpush1.msra.mxu0 0.0
    %6388 = vmatprep.subr.mxu0 0.0
    %6389 = vmatpush1.msra.mxu0 0.0
    %6390 = vmatprep.subr.mxu0 0.0
    %6391 = vmatpush1.msra.mxu0 0.0
    %6392 = vmatprep.subr.mxu0 0.0
    %6393 = vmatpush1.msra.mxu0 0.0
    %6394 = vmatprep.subr.mxu0 0.0
    %6395 = vmatpush1.msra.mxu0 0.0
    %6396 = vmatprep.subr.mxu0 0.0
    %6397 = vmatpush1.msra.mxu0 0.0
    %6398 = vmatprep.subr.mxu0 0.0
    %6399 = vmatpush1.msra.mxu0 0.0
    %6400 = vmatprep.subr.mxu0 0.0
    %6401 = vmatpush1.msra.mxu0 0.0
    %6402 = vmatprep.subr.mxu0 0.0
    %6403 = vmatpush1.msra.mxu0 0.0
    %6404 = vmatprep.subr.mxu0 0.0
    %6405 = vmatpush1.msra.mxu0 0.0
    %6406 = vmatprep.subr.mxu0 0.0
    %6407 = vmatpush1.msra.mxu0 0.0
    %6408 = vmatprep.subr.mxu0 0.0
    %6409 = vmatpush1.msra.mxu0 0.0
    %6410 = vmatprep.subr.mxu0 0.0
    %6411 = vmatpush1.msra.mxu0 0.0
    %6412 = vmatprep.subr.mxu0 0.0
    %6413 = vmatpush1.msra.mxu0 0.0
    %6414 = vmatprep.mubr.f32.mxu0 0.0
    %6415 = vmatmul.mubr.f32.gmra.mrb[0].mxu0 %v6336
    %v6416 = vpop.f32.mrb[0].mxu0
    %v6417 = vadd.f32 0.0, %v6416
    %v6418 = vpop.f32.mrb[0].mxu0
    %6419 = vmatprep.mubr.f32.mxu0 0.0
    %6420 = vmatmul.mubr.f32.gmra.mrb[0].mxu0 %v6339
    %v6421 = vpop.f32.mrb[0].mxu0
    %v6422 = vadd.f32 0.0, %v6421
    %v6423 = vpop.f32.mrb[0].mxu0
    %6424 = vmatprep.mubr.f32.mxu0 0.0
    %6425 = vmatmul.mubr.f32.gmra.mrb[0].mxu0 %v6342
    %v6426 = vpop.f32.mrb[0].mxu0
    %v6427 = vadd.f32 0.0, %v6426
    %v6428 = vpop.f32.mrb[0].mxu0
    %6429 = vmatprep.mubr.f32.mxu0 0.0
    %6430 = vmatmul.mubr.f32.gmra.mrb[0].mxu0 %v6345
    %v6431 = vpop.f32.mrb[0].mxu0
    %v6432 = vadd.f32 0.0, %v6431
    %v6433 = vpop.f32.mrb[0].mxu0
    %6434 = vmatprep.mubr.f32.mxu0 0.0
    %6435 = vmatmul.mubr.f32.gmra.mrb[0].mxu0 %v6348
    %v6436 = vpop.f32.mrb[0].mxu0
    %v6437 = vadd.f32 0.0, %v6436
    %v6438 = vpop.f32.mrb[0].mxu0
    %6439 = vdwg.mxu0
    %v6440 = vld [vmem:[%s14] sm:$0xff]
    %v6441 = vld [vmem:[%s14 + $0x8] sm:$0xff]
    %v6442 = vld [vmem:[%s14 + $0x10] sm:$0xff]
    %v6443 = vld [vmem:[%s14 + $0x18] sm:$0xff]
    %v6444 = vld [vmem:[%s14 + $0x20] sm:$0xff]
    %v6445 = vld [vmem:[%s14 + $0x28] sm:$0xff]
    %vm6446 = vcmask 392192
    %v6448 = vsel %vm6446, %v6417, 0
    %v6451 = vsel %vm6446, %v6422, 0
    %v6454 = vsel %vm6446, %v6427, 0
    %v6457 = vsel %vm6446, %v6432, 0
    %v6460 = vsel %vm6446, %v6437, 0
    %6462 = vmatprep.subr.mxu0 0.0
    %6463 = vmatpush1.msra.mxu0 %v6440
    %6464 = vmatprep.subr.mxu0 0.0
    %6465 = vmatpush1.msra.mxu0 %v6441
    %6466 = vmatprep.subr.mxu0 0.0
    %6467 = vmatpush1.msra.mxu0 %v6442
    %6468 = vmatprep.subr.mxu0 0.0
    %6469 = vmatpush1.msra.mxu0 %v6443
    %6470 = vmatprep.subr.mxu0 0.0
    %6471 = vmatpush1.msra.mxu0 %v6444
    %6472 = vmatprep.subr.mxu0 0.0
    %6473 = vmatpush1.msra.mxu0 %v6445
    %6474 = vmatprep.subr.mxu0 0.0
    %6475 = vmatpush1.msra.mxu0 0.0
    %6476 = vmatprep.subr.mxu0 0.0
    %6477 = vmatpush1.msra.mxu0 0.0
    %6478 = vmatprep.subr.mxu0 0.0
    %6479 = vmatpush1.msra.mxu0 0.0
    %6480 = vmatprep.subr.mxu0 0.0
    %6481 = vmatpush1.msra.mxu0 0.0
    %6482 = vmatprep.subr.mxu0 0.0
    %6483 = vmatpush1.msra.mxu0 0.0
    %6484 = vmatprep.subr.mxu0 0.0
    %6485 = vmatpush1.msra.mxu0 0.0
    %6486 = vmatprep.subr.mxu0 0.0
    %6487 = vmatpush1.msra.mxu0 0.0
    %6488 = vmatprep.subr.mxu0 0.0
    %6489 = vmatpush1.msra.mxu0 0.0
    %6490 = vmatprep.subr.mxu0 0.0
    %6491 = vmatpush1.msra.mxu0 0.0
    %6492 = vmatprep.subr.mxu0 0.0
    %6493 = vmatpush1.msra.mxu0 0.0
    %6494 = vmatprep.subr.mxu0 0.0
    %6495 = vmatpush1.msra.mxu0 0.0
    %6496 = vmatprep.subr.mxu0 0.0
    %6497 = vmatpush1.msra.mxu0 0.0
    %6498 = vmatprep.subr.mxu0 0.0
    %6499 = vmatpush1.msra.mxu0 0.0
    %6500 = vmatprep.subr.mxu0 0.0
    %6501 = vmatpush1.msra.mxu0 0.0
    %6502 = vmatprep.subr.mxu0 0.0
    %6503 = vmatpush1.msra.mxu0 0.0
    %6504 = vmatprep.subr.mxu0 0.0
    %6505 = vmatpush1.msra.mxu0 0.0
    %6506 = vmatprep.subr.mxu0 0.0
    %6507 = vmatpush1.msra.mxu0 0.0
    %6508 = vmatprep.subr.mxu0 0.0
    %6509 = vmatpush1.msra.mxu0 0.0
    %6510 = vmatprep.subr.mxu0 0.0
    %6511 = vmatpush1.msra.mxu0 0.0
    %6512 = vmatprep.subr.mxu0 0.0
    %6513 = vmatpush1.msra.mxu0 0.0
    %6514 = vmatprep.subr.mxu0 0.0
    %6515 = vmatpush1.msra.mxu0 0.0
    %6516 = vmatprep.subr.mxu0 0.0
    %6517 = vmatpush1.msra.mxu0 0.0
    %6518 = vmatprep.subr.mxu0 0.0
    %6519 = vmatpush1.msra.mxu0 0.0
    %6520 = vmatprep.subr.mxu0 0.0
    %6521 = vmatpush1.msra.mxu0 0.0
    %6522 = vmatprep.subr.mxu0 0.0
    %6523 = vmatpush1.msra.mxu0 0.0
    %6524 = vmatprep.subr.mxu0 0.0
    %6525 = vmatpush1.msra.mxu0 0.0
    %6526 = vmatprep.mubr.f32.mxu0 0.0
    %6527 = vmatmul.mubr.f32.gmra.mrb[0].mxu0 %v6448
    %v6528 = vpop.f32.mrb[0].mxu0
    %v6529 = vadd.f32 0.0, %v6528
    %v6530 = vpop.f32.mrb[0].mxu0
    %6531 = vmatprep.mubr.f32.mxu0 0.0
    %6532 = vmatmul.mubr.f32.gmra.mrb[0].mxu0 %v6451
    %v6533 = vpop.f32.mrb[0].mxu0
    %v6534 = vadd.f32 0.0, %v6533
    %v6535 = vpop.f32.mrb[0].mxu0
    %6536 = vmatprep.mubr.f32.mxu0 0.0
    %6537 = vmatmul.mubr.f32.gmra.mrb[0].mxu0 %v6454
    %v6538 = vpop.f32.mrb[0].mxu0
    %v6539 = vadd.f32 0.0, %v6538
    %v6540 = vpop.f32.mrb[0].mxu0
    %6541 = vmatprep.mubr.f32.mxu0 0.0
    %6542 = vmatmul.mubr.f32.gmra.mrb[0].mxu0 %v6457
    %v6543 = vpop.f32.mrb[0].mxu0
    %v6544 = vadd.f32 0.0, %v6543
    %v6545 = vpop.f32.mrb[0].mxu0
    %6546 = vmatprep.mubr.f32.mxu0 0.0
    %6547 = vmatmul.mubr.f32.gmra.mrb[0].mxu0 %v6460
    %v6548 = vpop.f32.mrb[0].mxu0
    %v6549 = vadd.f32 0.0, %v6548
    %v6550 = vpop.f32.mrb[0].mxu0
    %6551 = vdwg.mxu0
    %v6552 = vmul.f32 %v6529, %v6534
    %v6553 = vmul.f32 %v6529, %v6529
    %v6554 = vsub.f32 %v6539, %v6553
    %v6555 = vmul.f32 %v6534, %v6534
    %v6556 = vsub.f32 %v6544, %v6555
    %v6557 = vsub.f32 %v6549, %v6552
    %v6558 = vmul.f32 %v6557, 2.0
    %v6559 = vadd.f32 %v6558, 0.0009
    %v6560 = vadd.f32 %v6554, %v6556
    %v6561 = vadd.f32 %v6560, 0.0009
    %v6562 = vrcp.pop %v6561
    %v6563 = vmul.f32 %v6559, %v6562
    %v6564 = vmul.f32 %v6552, 2.0
    %v6565 = vadd.f32 %v6564, 0.0001
    %v6566 = vadd.f32 %v6553, %v6555
    %v6567 = vadd.f32 %v6566, 0.0001
    %v6568 = vrcp.pop %v6567
    %v6569 = vmul.f32 %v6565, %v6568
    %v6570 = vmul.f32 %v6569, %v6563
    %v6571 = vld [vmem:[%s15] sm:$0xff]
    %v6572 = vld [vmem:[%s15 + $0x8] sm:$0xf]
    %vm6573 = vcmask 97280
    %v6575 = vsel %vm6573, %v6570, 0
    %v6578 = vsel %vm3314, %v6572, 0
    %6580 = vmatprep.subr.mxu0 0.0
    %6581 = vmatpush1.msra.mxu0 %v6571
    %6582 = vmatprep.subr.mxu0 0.0
    %6583 = vmatpush1.msra.mxu0 %v6578
    %6584 = vmatprep.subr.mxu0 0.0
    %6585 = vmatpush1.msra.mxu0 0.0
    %6586 = vmatprep.subr.mxu0 0.0
    %6587 = vmatpush1.msra.mxu0 0.0
    %6588 = vmatprep.subr.mxu0 0.0
    %6589 = vmatpush1.msra.mxu0 0.0
    %6590 = vmatprep.subr.mxu0 0.0
    %6591 = vmatpush1.msra.mxu0 0.0
    %6592 = vmatprep.subr.mxu0 0.0
    %6593 = vmatpush1.msra.mxu0 0.0
    %6594 = vmatprep.subr.mxu0 0.0
    %6595 = vmatpush1.msra.mxu0 0.0
    %6596 = vmatprep.subr.mxu0 0.0
    %6597 = vmatpush1.msra.mxu0 0.0
    %6598 = vmatprep.subr.mxu0 0.0
    %6599 = vmatpush1.msra.mxu0 0.0
    %6600 = vmatprep.subr.mxu0 0.0
    %6601 = vmatpush1.msra.mxu0 0.0
    %6602 = vmatprep.subr.mxu0 0.0
    %6603 = vmatpush1.msra.mxu0 0.0
    %6604 = vmatprep.subr.mxu0 0.0
    %6605 = vmatpush1.msra.mxu0 0.0
    %6606 = vmatprep.subr.mxu0 0.0
    %6607 = vmatpush1.msra.mxu0 0.0
    %6608 = vmatprep.subr.mxu0 0.0
    %6609 = vmatpush1.msra.mxu0 0.0
    %6610 = vmatprep.subr.mxu0 0.0
    %6611 = vmatpush1.msra.mxu0 0.0
    %6612 = vmatprep.subr.mxu0 0.0
    %6613 = vmatpush1.msra.mxu0 0.0
    %6614 = vmatprep.subr.mxu0 0.0
    %6615 = vmatpush1.msra.mxu0 0.0
    %6616 = vmatprep.subr.mxu0 0.0
    %6617 = vmatpush1.msra.mxu0 0.0
    %6618 = vmatprep.subr.mxu0 0.0
    %6619 = vmatpush1.msra.mxu0 0.0
    %6620 = vmatprep.subr.mxu0 0.0
    %6621 = vmatpush1.msra.mxu0 0.0
    %6622 = vmatprep.subr.mxu0 0.0
    %6623 = vmatpush1.msra.mxu0 0.0
    %6624 = vmatprep.subr.mxu0 0.0
    %6625 = vmatpush1.msra.mxu0 0.0
    %6626 = vmatprep.subr.mxu0 0.0
    %6627 = vmatpush1.msra.mxu0 0.0
    %6628 = vmatprep.subr.mxu0 0.0
    %6629 = vmatpush1.msra.mxu0 0.0
    %6630 = vmatprep.subr.mxu0 0.0
    %6631 = vmatpush1.msra.mxu0 0.0
    %6632 = vmatprep.subr.mxu0 0.0
    %6633 = vmatpush1.msra.mxu0 0.0
    %6634 = vmatprep.subr.mxu0 0.0
    %6635 = vmatpush1.msra.mxu0 0.0
    %6636 = vmatprep.subr.mxu0 0.0
    %6637 = vmatpush1.msra.mxu0 0.0
    %6638 = vmatprep.subr.mxu0 0.0
    %6639 = vmatpush1.msra.mxu0 0.0
    %6640 = vmatprep.subr.mxu0 0.0
    %6641 = vmatpush1.msra.mxu0 0.0
    %6642 = vmatprep.subr.mxu0 0.0
    %6643 = vmatpush1.msra.mxu0 0.0
    %6644 = vmatprep.mubr.f32.mxu0 0.0
    %6645 = vmatmul.mubr.f32.gmra.mrb[0].mxu0 %v6575
    %v6646 = vpop.f32.mrb[0].mxu0
    %v6647 = vadd.f32 0.0, %v6646
    %v6648 = vpop.f32.mrb[0].mxu0
    %6649 = vdwg.mxu0
    %v6650 = vsel %vm3542, %v6647, 0.0
    %v6651 = vrot.slane %v6650, 4
    %v6652 = vadd.f32 %v6650, %v6651
    %v6653 = vrot.slane %v6652, 2
    %v6654 = vadd.f32 %v6652, %v6653
    %v6655 = vrot.slane %v6654, 1
    %v6656 = vadd.f32 %v6654, %v6655
    %v6657 = vmax.f32 %v6656, 0.0
    %v6658 = vmax.f32 %v6657, 1e-30
    %v6659 = vlog2.pop %v6658
    %v6660 = vmul.f32 %v6659, 0.6931472
    %v6661 = vmul.f32 %v6660, 0.2363
    %v6662 = vmul.f32 %v6661, 1.442695
    %v6663 = vpow.pop %v6662
    %vm6664 = vcmp.gt.f32.partialorder %v6657, 0.0
    %v6665 = vsel %vm6664, %v6663, 0.0
    %v6666 = vmul.f32 %v6022, %v6665
    %vm6667 = vcmask 40960
    %v6668 = vsel %vm6667, %v6666, 0.0
    %6669 = vadd.xlane.f32.xlu0 %v6668
    %v6670 = vpop.xlane.xlu0 %6669
    %v6671 = vrot.slane %v6670, 4
    %v6672 = vadd.f32 %v6670, %v6671
    %v6673 = vrot.slane %v6672, 2
    %v6674 = vadd.f32 %v6672, %v6673
    %v6675 = vrot.slane %v6674, 1
    %v6676 = vadd.f32 %v6674, %v6675
    %s6677 = vtos %v6676
    %v6678 = vrcp.pop 6.0
    %s6679 = vtos %v6678
    %s6680 = smul.f32 %s6677, %s6679
    %s6681 = sadd.f32 %s199, %s219
    %s6682 = smul.f32 %s6680, 0.5
    %s6683 = sadd.f32 %s6681, %s6682
    %s6684 = scalar_lea.smem [#allocation2], 0
    %6685 = sst [smem:[%s6684]] %s6683
    // Predicated region
    $region90: #{tpu_custom_call.1} parent=1 // pred_check
      _
    $region91: #{tpu_custom_call.1} parent=1 // pred_check_branch
      %6687 = sbr.rel (0) target = $region93
    $region92: #{tpu_custom_call.1} parent=1 // pred_region
      %s6689 = ssub.s32 16, 16
      %6690 = vsyncadd [#allocation3], %s6689
      %6693 = dma.smem_to_hbm [#allocation2], 16, %s22, [#allocation3]
    $region93: #{tpu_custom_call.1} parent=1 // pred_fallthru
      _
    // Predicated region
    $region94: #{tpu_custom_call.1} parent=1 // pred_check
      _
    $region95: #{tpu_custom_call.1} parent=1 // pred_check_branch
      %6695 = sbr.rel (0) target = $region97
    $region96: #{tpu_custom_call.1} parent=1 // pred_region
      %6696 = dma.done [#allocation3], 16
    $region97: #{tpu_custom_call.1} parent=1 // pred_fallthru
      _
    %6697 = sfence
    %6698 = vsyncpa [#allocation3], 1

</llo_original>
